<compile_context>
chip_gen: v7x
topology: tpu7x:2x2x1
jax: 0.10.0
libtpu: 0.0.40
codegen_flags: <defaults>
</compile_context>

<pallas_src>
import functools
import numpy as np

import jax
import jax.numpy as jnp
from jax.experimental import pallas as pl
from jax.experimental.pallas import tpu as pltpu

# ----------------------------- config (small synthetic sizes) ----------------
IGNORE_ID = -1
SOS_EOS = 0
TASK_ID = 1

B = 2
TEXT_VOCAB = 50
D = 128                  # llm_input_size == llm_output_size (lane-dense)
NUM_HEADS = 2
HEAD_DIM = D // NUM_HEADS
FFN = 256
NUM_LAYERS = 2
SPEECH_TOKEN_SIZE = 13   # vocab for decoder = speech_token_size + 3 = 16
VOCAB_OUT = SPEECH_TOKEN_SIZE + 3
V_PAD = 128              # decoder head padded to a full lane group
EPS = 1e-5
LSM_WEIGHT = 0.0         # TODO(synk): label smoothing > 0 path of LabelSmoothingLoss
                         #             is not implemented (default lsm_weight=0.0).
EXACT_SOFTMAX_DIV = False  # True -> exact division (parity tests) instead of
                           # pl.reciprocal(approx=True) for the softmax denom.


# ----------------------------- in-kernel helpers ------------------------------
def _rms_normalize(x, w, eps):
    ms = jnp.mean(x * x, axis=-1, keepdims=True)
    return x * jax.lax.rsqrt(ms + eps) * w


# ----------------------------- fused whole-stack transformer kernel -----------
def _stack_kernel(lens_ref,                       # scalar prefetch: (B,) int32 in SMEM
                  x_ref, cos_ref, sin_ref,
                  attn_norm_ref, wqkv_ref, wo_ref,
                  ffn_norm_ref, w1_ref, w3_ref, w2_ref,
                  out_ref, *, num_layers, num_heads, head_dim, eps,
                  exact_softmax_div):
    b = pl.program_id(0)
    seq_len = lens_ref[b]

    h = x_ref[...]                                # (T, D) f32 residual stream
    T, Dm = h.shape

    cos = cos_ref[...]                            # (T, D) lane-dense, tiled over heads
    sin = sin_ref[...]                            # (T, D) rotation sign already folded in

    # causal + key-length mask built once (in-kernel; no (B,T,T) HBM tensor),
    # reused by every layer.
    row = jax.lax.broadcasted_iota(jnp.int32, (T, T), 0)
    col = jax.lax.broadcasted_iota(jnp.int32, (T, T), 1)
    bias = jnp.where(jnp.logical_and(col <= row, col < seq_len),
                     0.0, -1e9).astype(jnp.float32)

    half = head_dim // 2

    def swap_halves(x):
        # per-head [x1|x2] -> [x2|x1]; the rotation sign lives in the sin table.
        parts = []
        for hd in range(num_heads):
            lo = hd * head_dim
            parts.append(x[:, lo + half:lo + head_dim])
            parts.append(x[:, lo:lo + half])
        return jnp.concatenate(parts, axis=-1)

    # Static unroll over layers: the residual stays in VMEM/vregs for the whole
    # stack (no inter-layer HBM round trips, one kernel launch total).
    # TODO(synk): at production D/FFN convert the whole-weight blocks below to
    #             K/N-tiled BlockSpecs + f32 VMEM accumulator (reduction axis
    #             last, "arbitrary") so the stack survives v7x's 64 MiB VMEM.
    # TODO(synk): folding the batch into the M dim of the dense matmuls would
    #             improve MXU fill on v6e/v7x but removes the per-batch
    #             "parallel" grid axis that keeps both v7x TensorCores busy.
    for l in range(num_layers):
        # ---- attention: RMSNorm -> fused QKV -> RoPE -> SDPA -> O-proj ----
        a = _rms_normalize(h, attn_norm_ref[l], eps).astype(jnp.bfloat16)
        qkv = jnp.dot(a, wqkv_ref[l], preferred_element_type=jnp.float32)  # (T, 3D)

        q = qkv[:, :Dm]
        k = qkv[:, Dm:2 * Dm]
        # full-slab RoPE (attention scale already folded into wqkv's Q columns);
        # one bf16 cast per slab (hoisted out of the head loop).
        q = (q * cos + swap_halves(q) * sin).astype(jnp.bfloat16)
        k = (k * cos + swap_halves(k) * sin).astype(jnp.bfloat16)
        v = qkv[:, 2 * Dm:].astype(jnp.bfloat16)

        wo_l = wo_ref[l]
        o = jnp.zeros((T, Dm), jnp.float32)
        for hd in range(num_heads):               # tiny static head count -> unrolled
            lo = hd * head_dim
            s = jax.lax.dot_general(
                q[:, lo:lo + head_dim], k[:, lo:lo + head_dim],
                (((1,), (1,)), ((), ())),
                preferred_element_type=jnp.float32) + bias          # (T, T) f32
            m = jnp.max(s, axis=-1, keepdims=True)
            p = jnp.exp(s - m)
            denom = jnp.sum(p, axis=-1, keepdims=True)
            ctx = jnp.dot(p.astype(jnp.bfloat16), v[:, lo:lo + head_dim],
                          preferred_element_type=jnp.float32)       # (T, Dh) f32
            if exact_softmax_div:
                ctx = ctx / denom
            else:
                ctx = ctx * pl.reciprocal(denom, approx=True)
            # per-head O-proj accumulation: no lane-axis concat of ctx heads.
            o = o + jnp.dot(ctx.astype(jnp.bfloat16), wo_l[lo:lo + head_dim, :],
                            preferred_element_type=jnp.float32)
        h = h + o

        # ---- FFN: RMSNorm -> SwiGLU ----
        mrm = _rms_normalize(h, ffn_norm_ref[l], eps).astype(jnp.bfloat16)
        g = jnp.dot(mrm, w1_ref[l], preferred_element_type=jnp.float32)
        u = jnp.dot(mrm, w3_ref[l], preferred_element_type=jnp.float32)
        act = (g * jax.nn.sigmoid(g) * u).astype(jnp.bfloat16)
        h = h + jnp.dot(act, w2_ref[l], preferred_element_type=jnp.float32)

    # NOTE: padded query rows (row >= seq_len) carry finite garbage through the
    # residual stream; this is correct here only because the loss masks them.
    out_ref[...] = h.astype(out_ref.dtype)


def transformer_forward(params, lm_input, lm_input_len):
    """Whole transformer stack as a single fused pallas_call."""
    Bq, T, Dm = lm_input.shape
    L = NUM_LAYERS
    cos, sin = rope_tables(T, HEAD_DIM, NUM_HEADS)

    hid_map = lambda b, lens_ref: (b, 0, 0)
    const2 = lambda b, lens_ref: (0, 0)
    const3 = lambda b, lens_ref: (0, 0, 0)

    kernel = functools.partial(
        _stack_kernel, num_layers=L, num_heads=NUM_HEADS, head_dim=HEAD_DIM,
        eps=EPS, exact_softmax_div=EXACT_SOFTMAX_DIV)

    def build(single_buffer):
        def wspec(shape, imap):
            # grid-invariant blocks: constant index_map means double buffering
            # buys no overlap, only VMEM; request a single buffer when supported.
            if single_buffer:
                return pl.BlockSpec(shape, imap, pipeline_mode=pl.Buffered(1))
            return pl.BlockSpec(shape, imap)

        grid_spec = pltpu.PrefetchScalarGridSpec(
            num_scalar_prefetch=1,
            grid=(Bq,),
            in_specs=[
                pl.BlockSpec((None, T, Dm), hid_map),     # per-b hidden state
                wspec((T, Dm), const2),                   # cos   (lane-dense)
                wspec((T, Dm), const2),                   # sin   (sign folded)
                wspec((L, 1, Dm), const3),                # attention norms
                wspec((L, Dm, 3 * Dm), const3),           # merged QKV (scale folded)
                wspec((L, Dm, Dm), const3),               # O-proj
                wspec((L, 1, Dm), const3),                # FFN norms
                wspec((L, Dm, FFN), const3),              # w1 (gate)
                wspec((L, Dm, FFN), const3),              # w3 (up)
                wspec((L, FFN, Dm), const3),              # w2 (down)
            ],
            out_specs=pl.BlockSpec((None, T, Dm), hid_map),
        )
        return pl.pallas_call(
            kernel,
            out_shape=jax.ShapeDtypeStruct((Bq, T, Dm), jnp.float32),
            grid_spec=grid_spec,
            compiler_params=pltpu.CompilerParams(
                dimension_semantics=("parallel",)),       # both v7x TCs get a batch
        )

    args = (lm_input_len, lm_input, cos, sin,
            params["attn_norm"], params["wqkv"], params["wo"],
            params["ffn_norm"], params["w1"], params["w3"], params["w2"])
    try:
        return build(single_buffer=True)(*args)
    except Exception:
        # Buffered(1) unsupported on this Pallas build -> default double
        # buffering (still only ~1.3 MB of VMEM at these shapes).
        return build(single_buffer=False)(*args)


# ----------------------------- fused head + CE/accuracy (single step) ---------
def _head_ce_kernel(h_ref, norm_ref, w_ref, b_ref, tgt_ref, out_ref, *, vocab, eps):
    x = _rms_normalize(h_ref[...], norm_ref[...], eps)              # (B*T, D) f32
    logits = jnp.dot(x.astype(jnp.bfloat16), w_ref[...],
                     preferred_element_type=jnp.float32) + b_ref[...]  # (B*T, V_PAD)
    M, VP = logits.shape
    col = jax.lax.broadcasted_iota(jnp.int32, (M, VP), 1)
    logits = jnp.where(col < vocab, logits, -1e9)                   # kill padded vocab cols

    tgt = tgt_ref[...]                                              # (B*T, 1) int32
    valid = tgt != IGNORE_ID
    validf = valid.astype(jnp.float32)

    mx = jnp.max(logits, axis=-1, keepdims=True)
    lse = mx + jnp.log(jnp.sum(jnp.exp(logits - mx), axis=-1, keepdims=True))
    tgt_logit = jnp.sum(jnp.where(col == tgt, logits, 0.0), axis=-1, keepdims=True)
    nll = (lse - tgt_logit) * validf                                # CE, smoothing = 0.0

    # exact first-occurrence argmax (matches torch argmax / th_accuracy)
    pred = jnp.min(jnp.where(logits >= mx, col, VP), axis=-1, keepdims=True)
    correct = jnp.logical_and(pred == tgt, valid).astype(jnp.float32)

    lane = jax.lax.broadcasted_iota(jnp.int32, (1, VP), 1)
    out_ref[...] = (jnp.where(lane == 0, jnp.sum(nll), 0.0)
                    + jnp.where(lane == 1, jnp.sum(validf), 0.0)
                    + jnp.where(lane == 2, jnp.sum(correct), 0.0))


def head_ce_pallas(h, final_norm, dec_w, dec_b, lm_target):
    Bq, T, Dm = h.shape
    VP = dec_w.shape[1]
    BT = Bq * T
    h2 = h.reshape(BT, Dm)
    tgt = lm_target.reshape(BT, 1).astype(jnp.int32)
    sums = pl.pallas_call(
        functools.partial(_head_ce_kernel, vocab=VOCAB_OUT, eps=EPS),
        out_shape=jax.ShapeDtypeStruct((1, VP), jnp.float32),
        grid=(1,),
        in_specs=[pl.BlockSpec((BT, Dm), lambda i: (0, 0)),
                  pl.BlockSpec((1, Dm), lambda i: (0, 0)),
                  pl.BlockSpec((Dm, VP), lambda i: (0, 0)),
                  pl.BlockSpec((1, VP), lambda i: (0, 0)),
                  pl.BlockSpec((BT, 1), lambda i: (0, 0))],
        out_specs=pl.BlockSpec((1, VP), lambda i: (0, 0)),
        compiler_params=pltpu.CompilerParams(dimension_semantics=("arbitrary",)),
    )(h2, final_norm, dec_w, dec_b, tgt)
    return sums[0, 0], sums[0, 1], sums[0, 2]


# ----------------------------- host-side tables / glue ------------------------
def rope_tables(T, head_dim, num_heads):
    """Lane-dense (T, num_heads*head_dim) cos and sign-folded sin tables."""
    half = head_dim // 2
    inv_freq = 1.0 / (10000.0 ** (np.arange(0, head_dim, 2, dtype=np.float32) / head_dim))
    freqs = np.outer(np.arange(T, dtype=np.float32), inv_freq)       # (T, half)
    cos_head = np.cos(np.concatenate([freqs, freqs], axis=-1))       # (T, head_dim)
    sin_f = np.sin(freqs)
    sin_head = np.concatenate([-sin_f, sin_f], axis=-1)              # rotation sign folded
    cos_full = np.tile(cos_head, (1, num_heads)).astype(np.float32)  # (T, D)
    sin_full = np.tile(sin_head, (1, num_heads)).astype(np.float32)
    return jnp.asarray(cos_full), jnp.asarray(sin_full)


def prepare_lm_input_target(params, text_emb, text_len, speech_token,
                            speech_emb, speech_len):
    """Host-side sequence assembly (mirrors the torch non-mixed branch).

    Everything is pulled to host numpy ONCE (no per-element device syncs inside
    the python loop); a single padded (B, T_pad, D) tensor is pushed back.
    """
    # TODO(synk): mix_ratio interleaving branch (random.random() < 0.5 data aug)
    #             is stochastic host-side list surgery; only the deterministic
    #             branch is implemented.
    llm_emb = np.asarray(params["llm_embedding"])          # (2, D)
    text_emb = np.asarray(text_emb)
    speech_emb = np.asarray(speech_emb)
    speech_token = np.asarray(speech_token)
    text_len = np.asarray(text_len)
    speech_len = np.asarray(speech_len)

    sos_emb = llm_emb[SOS_EOS][None, :]
    task_emb = llm_emb[TASK_ID][None, :]

    inputs, targets, lens = [], [], []
    for i in range(text_emb.shape[0]):
        tl = int(text_len[i])
        sl = int(speech_len[i])
        tgt = ([IGNORE_ID] * (1 + tl)
               + [int(t) for t in speech_token[i, :sl]]
               + [SPEECH_TOKEN_SIZE])
        inp = np.concatenate(
            [sos_emb, text_emb[i, :tl], task_emb, speech_emb[i, :sl]], axis=0)
        targets.append(tgt)
        inputs.append(inp)
        lens.append(inp.shape[0])

    T = max(lens)
    T_pad = ((T + 15) // 16) * 16          # bf16 MXU operands pack 16 rows/sublane tile
    lm_input = np.stack([
        np.pad(x, ((0, T_pad - x.shape[0]), (0, 0))) for x in inputs]
    ).astype(np.float32)
    lm_target = np.array(
        [t + [IGNORE_ID] * (T_pad - len(t)) for t in targets], dtype=np.int32)
    lm_input_len = np.array(lens, dtype=np.int32)
    return (jnp.asarray(lm_target), jnp.asarray(lm_input),
            jnp.asarray(lm_input_len))


# ----------------------------- InternLM2LM forward ---------------------------
def internlm2_lm_forward(params, batch):
    text_token = batch["text_token"]
    text_token_len = batch["text_token_len"]
    speech_token = batch["speech_token"]
    speech_token_len = batch["speech_token_len"]

    # embedding lookups (gather glue)
    text_emb = params["tok_embeddings"][text_token]            # (B, Lt, D)
    speech_emb = params["speech_embedding"][speech_token]      # (B, Ls, D)

    lm_target, lm_input, lm_input_len = prepare_lm_input_target(
        params, text_emb, text_token_len, speech_token, speech_emb,
        speech_token_len)

    # whole transformer stack: ONE fused Pallas kernel
    lm_output = transformer_forward(params, lm_input, lm_input_len)  # (B, T, D)

    # fused: final RMSNorm -> decoder head -> CE / accuracy reductions (one step)
    nll_sum, valid_sum, correct_sum = head_ce_pallas(
        lm_output, params["final_norm"], params["dec_w"], params["dec_b"],
        lm_target)

    loss = nll_sum / valid_sum       # length-normalized CE (smoothing = 0.0)
    acc = correct_sum / valid_sum
    return {"loss": loss, "acc": acc}
    # TODO(synk): autoregressive inference()/sampling_ids generator (host-side
    #             sampling loop with KV-cache) is not implemented.


# ----------------------------- deterministic parameter init -------------------
def init_params(key):
    keys = iter(jax.random.split(key, 16))

    def nrm(shape, scale=0.02):
        return scale * jax.random.normal(next(keys), shape, dtype=jnp.float32)

    # merged Q|K|V with the attention scale folded into the Q columns
    qscale = 1.0 / float(HEAD_DIM) ** 0.5
    wqkv = nrm((NUM_LAYERS, D, 3 * D))
    wqkv = wqkv.at[:, :, :D].multiply(qscale)

    dec_w = nrm((D, VOCAB_OUT))
    dec_w = jnp.pad(dec_w, ((0, 0), (0, V_PAD - VOCAB_OUT)))

    params = {
        "tok_embeddings": nrm((TEXT_VOCAB, D)),
        "speech_embedding": nrm((VOCAB_OUT, D)),
        "llm_embedding": nrm((2, D)),
        "dec_w": dec_w.astype(jnp.bfloat16),                 # (D, V_PAD) bf16
        "dec_b": jnp.zeros((1, V_PAD), jnp.float32),
        "final_norm": jnp.ones((1, D), jnp.float32),
        # per-layer weights stacked on a leading (L, ...) axis for the fused kernel
        "attn_norm": jnp.ones((NUM_LAYERS, 1, D), jnp.float32),
        "ffn_norm": jnp.ones((NUM_LAYERS, 1, D), jnp.float32),
        "wqkv": wqkv.astype(jnp.bfloat16),                   # (L, D, 3D)
        "wo": nrm((NUM_LAYERS, D, D)).astype(jnp.bfloat16),
        "w1": nrm((NUM_LAYERS, D, FFN)).astype(jnp.bfloat16),
        "w3": nrm((NUM_LAYERS, D, FFN)).astype(jnp.bfloat16),
        "w2": nrm((NUM_LAYERS, FFN, D)).astype(jnp.bfloat16),
    }
    return params


# ----------------------------- main -------------------------------------------
if __name__ == "__main__":
    root = jax.random.PRNGKey(0)
    k_params, k_text, k_speech = jax.random.split(root, 3)

    params = init_params(k_params)

    text_token = jax.random.randint(k_text, (B, 6), 0, TEXT_VOCAB, dtype=jnp.int32)
    text_token_len = jnp.array([5, 3], dtype=jnp.int32)
    speech_token = jax.random.randint(k_speech, (B, 10), 0, SPEECH_TOKEN_SIZE,
                                      dtype=jnp.int32)
    speech_token_len = jnp.array([7, 10], dtype=jnp.int32)

    batch = {
        "text_token": text_token,
        "text_token_len": text_token_len,
        "speech_token": speech_token,
        "speech_token_len": speech_token_len,
    }

    out = internlm2_lm_forward(params, batch)
    out = jax.block_until_ready(out)

    loss = float(out["loss"])
    acc = float(out["acc"])
    assert np.isfinite(loss) and np.isfinite(acc) and 0.0 <= acc <= 1.0
    print("KERNEL_OK")
</pallas_src>

<mosaic_0001>
module attributes {stable_mosaic.version = 11 : i64} {
  func.func @_stack_kernel(%arg0: i32, %arg1: memref<2xi32, #tpu.memory_space<smem>>, %arg2: memref<1x16x128xf32, #tpu.memory_space<vmem>>, %arg3: memref<16x128xf32, #tpu.memory_space<vmem>>, %arg4: memref<16x128xf32, #tpu.memory_space<vmem>>, %arg5: memref<2x1x128xf32, #tpu.memory_space<vmem>>, %arg6: memref<2x128x384xbf16, #tpu.memory_space<vmem>>, %arg7: memref<2x128x128xbf16, #tpu.memory_space<vmem>>, %arg8: memref<2x1x128xf32, #tpu.memory_space<vmem>>, %arg9: memref<2x128x256xbf16, #tpu.memory_space<vmem>>, %arg10: memref<2x128x256xbf16, #tpu.memory_space<vmem>>, %arg11: memref<2x256x128xbf16, #tpu.memory_space<vmem>>, %arg12: memref<1x16x128xf32, #tpu.memory_space<vmem>>) attributes {dimension_semantics = [#tpu.dimension_semantics<parallel>], iteration_bounds = array<i64: 2>, scalar_prefetch = 1 : i64, scratch_operands = 0 : i64, tpu.core_type = #tpu.core_type<tc>, window_params = [{transform_indices = @transform_0, window_bounds = array<i64: 1, 16, 128>}, {pipeline_mode = #tpu.pipeline_mode<synchronous>, transform_indices = @transform_1, window_bounds = array<i64: 16, 128>}, {pipeline_mode = #tpu.pipeline_mode<synchronous>, transform_indices = @transform_2, window_bounds = array<i64: 16, 128>}, {pipeline_mode = #tpu.pipeline_mode<synchronous>, transform_indices = @transform_3, window_bounds = array<i64: 2, 1, 128>}, {pipeline_mode = #tpu.pipeline_mode<synchronous>, transform_indices = @transform_4, window_bounds = array<i64: 2, 128, 384>}, {pipeline_mode = #tpu.pipeline_mode<synchronous>, transform_indices = @transform_5, window_bounds = array<i64: 2, 128, 128>}, {pipeline_mode = #tpu.pipeline_mode<synchronous>, transform_indices = @transform_6, window_bounds = array<i64: 2, 1, 128>}, {pipeline_mode = #tpu.pipeline_mode<synchronous>, transform_indices = @transform_7, window_bounds = array<i64: 2, 128, 256>}, {pipeline_mode = #tpu.pipeline_mode<synchronous>, transform_indices = @transform_8, window_bounds = array<i64: 2, 128, 256>}, {pipeline_mode = #tpu.pipeline_mode<synchronous>, transform_indices = @transform_9, window_bounds = array<i64: 2, 256, 128>}, {transform_indices = @transform_10, window_bounds = array<i64: 1, 16, 128>}]} {
    %0 = arith.index_cast %arg0 : i32 to index
    %1 = memref.load %arg1[%0] : memref<2xi32, #tpu.memory_space<smem>>
    %c0 = arith.constant 0 : index
    %c0_0 = arith.constant 0 : index
    %c0_1 = arith.constant 0 : index
    %2 = vector.load %arg2[%c0, %c0_0, %c0_1] : memref<1x16x128xf32, #tpu.memory_space<vmem>>, vector<1x16x128xf32>
    %3 = vector.shape_cast %2 : vector<1x16x128xf32> to vector<16x128xf32>
    %c0_2 = arith.constant 0 : index
    %c0_3 = arith.constant 0 : index
    %4 = vector.load %arg3[%c0_2, %c0_3] : memref<16x128xf32, #tpu.memory_space<vmem>>, vector<16x128xf32>
    %c0_4 = arith.constant 0 : index
    %c0_5 = arith.constant 0 : index
    %5 = vector.load %arg4[%c0_4, %c0_5] : memref<16x128xf32, #tpu.memory_space<vmem>>, vector<16x128xf32>
    %6 = tpu.iota {dimensions = array<i32: 0>} : vector<16x16xi32>
    %7 = tpu.iota {dimensions = array<i32: 1>} : vector<16x16xi32>
    %8 = arith.cmpi sle, %7, %6 : vector<16x16xi32>
    %9 = vector.broadcast %1 : i32 to vector<16x16xi32>
    %10 = arith.cmpi slt, %7, %9 : vector<16x16xi32>
    %11 = arith.andi %8, %10 : vector<16x16xi1>
    %cst = arith.constant 0.000000e+00 : f32
    %cst_6 = arith.constant -1.000000e+09 : f32
    %12 = vector.broadcast %cst : f32 to vector<16x16xf32>
    %13 = vector.broadcast %cst_6 : f32 to vector<16x16xf32>
    %14 = arith.select %11, %12, %13 : vector<16x16xi1>, vector<16x16xf32>
    %c0_7 = arith.constant 0 : index
    %c0_8 = arith.constant 0 : index
    %c0_9 = arith.constant 0 : index
    %15 = vector.load %arg5[%c0_7, %c0_8, %c0_9] : memref<2x1x128xf32, #tpu.memory_space<vmem>>, vector<1x1x128xf32>
    %16 = vector.shape_cast %15 : vector<1x1x128xf32> to vector<1x128xf32>
    %17 = arith.mulf %3, %3 : vector<16x128xf32>
    %cst_10 = arith.constant dense<0.000000e+00> : vector<16xf32>
    %18 = vector.multi_reduction <add>, %17, %cst_10 [1] : vector<16x128xf32> to vector<16xf32>
    %19 = vector.shape_cast %18 : vector<16xf32> to vector<16x1xf32>
    %cst_11 = arith.constant 1.280000e+02 : f32
    %20 = vector.broadcast %cst_11 : f32 to vector<16x1xf32>
    %21 = arith.divf %19, %20 : vector<16x1xf32>
    %cst_12 = arith.constant 9.99999974E-6 : f32
    %22 = vector.broadcast %cst_12 : f32 to vector<16x1xf32>
    %23 = arith.addf %21, %22 : vector<16x1xf32>
    %24 = math.rsqrt %23 : vector<16x1xf32>
    %25 = vector.broadcast %24 : vector<16x1xf32> to vector<16x128xf32>
    %26 = arith.mulf %3, %25 : vector<16x128xf32>
    %27 = vector.broadcast %16 : vector<1x128xf32> to vector<16x128xf32>
    %28 = arith.mulf %26, %27 : vector<16x128xf32>
    %29 = arith.truncf %28 : vector<16x128xf32> to vector<16x128xbf16>
    %c0_13 = arith.constant 0 : index
    %c0_14 = arith.constant 0 : index
    %c0_15 = arith.constant 0 : index
    %30 = vector.load %arg6[%c0_13, %c0_14, %c0_15] : memref<2x128x384xbf16, #tpu.memory_space<vmem>>, vector<1x128x384xbf16>
    %31 = vector.shape_cast %30 : vector<1x128x384xbf16> to vector<128x384xbf16>
    %cst_16 = arith.constant dense<0.000000e+00> : vector<16x384xf32>
    %32 = tpu.matmul %29, %31, %cst_16 {dimension_numbers = #tpu.dot_dimension_numbers<[1], [0], [0], [1], [0, 0, 1, 1], [], []>} : vector<16x128xbf16>, vector<128x384xbf16>, vector<16x384xf32> -> vector<16x384xf32>
    %33 = vector.extract_strided_slice %32 {offsets = [0, 0], sizes = [16, 128], strides = [1, 1]} : vector<16x384xf32> to vector<16x128xf32>
    %34 = vector.extract_strided_slice %32 {offsets = [0, 128], sizes = [16, 128], strides = [1, 1]} : vector<16x384xf32> to vector<16x128xf32>
    %35 = arith.mulf %33, %4 : vector<16x128xf32>
    %36 = vector.extract_strided_slice %33 {offsets = [0, 32], sizes = [16, 32], strides = [1, 1]} : vector<16x128xf32> to vector<16x32xf32>
    %37 = vector.extract_strided_slice %33 {offsets = [0, 0], sizes = [16, 32], strides = [1, 1]} : vector<16x128xf32> to vector<16x32xf32>
    %38 = vector.extract_strided_slice %33 {offsets = [0, 96], sizes = [16, 32], strides = [1, 1]} : vector<16x128xf32> to vector<16x32xf32>
    %39 = vector.extract_strided_slice %33 {offsets = [0, 64], sizes = [16, 32], strides = [1, 1]} : vector<16x128xf32> to vector<16x32xf32>
    %40 = tpu.concatenate %36, %37, %38, %39 in 1 : vector<16x32xf32>, vector<16x32xf32>, vector<16x32xf32>, vector<16x32xf32> -> vector<16x128xf32>
    %41 = arith.mulf %40, %5 : vector<16x128xf32>
    %42 = arith.addf %35, %41 : vector<16x128xf32>
    %43 = arith.truncf %42 : vector<16x128xf32> to vector<16x128xbf16>
    %44 = arith.mulf %34, %4 : vector<16x128xf32>
    %45 = vector.extract_strided_slice %34 {offsets = [0, 32], sizes = [16, 32], strides = [1, 1]} : vector<16x128xf32> to vector<16x32xf32>
    %46 = vector.extract_strided_slice %34 {offsets = [0, 0], sizes = [16, 32], strides = [1, 1]} : vector<16x128xf32> to vector<16x32xf32>
    %47 = vector.extract_strided_slice %34 {offsets = [0, 96], sizes = [16, 32], strides = [1, 1]} : vector<16x128xf32> to vector<16x32xf32>
    %48 = vector.extract_strided_slice %34 {offsets = [0, 64], sizes = [16, 32], strides = [1, 1]} : vector<16x128xf32> to vector<16x32xf32>
    %49 = tpu.concatenate %45, %46, %47, %48 in 1 : vector<16x32xf32>, vector<16x32xf32>, vector<16x32xf32>, vector<16x32xf32> -> vector<16x128xf32>
    %50 = arith.mulf %49, %5 : vector<16x128xf32>
    %51 = arith.addf %44, %50 : vector<16x128xf32>
    %52 = arith.truncf %51 : vector<16x128xf32> to vector<16x128xbf16>
    %53 = vector.extract_strided_slice %32 {offsets = [0, 256], sizes = [16, 128], strides = [1, 1]} : vector<16x384xf32> to vector<16x128xf32>
    %54 = arith.truncf %53 : vector<16x128xf32> to vector<16x128xbf16>
    %c0_17 = arith.constant 0 : index
    %c0_18 = arith.constant 0 : index
    %c0_19 = arith.constant 0 : index
    %55 = vector.load %arg7[%c0_17, %c0_18, %c0_19] : memref<2x128x128xbf16, #tpu.memory_space<vmem>>, vector<1x128x128xbf16>
    %56 = vector.shape_cast %55 : vector<1x128x128xbf16> to vector<128x128xbf16>
    %cst_20 = arith.constant 0.000000e+00 : f32
    %57 = vector.broadcast %cst_20 : f32 to vector<16x128xf32>
    %58 = vector.extract_strided_slice %43 {offsets = [0, 0], sizes = [16, 64], strides = [1, 1]} : vector<16x128xbf16> to vector<16x64xbf16>
    %59 = vector.extract_strided_slice %52 {offsets = [0, 0], sizes = [16, 64], strides = [1, 1]} : vector<16x128xbf16> to vector<16x64xbf16>
    %cst_21 = arith.constant dense<0.000000e+00> : vector<16x16xf32>
    %60 = tpu.matmul %58, %59, %cst_21 {dimension_numbers = #tpu.dot_dimension_numbers<[1], [1], [0], [0], [0, 0, 1, 0], [], []>} : vector<16x64xbf16>, vector<16x64xbf16>, vector<16x16xf32> -> vector<16x16xf32>
    %61 = arith.addf %60, %14 : vector<16x16xf32>
    %cst_22 = arith.constant dense<0xFF800000> : vector<16xf32>
    %62 = vector.multi_reduction <maximumf>, %61, %cst_22 [1] : vector<16x16xf32> to vector<16xf32>
    %63 = vector.shape_cast %62 : vector<16xf32> to vector<16x1xf32>
    %64 = vector.broadcast %63 : vector<16x1xf32> to vector<16x16xf32>
    %65 = arith.subf %61, %64 : vector<16x16xf32>
    %66 = math.exp %65 : vector<16x16xf32>
    %cst_23 = arith.constant dense<0.000000e+00> : vector<16xf32>
    %67 = vector.multi_reduction <add>, %66, %cst_23 [1] : vector<16x16xf32> to vector<16xf32>
    %68 = vector.shape_cast %67 : vector<16xf32> to vector<16x1xf32>
    %69 = arith.truncf %66 : vector<16x16xf32> to vector<16x16xbf16>
    %70 = vector.extract_strided_slice %54 {offsets = [0, 0], sizes = [16, 64], strides = [1, 1]} : vector<16x128xbf16> to vector<16x64xbf16>
    %cst_24 = arith.constant dense<0.000000e+00> : vector<16x64xf32>
    %71 = tpu.matmul %69, %70, %cst_24 {dimension_numbers = #tpu.dot_dimension_numbers<[1], [0], [0], [1], [0, 0, 1, 1], [], []>} : vector<16x16xbf16>, vector<16x64xbf16>, vector<16x64xf32> -> vector<16x64xf32>
    %72 = tpu.reciprocal %68 {approx = true} : vector<16x1xf32> -> vector<16x1xf32>
    %73 = vector.broadcast %72 : vector<16x1xf32> to vector<16x64xf32>
    %74 = arith.mulf %71, %73 : vector<16x64xf32>
    %75 = arith.truncf %74 : vector<16x64xf32> to vector<16x64xbf16>
    %76 = vector.extract_strided_slice %56 {offsets = [0, 0], sizes = [64, 128], strides = [1, 1]} : vector<128x128xbf16> to vector<64x128xbf16>
    %cst_25 = arith.constant dense<0.000000e+00> : vector<16x128xf32>
    %77 = tpu.matmul %75, %76, %cst_25 {dimension_numbers = #tpu.dot_dimension_numbers<[1], [0], [0], [1], [0, 0, 1, 1], [], []>} : vector<16x64xbf16>, vector<64x128xbf16>, vector<16x128xf32> -> vector<16x128xf32>
    %78 = arith.addf %57, %77 : vector<16x128xf32>
    %79 = vector.extract_strided_slice %43 {offsets = [0, 64], sizes = [16, 64], strides = [1, 1]} : vector<16x128xbf16> to vector<16x64xbf16>
    %80 = vector.extract_strided_slice %52 {offsets = [0, 64], sizes = [16, 64], strides = [1, 1]} : vector<16x128xbf16> to vector<16x64xbf16>
    %cst_26 = arith.constant dense<0.000000e+00> : vector<16x16xf32>
    %81 = tpu.matmul %79, %80, %cst_26 {dimension_numbers = #tpu.dot_dimension_numbers<[1], [1], [0], [0], [0, 0, 1, 0], [], []>} : vector<16x64xbf16>, vector<16x64xbf16>, vector<16x16xf32> -> vector<16x16xf32>
    %82 = arith.addf %81, %14 : vector<16x16xf32>
    %cst_27 = arith.constant dense<0xFF800000> : vector<16xf32>
    %83 = vector.multi_reduction <maximumf>, %82, %cst_27 [1] : vector<16x16xf32> to vector<16xf32>
    %84 = vector.shape_cast %83 : vector<16xf32> to vector<16x1xf32>
    %85 = vector.broadcast %84 : vector<16x1xf32> to vector<16x16xf32>
    %86 = arith.subf %82, %85 : vector<16x16xf32>
    %87 = math.exp %86 : vector<16x16xf32>
    %cst_28 = arith.constant dense<0.000000e+00> : vector<16xf32>
    %88 = vector.multi_reduction <add>, %87, %cst_28 [1] : vector<16x16xf32> to vector<16xf32>
    %89 = vector.shape_cast %88 : vector<16xf32> to vector<16x1xf32>
    %90 = arith.truncf %87 : vector<16x16xf32> to vector<16x16xbf16>
    %91 = vector.extract_strided_slice %54 {offsets = [0, 64], sizes = [16, 64], strides = [1, 1]} : vector<16x128xbf16> to vector<16x64xbf16>
    %cst_29 = arith.constant dense<0.000000e+00> : vector<16x64xf32>
    %92 = tpu.matmul %90, %91, %cst_29 {dimension_numbers = #tpu.dot_dimension_numbers<[1], [0], [0], [1], [0, 0, 1, 1], [], []>} : vector<16x16xbf16>, vector<16x64xbf16>, vector<16x64xf32> -> vector<16x64xf32>
    %93 = tpu.reciprocal %89 {approx = true} : vector<16x1xf32> -> vector<16x1xf32>
    %94 = vector.broadcast %93 : vector<16x1xf32> to vector<16x64xf32>
    %95 = arith.mulf %92, %94 : vector<16x64xf32>
    %96 = arith.truncf %95 : vector<16x64xf32> to vector<16x64xbf16>
    %97 = vector.extract_strided_slice %56 {offsets = [64, 0], sizes = [64, 128], strides = [1, 1]} : vector<128x128xbf16> to vector<64x128xbf16>
    %cst_30 = arith.constant dense<0.000000e+00> : vector<16x128xf32>
    %98 = tpu.matmul %96, %97, %cst_30 {dimension_numbers = #tpu.dot_dimension_numbers<[1], [0], [0], [1], [0, 0, 1, 1], [], []>} : vector<16x64xbf16>, vector<64x128xbf16>, vector<16x128xf32> -> vector<16x128xf32>
    %99 = arith.addf %78, %98 : vector<16x128xf32>
    %100 = arith.addf %3, %99 : vector<16x128xf32>
    %c0_31 = arith.constant 0 : index
    %c0_32 = arith.constant 0 : index
    %c0_33 = arith.constant 0 : index
    %101 = vector.load %arg8[%c0_31, %c0_32, %c0_33] : memref<2x1x128xf32, #tpu.memory_space<vmem>>, vector<1x1x128xf32>
    %102 = vector.shape_cast %101 : vector<1x1x128xf32> to vector<1x128xf32>
    %103 = arith.mulf %100, %100 : vector<16x128xf32>
    %cst_34 = arith.constant dense<0.000000e+00> : vector<16xf32>
    %104 = vector.multi_reduction <add>, %103, %cst_34 [1] : vector<16x128xf32> to vector<16xf32>
    %105 = vector.shape_cast %104 : vector<16xf32> to vector<16x1xf32>
    %cst_35 = arith.constant 1.280000e+02 : f32
    %106 = vector.broadcast %cst_35 : f32 to vector<16x1xf32>
    %107 = arith.divf %105, %106 : vector<16x1xf32>
    %cst_36 = arith.constant 9.99999974E-6 : f32
    %108 = vector.broadcast %cst_36 : f32 to vector<16x1xf32>
    %109 = arith.addf %107, %108 : vector<16x1xf32>
    %110 = math.rsqrt %109 : vector<16x1xf32>
    %111 = vector.broadcast %110 : vector<16x1xf32> to vector<16x128xf32>
    %112 = arith.mulf %100, %111 : vector<16x128xf32>
    %113 = vector.broadcast %102 : vector<1x128xf32> to vector<16x128xf32>
    %114 = arith.mulf %112, %113 : vector<16x128xf32>
    %115 = arith.truncf %114 : vector<16x128xf32> to vector<16x128xbf16>
    %c0_37 = arith.constant 0 : index
    %c0_38 = arith.constant 0 : index
    %c0_39 = arith.constant 0 : index
    %116 = vector.load %arg9[%c0_37, %c0_38, %c0_39] : memref<2x128x256xbf16, #tpu.memory_space<vmem>>, vector<1x128x256xbf16>
    %117 = vector.shape_cast %116 : vector<1x128x256xbf16> to vector<128x256xbf16>
    %cst_40 = arith.constant dense<0.000000e+00> : vector<16x256xf32>
    %118 = tpu.matmul %115, %117, %cst_40 {dimension_numbers = #tpu.dot_dimension_numbers<[1], [0], [0], [1], [0, 0, 1, 1], [], []>} : vector<16x128xbf16>, vector<128x256xbf16>, vector<16x256xf32> -> vector<16x256xf32>
    %c0_41 = arith.constant 0 : index
    %c0_42 = arith.constant 0 : index
    %c0_43 = arith.constant 0 : index
    %119 = vector.load %arg10[%c0_41, %c0_42, %c0_43] : memref<2x128x256xbf16, #tpu.memory_space<vmem>>, vector<1x128x256xbf16>
    %120 = vector.shape_cast %119 : vector<1x128x256xbf16> to vector<128x256xbf16>
    %cst_44 = arith.constant dense<0.000000e+00> : vector<16x256xf32>
    %121 = tpu.matmul %115, %120, %cst_44 {dimension_numbers = #tpu.dot_dimension_numbers<[1], [0], [0], [1], [0, 0, 1, 1], [], []>} : vector<16x128xbf16>, vector<128x256xbf16>, vector<16x256xf32> -> vector<16x256xf32>
    %122 = arith.negf %118 : vector<16x256xf32>
    %123 = math.exp %122 : vector<16x256xf32>
    %cst_45 = arith.constant 1.000000e+00 : f32
    %124 = vector.broadcast %cst_45 : f32 to vector<16x256xf32>
    %125 = arith.addf %124, %123 : vector<16x256xf32>
    %126 = arith.divf %124, %125 : vector<16x256xf32>
    %127 = arith.mulf %118, %126 : vector<16x256xf32>
    %128 = arith.mulf %127, %121 : vector<16x256xf32>
    %129 = arith.truncf %128 : vector<16x256xf32> to vector<16x256xbf16>
    %c0_46 = arith.constant 0 : index
    %c0_47 = arith.constant 0 : index
    %c0_48 = arith.constant 0 : index
    %130 = vector.load %arg11[%c0_46, %c0_47, %c0_48] : memref<2x256x128xbf16, #tpu.memory_space<vmem>>, vector<1x256x128xbf16>
    %131 = vector.shape_cast %130 : vector<1x256x128xbf16> to vector<256x128xbf16>
    %cst_49 = arith.constant dense<0.000000e+00> : vector<16x128xf32>
    %132 = tpu.matmul %129, %131, %cst_49 {dimension_numbers = #tpu.dot_dimension_numbers<[1], [0], [0], [1], [0, 0, 1, 1], [], []>} : vector<16x256xbf16>, vector<256x128xbf16>, vector<16x128xf32> -> vector<16x128xf32>
    %133 = arith.addf %100, %132 : vector<16x128xf32>
    %c1 = arith.constant 1 : index
    %c0_50 = arith.constant 0 : index
    %c0_51 = arith.constant 0 : index
    %134 = vector.load %arg5[%c1, %c0_50, %c0_51] : memref<2x1x128xf32, #tpu.memory_space<vmem>>, vector<1x1x128xf32>
    %135 = vector.shape_cast %134 : vector<1x1x128xf32> to vector<1x128xf32>
    %136 = arith.mulf %133, %133 : vector<16x128xf32>
    %cst_52 = arith.constant dense<0.000000e+00> : vector<16xf32>
    %137 = vector.multi_reduction <add>, %136, %cst_52 [1] : vector<16x128xf32> to vector<16xf32>
    %138 = vector.shape_cast %137 : vector<16xf32> to vector<16x1xf32>
    %cst_53 = arith.constant 1.280000e+02 : f32
    %139 = vector.broadcast %cst_53 : f32 to vector<16x1xf32>
    %140 = arith.divf %138, %139 : vector<16x1xf32>
    %cst_54 = arith.constant 9.99999974E-6 : f32
    %141 = vector.broadcast %cst_54 : f32 to vector<16x1xf32>
    %142 = arith.addf %140, %141 : vector<16x1xf32>
    %143 = math.rsqrt %142 : vector<16x1xf32>
    %144 = vector.broadcast %143 : vector<16x1xf32> to vector<16x128xf32>
    %145 = arith.mulf %133, %144 : vector<16x128xf32>
    %146 = vector.broadcast %135 : vector<1x128xf32> to vector<16x128xf32>
    %147 = arith.mulf %145, %146 : vector<16x128xf32>
    %148 = arith.truncf %147 : vector<16x128xf32> to vector<16x128xbf16>
    %c1_55 = arith.constant 1 : index
    %c0_56 = arith.constant 0 : index
    %c0_57 = arith.constant 0 : index
    %149 = vector.load %arg6[%c1_55, %c0_56, %c0_57] : memref<2x128x384xbf16, #tpu.memory_space<vmem>>, vector<1x128x384xbf16>
    %150 = vector.shape_cast %149 : vector<1x128x384xbf16> to vector<128x384xbf16>
    %cst_58 = arith.constant dense<0.000000e+00> : vector<16x384xf32>
    %151 = tpu.matmul %148, %150, %cst_58 {dimension_numbers = #tpu.dot_dimension_numbers<[1], [0], [0], [1], [0, 0, 1, 1], [], []>} : vector<16x128xbf16>, vector<128x384xbf16>, vector<16x384xf32> -> vector<16x384xf32>
    %152 = vector.extract_strided_slice %151 {offsets = [0, 0], sizes = [16, 128], strides = [1, 1]} : vector<16x384xf32> to vector<16x128xf32>
    %153 = vector.extract_strided_slice %151 {offsets = [0, 128], sizes = [16, 128], strides = [1, 1]} : vector<16x384xf32> to vector<16x128xf32>
    %154 = arith.mulf %152, %4 : vector<16x128xf32>
    %155 = vector.extract_strided_slice %152 {offsets = [0, 32], sizes = [16, 32], strides = [1, 1]} : vector<16x128xf32> to vector<16x32xf32>
    %156 = vector.extract_strided_slice %152 {offsets = [0, 0], sizes = [16, 32], strides = [1, 1]} : vector<16x128xf32> to vector<16x32xf32>
    %157 = vector.extract_strided_slice %152 {offsets = [0, 96], sizes = [16, 32], strides = [1, 1]} : vector<16x128xf32> to vector<16x32xf32>
    %158 = vector.extract_strided_slice %152 {offsets = [0, 64], sizes = [16, 32], strides = [1, 1]} : vector<16x128xf32> to vector<16x32xf32>
    %159 = tpu.concatenate %155, %156, %157, %158 in 1 : vector<16x32xf32>, vector<16x32xf32>, vector<16x32xf32>, vector<16x32xf32> -> vector<16x128xf32>
    %160 = arith.mulf %159, %5 : vector<16x128xf32>
    %161 = arith.addf %154, %160 : vector<16x128xf32>
    %162 = arith.truncf %161 : vector<16x128xf32> to vector<16x128xbf16>
    %163 = arith.mulf %153, %4 : vector<16x128xf32>
    %164 = vector.extract_strided_slice %153 {offsets = [0, 32], sizes = [16, 32], strides = [1, 1]} : vector<16x128xf32> to vector<16x32xf32>
    %165 = vector.extract_strided_slice %153 {offsets = [0, 0], sizes = [16, 32], strides = [1, 1]} : vector<16x128xf32> to vector<16x32xf32>
    %166 = vector.extract_strided_slice %153 {offsets = [0, 96], sizes = [16, 32], strides = [1, 1]} : vector<16x128xf32> to vector<16x32xf32>
    %167 = vector.extract_strided_slice %153 {offsets = [0, 64], sizes = [16, 32], strides = [1, 1]} : vector<16x128xf32> to vector<16x32xf32>
    %168 = tpu.concatenate %164, %165, %166, %167 in 1 : vector<16x32xf32>, vector<16x32xf32>, vector<16x32xf32>, vector<16x32xf32> -> vector<16x128xf32>
    %169 = arith.mulf %168, %5 : vector<16x128xf32>
    %170 = arith.addf %163, %169 : vector<16x128xf32>
    %171 = arith.truncf %170 : vector<16x128xf32> to vector<16x128xbf16>
    %172 = vector.extract_strided_slice %151 {offsets = [0, 256], sizes = [16, 128], strides = [1, 1]} : vector<16x384xf32> to vector<16x128xf32>
    %173 = arith.truncf %172 : vector<16x128xf32> to vector<16x128xbf16>
    %c1_59 = arith.constant 1 : index
    %c0_60 = arith.constant 0 : index
    %c0_61 = arith.constant 0 : index
    %174 = vector.load %arg7[%c1_59, %c0_60, %c0_61] : memref<2x128x128xbf16, #tpu.memory_space<vmem>>, vector<1x128x128xbf16>
    %175 = vector.shape_cast %174 : vector<1x128x128xbf16> to vector<128x128xbf16>
    %cst_62 = arith.constant 0.000000e+00 : f32
    %176 = vector.broadcast %cst_62 : f32 to vector<16x128xf32>
    %177 = vector.extract_strided_slice %162 {offsets = [0, 0], sizes = [16, 64], strides = [1, 1]} : vector<16x128xbf16> to vector<16x64xbf16>
    %178 = vector.extract_strided_slice %171 {offsets = [0, 0], sizes = [16, 64], strides = [1, 1]} : vector<16x128xbf16> to vector<16x64xbf16>
    %cst_63 = arith.constant dense<0.000000e+00> : vector<16x16xf32>
    %179 = tpu.matmul %177, %178, %cst_63 {dimension_numbers = #tpu.dot_dimension_numbers<[1], [1], [0], [0], [0, 0, 1, 0], [], []>} : vector<16x64xbf16>, vector<16x64xbf16>, vector<16x16xf32> -> vector<16x16xf32>
    %180 = arith.addf %179, %14 : vector<16x16xf32>
    %cst_64 = arith.constant dense<0xFF800000> : vector<16xf32>
    %181 = vector.multi_reduction <maximumf>, %180, %cst_64 [1] : vector<16x16xf32> to vector<16xf32>
    %182 = vector.shape_cast %181 : vector<16xf32> to vector<16x1xf32>
    %183 = vector.broadcast %182 : vector<16x1xf32> to vector<16x16xf32>
    %184 = arith.subf %180, %183 : vector<16x16xf32>
    %185 = math.exp %184 : vector<16x16xf32>
    %cst_65 = arith.constant dense<0.000000e+00> : vector<16xf32>
    %186 = vector.multi_reduction <add>, %185, %cst_65 [1] : vector<16x16xf32> to vector<16xf32>
    %187 = vector.shape_cast %186 : vector<16xf32> to vector<16x1xf32>
    %188 = arith.truncf %185 : vector<16x16xf32> to vector<16x16xbf16>
    %189 = vector.extract_strided_slice %173 {offsets = [0, 0], sizes = [16, 64], strides = [1, 1]} : vector<16x128xbf16> to vector<16x64xbf16>
    %cst_66 = arith.constant dense<0.000000e+00> : vector<16x64xf32>
    %190 = tpu.matmul %188, %189, %cst_66 {dimension_numbers = #tpu.dot_dimension_numbers<[1], [0], [0], [1], [0, 0, 1, 1], [], []>} : vector<16x16xbf16>, vector<16x64xbf16>, vector<16x64xf32> -> vector<16x64xf32>
    %191 = tpu.reciprocal %187 {approx = true} : vector<16x1xf32> -> vector<16x1xf32>
    %192 = vector.broadcast %191 : vector<16x1xf32> to vector<16x64xf32>
    %193 = arith.mulf %190, %192 : vector<16x64xf32>
    %194 = arith.truncf %193 : vector<16x64xf32> to vector<16x64xbf16>
    %195 = vector.extract_strided_slice %175 {offsets = [0, 0], sizes = [64, 128], strides = [1, 1]} : vector<128x128xbf16> to vector<64x128xbf16>
    %cst_67 = arith.constant dense<0.000000e+00> : vector<16x128xf32>
    %196 = tpu.matmul %194, %195, %cst_67 {dimension_numbers = #tpu.dot_dimension_numbers<[1], [0], [0], [1], [0, 0, 1, 1], [], []>} : vector<16x64xbf16>, vector<64x128xbf16>, vector<16x128xf32> -> vector<16x128xf32>
    %197 = arith.addf %176, %196 : vector<16x128xf32>
    %198 = vector.extract_strided_slice %162 {offsets = [0, 64], sizes = [16, 64], strides = [1, 1]} : vector<16x128xbf16> to vector<16x64xbf16>
    %199 = vector.extract_strided_slice %171 {offsets = [0, 64], sizes = [16, 64], strides = [1, 1]} : vector<16x128xbf16> to vector<16x64xbf16>
    %cst_68 = arith.constant dense<0.000000e+00> : vector<16x16xf32>
    %200 = tpu.matmul %198, %199, %cst_68 {dimension_numbers = #tpu.dot_dimension_numbers<[1], [1], [0], [0], [0, 0, 1, 0], [], []>} : vector<16x64xbf16>, vector<16x64xbf16>, vector<16x16xf32> -> vector<16x16xf32>
    %201 = arith.addf %200, %14 : vector<16x16xf32>
    %cst_69 = arith.constant dense<0xFF800000> : vector<16xf32>
    %202 = vector.multi_reduction <maximumf>, %201, %cst_69 [1] : vector<16x16xf32> to vector<16xf32>
    %203 = vector.shape_cast %202 : vector<16xf32> to vector<16x1xf32>
    %204 = vector.broadcast %203 : vector<16x1xf32> to vector<16x16xf32>
    %205 = arith.subf %201, %204 : vector<16x16xf32>
    %206 = math.exp %205 : vector<16x16xf32>
    %cst_70 = arith.constant dense<0.000000e+00> : vector<16xf32>
    %207 = vector.multi_reduction <add>, %206, %cst_70 [1] : vector<16x16xf32> to vector<16xf32>
    %208 = vector.shape_cast %207 : vector<16xf32> to vector<16x1xf32>
    %209 = arith.truncf %206 : vector<16x16xf32> to vector<16x16xbf16>
    %210 = vector.extract_strided_slice %173 {offsets = [0, 64], sizes = [16, 64], strides = [1, 1]} : vector<16x128xbf16> to vector<16x64xbf16>
    %cst_71 = arith.constant dense<0.000000e+00> : vector<16x64xf32>
    %211 = tpu.matmul %209, %210, %cst_71 {dimension_numbers = #tpu.dot_dimension_numbers<[1], [0], [0], [1], [0, 0, 1, 1], [], []>} : vector<16x16xbf16>, vector<16x64xbf16>, vector<16x64xf32> -> vector<16x64xf32>
    %212 = tpu.reciprocal %208 {approx = true} : vector<16x1xf32> -> vector<16x1xf32>
    %213 = vector.broadcast %212 : vector<16x1xf32> to vector<16x64xf32>
    %214 = arith.mulf %211, %213 : vector<16x64xf32>
    %215 = arith.truncf %214 : vector<16x64xf32> to vector<16x64xbf16>
    %216 = vector.extract_strided_slice %175 {offsets = [64, 0], sizes = [64, 128], strides = [1, 1]} : vector<128x128xbf16> to vector<64x128xbf16>
    %cst_72 = arith.constant dense<0.000000e+00> : vector<16x128xf32>
    %217 = tpu.matmul %215, %216, %cst_72 {dimension_numbers = #tpu.dot_dimension_numbers<[1], [0], [0], [1], [0, 0, 1, 1], [], []>} : vector<16x64xbf16>, vector<64x128xbf16>, vector<16x128xf32> -> vector<16x128xf32>
    %218 = arith.addf %197, %217 : vector<16x128xf32>
    %219 = arith.addf %133, %218 : vector<16x128xf32>
    %c1_73 = arith.constant 1 : index
    %c0_74 = arith.constant 0 : index
    %c0_75 = arith.constant 0 : index
    %220 = vector.load %arg8[%c1_73, %c0_74, %c0_75] : memref<2x1x128xf32, #tpu.memory_space<vmem>>, vector<1x1x128xf32>
    %221 = vector.shape_cast %220 : vector<1x1x128xf32> to vector<1x128xf32>
    %222 = arith.mulf %219, %219 : vector<16x128xf32>
    %cst_76 = arith.constant dense<0.000000e+00> : vector<16xf32>
    %223 = vector.multi_reduction <add>, %222, %cst_76 [1] : vector<16x128xf32> to vector<16xf32>
    %224 = vector.shape_cast %223 : vector<16xf32> to vector<16x1xf32>
    %cst_77 = arith.constant 1.280000e+02 : f32
    %225 = vector.broadcast %cst_77 : f32 to vector<16x1xf32>
    %226 = arith.divf %224, %225 : vector<16x1xf32>
    %cst_78 = arith.constant 9.99999974E-6 : f32
    %227 = vector.broadcast %cst_78 : f32 to vector<16x1xf32>
    %228 = arith.addf %226, %227 : vector<16x1xf32>
    %229 = math.rsqrt %228 : vector<16x1xf32>
    %230 = vector.broadcast %229 : vector<16x1xf32> to vector<16x128xf32>
    %231 = arith.mulf %219, %230 : vector<16x128xf32>
    %232 = vector.broadcast %221 : vector<1x128xf32> to vector<16x128xf32>
    %233 = arith.mulf %231, %232 : vector<16x128xf32>
    %234 = arith.truncf %233 : vector<16x128xf32> to vector<16x128xbf16>
    %c1_79 = arith.constant 1 : index
    %c0_80 = arith.constant 0 : index
    %c0_81 = arith.constant 0 : index
    %235 = vector.load %arg9[%c1_79, %c0_80, %c0_81] : memref<2x128x256xbf16, #tpu.memory_space<vmem>>, vector<1x128x256xbf16>
    %236 = vector.shape_cast %235 : vector<1x128x256xbf16> to vector<128x256xbf16>
    %cst_82 = arith.constant dense<0.000000e+00> : vector<16x256xf32>
    %237 = tpu.matmul %234, %236, %cst_82 {dimension_numbers = #tpu.dot_dimension_numbers<[1], [0], [0], [1], [0, 0, 1, 1], [], []>} : vector<16x128xbf16>, vector<128x256xbf16>, vector<16x256xf32> -> vector<16x256xf32>
    %c1_83 = arith.constant 1 : index
    %c0_84 = arith.constant 0 : index
    %c0_85 = arith.constant 0 : index
    %238 = vector.load %arg10[%c1_83, %c0_84, %c0_85] : memref<2x128x256xbf16, #tpu.memory_space<vmem>>, vector<1x128x256xbf16>
    %239 = vector.shape_cast %238 : vector<1x128x256xbf16> to vector<128x256xbf16>
    %cst_86 = arith.constant dense<0.000000e+00> : vector<16x256xf32>
    %240 = tpu.matmul %234, %239, %cst_86 {dimension_numbers = #tpu.dot_dimension_numbers<[1], [0], [0], [1], [0, 0, 1, 1], [], []>} : vector<16x128xbf16>, vector<128x256xbf16>, vector<16x256xf32> -> vector<16x256xf32>
    %241 = arith.negf %237 : vector<16x256xf32>
    %242 = math.exp %241 : vector<16x256xf32>
    %cst_87 = arith.constant 1.000000e+00 : f32
    %243 = vector.broadcast %cst_87 : f32 to vector<16x256xf32>
    %244 = arith.addf %243, %242 : vector<16x256xf32>
    %245 = arith.divf %243, %244 : vector<16x256xf32>
    %246 = arith.mulf %237, %245 : vector<16x256xf32>
    %247 = arith.mulf %246, %240 : vector<16x256xf32>
    %248 = arith.truncf %247 : vector<16x256xf32> to vector<16x256xbf16>
    %c1_88 = arith.constant 1 : index
    %c0_89 = arith.constant 0 : index
    %c0_90 = arith.constant 0 : index
    %249 = vector.load %arg11[%c1_88, %c0_89, %c0_90] : memref<2x256x128xbf16, #tpu.memory_space<vmem>>, vector<1x256x128xbf16>
    %250 = vector.shape_cast %249 : vector<1x256x128xbf16> to vector<256x128xbf16>
    %cst_91 = arith.constant dense<0.000000e+00> : vector<16x128xf32>
    %251 = tpu.matmul %248, %250, %cst_91 {dimension_numbers = #tpu.dot_dimension_numbers<[1], [0], [0], [1], [0, 0, 1, 1], [], []>} : vector<16x256xbf16>, vector<256x128xbf16>, vector<16x128xf32> -> vector<16x128xf32>
    %252 = arith.addf %219, %251 : vector<16x128xf32>
    %c0_92 = arith.constant 0 : index
    %c0_93 = arith.constant 0 : index
    %c0_94 = arith.constant 0 : index
    %253 = vector.load %arg12[%c0_92, %c0_93, %c0_94] : memref<1x16x128xf32, #tpu.memory_space<vmem>>, vector<1x16x128xf32>
    %254 = vector.shape_cast %253 : vector<1x16x128xf32> to vector<16x128xf32>
    %255 = vector.shape_cast %252 : vector<16x128xf32> to vector<1x16x128xf32>
    tpu.vector_store %arg12[%c0_92, %c0_93, %c0_94], %255 {strides = array<i32>} : memref<1x16x128xf32, #tpu.memory_space<vmem>>, vector<1x16x128xf32>,
    return
  }
  func.func @transform_0(%arg0: i32, %arg1: memref<2xi32, #tpu.memory_space<smem>>) -> (i32, i32, i32) {
    %c0_i32 = arith.constant 0 : i32
    %c0_i32_0 = arith.constant 0 : i32
    %c0_i32_1 = arith.constant 0 : i32
    return %arg0, %c0_i32, %c0_i32_0 : i32, i32, i32
  }
  func.func @transform_1(%arg0: i32, %arg1: memref<2xi32, #tpu.memory_space<smem>>) -> (i32, i32) {
    %c0_i32 = arith.constant 0 : i32
    %c0_i32_0 = arith.constant 0 : i32
    %c0_i32_1 = arith.constant 0 : i32
    return %c0_i32, %c0_i32_0 : i32, i32
  }
  func.func @transform_2(%arg0: i32, %arg1: memref<2xi32, #tpu.memory_space<smem>>) -> (i32, i32) {
    %c0_i32 = arith.constant 0 : i32
    %c0_i32_0 = arith.constant 0 : i32
    %c0_i32_1 = arith.constant 0 : i32
    return %c0_i32, %c0_i32_0 : i32, i32
  }
  func.func @transform_3(%arg0: i32, %arg1: memref<2xi32, #tpu.memory_space<smem>>) -> (i32, i32, i32) {
    %c0_i32 = arith.constant 0 : i32
    %c0_i32_0 = arith.constant 0 : i32
    %c0_i32_1 = arith.constant 0 : i32
    %c0_i32_2 = arith.constant 0 : i32
    return %c0_i32, %c0_i32_0, %c0_i32_1 : i32, i32, i32
  }
  func.func @transform_4(%arg0: i32, %arg1: memref<2xi32, #tpu.memory_space<smem>>) -> (i32, i32, i32) {
    %c0_i32 = arith.constant 0 : i32
    %c0_i32_0 = arith.constant 0 : i32
    %c0_i32_1 = arith.constant 0 : i32
    %c0_i32_2 = arith.constant 0 : i32
    return %c0_i32, %c0_i32_0, %c0_i32_1 : i32, i32, i32
  }
  func.func @transform_5(%arg0: i32, %arg1: memref<2xi32, #tpu.memory_space<smem>>) -> (i32, i32, i32) {
    %c0_i32 = arith.constant 0 : i32
    %c0_i32_0 = arith.constant 0 : i32
    %c0_i32_1 = arith.constant 0 : i32
    %c0_i32_2 = arith.constant 0 : i32
    return %c0_i32, %c0_i32_0, %c0_i32_1 : i32, i32, i32
  }
  func.func @transform_6(%arg0: i32, %arg1: memref<2xi32, #tpu.memory_space<smem>>) -> (i32, i32, i32) {
    %c0_i32 = arith.constant 0 : i32
    %c0_i32_0 = arith.constant 0 : i32
    %c0_i32_1 = arith.constant 0 : i32
    %c0_i32_2 = arith.constant 0 : i32
    return %c0_i32, %c0_i32_0, %c0_i32_1 : i32, i32, i32
  }
  func.func @transform_7(%arg0: i32, %arg1: memref<2xi32, #tpu.memory_space<smem>>) -> (i32, i32, i32) {
    %c0_i32 = arith.constant 0 : i32
    %c0_i32_0 = arith.constant 0 : i32
    %c0_i32_1 = arith.constant 0 : i32
    %c0_i32_2 = arith.constant 0 : i32
    return %c0_i32, %c0_i32_0, %c0_i32_1 : i32, i32, i32
  }
  func.func @transform_8(%arg0: i32, %arg1: memref<2xi32, #tpu.memory_space<smem>>) -> (i32, i32, i32) {
    %c0_i32 = arith.constant 0 : i32
    %c0_i32_0 = arith.constant 0 : i32
    %c0_i32_1 = arith.constant 0 : i32
    %c0_i32_2 = arith.constant 0 : i32
    return %c0_i32, %c0_i32_0, %c0_i32_1 : i32, i32, i32
  }
  func.func @transform_9(%arg0: i32, %arg1: memref<2xi32, #tpu.memory_space<smem>>) -> (i32, i32, i32) {
    %c0_i32 = arith.constant 0 : i32
    %c0_i32_0 = arith.constant 0 : i32
    %c0_i32_1 = arith.constant 0 : i32
    %c0_i32_2 = arith.constant 0 : i32
    return %c0_i32, %c0_i32_0, %c0_i32_1 : i32, i32, i32
  }
  func.func @transform_10(%arg0: i32, %arg1: memref<2xi32, #tpu.memory_space<smem>>) -> (i32, i32, i32) {
    %c0_i32 = arith.constant 0 : i32
    %c0_i32_0 = arith.constant 0 : i32
    %c0_i32_1 = arith.constant 0 : i32
    return %arg0, %c0_i32, %c0_i32_0 : i32, i32, i32
  }
}

module attributes {stable_mosaic.version = 11 : i64} {
  func.func @_stack_kernel(%arg0: i32, %arg1: memref<2xi32, #tpu.memory_space<smem>>, %arg2: memref<1x16x128xf32, #tpu.memory_space<vmem>>, %arg3: memref<16x128xf32, #tpu.memory_space<vmem>>, %arg4: memref<16x128xf32, #tpu.memory_space<vmem>>, %arg5: memref<2x1x128xf32, #tpu.memory_space<vmem>>, %arg6: memref<2x128x384xbf16, #tpu.memory_space<vmem>>, %arg7: memref<2x128x128xbf16, #tpu.memory_space<vmem>>, %arg8: memref<2x1x128xf32, #tpu.memory_space<vmem>>, %arg9: memref<2x128x256xbf16, #tpu.memory_space<vmem>>, %arg10: memref<2x128x256xbf16, #tpu.memory_space<vmem>>, %arg11: memref<2x256x128xbf16, #tpu.memory_space<vmem>>, %arg12: memref<1x16x128xf32, #tpu.memory_space<vmem>>) attributes {dimension_semantics = [#tpu.dimension_semantics<parallel>], iteration_bounds = array<i64: 2>, scalar_prefetch = 1 : i64, scratch_operands = 0 : i64, tpu.core_type = #tpu.core_type<tc>, window_params = [{transform_indices = @transform_0, window_bounds = array<i64: 1, 16, 128>}, {pipeline_mode = #tpu.pipeline_mode<synchronous>, transform_indices = @transform_1, window_bounds = array<i64: 16, 128>}, {pipeline_mode = #tpu.pipeline_mode<synchronous>, transform_indices = @transform_2, window_bounds = array<i64: 16, 128>}, {pipeline_mode = #tpu.pipeline_mode<synchronous>, transform_indices = @transform_3, window_bounds = array<i64: 2, 1, 128>}, {pipeline_mode = #tpu.pipeline_mode<synchronous>, transform_indices = @transform_4, window_bounds = array<i64: 2, 128, 384>}, {pipeline_mode = #tpu.pipeline_mode<synchronous>, transform_indices = @transform_5, window_bounds = array<i64: 2, 128, 128>}, {pipeline_mode = #tpu.pipeline_mode<synchronous>, transform_indices = @transform_6, window_bounds = array<i64: 2, 1, 128>}, {pipeline_mode = #tpu.pipeline_mode<synchronous>, transform_indices = @transform_7, window_bounds = array<i64: 2, 128, 256>}, {pipeline_mode = #tpu.pipeline_mode<synchronous>, transform_indices = @transform_8, window_bounds = array<i64: 2, 128, 256>}, {pipeline_mode = #tpu.pipeline_mode<synchronous>, transform_indices = @transform_9, window_bounds = array<i64: 2, 256, 128>}, {transform_indices = @transform_10, window_bounds = array<i64: 1, 16, 128>}]} {
    %0 = arith.index_cast %arg0 : i32 to index
    %1 = memref.load %arg1[%0] : memref<2xi32, #tpu.memory_space<smem>>
    %c0 = arith.constant 0 : index
    %c0_0 = arith.constant 0 : index
    %c0_1 = arith.constant 0 : index
    %2 = vector.load %arg2[%c0, %c0_0, %c0_1] : memref<1x16x128xf32, #tpu.memory_space<vmem>>, vector<1x16x128xf32>
    %3 = vector.shape_cast %2 : vector<1x16x128xf32> to vector<16x128xf32>
    %c0_2 = arith.constant 0 : index
    %c0_3 = arith.constant 0 : index
    %4 = vector.load %arg3[%c0_2, %c0_3] : memref<16x128xf32, #tpu.memory_space<vmem>>, vector<16x128xf32>
    %c0_4 = arith.constant 0 : index
    %c0_5 = arith.constant 0 : index
    %5 = vector.load %arg4[%c0_4, %c0_5] : memref<16x128xf32, #tpu.memory_space<vmem>>, vector<16x128xf32>
    %6 = tpu.iota {dimensions = array<i32: 0>} : vector<16x16xi32>
    %7 = tpu.iota {dimensions = array<i32: 1>} : vector<16x16xi32>
    %8 = arith.cmpi sle, %7, %6 : vector<16x16xi32>
    %9 = vector.broadcast %1 : i32 to vector<16x16xi32>
    %10 = arith.cmpi slt, %7, %9 : vector<16x16xi32>
    %11 = arith.andi %8, %10 : vector<16x16xi1>
    %cst = arith.constant 0.000000e+00 : f32
    %cst_6 = arith.constant -1.000000e+09 : f32
    %12 = vector.broadcast %cst : f32 to vector<16x16xf32>
    %13 = vector.broadcast %cst_6 : f32 to vector<16x16xf32>
    %14 = arith.select %11, %12, %13 : vector<16x16xi1>, vector<16x16xf32>
    %c0_7 = arith.constant 0 : index
    %c0_8 = arith.constant 0 : index
    %c0_9 = arith.constant 0 : index
    %15 = vector.load %arg5[%c0_7, %c0_8, %c0_9] : memref<2x1x128xf32, #tpu.memory_space<vmem>>, vector<1x1x128xf32>
    %16 = vector.shape_cast %15 : vector<1x1x128xf32> to vector<1x128xf32>
    %17 = arith.mulf %3, %3 : vector<16x128xf32>
    %cst_10 = arith.constant dense<0.000000e+00> : vector<16xf32>
    %18 = vector.multi_reduction <add>, %17, %cst_10 [1] : vector<16x128xf32> to vector<16xf32>
    %19 = vector.shape_cast %18 : vector<16xf32> to vector<16x1xf32>
    %cst_11 = arith.constant 1.280000e+02 : f32
    %20 = vector.broadcast %cst_11 : f32 to vector<16x1xf32>
    %21 = arith.divf %19, %20 : vector<16x1xf32>
    %cst_12 = arith.constant 9.99999974E-6 : f32
    %22 = vector.broadcast %cst_12 : f32 to vector<16x1xf32>
    %23 = arith.addf %21, %22 : vector<16x1xf32>
    %24 = math.rsqrt %23 : vector<16x1xf32>
    %25 = vector.broadcast %24 : vector<16x1xf32> to vector<16x128xf32>
    %26 = arith.mulf %3, %25 : vector<16x128xf32>
    %27 = vector.broadcast %16 : vector<1x128xf32> to vector<16x128xf32>
    %28 = arith.mulf %26, %27 : vector<16x128xf32>
    %29 = arith.truncf %28 : vector<16x128xf32> to vector<16x128xbf16>
    %c0_13 = arith.constant 0 : index
    %c0_14 = arith.constant 0 : index
    %c0_15 = arith.constant 0 : index
    %30 = vector.load %arg6[%c0_13, %c0_14, %c0_15] : memref<2x128x384xbf16, #tpu.memory_space<vmem>>, vector<1x128x384xbf16>
    %31 = vector.shape_cast %30 : vector<1x128x384xbf16> to vector<128x384xbf16>
    %cst_16 = arith.constant dense<0.000000e+00> : vector<16x384xf32>
    %32 = tpu.matmul %29, %31, %cst_16 {dimension_numbers = #tpu.dot_dimension_numbers<[1], [0], [0], [1], [0, 0, 1, 1], [], []>} : vector<16x128xbf16>, vector<128x384xbf16>, vector<16x384xf32> -> vector<16x384xf32>
    %33 = vector.extract_strided_slice %32 {offsets = [0, 0], sizes = [16, 128], strides = [1, 1]} : vector<16x384xf32> to vector<16x128xf32>
    %34 = vector.extract_strided_slice %32 {offsets = [0, 128], sizes = [16, 128], strides = [1, 1]} : vector<16x384xf32> to vector<16x128xf32>
    %35 = arith.mulf %33, %4 : vector<16x128xf32>
    %36 = vector.extract_strided_slice %33 {offsets = [0, 32], sizes = [16, 32], strides = [1, 1]} : vector<16x128xf32> to vector<16x32xf32>
    %37 = vector.extract_strided_slice %33 {offsets = [0, 0], sizes = [16, 32], strides = [1, 1]} : vector<16x128xf32> to vector<16x32xf32>
    %38 = vector.extract_strided_slice %33 {offsets = [0, 96], sizes = [16, 32], strides = [1, 1]} : vector<16x128xf32> to vector<16x32xf32>
    %39 = vector.extract_strided_slice %33 {offsets = [0, 64], sizes = [16, 32], strides = [1, 1]} : vector<16x128xf32> to vector<16x32xf32>
    %40 = tpu.concatenate %36, %37, %38, %39 in 1 : vector<16x32xf32>, vector<16x32xf32>, vector<16x32xf32>, vector<16x32xf32> -> vector<16x128xf32>
    %41 = arith.mulf %40, %5 : vector<16x128xf32>
    %42 = arith.addf %35, %41 : vector<16x128xf32>
    %43 = arith.truncf %42 : vector<16x128xf32> to vector<16x128xbf16>
    %44 = arith.mulf %34, %4 : vector<16x128xf32>
    %45 = vector.extract_strided_slice %34 {offsets = [0, 32], sizes = [16, 32], strides = [1, 1]} : vector<16x128xf32> to vector<16x32xf32>
    %46 = vector.extract_strided_slice %34 {offsets = [0, 0], sizes = [16, 32], strides = [1, 1]} : vector<16x128xf32> to vector<16x32xf32>
    %47 = vector.extract_strided_slice %34 {offsets = [0, 96], sizes = [16, 32], strides = [1, 1]} : vector<16x128xf32> to vector<16x32xf32>
    %48 = vector.extract_strided_slice %34 {offsets = [0, 64], sizes = [16, 32], strides = [1, 1]} : vector<16x128xf32> to vector<16x32xf32>
    %49 = tpu.concatenate %45, %46, %47, %48 in 1 : vector<16x32xf32>, vector<16x32xf32>, vector<16x32xf32>, vector<16x32xf32> -> vector<16x128xf32>
    %50 = arith.mulf %49, %5 : vector<16x128xf32>
    %51 = arith.addf %44, %50 : vector<16x128xf32>
    %52 = arith.truncf %51 : vector<16x128xf32> to vector<16x128xbf16>
    %53 = vector.extract_strided_slice %32 {offsets = [0, 256], sizes = [16, 128], strides = [1, 1]} : vector<16x384xf32> to vector<16x128xf32>
    %54 = arith.truncf %53 : vector<16x128xf32> to vector<16x128xbf16>
    %c0_17 = arith.constant 0 : index
    %c0_18 = arith.constant 0 : index
    %c0_19 = arith.constant 0 : index
    %55 = vector.load %arg7[%c0_17, %c0_18, %c0_19] : memref<2x128x128xbf16, #tpu.memory_space<vmem>>, vector<1x128x128xbf16>
    %56 = vector.shape_cast %55 : vector<1x128x128xbf16> to vector<128x128xbf16>
    %cst_20 = arith.constant 0.000000e+00 : f32
    %57 = vector.broadcast %cst_20 : f32 to vector<16x128xf32>
    %58 = vector.extract_strided_slice %43 {offsets = [0, 0], sizes = [16, 64], strides = [1, 1]} : vector<16x128xbf16> to vector<16x64xbf16>
    %59 = vector.extract_strided_slice %52 {offsets = [0, 0], sizes = [16, 64], strides = [1, 1]} : vector<16x128xbf16> to vector<16x64xbf16>
    %cst_21 = arith.constant dense<0.000000e+00> : vector<16x16xf32>
    %60 = tpu.matmul %58, %59, %cst_21 {dimension_numbers = #tpu.dot_dimension_numbers<[1], [1], [0], [0], [0, 0, 1, 0], [], []>} : vector<16x64xbf16>, vector<16x64xbf16>, vector<16x16xf32> -> vector<16x16xf32>
    %61 = arith.addf %60, %14 : vector<16x16xf32>
    %cst_22 = arith.constant dense<0xFF800000> : vector<16xf32>
    %62 = vector.multi_reduction <maximumf>, %61, %cst_22 [1] : vector<16x16xf32> to vector<16xf32>
    %63 = vector.shape_cast %62 : vector<16xf32> to vector<16x1xf32>
    %64 = vector.broadcast %63 : vector<16x1xf32> to vector<16x16xf32>
    %65 = arith.subf %61, %64 : vector<16x16xf32>
    %66 = math.exp %65 : vector<16x16xf32>
    %cst_23 = arith.constant dense<0.000000e+00> : vector<16xf32>
    %67 = vector.multi_reduction <add>, %66, %cst_23 [1] : vector<16x16xf32> to vector<16xf32>
    %68 = vector.shape_cast %67 : vector<16xf32> to vector<16x1xf32>
    %69 = arith.truncf %66 : vector<16x16xf32> to vector<16x16xbf16>
    %70 = vector.extract_strided_slice %54 {offsets = [0, 0], sizes = [16, 64], strides = [1, 1]} : vector<16x128xbf16> to vector<16x64xbf16>
    %cst_24 = arith.constant dense<0.000000e+00> : vector<16x64xf32>
    %71 = tpu.matmul %69, %70, %cst_24 {dimension_numbers = #tpu.dot_dimension_numbers<[1], [0], [0], [1], [0, 0, 1, 1], [], []>} : vector<16x16xbf16>, vector<16x64xbf16>, vector<16x64xf32> -> vector<16x64xf32>
    %72 = tpu.reciprocal %68 {approx = true} : vector<16x1xf32> -> vector<16x1xf32>
    %73 = vector.broadcast %72 : vector<16x1xf32> to vector<16x64xf32>
    %74 = arith.mulf %71, %73 : vector<16x64xf32>
    %75 = arith.truncf %74 : vector<16x64xf32> to vector<16x64xbf16>
    %76 = vector.extract_strided_slice %56 {offsets = [0, 0], sizes = [64, 128], strides = [1, 1]} : vector<128x128xbf16> to vector<64x128xbf16>
    %cst_25 = arith.constant dense<0.000000e+00> : vector<16x128xf32>
    %77 = tpu.matmul %75, %76, %cst_25 {dimension_numbers = #tpu.dot_dimension_numbers<[1], [0], [0], [1], [0, 0, 1, 1], [], []>} : vector<16x64xbf16>, vector<64x128xbf16>, vector<16x128xf32> -> vector<16x128xf32>
    %78 = arith.addf %57, %77 : vector<16x128xf32>
    %79 = vector.extract_strided_slice %43 {offsets = [0, 64], sizes = [16, 64], strides = [1, 1]} : vector<16x128xbf16> to vector<16x64xbf16>
    %80 = vector.extract_strided_slice %52 {offsets = [0, 64], sizes = [16, 64], strides = [1, 1]} : vector<16x128xbf16> to vector<16x64xbf16>
    %cst_26 = arith.constant dense<0.000000e+00> : vector<16x16xf32>
    %81 = tpu.matmul %79, %80, %cst_26 {dimension_numbers = #tpu.dot_dimension_numbers<[1], [1], [0], [0], [0, 0, 1, 0], [], []>} : vector<16x64xbf16>, vector<16x64xbf16>, vector<16x16xf32> -> vector<16x16xf32>
    %82 = arith.addf %81, %14 : vector<16x16xf32>
    %cst_27 = arith.constant dense<0xFF800000> : vector<16xf32>
    %83 = vector.multi_reduction <maximumf>, %82, %cst_27 [1] : vector<16x16xf32> to vector<16xf32>
    %84 = vector.shape_cast %83 : vector<16xf32> to vector<16x1xf32>
    %85 = vector.broadcast %84 : vector<16x1xf32> to vector<16x16xf32>
    %86 = arith.subf %82, %85 : vector<16x16xf32>
    %87 = math.exp %86 : vector<16x16xf32>
    %cst_28 = arith.constant dense<0.000000e+00> : vector<16xf32>
    %88 = vector.multi_reduction <add>, %87, %cst_28 [1] : vector<16x16xf32> to vector<16xf32>
    %89 = vector.shape_cast %88 : vector<16xf32> to vector<16x1xf32>
    %90 = arith.truncf %87 : vector<16x16xf32> to vector<16x16xbf16>
    %91 = vector.extract_strided_slice %54 {offsets = [0, 64], sizes = [16, 64], strides = [1, 1]} : vector<16x128xbf16> to vector<16x64xbf16>
    %cst_29 = arith.constant dense<0.000000e+00> : vector<16x64xf32>
    %92 = tpu.matmul %90, %91, %cst_29 {dimension_numbers = #tpu.dot_dimension_numbers<[1], [0], [0], [1], [0, 0, 1, 1], [], []>} : vector<16x16xbf16>, vector<16x64xbf16>, vector<16x64xf32> -> vector<16x64xf32>
    %93 = tpu.reciprocal %89 {approx = true} : vector<16x1xf32> -> vector<16x1xf32>
    %94 = vector.broadcast %93 : vector<16x1xf32> to vector<16x64xf32>
    %95 = arith.mulf %92, %94 : vector<16x64xf32>
    %96 = arith.truncf %95 : vector<16x64xf32> to vector<16x64xbf16>
    %97 = vector.extract_strided_slice %56 {offsets = [64, 0], sizes = [64, 128], strides = [1, 1]} : vector<128x128xbf16> to vector<64x128xbf16>
    %cst_30 = arith.constant dense<0.000000e+00> : vector<16x128xf32>
    %98 = tpu.matmul %96, %97, %cst_30 {dimension_numbers = #tpu.dot_dimension_numbers<[1], [0], [0], [1], [0, 0, 1, 1], [], []>} : vector<16x64xbf16>, vector<64x128xbf16>, vector<16x128xf32> -> vector<16x128xf32>
    %99 = arith.addf %78, %98 : vector<16x128xf32>
    %100 = arith.addf %3, %99 : vector<16x128xf32>
    %c0_31 = arith.constant 0 : index
    %c0_32 = arith.constant 0 : index
    %c0_33 = arith.constant 0 : index
    %101 = vector.load %arg8[%c0_31, %c0_32, %c0_33] : memref<2x1x128xf32, #tpu.memory_space<vmem>>, vector<1x1x128xf32>
    %102 = vector.shape_cast %101 : vector<1x1x128xf32> to vector<1x128xf32>
    %103 = arith.mulf %100, %100 : vector<16x128xf32>
    %cst_34 = arith.constant dense<0.000000e+00> : vector<16xf32>
    %104 = vector.multi_reduction <add>, %103, %cst_34 [1] : vector<16x128xf32> to vector<16xf32>
    %105 = vector.shape_cast %104 : vector<16xf32> to vector<16x1xf32>
    %cst_35 = arith.constant 1.280000e+02 : f32
    %106 = vector.broadcast %cst_35 : f32 to vector<16x1xf32>
    %107 = arith.divf %105, %106 : vector<16x1xf32>
    %cst_36 = arith.constant 9.99999974E-6 : f32
    %108 = vector.broadcast %cst_36 : f32 to vector<16x1xf32>
    %109 = arith.addf %107, %108 : vector<16x1xf32>
    %110 = math.rsqrt %109 : vector<16x1xf32>
    %111 = vector.broadcast %110 : vector<16x1xf32> to vector<16x128xf32>
    %112 = arith.mulf %100, %111 : vector<16x128xf32>
    %113 = vector.broadcast %102 : vector<1x128xf32> to vector<16x128xf32>
    %114 = arith.mulf %112, %113 : vector<16x128xf32>
    %115 = arith.truncf %114 : vector<16x128xf32> to vector<16x128xbf16>
    %c0_37 = arith.constant 0 : index
    %c0_38 = arith.constant 0 : index
    %c0_39 = arith.constant 0 : index
    %116 = vector.load %arg9[%c0_37, %c0_38, %c0_39] : memref<2x128x256xbf16, #tpu.memory_space<vmem>>, vector<1x128x256xbf16>
    %117 = vector.shape_cast %116 : vector<1x128x256xbf16> to vector<128x256xbf16>
    %cst_40 = arith.constant dense<0.000000e+00> : vector<16x256xf32>
    %118 = tpu.matmul %115, %117, %cst_40 {dimension_numbers = #tpu.dot_dimension_numbers<[1], [0], [0], [1], [0, 0, 1, 1], [], []>} : vector<16x128xbf16>, vector<128x256xbf16>, vector<16x256xf32> -> vector<16x256xf32>
    %c0_41 = arith.constant 0 : index
    %c0_42 = arith.constant 0 : index
    %c0_43 = arith.constant 0 : index
    %119 = vector.load %arg10[%c0_41, %c0_42, %c0_43] : memref<2x128x256xbf16, #tpu.memory_space<vmem>>, vector<1x128x256xbf16>
    %120 = vector.shape_cast %119 : vector<1x128x256xbf16> to vector<128x256xbf16>
    %cst_44 = arith.constant dense<0.000000e+00> : vector<16x256xf32>
    %121 = tpu.matmul %115, %120, %cst_44 {dimension_numbers = #tpu.dot_dimension_numbers<[1], [0], [0], [1], [0, 0, 1, 1], [], []>} : vector<16x128xbf16>, vector<128x256xbf16>, vector<16x256xf32> -> vector<16x256xf32>
    %122 = arith.negf %118 : vector<16x256xf32>
    %123 = math.exp %122 : vector<16x256xf32>
    %cst_45 = arith.constant 1.000000e+00 : f32
    %124 = vector.broadcast %cst_45 : f32 to vector<16x256xf32>
    %125 = arith.addf %124, %123 : vector<16x256xf32>
    %126 = arith.divf %124, %125 : vector<16x256xf32>
    %127 = arith.mulf %118, %126 : vector<16x256xf32>
    %128 = arith.mulf %127, %121 : vector<16x256xf32>
    %129 = arith.truncf %128 : vector<16x256xf32> to vector<16x256xbf16>
    %c0_46 = arith.constant 0 : index
    %c0_47 = arith.constant 0 : index
    %c0_48 = arith.constant 0 : index
    %130 = vector.load %arg11[%c0_46, %c0_47, %c0_48] : memref<2x256x128xbf16, #tpu.memory_space<vmem>>, vector<1x256x128xbf16>
    %131 = vector.shape_cast %130 : vector<1x256x128xbf16> to vector<256x128xbf16>
    %cst_49 = arith.constant dense<0.000000e+00> : vector<16x128xf32>
    %132 = tpu.matmul %129, %131, %cst_49 {dimension_numbers = #tpu.dot_dimension_numbers<[1], [0], [0], [1], [0, 0, 1, 1], [], []>} : vector<16x256xbf16>, vector<256x128xbf16>, vector<16x128xf32> -> vector<16x128xf32>
    %133 = arith.addf %100, %132 : vector<16x128xf32>
    %c1 = arith.constant 1 : index
    %c0_50 = arith.constant 0 : index
    %c0_51 = arith.constant 0 : index
    %134 = vector.load %arg5[%c1, %c0_50, %c0_51] : memref<2x1x128xf32, #tpu.memory_space<vmem>>, vector<1x1x128xf32>
    %135 = vector.shape_cast %134 : vector<1x1x128xf32> to vector<1x128xf32>
    %136 = arith.mulf %133, %133 : vector<16x128xf32>
    %cst_52 = arith.constant dense<0.000000e+00> : vector<16xf32>
    %137 = vector.multi_reduction <add>, %136, %cst_52 [1] : vector<16x128xf32> to vector<16xf32>
    %138 = vector.shape_cast %137 : vector<16xf32> to vector<16x1xf32>
    %cst_53 = arith.constant 1.280000e+02 : f32
    %139 = vector.broadcast %cst_53 : f32 to vector<16x1xf32>
    %140 = arith.divf %138, %139 : vector<16x1xf32>
    %cst_54 = arith.constant 9.99999974E-6 : f32
    %141 = vector.broadcast %cst_54 : f32 to vector<16x1xf32>
    %142 = arith.addf %140, %141 : vector<16x1xf32>
    %143 = math.rsqrt %142 : vector<16x1xf32>
    %144 = vector.broadcast %143 : vector<16x1xf32> to vector<16x128xf32>
    %145 = arith.mulf %133, %144 : vector<16x128xf32>
    %146 = vector.broadcast %135 : vector<1x128xf32> to vector<16x128xf32>
    %147 = arith.mulf %145, %146 : vector<16x128xf32>
    %148 = arith.truncf %147 : vector<16x128xf32> to vector<16x128xbf16>
    %c1_55 = arith.constant 1 : index
    %c0_56 = arith.constant 0 : index
    %c0_57 = arith.constant 0 : index
    %149 = vector.load %arg6[%c1_55, %c0_56, %c0_57] : memref<2x128x384xbf16, #tpu.memory_space<vmem>>, vector<1x128x384xbf16>
    %150 = vector.shape_cast %149 : vector<1x128x384xbf16> to vector<128x384xbf16>
    %cst_58 = arith.constant dense<0.000000e+00> : vector<16x384xf32>
    %151 = tpu.matmul %148, %150, %cst_58 {dimension_numbers = #tpu.dot_dimension_numbers<[1], [0], [0], [1], [0, 0, 1, 1], [], []>} : vector<16x128xbf16>, vector<128x384xbf16>, vector<16x384xf32> -> vector<16x384xf32>
    %152 = vector.extract_strided_slice %151 {offsets = [0, 0], sizes = [16, 128], strides = [1, 1]} : vector<16x384xf32> to vector<16x128xf32>
    %153 = vector.extract_strided_slice %151 {offsets = [0, 128], sizes = [16, 128], strides = [1, 1]} : vector<16x384xf32> to vector<16x128xf32>
    %154 = arith.mulf %152, %4 : vector<16x128xf32>
    %155 = vector.extract_strided_slice %152 {offsets = [0, 32], sizes = [16, 32], strides = [1, 1]} : vector<16x128xf32> to vector<16x32xf32>
    %156 = vector.extract_strided_slice %152 {offsets = [0, 0], sizes = [16, 32], strides = [1, 1]} : vector<16x128xf32> to vector<16x32xf32>
    %157 = vector.extract_strided_slice %152 {offsets = [0, 96], sizes = [16, 32], strides = [1, 1]} : vector<16x128xf32> to vector<16x32xf32>
    %158 = vector.extract_strided_slice %152 {offsets = [0, 64], sizes = [16, 32], strides = [1, 1]} : vector<16x128xf32> to vector<16x32xf32>
    %159 = tpu.concatenate %155, %156, %157, %158 in 1 : vector<16x32xf32>, vector<16x32xf32>, vector<16x32xf32>, vector<16x32xf32> -> vector<16x128xf32>
    %160 = arith.mulf %159, %5 : vector<16x128xf32>
    %161 = arith.addf %154, %160 : vector<16x128xf32>
    %162 = arith.truncf %161 : vector<16x128xf32> to vector<16x128xbf16>
    %163 = arith.mulf %153, %4 : vector<16x128xf32>
    %164 = vector.extract_strided_slice %153 {offsets = [0, 32], sizes = [16, 32], strides = [1, 1]} : vector<16x128xf32> to vector<16x32xf32>
    %165 = vector.extract_strided_slice %153 {offsets = [0, 0], sizes = [16, 32], strides = [1, 1]} : vector<16x128xf32> to vector<16x32xf32>
    %166 = vector.extract_strided_slice %153 {offsets = [0, 96], sizes = [16, 32], strides = [1, 1]} : vector<16x128xf32> to vector<16x32xf32>
    %167 = vector.extract_strided_slice %153 {offsets = [0, 64], sizes = [16, 32], strides = [1, 1]} : vector<16x128xf32> to vector<16x32xf32>
    %168 = tpu.concatenate %164, %165, %166, %167 in 1 : vector<16x32xf32>, vector<16x32xf32>, vector<16x32xf32>, vector<16x32xf32> -> vector<16x128xf32>
    %169 = arith.mulf %168, %5 : vector<16x128xf32>
    %170 = arith.addf %163, %169 : vector<16x128xf32>
    %171 = arith.truncf %170 : vector<16x128xf32> to vector<16x128xbf16>
    %172 = vector.extract_strided_slice %151 {offsets = [0, 256], sizes = [16, 128], strides = [1, 1]} : vector<16x384xf32> to vector<16x128xf32>
    %173 = arith.truncf %172 : vector<16x128xf32> to vector<16x128xbf16>
    %c1_59 = arith.constant 1 : index
    %c0_60 = arith.constant 0 : index
    %c0_61 = arith.constant 0 : index
    %174 = vector.load %arg7[%c1_59, %c0_60, %c0_61] : memref<2x128x128xbf16, #tpu.memory_space<vmem>>, vector<1x128x128xbf16>
    %175 = vector.shape_cast %174 : vector<1x128x128xbf16> to vector<128x128xbf16>
    %cst_62 = arith.constant 0.000000e+00 : f32
    %176 = vector.broadcast %cst_62 : f32 to vector<16x128xf32>
    %177 = vector.extract_strided_slice %162 {offsets = [0, 0], sizes = [16, 64], strides = [1, 1]} : vector<16x128xbf16> to vector<16x64xbf16>
    %178 = vector.extract_strided_slice %171 {offsets = [0, 0], sizes = [16, 64], strides = [1, 1]} : vector<16x128xbf16> to vector<16x64xbf16>
    %cst_63 = arith.constant dense<0.000000e+00> : vector<16x16xf32>
    %179 = tpu.matmul %177, %178, %cst_63 {dimension_numbers = #tpu.dot_dimension_numbers<[1], [1], [0], [0], [0, 0, 1, 0], [], []>} : vector<16x64xbf16>, vector<16x64xbf16>, vector<16x16xf32> -> vector<16x16xf32>
    %180 = arith.addf %179, %14 : vector<16x16xf32>
    %cst_64 = arith.constant dense<0xFF800000> : vector<16xf32>
    %181 = vector.multi_reduction <maximumf>, %180, %cst_64 [1] : vector<16x16xf32> to vector<16xf32>
    %182 = vector.shape_cast %181 : vector<16xf32> to vector<16x1xf32>
    %183 = vector.broadcast %182 : vector<16x1xf32> to vector<16x16xf32>
    %184 = arith.subf %180, %183 : vector<16x16xf32>
    %185 = math.exp %184 : vector<16x16xf32>
    %cst_65 = arith.constant dense<0.000000e+00> : vector<16xf32>
    %186 = vector.multi_reduction <add>, %185, %cst_65 [1] : vector<16x16xf32> to vector<16xf32>
    %187 = vector.shape_cast %186 : vector<16xf32> to vector<16x1xf32>
    %188 = arith.truncf %185 : vector<16x16xf32> to vector<16x16xbf16>
    %189 = vector.extract_strided_slice %173 {offsets = [0, 0], sizes = [16, 64], strides = [1, 1]} : vector<16x128xbf16> to vector<16x64xbf16>
    %cst_66 = arith.constant dense<0.000000e+00> : vector<16x64xf32>
    %190 = tpu.matmul %188, %189, %cst_66 {dimension_numbers = #tpu.dot_dimension_numbers<[1], [0], [0], [1], [0, 0, 1, 1], [], []>} : vector<16x16xbf16>, vector<16x64xbf16>, vector<16x64xf32> -> vector<16x64xf32>
    %191 = tpu.reciprocal %187 {approx = true} : vector<16x1xf32> -> vector<16x1xf32>
    %192 = vector.broadcast %191 : vector<16x1xf32> to vector<16x64xf32>
    %193 = arith.mulf %190, %192 : vector<16x64xf32>
    %194 = arith.truncf %193 : vector<16x64xf32> to vector<16x64xbf16>
    %195 = vector.extract_strided_slice %175 {offsets = [0, 0], sizes = [64, 128], strides = [1, 1]} : vector<128x128xbf16> to vector<64x128xbf16>
    %cst_67 = arith.constant dense<0.000000e+00> : vector<16x128xf32>
    %196 = tpu.matmul %194, %195, %cst_67 {dimension_numbers = #tpu.dot_dimension_numbers<[1], [0], [0], [1], [0, 0, 1, 1], [], []>} : vector<16x64xbf16>, vector<64x128xbf16>, vector<16x128xf32> -> vector<16x128xf32>
    %197 = arith.addf %176, %196 : vector<16x128xf32>
    %198 = vector.extract_strided_slice %162 {offsets = [0, 64], sizes = [16, 64], strides = [1, 1]} : vector<16x128xbf16> to vector<16x64xbf16>
    %199 = vector.extract_strided_slice %171 {offsets = [0, 64], sizes = [16, 64], strides = [1, 1]} : vector<16x128xbf16> to vector<16x64xbf16>
    %cst_68 = arith.constant dense<0.000000e+00> : vector<16x16xf32>
    %200 = tpu.matmul %198, %199, %cst_68 {dimension_numbers = #tpu.dot_dimension_numbers<[1], [1], [0], [0], [0, 0, 1, 0], [], []>} : vector<16x64xbf16>, vector<16x64xbf16>, vector<16x16xf32> -> vector<16x16xf32>
    %201 = arith.addf %200, %14 : vector<16x16xf32>
    %cst_69 = arith.constant dense<0xFF800000> : vector<16xf32>
    %202 = vector.multi_reduction <maximumf>, %201, %cst_69 [1] : vector<16x16xf32> to vector<16xf32>
    %203 = vector.shape_cast %202 : vector<16xf32> to vector<16x1xf32>
    %204 = vector.broadcast %203 : vector<16x1xf32> to vector<16x16xf32>
    %205 = arith.subf %201, %204 : vector<16x16xf32>
    %206 = math.exp %205 : vector<16x16xf32>
    %cst_70 = arith.constant dense<0.000000e+00> : vector<16xf32>
    %207 = vector.multi_reduction <add>, %206, %cst_70 [1] : vector<16x16xf32> to vector<16xf32>
    %208 = vector.shape_cast %207 : vector<16xf32> to vector<16x1xf32>
    %209 = arith.truncf %206 : vector<16x16xf32> to vector<16x16xbf16>
    %210 = vector.extract_strided_slice %173 {offsets = [0, 64], sizes = [16, 64], strides = [1, 1]} : vector<16x128xbf16> to vector<16x64xbf16>
    %cst_71 = arith.constant dense<0.000000e+00> : vector<16x64xf32>
    %211 = tpu.matmul %209, %210, %cst_71 {dimension_numbers = #tpu.dot_dimension_numbers<[1], [0], [0], [1], [0, 0, 1, 1], [], []>} : vector<16x16xbf16>, vector<16x64xbf16>, vector<16x64xf32> -> vector<16x64xf32>
    %212 = tpu.reciprocal %208 {approx = true} : vector<16x1xf32> -> vector<16x1xf32>
    %213 = vector.broadcast %212 : vector<16x1xf32> to vector<16x64xf32>
    %214 = arith.mulf %211, %213 : vector<16x64xf32>
    %215 = arith.truncf %214 : vector<16x64xf32> to vector<16x64xbf16>
    %216 = vector.extract_strided_slice %175 {offsets = [64, 0], sizes = [64, 128], strides = [1, 1]} : vector<128x128xbf16> to vector<64x128xbf16>
    %cst_72 = arith.constant dense<0.000000e+00> : vector<16x128xf32>
    %217 = tpu.matmul %215, %216, %cst_72 {dimension_numbers = #tpu.dot_dimension_numbers<[1], [0], [0], [1], [0, 0, 1, 1], [], []>} : vector<16x64xbf16>, vector<64x128xbf16>, vector<16x128xf32> -> vector<16x128xf32>
    %218 = arith.addf %197, %217 : vector<16x128xf32>
    %219 = arith.addf %133, %218 : vector<16x128xf32>
    %c1_73 = arith.constant 1 : index
    %c0_74 = arith.constant 0 : index
    %c0_75 = arith.constant 0 : index
    %220 = vector.load %arg8[%c1_73, %c0_74, %c0_75] : memref<2x1x128xf32, #tpu.memory_space<vmem>>, vector<1x1x128xf32>
    %221 = vector.shape_cast %220 : vector<1x1x128xf32> to vector<1x128xf32>
    %222 = arith.mulf %219, %219 : vector<16x128xf32>
    %cst_76 = arith.constant dense<0.000000e+00> : vector<16xf32>
    %223 = vector.multi_reduction <add>, %222, %cst_76 [1] : vector<16x128xf32> to vector<16xf32>
    %224 = vector.shape_cast %223 : vector<16xf32> to vector<16x1xf32>
    %cst_77 = arith.constant 1.280000e+02 : f32
    %225 = vector.broadcast %cst_77 : f32 to vector<16x1xf32>
    %226 = arith.divf %224, %225 : vector<16x1xf32>
    %cst_78 = arith.constant 9.99999974E-6 : f32
    %227 = vector.broadcast %cst_78 : f32 to vector<16x1xf32>
    %228 = arith.addf %226, %227 : vector<16x1xf32>
    %229 = math.rsqrt %228 : vector<16x1xf32>
    %230 = vector.broadcast %229 : vector<16x1xf32> to vector<16x128xf32>
    %231 = arith.mulf %219, %230 : vector<16x128xf32>
    %232 = vector.broadcast %221 : vector<1x128xf32> to vector<16x128xf32>
    %233 = arith.mulf %231, %232 : vector<16x128xf32>
    %234 = arith.truncf %233 : vector<16x128xf32> to vector<16x128xbf16>
    %c1_79 = arith.constant 1 : index
    %c0_80 = arith.constant 0 : index
    %c0_81 = arith.constant 0 : index
    %235 = vector.load %arg9[%c1_79, %c0_80, %c0_81] : memref<2x128x256xbf16, #tpu.memory_space<vmem>>, vector<1x128x256xbf16>
    %236 = vector.shape_cast %235 : vector<1x128x256xbf16> to vector<128x256xbf16>
    %cst_82 = arith.constant dense<0.000000e+00> : vector<16x256xf32>
    %237 = tpu.matmul %234, %236, %cst_82 {dimension_numbers = #tpu.dot_dimension_numbers<[1], [0], [0], [1], [0, 0, 1, 1], [], []>} : vector<16x128xbf16>, vector<128x256xbf16>, vector<16x256xf32> -> vector<16x256xf32>
    %c1_83 = arith.constant 1 : index
    %c0_84 = arith.constant 0 : index
    %c0_85 = arith.constant 0 : index
    %238 = vector.load %arg10[%c1_83, %c0_84, %c0_85] : memref<2x128x256xbf16, #tpu.memory_space<vmem>>, vector<1x128x256xbf16>
    %239 = vector.shape_cast %238 : vector<1x128x256xbf16> to vector<128x256xbf16>
    %cst_86 = arith.constant dense<0.000000e+00> : vector<16x256xf32>
    %240 = tpu.matmul %234, %239, %cst_86 {dimension_numbers = #tpu.dot_dimension_numbers<[1], [0], [0], [1], [0, 0, 1, 1], [], []>} : vector<16x128xbf16>, vector<128x256xbf16>, vector<16x256xf32> -> vector<16x256xf32>
    %241 = arith.negf %237 : vector<16x256xf32>
    %242 = math.exp %241 : vector<16x256xf32>
    %cst_87 = arith.constant 1.000000e+00 : f32
    %243 = vector.broadcast %cst_87 : f32 to vector<16x256xf32>
    %244 = arith.addf %243, %242 : vector<16x256xf32>
    %245 = arith.divf %243, %244 : vector<16x256xf32>
    %246 = arith.mulf %237, %245 : vector<16x256xf32>
    %247 = arith.mulf %246, %240 : vector<16x256xf32>
    %248 = arith.truncf %247 : vector<16x256xf32> to vector<16x256xbf16>
    %c1_88 = arith.constant 1 : index
    %c0_89 = arith.constant 0 : index
    %c0_90 = arith.constant 0 : index
    %249 = vector.load %arg11[%c1_88, %c0_89, %c0_90] : memref<2x256x128xbf16, #tpu.memory_space<vmem>>, vector<1x256x128xbf16>
    %250 = vector.shape_cast %249 : vector<1x256x128xbf16> to vector<256x128xbf16>
    %cst_91 = arith.constant dense<0.000000e+00> : vector<16x128xf32>
    %251 = tpu.matmul %248, %250, %cst_91 {dimension_numbers = #tpu.dot_dimension_numbers<[1], [0], [0], [1], [0, 0, 1, 1], [], []>} : vector<16x256xbf16>, vector<256x128xbf16>, vector<16x128xf32> -> vector<16x128xf32>
    %252 = arith.addf %219, %251 : vector<16x128xf32>
    %c0_92 = arith.constant 0 : index
    %c0_93 = arith.constant 0 : index
    %c0_94 = arith.constant 0 : index
    %253 = vector.load %arg12[%c0_92, %c0_93, %c0_94] : memref<1x16x128xf32, #tpu.memory_space<vmem>>, vector<1x16x128xf32>
    %254 = vector.shape_cast %253 : vector<1x16x128xf32> to vector<16x128xf32>
    %255 = vector.shape_cast %252 : vector<16x128xf32> to vector<1x16x128xf32>
    tpu.vector_store %arg12[%c0_92, %c0_93, %c0_94], %255 {strides = array<i32>} : memref<1x16x128xf32, #tpu.memory_space<vmem>>, vector<1x16x128xf32>,
    return
  }
  func.func @transform_0(%arg0: i32, %arg1: memref<2xi32, #tpu.memory_space<smem>>) -> (i32, i32, i32) {
    %c0_i32 = arith.constant 0 : i32
    %c0_i32_0 = arith.constant 0 : i32
    %c0_i32_1 = arith.constant 0 : i32
    return %arg0, %c0_i32, %c0_i32_0 : i32, i32, i32
  }
  func.func @transform_1(%arg0: i32, %arg1: memref<2xi32, #tpu.memory_space<smem>>) -> (i32, i32) {
    %c0_i32 = arith.constant 0 : i32
    %c0_i32_0 = arith.constant 0 : i32
    %c0_i32_1 = arith.constant 0 : i32
    return %c0_i32, %c0_i32_0 : i32, i32
  }
  func.func @transform_2(%arg0: i32, %arg1: memref<2xi32, #tpu.memory_space<smem>>) -> (i32, i32) {
    %c0_i32 = arith.constant 0 : i32
    %c0_i32_0 = arith.constant 0 : i32
    %c0_i32_1 = arith.constant 0 : i32
    return %c0_i32, %c0_i32_0 : i32, i32
  }
  func.func @transform_3(%arg0: i32, %arg1: memref<2xi32, #tpu.memory_space<smem>>) -> (i32, i32, i32) {
    %c0_i32 = arith.constant 0 : i32
    %c0_i32_0 = arith.constant 0 : i32
    %c0_i32_1 = arith.constant 0 : i32
    %c0_i32_2 = arith.constant 0 : i32
    return %c0_i32, %c0_i32_0, %c0_i32_1 : i32, i32, i32
  }
  func.func @transform_4(%arg0: i32, %arg1: memref<2xi32, #tpu.memory_space<smem>>) -> (i32, i32, i32) {
    %c0_i32 = arith.constant 0 : i32
    %c0_i32_0 = arith.constant 0 : i32
    %c0_i32_1 = arith.constant 0 : i32
    %c0_i32_2 = arith.constant 0 : i32
    return %c0_i32, %c0_i32_0, %c0_i32_1 : i32, i32, i32
  }
  func.func @transform_5(%arg0: i32, %arg1: memref<2xi32, #tpu.memory_space<smem>>) -> (i32, i32, i32) {
    %c0_i32 = arith.constant 0 : i32
    %c0_i32_0 = arith.constant 0 : i32
    %c0_i32_1 = arith.constant 0 : i32
    %c0_i32_2 = arith.constant 0 : i32
    return %c0_i32, %c0_i32_0, %c0_i32_1 : i32, i32, i32
  }
  func.func @transform_6(%arg0: i32, %arg1: memref<2xi32, #tpu.memory_space<smem>>) -> (i32, i32, i32) {
    %c0_i32 = arith.constant 0 : i32
    %c0_i32_0 = arith.constant 0 : i32
    %c0_i32_1 = arith.constant 0 : i32
    %c0_i32_2 = arith.constant 0 : i32
    return %c0_i32, %c0_i32_0, %c0_i32_1 : i32, i32, i32
  }
  func.func @transform_7(%arg0: i32, %arg1: memref<2xi32, #tpu.memory_space<smem>>) -> (i32, i32, i32) {
    %c0_i32 = arith.constant 0 : i32
    %c0_i32_0 = arith.constant 0 : i32
    %c0_i32_1 = arith.constant 0 : i32
    %c0_i32_2 = arith.constant 0 : i32
    return %c0_i32, %c0_i32_0, %c0_i32_1 : i32, i32, i32
  }
  func.func @transform_8(%arg0: i32, %arg1: memref<2xi32, #tpu.memory_space<smem>>) -> (i32, i32, i32) {
    %c0_i32 = arith.constant 0 : i32
    %c0_i32_0 = arith.constant 0 : i32
    %c0_i32_1 = arith.constant 0 : i32
    %c0_i32_2 = arith.constant 0 : i32
    return %c0_i32, %c0_i32_0, %c0_i32_1 : i32, i32, i32
  }
  func.func @transform_9(%arg0: i32, %arg1: memref<2xi32, #tpu.memory_space<smem>>) -> (i32, i32, i32) {
    %c0_i32 = arith.constant 0 : i32
    %c0_i32_0 = arith.constant 0 : i32
    %c0_i32_1 = arith.constant 0 : i32
    %c0_i32_2 = arith.constant 0 : i32
    return %c0_i32, %c0_i32_0, %c0_i32_1 : i32, i32, i32
  }
  func.func @transform_10(%arg0: i32, %arg1: memref<2xi32, #tpu.memory_space<smem>>) -> (i32, i32, i32) {
    %c0_i32 = arith.constant 0 : i32
    %c0_i32_0 = arith.constant 0 : i32
    %c0_i32_1 = arith.constant 0 : i32
    return %arg0, %c0_i32, %c0_i32_0 : i32, i32, i32
  }
}

</mosaic_0001>

<llo_original>
// kernel: tpu_custom_call.1
$region0: #{tpu_custom_call.1}
  #allocation0 [shape = 'u32[]', space=smem, size = 0x4, offset = 0x4, fixed_abs, tag = 'smem constant byte address 0x4 - core index']
  #allocation1 [shape = 'u32[144,128]{1,0:T(1,128)}', space=vmem, size = 0x12000, scoped, tag = 'internal scratch']
  #allocation2 [shape = 's32[1]{0}', space=sflag, size = 0x4, scoped, tag = 'scoped memory for tpu_custom_call.1']
  #allocation3 [shape = 'u8[512]{0}', space=smem, size = 0x200, scoped, tag = 'prefetched SMEM operand 0']
  %s0 = inlined_call_operand.hbm [shape: s32[2], index: 0, kind: input, shape index: {}]
  %s1 = inlined_call_operand.hbm [shape: f32[2,16,128], index: 1, kind: input, shape index: {}]
  %s2 = inlined_call_operand.hbm [shape: f32[16,128], index: 2, kind: input, shape index: {}]
  %s3 = inlined_call_operand.hbm [shape: f32[16,128], index: 3, kind: input, shape index: {}]
  %s4 = inlined_call_operand.vmem [shape: f32[2,1,128], index: 4, kind: input, shape index: {}]
  %s5 = inlined_call_operand.hbm [shape: bf16[2,128,384], index: 5, kind: input, shape index: {}]
  %s6 = inlined_call_operand.hbm [shape: bf16[2,128,128], index: 6, kind: input, shape index: {}]
  %s7 = inlined_call_operand.vmem [shape: f32[2,1,128], index: 7, kind: input, shape index: {}]
  %s8 = inlined_call_operand.hbm [shape: bf16[2,128,256], index: 8, kind: input, shape index: {}]
  %s9 = inlined_call_operand.hbm [shape: bf16[2,128,256], index: 9, kind: input, shape index: {}]
  %s10 = inlined_call_operand.hbm [shape: bf16[2,256,128], index: 10, kind: input, shape index: {}]
  %s11 = inlined_call_operand.hbm [shape: f32[2,16,128], index: 11, kind: output, shape index: {}]
  %s12 = sld [smem:[#allocation0]]
  $region105: #{tpu_custom_call.1} parent=0
    _
  %s14 = ssub.s32 1, %s12
  %s15 = scalar_select 0, %s14, %s12
  %17 = dma.hbm_to_smem %s0, 16, [#allocation3], [#allocation2]
  %18 = dma.done [#allocation2], 16
  %19 = sfence
  $region1: #{tpu_custom_call.1} parent=0
    #allocation4 [shape = 'u8[16384]{0}', space=vmem, size = 0x4000, scoped, tag = 'input window, operand 1']
    #allocation5 [shape = 's32[2]{0}', space=sflag, size = 0x8, scoped, tag = 'scoped memory for tpu_custom_call.1']
    #allocation6 [shape = 's32[2]{0}', space=sflag, size = 0x8, scoped, tag = 'scoped memory for tpu_custom_call.1']
    #allocation7 [shape = 'u8[8192]{0}', space=vmem, size = 0x2000, scoped, tag = 'input window, operand 2, single buffered']
    #allocation8 [shape = 's32[1]{0}', space=sflag, size = 0x4, scoped, tag = 'scoped memory for tpu_custom_call.1']
    #allocation9 [shape = 'u8[8192]{0}', space=vmem, size = 0x2000, scoped, tag = 'input window, operand 3, single buffered']
    #allocation10 [shape = 'u8[196608]{0}', space=vmem, size = 0x30000, scoped, tag = 'input window, operand 5, single buffered']
    #allocation11 [shape = 's32[1]{0}', space=sflag, size = 0x4, scoped, tag = 'scoped memory for tpu_custom_call.1']
    #allocation12 [shape = 'u8[65536]{0}', space=vmem, size = 0x10000, scoped, tag = 'input window, operand 6, single buffered']
    #allocation13 [shape = 'u8[131072]{0}', space=vmem, size = 0x20000, scoped, tag = 'input window, operand 8, single buffered']
    #allocation14 [shape = 's32[1]{0}', space=sflag, size = 0x4, scoped, tag = 'scoped memory for tpu_custom_call.1']
    #allocation15 [shape = 'u8[131072]{0}', space=vmem, size = 0x20000, scoped, tag = 'input window, operand 9, single buffered']
    #allocation16 [shape = 'u8[131072]{0}', space=vmem, size = 0x20000, scoped, tag = 'input window, operand 10, single buffered']
    #allocation17 [shape = 's32[1]{0}', space=sflag, size = 0x4, scoped, tag = 'scoped memory for tpu_custom_call.1']
    #allocation18 [shape = 'u8[16384]{0}', space=vmem, size = 0x4000, scoped, tag = 'output window, operand 0']
    %20 = vsyncpa [#allocation5], 0
    %s21 = scalar_lea.sflag [#allocation5], 1
    %22 = vsyncpa %s21, 0
    %23 = vsyncpa [#allocation8], 0
    %24 = vsyncpa [#allocation11], 0
    %25 = vsyncpa [#allocation14], 0
    %26 = vsyncpa [#allocation17], 0
    %27 = vsyncpa [#allocation6], 0
    %s28 = scalar_lea.sflag [#allocation6], 1
    %29 = vsyncpa %s28, 0
    loop: start=0, step=1, limit=4
    $region2: #{tpu_custom_call.1} parent=1 // loop_pre_header
      _
    $region3: #{tpu_custom_call.1} parent=1 // loop_header
      %s31 = sphi 0, %s35
      %p32 = scmp.ge.s32.totalorder %s31, 4
      %s41 = sphi 0, %s43
      %s44 = sphi 0, %s41
      %s45 = sphi 0, %s44
      %s61 = sphi 0, %s45
      %s65 = sphi 0, %s65
      %s67 = sphi 0, %s65
      %s68 = sphi 0, %s67
      %s82 = sphi 0, %s68
      %s86 = sphi 0, %s86
      %s88 = sphi 0, %s86
      %s89 = sphi 0, %s88
      %s103 = sphi 0, %s89
      %s107 = sphi 0, %s107
      %s109 = sphi 0, %s107
      %s110 = sphi 0, %s109
      %s124 = sphi 0, %s110
      %s128 = sphi 0, %s128
      %s130 = sphi 0, %s128
      %s131 = sphi 0, %s130
      %s145 = sphi 0, %s131
      %s149 = sphi 0, %s149
      %s151 = sphi 0, %s149
      %s152 = sphi 0, %s151
      %s166 = sphi 0, %s152
      %s170 = sphi 0, %s170
      %s172 = sphi 0, %s170
      %s173 = sphi 0, %s172
      %s187 = sphi 0, %s173
      %s191 = sphi 0, %s191
      %s193 = sphi 0, %s191
      %s194 = sphi 0, %s193
      %s208 = sphi 0, %s194
      %s212 = sphi 0, %s212
      %s214 = sphi 0, %s212
      %s215 = sphi 0, %s214
      %s229 = sphi 0, %s215
      %s233 = sphi 0, %s233
      %s235 = sphi 0, %s233
      %s236 = sphi 0, %s235
      %s250 = sphi 0, %s236
      %s256 = sphi 0, %s258
      %s259 = sphi 0, %s256
      %s260 = sphi 0, %s259
      %s276 = sphi 0, %s260
    $region4: #{tpu_custom_call.1} parent=1 // loop_header_branch
      %34 = sbr.rel (%p32) target = $region8
    $region5: #{tpu_custom_call.1} parent=1 // loop_body
      %s36 = ssub.s32 %s31, 1
      %s37 = ssub.s32 %s31, 2
      %s38 = sadd.s32 %s31, 1
      %s39 = ssub.s32 %s31, %s38
      %p40 = scmp.eq.s32.totalorder %s39, 0
      %s42 = sadd.s32 %s41, 1
      %s43 = scalar_select %p40, %s41, %s42
      %p46 = pneg %p40
      %p47 = scmp.eq.s32.totalorder %s31, 1
      %p48 = por %p46, %p47
      %p49 = scmp.ne.s32.totalorder %s41, %s44
      %p50 = scmp.eq.s32.totalorder %s31, 0
      %p51 = por %p49, %p50
      %p52 = scmp.ne.s32.totalorder %s41, %s44
      %p53 = scmp.eq.s32.totalorder %s36, 1
      %p54 = por %p52, %p53
      %p55 = scmp.ne.s32.totalorder %s44, %s45
      %p56 = scmp.eq.s32.totalorder %s36, 0
      %p57 = por %p55, %p56
      %p58 = scmp.ne.s32.totalorder %s44, %s45
      %p59 = scmp.eq.s32.totalorder %s37, 1
      %p60 = por %p58, %p59
      %p62 = scmp.ne.s32.totalorder %s45, %s61
      %p63 = scmp.eq.s32.totalorder %s37, 0
      %p64 = por %p62, %p63
      %s66 = sadd.s32 %s65, 1
      %p69 = scmp.eq.s32.totalorder %s31, 1
      %p70 = scmp.ne.s32.totalorder %s65, %s67
      %p71 = scmp.eq.s32.totalorder %s31, 0
      %p72 = por %p70, %p71
      %p73 = scmp.ne.s32.totalorder %s65, %s67
      %p74 = scmp.eq.s32.totalorder %s36, 1
      %p75 = por %p73, %p74
      %p76 = scmp.ne.s32.totalorder %s67, %s68
      %p77 = scmp.eq.s32.totalorder %s36, 0
      %p78 = por %p76, %p77
      %p79 = scmp.ne.s32.totalorder %s67, %s68
      %p80 = scmp.eq.s32.totalorder %s37, 1
      %p81 = por %p79, %p80
      %p83 = scmp.ne.s32.totalorder %s68, %s82
      %p84 = scmp.eq.s32.totalorder %s37, 0
      %p85 = por %p83, %p84
      %s87 = sadd.s32 %s86, 1
      %p90 = scmp.eq.s32.totalorder %s31, 1
      %p91 = scmp.ne.s32.totalorder %s86, %s88
      %p92 = scmp.eq.s32.totalorder %s31, 0
      %p93 = por %p91, %p92
      %p94 = scmp.ne.s32.totalorder %s86, %s88
      %p95 = scmp.eq.s32.totalorder %s36, 1
      %p96 = por %p94, %p95
      %p97 = scmp.ne.s32.totalorder %s88, %s89
      %p98 = scmp.eq.s32.totalorder %s36, 0
      %p99 = por %p97, %p98
      %p100 = scmp.ne.s32.totalorder %s88, %s89
      %p101 = scmp.eq.s32.totalorder %s37, 1
      %p102 = por %p100, %p101
      %p104 = scmp.ne.s32.totalorder %s89, %s103
      %p105 = scmp.eq.s32.totalorder %s37, 0
      %p106 = por %p104, %p105
      %s108 = sadd.s32 %s107, 1
      %p111 = scmp.eq.s32.totalorder %s31, 1
      %p112 = scmp.ne.s32.totalorder %s107, %s109
      %p113 = scmp.eq.s32.totalorder %s31, 0
      %p114 = por %p112, %p113
      %p115 = scmp.ne.s32.totalorder %s107, %s109
      %p116 = scmp.eq.s32.totalorder %s36, 1
      %p117 = por %p115, %p116
      %p118 = scmp.ne.s32.totalorder %s109, %s110
      %p119 = scmp.eq.s32.totalorder %s36, 0
      %p120 = por %p118, %p119
      %p121 = scmp.ne.s32.totalorder %s109, %s110
      %p122 = scmp.eq.s32.totalorder %s37, 1
      %p123 = por %p121, %p122
      %p125 = scmp.ne.s32.totalorder %s110, %s124
      %p126 = scmp.eq.s32.totalorder %s37, 0
      %p127 = por %p125, %p126
      %s129 = sadd.s32 %s128, 1
      %p132 = scmp.eq.s32.totalorder %s31, 1
      %p133 = scmp.ne.s32.totalorder %s128, %s130
      %p134 = scmp.eq.s32.totalorder %s31, 0
      %p135 = por %p133, %p134
      %p136 = scmp.ne.s32.totalorder %s128, %s130
      %p137 = scmp.eq.s32.totalorder %s36, 1
      %p138 = por %p136, %p137
      %p139 = scmp.ne.s32.totalorder %s130, %s131
      %p140 = scmp.eq.s32.totalorder %s36, 0
      %p141 = por %p139, %p140
      %p142 = scmp.ne.s32.totalorder %s130, %s131
      %p143 = scmp.eq.s32.totalorder %s37, 1
      %p144 = por %p142, %p143
      %p146 = scmp.ne.s32.totalorder %s131, %s145
      %p147 = scmp.eq.s32.totalorder %s37, 0
      %p148 = por %p146, %p147
      %s150 = sadd.s32 %s149, 1
      %p153 = scmp.eq.s32.totalorder %s31, 1
      %p154 = scmp.ne.s32.totalorder %s149, %s151
      %p155 = scmp.eq.s32.totalorder %s31, 0
      %p156 = por %p154, %p155
      %p157 = scmp.ne.s32.totalorder %s149, %s151
      %p158 = scmp.eq.s32.totalorder %s36, 1
      %p159 = por %p157, %p158
      %p160 = scmp.ne.s32.totalorder %s151, %s152
      %p161 = scmp.eq.s32.totalorder %s36, 0
      %p162 = por %p160, %p161
      %p163 = scmp.ne.s32.totalorder %s151, %s152
      %p164 = scmp.eq.s32.totalorder %s37, 1
      %p165 = por %p163, %p164
      %p167 = scmp.ne.s32.totalorder %s152, %s166
      %p168 = scmp.eq.s32.totalorder %s37, 0
      %p169 = por %p167, %p168
      %s171 = sadd.s32 %s170, 1
      %p174 = scmp.eq.s32.totalorder %s31, 1
      %p175 = scmp.ne.s32.totalorder %s170, %s172
      %p176 = scmp.eq.s32.totalorder %s31, 0
      %p177 = por %p175, %p176
      %p178 = scmp.ne.s32.totalorder %s170, %s172
      %p179 = scmp.eq.s32.totalorder %s36, 1
      %p180 = por %p178, %p179
      %p181 = scmp.ne.s32.totalorder %s172, %s173
      %p182 = scmp.eq.s32.totalorder %s36, 0
      %p183 = por %p181, %p182
      %p184 = scmp.ne.s32.totalorder %s172, %s173
      %p185 = scmp.eq.s32.totalorder %s37, 1
      %p186 = por %p184, %p185
      %p188 = scmp.ne.s32.totalorder %s173, %s187
      %p189 = scmp.eq.s32.totalorder %s37, 0
      %p190 = por %p188, %p189
      %s192 = sadd.s32 %s191, 1
      %p195 = scmp.eq.s32.totalorder %s31, 1
      %p196 = scmp.ne.s32.totalorder %s191, %s193
      %p197 = scmp.eq.s32.totalorder %s31, 0
      %p198 = por %p196, %p197
      %p199 = scmp.ne.s32.totalorder %s191, %s193
      %p200 = scmp.eq.s32.totalorder %s36, 1
      %p201 = por %p199, %p200
      %p202 = scmp.ne.s32.totalorder %s193, %s194
      %p203 = scmp.eq.s32.totalorder %s36, 0
      %p204 = por %p202, %p203
      %p205 = scmp.ne.s32.totalorder %s193, %s194
      %p206 = scmp.eq.s32.totalorder %s37, 1
      %p207 = por %p205, %p206
      %p209 = scmp.ne.s32.totalorder %s194, %s208
      %p210 = scmp.eq.s32.totalorder %s37, 0
      %p211 = por %p209, %p210
      %s213 = sadd.s32 %s212, 1
      %p216 = scmp.eq.s32.totalorder %s31, 1
      %p217 = scmp.ne.s32.totalorder %s212, %s214
      %p218 = scmp.eq.s32.totalorder %s31, 0
      %p219 = por %p217, %p218
      %p220 = scmp.ne.s32.totalorder %s212, %s214
      %p221 = scmp.eq.s32.totalorder %s36, 1
      %p222 = por %p220, %p221
      %p223 = scmp.ne.s32.totalorder %s214, %s215
      %p224 = scmp.eq.s32.totalorder %s36, 0
      %p225 = por %p223, %p224
      %p226 = scmp.ne.s32.totalorder %s214, %s215
      %p227 = scmp.eq.s32.totalorder %s37, 1
      %p228 = por %p226, %p227
      %p230 = scmp.ne.s32.totalorder %s215, %s229
      %p231 = scmp.eq.s32.totalorder %s37, 0
      %p232 = por %p230, %p231
      %s234 = sadd.s32 %s233, 1
      %p237 = scmp.eq.s32.totalorder %s31, 1
      %p238 = scmp.ne.s32.totalorder %s233, %s235
      %p239 = scmp.eq.s32.totalorder %s31, 0
      %p240 = por %p238, %p239
      %p241 = scmp.ne.s32.totalorder %s233, %s235
      %p242 = scmp.eq.s32.totalorder %s36, 1
      %p243 = por %p241, %p242
      %p244 = scmp.ne.s32.totalorder %s235, %s236
      %p245 = scmp.eq.s32.totalorder %s36, 0
      %p246 = por %p244, %p245
      %p247 = scmp.ne.s32.totalorder %s235, %s236
      %p248 = scmp.eq.s32.totalorder %s37, 1
      %p249 = por %p247, %p248
      %p251 = scmp.ne.s32.totalorder %s236, %s250
      %p252 = scmp.eq.s32.totalorder %s37, 0
      %p253 = por %p251, %p252
      %s254 = ssub.s32 %s31, %s38
      %p255 = scmp.eq.s32.totalorder %s254, 0
      %s257 = sadd.s32 %s256, 1
      %s258 = scalar_select %p255, %s256, %s257
      %p261 = pneg %p255
      %p262 = scmp.eq.s32.totalorder %s31, 1
      %p263 = por %p261, %p262
      %p264 = scmp.ne.s32.totalorder %s256, %s259
      %p265 = scmp.eq.s32.totalorder %s31, 0
      %p266 = por %p264, %p265
      %p267 = scmp.ne.s32.totalorder %s256, %s259
      %p268 = scmp.eq.s32.totalorder %s36, 1
      %p269 = por %p267, %p268
      %p270 = scmp.ne.s32.totalorder %s259, %s260
      %p271 = scmp.eq.s32.totalorder %s36, 0
      %p272 = por %p270, %p271
      %p273 = scmp.ne.s32.totalorder %s259, %s260
      %p274 = scmp.eq.s32.totalorder %s37, 1
      %p275 = por %p273, %p274
      %p277 = scmp.ne.s32.totalorder %s260, %s276
      %p278 = scmp.eq.s32.totalorder %s37, 0
      %p279 = por %p277, %p278
      %p280 = scmp.le.s32.totalorder 1, %s31
      %p281 = scmp.lt.s32.totalorder %s31, 3
      %p282 = pnand %p280, %p281
      %p283 = pneg %p282
      // Predicated region
      $region9: #{tpu_custom_call.1} parent=5 // pred_check
        _
      $region10: #{tpu_custom_call.1} parent=5 // pred_check_branch
        %285 = sbr.rel (%p282) target = $region12
      $region11: #{tpu_custom_call.1} parent=5 // pred_region
        %s286 = ssub.s32 %s31, 1
        // Predicated region
        $region13: #{tpu_custom_call.1} parent=11 // pred_check
          %p287 = pneg %p78
        $region14: #{tpu_custom_call.1} parent=11 // pred_check_branch
          %289 = sbr.rel (%p287) target = $region16
        $region15: #{tpu_custom_call.1} parent=11 // pred_region
          %s291 = ssub.s32 256, 256
          %292 = vsyncadd [#allocation8], %s291
          %s293 = sshll.u32 [#allocation7], 4
          %s294 = int_to_ptr.vmem [resolvable:$true] %s293
          %299 = dma.hbm_to_vmem [thread:$0]  %s2, 256, %s294, [#allocation8], 128, 128, 8
        $region16: #{tpu_custom_call.1} parent=11 // pred_fallthru
          _
        // Predicated region
        $region17: #{tpu_custom_call.1} parent=11 // pred_check
          %p300 = pneg %p99
        $region18: #{tpu_custom_call.1} parent=11 // pred_check_branch
          %302 = sbr.rel (%p300) target = $region20
        $region19: #{tpu_custom_call.1} parent=11 // pred_region
          %s304 = ssub.s32 256, 256
          %305 = vsyncadd [#allocation8], %s304
          %s306 = sshll.u32 [#allocation9], 4
          %s307 = int_to_ptr.vmem [resolvable:$true] %s306
          %312 = dma.hbm_to_vmem [thread:$0]  %s3, 256, %s307, [#allocation8], 128, 128, 8
        $region20: #{tpu_custom_call.1} parent=11 // pred_fallthru
          _
        // Predicated region
        $region21: #{tpu_custom_call.1} parent=11 // pred_check
          %p313 = pneg %p120
        $region22: #{tpu_custom_call.1} parent=11 // pred_check_branch
          %315 = sbr.rel (%p313) target = $region24
        $region23: #{tpu_custom_call.1} parent=11 // pred_region
          _
        $region24: #{tpu_custom_call.1} parent=11 // pred_fallthru
          _
        // Predicated region
        $region25: #{tpu_custom_call.1} parent=11 // pred_check
          %p316 = pneg %p141
        $region26: #{tpu_custom_call.1} parent=11 // pred_check_branch
          %318 = sbr.rel (%p316) target = $region28
        $region27: #{tpu_custom_call.1} parent=11 // pred_region
          %s320 = ssub.s32 6144, 6144
          %321 = vsyncadd [#allocation11], %s320
          %s322 = sshll.u32 [#allocation10], 4
          %s323 = int_to_ptr.vmem [resolvable:$true] %s322
          %328 = dma.hbm_to_vmem [thread:$0]  %s5, 6144, %s323, [#allocation11], 192, 192, 12
        $region28: #{tpu_custom_call.1} parent=11 // pred_fallthru
          _
        // Predicated region
        $region29: #{tpu_custom_call.1} parent=11 // pred_check
          %p329 = pneg %p162
        $region30: #{tpu_custom_call.1} parent=11 // pred_check_branch
          %331 = sbr.rel (%p329) target = $region32
        $region31: #{tpu_custom_call.1} parent=11 // pred_region
          %s333 = ssub.s32 2048, 2048
          %334 = vsyncadd [#allocation11], %s333
          %s335 = sshll.u32 [#allocation12], 4
          %s336 = int_to_ptr.vmem [resolvable:$true] %s335
          %341 = dma.hbm_to_vmem [thread:$0]  %s6, 2048, %s336, [#allocation11], 64, 64, 4
        $region32: #{tpu_custom_call.1} parent=11 // pred_fallthru
          _
        // Predicated region
        $region33: #{tpu_custom_call.1} parent=11 // pred_check
          %p342 = pneg %p183
        $region34: #{tpu_custom_call.1} parent=11 // pred_check_branch
          %344 = sbr.rel (%p342) target = $region36
        $region35: #{tpu_custom_call.1} parent=11 // pred_region
          _
        $region36: #{tpu_custom_call.1} parent=11 // pred_fallthru
          _
        // Predicated region
        $region37: #{tpu_custom_call.1} parent=11 // pred_check
          %p345 = pneg %p204
        $region38: #{tpu_custom_call.1} parent=11 // pred_check_branch
          %347 = sbr.rel (%p345) target = $region40
        $region39: #{tpu_custom_call.1} parent=11 // pred_region
          %s349 = ssub.s32 4096, 4096
          %350 = vsyncadd [#allocation14], %s349
          %s351 = sshll.u32 [#allocation13], 4
          %s352 = int_to_ptr.vmem [resolvable:$true] %s351
          %357 = dma.hbm_to_vmem [thread:$0]  %s8, 4096, %s352, [#allocation14], 128, 128, 8
        $region40: #{tpu_custom_call.1} parent=11 // pred_fallthru
          _
        // Predicated region
        $region41: #{tpu_custom_call.1} parent=11 // pred_check
          %p358 = pneg %p225
        $region42: #{tpu_custom_call.1} parent=11 // pred_check_branch
          %360 = sbr.rel (%p358) target = $region44
        $region43: #{tpu_custom_call.1} parent=11 // pred_region
          %s362 = ssub.s32 4096, 4096
          %363 = vsyncadd [#allocation14], %s362
          %s364 = sshll.u32 [#allocation15], 4
          %s365 = int_to_ptr.vmem [resolvable:$true] %s364
          %370 = dma.hbm_to_vmem [thread:$0]  %s9, 4096, %s365, [#allocation14], 128, 128, 8
        $region44: #{tpu_custom_call.1} parent=11 // pred_fallthru
          _
        // Predicated region
        $region45: #{tpu_custom_call.1} parent=11 // pred_check
          %p371 = pneg %p246
        $region46: #{tpu_custom_call.1} parent=11 // pred_check_branch
          %373 = sbr.rel (%p371) target = $region48
        $region47: #{tpu_custom_call.1} parent=11 // pred_region
          %s375 = ssub.s32 4096, 4096
          %376 = vsyncadd [#allocation17], %s375
          %s377 = sshll.u32 [#allocation16], 4
          %s378 = int_to_ptr.vmem [resolvable:$true] %s377
          %383 = dma.hbm_to_vmem [thread:$0]  %s10, 4096, %s378, [#allocation17], 64, 64, 4
        $region48: #{tpu_custom_call.1} parent=11 // pred_fallthru
          _
      $region12: #{tpu_custom_call.1} parent=5 // pred_fallthru
        _
      %p384 = scmp.lt.s32.totalorder %s31, 2
      // Predicated region
      $region49: #{tpu_custom_call.1} parent=5 // pred_check
        %p385 = pneg %p384
      $region50: #{tpu_custom_call.1} parent=5 // pred_check_branch
        %387 = sbr.rel (%p385) target = $region52
      $region51: #{tpu_custom_call.1} parent=5 // pred_region
        // Predicated region
        $region53: #{tpu_custom_call.1} parent=51 // pred_check
          %p388 = pneg %p51
        $region54: #{tpu_custom_call.1} parent=51 // pred_check_branch
          %390 = sbr.rel (%p388) target = $region56
        $region55: #{tpu_custom_call.1} parent=51 // pred_region
          %s391 = sand.u32 %s41, 1
          %s392 = scalar_lea.sflag [#allocation5], %s391
          %s393 = sand.u32 %s41, 1
          %s394 = smul.addr %s393, 16
          %s395 = scalar_lea.vmem [#allocation4], %s394
          %s397 = ssub.s32 256, 256
          %398 = vsyncadd %s392, %s397
          %s399 = smul.addr %s31, 2
          %s400 = smul.addr %s399, 128
          %s401 = scalar_lea.hbm %s1, %s400
          %s402 = sshll.u32 %s395, 4
          %s403 = int_to_ptr.vmem [resolvable:$true] %s402
          %408 = dma.hbm_to_vmem [thread:$0]  %s401, 256, %s403, %s392, 128, 128, 8
        $region56: #{tpu_custom_call.1} parent=51 // pred_fallthru
          _
      $region52: #{tpu_custom_call.1} parent=5 // pred_fallthru
        _
      %p409 = scmp.le.s32.totalorder 1, %s31
      %p410 = scmp.lt.s32.totalorder %s31, 3
      %p411 = pnand %p409, %p410
      %p412 = pneg %p411
      // Predicated region
      $region57: #{tpu_custom_call.1} parent=5 // pred_check
        _
      $region58: #{tpu_custom_call.1} parent=5 // pred_check_branch
        %414 = sbr.rel (%p411) target = $region60
      $region59: #{tpu_custom_call.1} parent=5 // pred_region
        %s415 = ssub.s32 %s31, 1
        %s416 = sand.u32 %s44, 1
        %s417 = scalar_lea.sflag [#allocation5], %s416
        %s418 = sand.u32 %s44, 1
        %s419 = smul.addr %s418, 16
        %s420 = scalar_lea.vmem [#allocation4], %s419
        // Predicated region
        $region61: #{tpu_custom_call.1} parent=59 // pred_check
          %p421 = pneg %p57
        $region62: #{tpu_custom_call.1} parent=59 // pred_check_branch
          %423 = sbr.rel (%p421) target = $region64
        $region63: #{tpu_custom_call.1} parent=59 // pred_region
          %424 = dma.done %s417, 256
        $region64: #{tpu_custom_call.1} parent=59 // pred_fallthru
          _
        // Predicated region
        $region65: #{tpu_custom_call.1} parent=59 // pred_check
          %p425 = pneg %p78
        $region66: #{tpu_custom_call.1} parent=59 // pred_check_branch
          %427 = sbr.rel (%p425) target = $region68
        $region67: #{tpu_custom_call.1} parent=59 // pred_region
          %428 = dma.done [#allocation8], 256
        $region68: #{tpu_custom_call.1} parent=59 // pred_fallthru
          _
        // Predicated region
        $region69: #{tpu_custom_call.1} parent=59 // pred_check
          %p429 = pneg %p99
        $region70: #{tpu_custom_call.1} parent=59 // pred_check_branch
          %431 = sbr.rel (%p429) target = $region72
        $region71: #{tpu_custom_call.1} parent=59 // pred_region
          %432 = dma.done [#allocation8], 256
        $region72: #{tpu_custom_call.1} parent=59 // pred_fallthru
          _
        // Predicated region
        $region73: #{tpu_custom_call.1} parent=59 // pred_check
          %p433 = pneg %p141
        $region74: #{tpu_custom_call.1} parent=59 // pred_check_branch
          %435 = sbr.rel (%p433) target = $region76
        $region75: #{tpu_custom_call.1} parent=59 // pred_region
          %436 = dma.done [#allocation11], 6144
        $region76: #{tpu_custom_call.1} parent=59 // pred_fallthru
          _
        // Predicated region
        $region77: #{tpu_custom_call.1} parent=59 // pred_check
          %p437 = pneg %p162
        $region78: #{tpu_custom_call.1} parent=59 // pred_check_branch
          %439 = sbr.rel (%p437) target = $region80
        $region79: #{tpu_custom_call.1} parent=59 // pred_region
          %440 = dma.done [#allocation11], 2048
        $region80: #{tpu_custom_call.1} parent=59 // pred_fallthru
          _
        // Predicated region
        $region81: #{tpu_custom_call.1} parent=59 // pred_check
          %p441 = pneg %p204
        $region82: #{tpu_custom_call.1} parent=59 // pred_check_branch
          %443 = sbr.rel (%p441) target = $region84
        $region83: #{tpu_custom_call.1} parent=59 // pred_region
          %444 = dma.done [#allocation14], 4096
        $region84: #{tpu_custom_call.1} parent=59 // pred_fallthru
          _
        // Predicated region
        $region85: #{tpu_custom_call.1} parent=59 // pred_check
          %p445 = pneg %p225
        $region86: #{tpu_custom_call.1} parent=59 // pred_check_branch
          %447 = sbr.rel (%p445) target = $region88
        $region87: #{tpu_custom_call.1} parent=59 // pred_region
          %448 = dma.done [#allocation14], 4096
        $region88: #{tpu_custom_call.1} parent=59 // pred_fallthru
          _
        // Predicated region
        $region89: #{tpu_custom_call.1} parent=59 // pred_check
          %p449 = pneg %p246
        $region90: #{tpu_custom_call.1} parent=59 // pred_check_branch
          %451 = sbr.rel (%p449) target = $region92
        $region91: #{tpu_custom_call.1} parent=59 // pred_region
          %452 = dma.done [#allocation17], 4096
        $region92: #{tpu_custom_call.1} parent=59 // pred_fallthru
          _
        %s453 = sand.u32 %s44, 1
        %s454 = scalar_lea.sflag [#allocation5], %s453
        %s455 = sand.u32 %s44, 1
        %s456 = smul.addr %s455, 16
        %s457 = scalar_lea.vmem [#allocation4], %s456
        %p458 = pneg %p57
        %p459 = pneg %p54
        %p460 = pneg %p78
        %p461 = pneg %p75
        %p462 = pneg %p99
        %p463 = pneg %p96
        %p464 = pneg %p120
        %p465 = pneg %p117
        %p466 = pneg %p141
        %p467 = pneg %p138
        %p468 = pneg %p162
        %p469 = pneg %p159
        %p470 = pneg %p183
        %p471 = pneg %p180
        %p472 = pneg %p204
        %p473 = pneg %p201
        %p474 = pneg %p225
        %p475 = pneg %p222
        %p476 = pneg %p246
        %p477 = pneg %p243
        %p478 = pneg %p272
        %p479 = pneg %p269
        %s480 = sand.u32 %s259, 1
        %s481 = scalar_lea.sflag [#allocation6], %s480
        %s482 = sand.u32 %s259, 1
        %s483 = smul.addr %s482, 16
        %s484 = scalar_lea.vmem [#allocation18], %s483
        %s486 = sld [smem:[#allocation3 + %s36]]
        %v487 = vld [vmem:[%s420] sm:$0xff]
        %v488 = vld [vmem:[%s420 + $0x8] sm:$0xff]
        %v489 = vld [vmem:[#allocation7] sm:$0xff]
        %v490 = vld [vmem:[#allocation7 + $0x8] sm:$0xff]
        %v491 = vld [vmem:[#allocation9] sm:$0xff]
        %v492 = vld [vmem:[#allocation9 + $0x8] sm:$0xff]
        %v493 = vlaneseq
        %v494 = vshrl.u32 %v493, 7
        %v495 = vadd.s32 %v494, 8
        %v496 = vlaneseq
        %v497 = vand.u32 %v496, 127
        %vm498 = vcmp.le.s32.totalorder %v497, %v494
        %vm499 = vcmp.le.s32.totalorder %v497, %v495
        %v500 = vstv %s486
        %vm501 = vcmp.lt.s32.totalorder %v497, %v500
        %vm502 = vmand %vm498, %vm501
        %vm503 = vmand %vm499, %vm501
        %v504 = vsel %vm502, 0.0, -1e+09
        %v505 = vsel %vm503, 0.0, -1e+09
        %v506 = vld [vmem:[%s4] sm:$0x1]
        %v507 = vmul.f32 %v487, %v487
        %v508 = vmul.f32 %v488, %v488
        %509 = vadd.xlane.f32.xlu0 %v507
        %v510 = vpop.xlane.xlu0 %509
        %511 = vadd.xlane.f32.xlu0 %v508
        %v512 = vpop.xlane.xlu0 %511
        %v513 = vrcp.pop 128.0
        %v514 = vmul.f32 %v510, %v513
        %v515 = vmul.f32 %v512, %v513
        %v516 = vadd.f32 %v514, 1e-05
        %v517 = vadd.f32 %v515, 1e-05
        %v518 = vrsqrt.pop %v516
        %v519 = vrsqrt.pop %v517
        %v520 = vmul.f32 %v487, %v518
        %v521 = vmul.f32 %v488, %v519
        %v523 = vlaneseq
        %v524 = vshrl.u32 %v523, 7
        %v525 = vsub.s32 0, %v524
        %v526 = vrot.slane %v506, %v525
        %v528 = vmul.f32 %v520, %v526
        %v529 = vmul.f32 %v521, %v526
        %v530 = vpack.c.bf16 %v529, %v528
        %v531 = vld [vmem:[#allocation10] sm:$0xff]
        %v532 = vld [vmem:[#allocation10 + $0x8] sm:$0xf]
        %v533 = vld [vmem:[#allocation10 + $0xc] sm:$0xff]
        %v534 = vld [vmem:[#allocation10 + $0x14] sm:$0xf]
        %v535 = vld [vmem:[#allocation10 + $0x18] sm:$0xff]
        %v536 = vld [vmem:[#allocation10 + $0x20] sm:$0xf]
        %v537 = vld [vmem:[#allocation10 + $0x24] sm:$0xff]
        %v538 = vld [vmem:[#allocation10 + $0x2c] sm:$0xf]
        %v539 = vld [vmem:[#allocation10 + $0x30] sm:$0xff]
        %v540 = vld [vmem:[#allocation10 + $0x38] sm:$0xf]
        %v541 = vld [vmem:[#allocation10 + $0x3c] sm:$0xff]
        %v542 = vld [vmem:[#allocation10 + $0x44] sm:$0xf]
        %v543 = vld [vmem:[#allocation10 + $0x48] sm:$0xff]
        %v544 = vld [vmem:[#allocation10 + $0x50] sm:$0xf]
        %v545 = vld [vmem:[#allocation10 + $0x54] sm:$0xff]
        %v546 = vld [vmem:[#allocation10 + $0x5c] sm:$0xf]
        %v547 = vld [vmem:[#allocation10 + $0x60] sm:$0xff]
        %v548 = vld [vmem:[#allocation10 + $0x68] sm:$0xf]
        %v549 = vld [vmem:[#allocation10 + $0x6c] sm:$0xff]
        %v550 = vld [vmem:[#allocation10 + $0x74] sm:$0xf]
        %v551 = vld [vmem:[#allocation10 + $0x78] sm:$0xff]
        %v552 = vld [vmem:[#allocation10 + $0x80] sm:$0xf]
        %v553 = vld [vmem:[#allocation10 + $0x84] sm:$0xff]
        %v554 = vld [vmem:[#allocation10 + $0x8c] sm:$0xf]
        %v555 = vld [vmem:[#allocation10 + $0x90] sm:$0xff]
        %v556 = vld [vmem:[#allocation10 + $0x98] sm:$0xf]
        %v557 = vld [vmem:[#allocation10 + $0x9c] sm:$0xff]
        %v558 = vld [vmem:[#allocation10 + $0xa4] sm:$0xf]
        %v559 = vld [vmem:[#allocation10 + $0xa8] sm:$0xff]
        %v560 = vld [vmem:[#allocation10 + $0xb0] sm:$0xf]
        %v561 = vld [vmem:[#allocation10 + $0xb4] sm:$0xff]
        %v562 = vld [vmem:[#allocation10 + $0xbc] sm:$0xf]
        %v595 = vunpack.c.l.b16 %v531
        %v596 = vunpack.c.h.b16 %v531
        %v597 = vunpack.c.l.b16 %v532
        %v598 = vunpack.c.l.b16 %v533
        %v599 = vunpack.c.h.b16 %v533
        %v600 = vunpack.c.l.b16 %v534
        %v601 = vunpack.c.l.b16 %v535
        %v602 = vunpack.c.h.b16 %v535
        %v603 = vunpack.c.l.b16 %v536
        %v604 = vunpack.c.l.b16 %v537
        %v605 = vunpack.c.h.b16 %v537
        %v606 = vunpack.c.l.b16 %v538
        %v607 = vunpack.c.l.b16 %v539
        %v608 = vunpack.c.h.b16 %v539
        %v609 = vunpack.c.l.b16 %v540
        %v610 = vunpack.c.l.b16 %v541
        %v611 = vunpack.c.h.b16 %v541
        %v612 = vunpack.c.l.b16 %v542
        %v613 = vunpack.c.l.b16 %v543
        %v614 = vunpack.c.h.b16 %v543
        %v615 = vunpack.c.l.b16 %v544
        %v616 = vunpack.c.l.b16 %v545
        %v617 = vunpack.c.h.b16 %v545
        %v618 = vunpack.c.l.b16 %v546
        %v619 = vunpack.c.l.b16 %v547
        %v620 = vunpack.c.h.b16 %v547
        %v621 = vunpack.c.l.b16 %v548
        %v622 = vunpack.c.l.b16 %v549
        %v623 = vunpack.c.h.b16 %v549
        %v624 = vunpack.c.l.b16 %v550
        %v625 = vunpack.c.l.b16 %v551
        %v626 = vunpack.c.h.b16 %v551
        %v627 = vunpack.c.l.b16 %v552
        %v628 = vunpack.c.l.b16 %v553
        %v629 = vunpack.c.h.b16 %v553
        %v630 = vunpack.c.l.b16 %v554
        %v631 = vunpack.c.l.b16 %v555
        %v632 = vunpack.c.h.b16 %v555
        %v633 = vunpack.c.l.b16 %v556
        %v634 = vunpack.c.l.b16 %v557
        %v635 = vunpack.c.h.b16 %v557
        %v636 = vunpack.c.l.b16 %v558
        %v637 = vunpack.c.l.b16 %v559
        %v638 = vunpack.c.h.b16 %v559
        %v639 = vunpack.c.l.b16 %v560
        %v640 = vunpack.c.l.b16 %v561
        %v641 = vunpack.c.h.b16 %v561
        %v642 = vunpack.c.l.b16 %v562
        %v643 = vpack.c.b16 %v598, %v595
        %v644 = vpack.c.b16 %v599, %v596
        %v645 = vpack.c.b16 %v600, %v597
        %v646 = vpack.c.b16 %v604, %v601
        %v647 = vpack.c.b16 %v605, %v602
        %v648 = vpack.c.b16 %v606, %v603
        %v649 = vpack.c.b16 %v610, %v607
        %v650 = vpack.c.b16 %v611, %v608
        %v651 = vpack.c.b16 %v612, %v609
        %v652 = vpack.c.b16 %v616, %v613
        %v653 = vpack.c.b16 %v617, %v614
        %v654 = vpack.c.b16 %v618, %v615
        %v655 = vpack.c.b16 %v622, %v619
        %v656 = vpack.c.b16 %v623, %v620
        %v657 = vpack.c.b16 %v624, %v621
        %v658 = vpack.c.b16 %v628, %v625
        %v659 = vpack.c.b16 %v629, %v626
        %v660 = vpack.c.b16 %v630, %v627
        %v661 = vpack.c.b16 %v634, %v631
        %v662 = vpack.c.b16 %v635, %v632
        %v663 = vpack.c.b16 %v636, %v633
        %v664 = vpack.c.b16 %v640, %v637
        %v665 = vpack.c.b16 %v641, %v638
        %v666 = vpack.c.b16 %v642, %v639
        %691 = vmatprep.subr.bf16.mxu0 %v644
        %692 = vmatpush1.bf16.msra.mxu0 %v643
        %693 = vmatprep.subr.bf16.mxu0 %v647
        %694 = vmatpush1.bf16.msra.mxu0 %v646
        %695 = vmatprep.subr.bf16.mxu0 %v650
        %696 = vmatpush1.bf16.msra.mxu0 %v649
        %697 = vmatprep.subr.bf16.mxu0 %v653
        %698 = vmatpush1.bf16.msra.mxu0 %v652
        %699 = vmatprep.subr.bf16.mxu0 %v656
        %700 = vmatpush1.bf16.msra.mxu0 %v655
        %701 = vmatprep.subr.bf16.mxu0 %v659
        %702 = vmatpush1.bf16.msra.mxu0 %v658
        %703 = vmatprep.subr.bf16.mxu0 %v662
        %704 = vmatpush1.bf16.msra.mxu0 %v661
        %705 = vmatprep.subr.bf16.mxu0 %v665
        %706 = vmatpush1.bf16.msra.mxu0 %v664
        %707 = vmatprep.subr.bf16.mxu0 0
        %708 = vmatpush1.bf16.msra.mxu0 0
        %709 = vmatprep.subr.bf16.mxu0 0
        %710 = vmatpush1.bf16.msra.mxu0 0
        %711 = vmatprep.subr.bf16.mxu0 0
        %712 = vmatpush1.bf16.msra.mxu0 0
        %713 = vmatprep.subr.bf16.mxu0 0
        %714 = vmatpush1.bf16.msra.mxu0 0
        %715 = vmatprep.subr.bf16.mxu0 0
        %716 = vmatpush1.bf16.msra.mxu0 0
        %717 = vmatprep.subr.bf16.mxu0 0
        %718 = vmatpush1.bf16.msra.mxu0 0
        %719 = vmatprep.subr.bf16.mxu0 0
        %720 = vmatpush1.bf16.msra.mxu0 0
        %721 = vmatprep.subr.bf16.mxu0 0
        %722 = vmatpush1.bf16.msra.mxu0 0
        %723 = vmatprep.mubr.bf16.mxu0 0
        %724 = vmatmul.mubr.bf16.gmra.mrb[0].mxu0 %v530
        %v725 = vpop.f32.mrb[0].mxu0
        %v726 = vadd.f32 0.0, %v725
        %v727 = vpop.f32.mrb[0].mxu0
        %v728 = vadd.f32 0.0, %v727
        %v729 = vpop.f32.mrb[0].mxu0
        %v730 = vadd.f32 0.0, %v729
        %v731 = vpop.f32.mrb[0].mxu0
        %v732 = vadd.f32 0.0, %v731
        %733 = vdwg.mxu0
        %734 = vmatprep.subr.bf16.mxu0 0
        %735 = vmatpush1.bf16.msra.mxu0 %v645
        %736 = vmatprep.subr.bf16.mxu0 0
        %737 = vmatpush1.bf16.msra.mxu0 %v648
        %738 = vmatprep.subr.bf16.mxu0 0
        %739 = vmatpush1.bf16.msra.mxu0 %v651
        %740 = vmatprep.subr.bf16.mxu0 0
        %741 = vmatpush1.bf16.msra.mxu0 %v654
        %742 = vmatprep.subr.bf16.mxu0 0
        %743 = vmatpush1.bf16.msra.mxu0 %v657
        %744 = vmatprep.subr.bf16.mxu0 0
        %745 = vmatpush1.bf16.msra.mxu0 %v660
        %746 = vmatprep.subr.bf16.mxu0 0
        %747 = vmatpush1.bf16.msra.mxu0 %v663
        %748 = vmatprep.subr.bf16.mxu0 0
        %749 = vmatpush1.bf16.msra.mxu0 %v666
        %750 = vmatprep.subr.bf16.mxu0 0
        %751 = vmatpush1.bf16.msra.mxu0 0
        %752 = vmatprep.subr.bf16.mxu0 0
        %753 = vmatpush1.bf16.msra.mxu0 0
        %754 = vmatprep.subr.bf16.mxu0 0
        %755 = vmatpush1.bf16.msra.mxu0 0
        %756 = vmatprep.subr.bf16.mxu0 0
        %757 = vmatpush1.bf16.msra.mxu0 0
        %758 = vmatprep.subr.bf16.mxu0 0
        %759 = vmatpush1.bf16.msra.mxu0 0
        %760 = vmatprep.subr.bf16.mxu0 0
        %761 = vmatpush1.bf16.msra.mxu0 0
        %762 = vmatprep.subr.bf16.mxu0 0
        %763 = vmatpush1.bf16.msra.mxu0 0
        %764 = vmatprep.subr.bf16.mxu0 0
        %765 = vmatpush1.bf16.msra.mxu0 0
        %766 = vmatprep.mubr.bf16.mxu0 0
        %767 = vmatmul.mubr.bf16.gmra.mrb[0].mxu0 %v530
        %v768 = vpop.f32.mrb[0].mxu0
        %v769 = vadd.f32 0.0, %v768
        %v770 = vpop.f32.mrb[0].mxu0
        %v771 = vpop.f32.mrb[0].mxu0
        %v772 = vadd.f32 0.0, %v771
        %v773 = vpop.f32.mrb[0].mxu0
        %774 = vdwg.mxu0
        %v775 = vmul.f32 %v726, %v489
        %v776 = vmul.f32 %v730, %v490
        %779 = vrot.lane.b32.xlu0 %v726, 96
        %v780 = vpop.permute.xlu0 %779
        %781 = vrot.lane.b32.xlu0 %v730, 96
        %v782 = vpop.permute.xlu0 %781
        %785 = vrot.lane.b32.xlu0 %v726, 32
        %v786 = vpop.permute.xlu0 %785
        %787 = vrot.lane.b32.xlu0 %v730, 32
        %v788 = vpop.permute.xlu0 %787
        %vm791 = vcmask 261120
        %v792 = vsel %vm791, %v780, %v786
        %v793 = vsel %vm791, %v782, %v788
        %vm794 = vcmask 523264
        %v795 = vsel %vm794, %v792, %v780
        %v796 = vsel %vm794, %v793, %v782
        %vm797 = vcmask 785408
        %v798 = vsel %vm797, %v795, %v786
        %v799 = vsel %vm797, %v796, %v788
        %v800 = vmul.f32 %v798, %v491
        %v801 = vmul.f32 %v799, %v492
        %v802 = vadd.f32 %v775, %v800
        %v803 = vadd.f32 %v776, %v801
        %v804 = vpack.c.bf16 %v803, %v802
        %v805 = vmul.f32 %v728, %v489
        %v806 = vmul.f32 %v732, %v490
        %809 = vrot.lane.b32.xlu0 %v728, 96
        %v810 = vpop.permute.xlu0 %809
        %811 = vrot.lane.b32.xlu0 %v732, 96
        %v812 = vpop.permute.xlu0 %811
        %815 = vrot.lane.b32.xlu0 %v728, 32
        %v816 = vpop.permute.xlu0 %815
        %817 = vrot.lane.b32.xlu0 %v732, 32
        %v818 = vpop.permute.xlu0 %817
        %v821 = vsel %vm791, %v810, %v816
        %v822 = vsel %vm791, %v812, %v818
        %v823 = vsel %vm794, %v821, %v810
        %v824 = vsel %vm794, %v822, %v812
        %v825 = vsel %vm797, %v823, %v816
        %v826 = vsel %vm797, %v824, %v818
        %v827 = vmul.f32 %v825, %v491
        %v828 = vmul.f32 %v826, %v492
        %v829 = vadd.f32 %v805, %v827
        %v830 = vadd.f32 %v806, %v828
        %v831 = vpack.c.bf16 %v830, %v829
        %v832 = vpack.c.bf16 %v772, %v769
        %v833 = vld [vmem:[#allocation12] sm:$0xf]
        %v834 = vld [vmem:[#allocation12 + $0x4] sm:$0xf]
        %v835 = vld [vmem:[#allocation12 + $0x8] sm:$0xf]
        %v836 = vld [vmem:[#allocation12 + $0xc] sm:$0xf]
        %v837 = vld [vmem:[#allocation12 + $0x10] sm:$0xf]
        %v838 = vld [vmem:[#allocation12 + $0x14] sm:$0xf]
        %v839 = vld [vmem:[#allocation12 + $0x18] sm:$0xf]
        %v840 = vld [vmem:[#allocation12 + $0x1c] sm:$0xf]
        %v841 = vld [vmem:[#allocation12 + $0x20] sm:$0xf]
        %v842 = vld [vmem:[#allocation12 + $0x24] sm:$0xf]
        %v843 = vld [vmem:[#allocation12 + $0x28] sm:$0xf]
        %v844 = vld [vmem:[#allocation12 + $0x2c] sm:$0xf]
        %v845 = vld [vmem:[#allocation12 + $0x30] sm:$0xf]
        %v846 = vld [vmem:[#allocation12 + $0x34] sm:$0xf]
        %v847 = vld [vmem:[#allocation12 + $0x38] sm:$0xf]
        %v848 = vld [vmem:[#allocation12 + $0x3c] sm:$0xf]
        %v850 = vsel %vm794, %v804, 0
        %v853 = vsel %vm794, %v831, 0
        %855 = vmatprep.subr.bf16.mxu0 0
        %856 = vmatpush1.bf16.xpose.msra.mxu0 %v853
        %857 = vmatprep.subr.bf16.mxu0 0
        %858 = vmatpush1.bf16.xpose.msra.mxu0 0
        %859 = vmatprep.subr.bf16.mxu0 0
        %860 = vmatpush1.bf16.xpose.msra.mxu0 0
        %861 = vmatprep.subr.bf16.mxu0 0
        %862 = vmatpush1.bf16.xpose.msra.mxu0 0
        %863 = vmatprep.subr.bf16.mxu0 0
        %864 = vmatpush1.bf16.xpose.msra.mxu0 0
        %865 = vmatprep.subr.bf16.mxu0 0
        %866 = vmatpush1.bf16.xpose.msra.mxu0 0
        %867 = vmatprep.subr.bf16.mxu0 0
        %868 = vmatpush1.bf16.xpose.msra.mxu0 0
        %869 = vmatprep.subr.bf16.mxu0 0
        %870 = vmatpush1.bf16.xpose.msra.mxu0 0
        %871 = vmatprep.subr.bf16.mxu0 0
        %872 = vmatpush1.bf16.xpose.msra.mxu0 0
        %873 = vmatprep.subr.bf16.mxu0 0
        %874 = vmatpush1.bf16.xpose.msra.mxu0 0
        %875 = vmatprep.subr.bf16.mxu0 0
        %876 = vmatpush1.bf16.xpose.msra.mxu0 0
        %877 = vmatprep.subr.bf16.mxu0 0
        %878 = vmatpush1.bf16.xpose.msra.mxu0 0
        %879 = vmatprep.subr.bf16.mxu0 0
        %880 = vmatpush1.bf16.xpose.msra.mxu0 0
        %881 = vmatprep.subr.bf16.mxu0 0
        %882 = vmatpush1.bf16.xpose.msra.mxu0 0
        %883 = vmatprep.subr.bf16.mxu0 0
        %884 = vmatpush1.bf16.xpose.msra.mxu0 0
        %885 = vmatprep.subr.bf16.mxu0 0
        %886 = vmatpush1.bf16.xpose.msra.mxu0 0
        %887 = vmatprep.mubr.bf16.mxu0 0
        %888 = vmatmul.mubr.bf16.gmra.mrb[0].mxu0 %v850
        %v889 = vpop.f32.mrb[0].mxu0
        %v890 = vadd.f32 %v504, %v889
        %v891 = vpop.f32.mrb[0].mxu0
        %v892 = vpop.f32.mrb[0].mxu0
        %v893 = vadd.f32 %v505, %v892
        %v894 = vpop.f32.mrb[0].mxu0
        %895 = vdwg.mxu0
        %vm896 = vcmask 130048
        %v897 = vsel %vm896, %v890, -inf
        %898 = vmax.xlane.f32.xlu0 %v897
        %v899 = vpop.xlane.xlu0 %898
        %v900 = vsel %vm896, %v893, -inf
        %901 = vmax.xlane.f32.xlu0 %v900
        %v902 = vpop.xlane.xlu0 %901
        %v903 = vsub.f32 %v890, %v899
        %v904 = vsub.f32 %v893, %v902
        %v905 = vmul.f32 %v903, 1.442695
        %v906 = vpow.pop %v905
        %v907 = vmul.f32 %v904, 1.442695
        %v908 = vpow.pop %v907
        %v909 = vsel %vm896, %v906, 0.0
        %910 = vadd.xlane.f32.xlu0 %v909
        %v911 = vpop.xlane.xlu0 %910
        %v912 = vsel %vm896, %v908, 0.0
        %913 = vadd.xlane.f32.xlu0 %v912
        %v914 = vpop.xlane.xlu0 %913
        %v915 = vpack.c.bf16 %v908, %v906
        %v917 = vsel %vm896, %v915, 0
        %919 = vmatprep.subr.bf16.mxu0 0
        %920 = vmatpush1.bf16.msra.mxu0 %v832
        %921 = vmatprep.subr.bf16.mxu0 0
        %922 = vmatpush1.bf16.msra.mxu0 0
        %923 = vmatprep.subr.bf16.mxu0 0
        %924 = vmatpush1.bf16.msra.mxu0 0
        %925 = vmatprep.subr.bf16.mxu0 0
        %926 = vmatpush1.bf16.msra.mxu0 0
        %927 = vmatprep.subr.bf16.mxu0 0
        %928 = vmatpush1.bf16.msra.mxu0 0
        %929 = vmatprep.subr.bf16.mxu0 0
        %930 = vmatpush1.bf16.msra.mxu0 0
        %931 = vmatprep.subr.bf16.mxu0 0
        %932 = vmatpush1.bf16.msra.mxu0 0
        %933 = vmatprep.subr.bf16.mxu0 0
        %934 = vmatpush1.bf16.msra.mxu0 0
        %935 = vmatprep.subr.bf16.mxu0 0
        %936 = vmatpush1.bf16.msra.mxu0 0
        %937 = vmatprep.subr.bf16.mxu0 0
        %938 = vmatpush1.bf16.msra.mxu0 0
        %939 = vmatprep.subr.bf16.mxu0 0
        %940 = vmatpush1.bf16.msra.mxu0 0
        %941 = vmatprep.subr.bf16.mxu0 0
        %942 = vmatpush1.bf16.msra.mxu0 0
        %943 = vmatprep.subr.bf16.mxu0 0
        %944 = vmatpush1.bf16.msra.mxu0 0
        %945 = vmatprep.subr.bf16.mxu0 0
        %946 = vmatpush1.bf16.msra.mxu0 0
        %947 = vmatprep.subr.bf16.mxu0 0
        %948 = vmatpush1.bf16.msra.mxu0 0
        %949 = vmatprep.subr.bf16.mxu0 0
        %950 = vmatpush1.bf16.msra.mxu0 0
        %951 = vmatprep.mubr.bf16.mxu0 0
        %952 = vmatmul.mubr.bf16.gmra.mrb[0].mxu0 %v917
        %v953 = vpop.f32.mrb[0].mxu0
        %v954 = vadd.f32 0.0, %v953
        %v955 = vpop.f32.mrb[0].mxu0
        %v956 = vpop.f32.mrb[0].mxu0
        %v957 = vadd.f32 0.0, %v956
        %v958 = vpop.f32.mrb[0].mxu0
        %959 = vdwg.mxu0
        %v960 = vrcp.pop %v911
        %v961 = vrcp.pop %v914
        %v962 = vmul.f32 %v954, %v960
        %v963 = vmul.f32 %v957, %v961
        %v964 = vpack.c.bf16 %v963, %v962
        %966 = vrot.lane.b32.xlu0 %v804, 64
        %v967 = vpop.permute.xlu0 %966
        %969 = vrot.lane.b32.xlu0 %v831, 64
        %v970 = vpop.permute.xlu0 %969
        %v972 = vsel %vm794, %v967, 0
        %v975 = vsel %vm794, %v970, 0
        %977 = vmatprep.subr.bf16.mxu0 0
        %978 = vmatpush1.bf16.xpose.msra.mxu0 %v975
        %979 = vmatprep.subr.bf16.mxu0 0
        %980 = vmatpush1.bf16.xpose.msra.mxu0 0
        %981 = vmatprep.subr.bf16.mxu0 0
        %982 = vmatpush1.bf16.xpose.msra.mxu0 0
        %983 = vmatprep.subr.bf16.mxu0 0
        %984 = vmatpush1.bf16.xpose.msra.mxu0 0
        %985 = vmatprep.subr.bf16.mxu0 0
        %986 = vmatpush1.bf16.xpose.msra.mxu0 0
        %987 = vmatprep.subr.bf16.mxu0 0
        %988 = vmatpush1.bf16.xpose.msra.mxu0 0
        %989 = vmatprep.subr.bf16.mxu0 0
        %990 = vmatpush1.bf16.xpose.msra.mxu0 0
        %991 = vmatprep.subr.bf16.mxu0 0
        %992 = vmatpush1.bf16.xpose.msra.mxu0 0
        %993 = vmatprep.subr.bf16.mxu0 0
        %994 = vmatpush1.bf16.xpose.msra.mxu0 0
        %995 = vmatprep.subr.bf16.mxu0 0
        %996 = vmatpush1.bf16.xpose.msra.mxu0 0
        %997 = vmatprep.subr.bf16.mxu0 0
        %998 = vmatpush1.bf16.xpose.msra.mxu0 0
        %999 = vmatprep.subr.bf16.mxu0 0
        %1000 = vmatpush1.bf16.xpose.msra.mxu0 0
        %1001 = vmatprep.subr.bf16.mxu0 0
        %1002 = vmatpush1.bf16.xpose.msra.mxu0 0
        %1003 = vmatprep.subr.bf16.mxu0 0
        %1004 = vmatpush1.bf16.xpose.msra.mxu0 0
        %1005 = vmatprep.subr.bf16.mxu0 0
        %1006 = vmatpush1.bf16.xpose.msra.mxu0 0
        %1007 = vmatprep.subr.bf16.mxu0 0
        %1008 = vmatpush1.bf16.xpose.msra.mxu0 0
        %1009 = vmatprep.mubr.bf16.mxu0 0
        %1010 = vmatmul.mubr.bf16.gmra.mrb[0].mxu0 %v972
        %v1011 = vpop.f32.mrb[0].mxu0
        %v1012 = vadd.f32 %v504, %v1011
        %v1013 = vpop.f32.mrb[0].mxu0
        %v1014 = vpop.f32.mrb[0].mxu0
        %v1015 = vadd.f32 %v505, %v1014
        %v1016 = vpop.f32.mrb[0].mxu0
        %1017 = vdwg.mxu0
        %v1018 = vsel %vm896, %v1012, -inf
        %1019 = vmax.xlane.f32.xlu0 %v1018
        %v1020 = vpop.xlane.xlu0 %1019
        %v1021 = vsel %vm896, %v1015, -inf
        %1022 = vmax.xlane.f32.xlu0 %v1021
        %v1023 = vpop.xlane.xlu0 %1022
        %v1024 = vsub.f32 %v1012, %v1020
        %v1025 = vsub.f32 %v1015, %v1023
        %v1026 = vmul.f32 %v1024, 1.442695
        %v1027 = vpow.pop %v1026
        %v1028 = vmul.f32 %v1025, 1.442695
        %v1029 = vpow.pop %v1028
        %v1030 = vsel %vm896, %v1027, 0.0
        %1031 = vadd.xlane.f32.xlu0 %v1030
        %v1032 = vpop.xlane.xlu0 %1031
        %v1033 = vsel %vm896, %v1029, 0.0
        %1034 = vadd.xlane.f32.xlu0 %v1033
        %v1035 = vpop.xlane.xlu0 %1034
        %v1036 = vpack.c.bf16 %v1029, %v1027
        %1038 = vrot.lane.b32.xlu0 %v832, 64
        %v1039 = vpop.permute.xlu0 %1038
        %v1042 = vsel %vm896, %v1036, 0
        %1044 = vmatprep.subr.bf16.mxu0 0
        %1045 = vmatpush1.bf16.msra.mxu0 %v1039
        %1046 = vmatprep.subr.bf16.mxu0 0
        %1047 = vmatpush1.bf16.msra.mxu0 0
        %1048 = vmatprep.subr.bf16.mxu0 0
        %1049 = vmatpush1.bf16.msra.mxu0 0
        %1050 = vmatprep.subr.bf16.mxu0 0
        %1051 = vmatpush1.bf16.msra.mxu0 0
        %1052 = vmatprep.subr.bf16.mxu0 0
        %1053 = vmatpush1.bf16.msra.mxu0 0
        %1054 = vmatprep.subr.bf16.mxu0 0
        %1055 = vmatpush1.bf16.msra.mxu0 0
        %1056 = vmatprep.subr.bf16.mxu0 0
        %1057 = vmatpush1.bf16.msra.mxu0 0
        %1058 = vmatprep.subr.bf16.mxu0 0
        %1059 = vmatpush1.bf16.msra.mxu0 0
        %1060 = vmatprep.subr.bf16.mxu0 0
        %1061 = vmatpush1.bf16.msra.mxu0 0
        %1062 = vmatprep.subr.bf16.mxu0 0
        %1063 = vmatpush1.bf16.msra.mxu0 0
        %1064 = vmatprep.subr.bf16.mxu0 0
        %1065 = vmatpush1.bf16.msra.mxu0 0
        %1066 = vmatprep.subr.bf16.mxu0 0
        %1067 = vmatpush1.bf16.msra.mxu0 0
        %1068 = vmatprep.subr.bf16.mxu0 0
        %1069 = vmatpush1.bf16.msra.mxu0 0
        %1070 = vmatprep.subr.bf16.mxu0 0
        %1071 = vmatpush1.bf16.msra.mxu0 0
        %1072 = vmatprep.subr.bf16.mxu0 0
        %1073 = vmatpush1.bf16.msra.mxu0 0
        %1074 = vmatprep.subr.bf16.mxu0 0
        %1075 = vmatpush1.bf16.msra.mxu0 0
        %1076 = vmatprep.mubr.bf16.mxu0 0
        %1077 = vmatmul.mubr.bf16.gmra.mrb[0].mxu0 %v1042
        %v1078 = vpop.f32.mrb[0].mxu0
        %v1079 = vadd.f32 0.0, %v1078
        %v1080 = vpop.f32.mrb[0].mxu0
        %v1081 = vpop.f32.mrb[0].mxu0
        %v1082 = vadd.f32 0.0, %v1081
        %v1083 = vpop.f32.mrb[0].mxu0
        %1084 = vdwg.mxu0
        %v1085 = vrcp.pop %v1032
        %v1086 = vrcp.pop %v1035
        %v1087 = vmul.f32 %v1079, %v1085
        %v1088 = vmul.f32 %v1082, %v1086
        %v1089 = vpack.c.bf16 %v1088, %v1087
        %v1098 = vunpack.c.l.b16 %v841
        %v1099 = vunpack.c.l.b16 %v842
        %v1100 = vunpack.c.l.b16 %v843
        %v1101 = vunpack.c.l.b16 %v844
        %v1102 = vunpack.c.l.b16 %v845
        %v1103 = vunpack.c.l.b16 %v846
        %v1104 = vunpack.c.l.b16 %v847
        %v1105 = vunpack.c.l.b16 %v848
        %v1106 = vpack.c.b16 %v1099, %v1098
        %v1107 = vpack.c.b16 %v1101, %v1100
        %v1108 = vpack.c.b16 %v1103, %v1102
        %v1109 = vpack.c.b16 %v1105, %v1104
        %v1115 = vsel %vm794, %v1089, 0
        %1117 = vmatprep.subr.bf16.mxu0 0
        %1118 = vmatpush1.bf16.msra.mxu0 %v1106
        %1119 = vmatprep.subr.bf16.mxu0 0
        %1120 = vmatpush1.bf16.msra.mxu0 %v1107
        %1121 = vmatprep.subr.bf16.mxu0 0
        %1122 = vmatpush1.bf16.msra.mxu0 %v1108
        %1123 = vmatprep.subr.bf16.mxu0 0
        %1124 = vmatpush1.bf16.msra.mxu0 %v1109
        %1125 = vmatprep.subr.bf16.mxu0 0
        %1126 = vmatpush1.bf16.msra.mxu0 0
        %1127 = vmatprep.subr.bf16.mxu0 0
        %1128 = vmatpush1.bf16.msra.mxu0 0
        %1129 = vmatprep.subr.bf16.mxu0 0
        %1130 = vmatpush1.bf16.msra.mxu0 0
        %1131 = vmatprep.subr.bf16.mxu0 0
        %1132 = vmatpush1.bf16.msra.mxu0 0
        %1133 = vmatprep.subr.bf16.mxu0 0
        %1134 = vmatpush1.bf16.msra.mxu0 0
        %1135 = vmatprep.subr.bf16.mxu0 0
        %1136 = vmatpush1.bf16.msra.mxu0 0
        %1137 = vmatprep.subr.bf16.mxu0 0
        %1138 = vmatpush1.bf16.msra.mxu0 0
        %1139 = vmatprep.subr.bf16.mxu0 0
        %1140 = vmatpush1.bf16.msra.mxu0 0
        %1141 = vmatprep.subr.bf16.mxu0 0
        %1142 = vmatpush1.bf16.msra.mxu0 0
        %1143 = vmatprep.subr.bf16.mxu0 0
        %1144 = vmatpush1.bf16.msra.mxu0 0
        %1145 = vmatprep.subr.bf16.mxu0 0
        %1146 = vmatpush1.bf16.msra.mxu0 0
        %1147 = vmatprep.subr.bf16.mxu0 0
        %1148 = vmatpush1.bf16.msra.mxu0 0
        %1149 = vmatprep.mubr.bf16.mxu0 0
        %1150 = vmatmul.mubr.bf16.gmra.mrb[0].mxu0 %v1115
        %v1151 = vpop.f32.mrb[0].mxu0
        %v1152 = vadd.f32 0.0, %v1151
        %v1153 = vpop.f32.mrb[0].mxu0
        %v1154 = vpop.f32.mrb[0].mxu0
        %v1155 = vadd.f32 0.0, %v1154
        %v1156 = vpop.f32.mrb[0].mxu0
        %1157 = vdwg.mxu0
        %v1166 = vunpack.c.l.b16 %v833
        %v1167 = vunpack.c.l.b16 %v834
        %v1168 = vunpack.c.l.b16 %v835
        %v1169 = vunpack.c.l.b16 %v836
        %v1170 = vunpack.c.l.b16 %v837
        %v1171 = vunpack.c.l.b16 %v838
        %v1172 = vunpack.c.l.b16 %v839
        %v1173 = vunpack.c.l.b16 %v840
        %v1174 = vpack.c.b16 %v1167, %v1166
        %v1175 = vpack.c.b16 %v1169, %v1168
        %v1176 = vpack.c.b16 %v1171, %v1170
        %v1177 = vpack.c.b16 %v1173, %v1172
        %v1183 = vsel %vm794, %v964, 0
        %1185 = vmatprep.subr.bf16.mxu0 0
        %1186 = vmatpush1.bf16.msra.mxu0 %v1174
        %1187 = vmatprep.subr.bf16.mxu0 0
        %1188 = vmatpush1.bf16.msra.mxu0 %v1175
        %1189 = vmatprep.subr.bf16.mxu0 0
        %1190 = vmatpush1.bf16.msra.mxu0 %v1176
        %1191 = vmatprep.subr.bf16.mxu0 0
        %1192 = vmatpush1.bf16.msra.mxu0 %v1177
        %1193 = vmatprep.subr.bf16.mxu0 0
        %1194 = vmatpush1.bf16.msra.mxu0 0
        %1195 = vmatprep.subr.bf16.mxu0 0
        %1196 = vmatpush1.bf16.msra.mxu0 0
        %1197 = vmatprep.subr.bf16.mxu0 0
        %1198 = vmatpush1.bf16.msra.mxu0 0
        %1199 = vmatprep.subr.bf16.mxu0 0
        %1200 = vmatpush1.bf16.msra.mxu0 0
        %1201 = vmatprep.subr.bf16.mxu0 0
        %1202 = vmatpush1.bf16.msra.mxu0 0
        %1203 = vmatprep.subr.bf16.mxu0 0
        %1204 = vmatpush1.bf16.msra.mxu0 0
        %1205 = vmatprep.subr.bf16.mxu0 0
        %1206 = vmatpush1.bf16.msra.mxu0 0
        %1207 = vmatprep.subr.bf16.mxu0 0
        %1208 = vmatpush1.bf16.msra.mxu0 0
        %1209 = vmatprep.subr.bf16.mxu0 0
        %1210 = vmatpush1.bf16.msra.mxu0 0
        %1211 = vmatprep.subr.bf16.mxu0 0
        %1212 = vmatpush1.bf16.msra.mxu0 0
        %1213 = vmatprep.subr.bf16.mxu0 0
        %1214 = vmatpush1.bf16.msra.mxu0 0
        %1215 = vmatprep.subr.bf16.mxu0 0
        %1216 = vmatpush1.bf16.msra.mxu0 0
        %1217 = vmatprep.mubr.bf16.mxu0 0
        %1218 = vmatmul.mubr.bf16.gmra.mrb[0].mxu0 %v1183
        %v1219 = vpop.f32.mrb[0].mxu0
        %v1220 = vadd.f32 %v1152, %v1219
        %v1221 = vpop.f32.mrb[0].mxu0
        %v1222 = vpop.f32.mrb[0].mxu0
        %v1223 = vadd.f32 %v1155, %v1222
        %v1224 = vpop.f32.mrb[0].mxu0
        %1225 = vdwg.mxu0
        %v1226 = vadd.f32 %v487, %v1220
        %v1227 = vadd.f32 %v488, %v1223
        %v1228 = vld [vmem:[%s7] sm:$0x1]
        %v1229 = vmul.f32 %v1226, %v1226
        %v1230 = vmul.f32 %v1227, %v1227
        %1231 = vadd.xlane.f32.xlu0 %v1229
        %v1232 = vpop.xlane.xlu0 %1231
        %1233 = vadd.xlane.f32.xlu0 %v1230
        %v1234 = vpop.xlane.xlu0 %1233
        %v1235 = vmul.f32 %v1232, %v513
        %v1236 = vmul.f32 %v1234, %v513
        %v1237 = vadd.f32 %v1235, 1e-05
        %v1238 = vadd.f32 %v1236, 1e-05
        %v1239 = vrsqrt.pop %v1237
        %v1240 = vrsqrt.pop %v1238
        %v1241 = vmul.f32 %v1226, %v1239
        %v1242 = vmul.f32 %v1227, %v1240
        %v1244 = vlaneseq
        %v1245 = vshrl.u32 %v1244, 7
        %v1246 = vsub.s32 0, %v1245
        %v1247 = vrot.slane %v1228, %v1246
        %v1249 = vmul.f32 %v1241, %v1247
        %v1250 = vmul.f32 %v1242, %v1247
        %v1251 = vpack.c.bf16 %v1250, %v1249
        %v1252 = vld [vmem:[#allocation13] sm:$0xff]
        %v1253 = vld [vmem:[#allocation13 + $0x8] sm:$0xff]
        %v1254 = vld [vmem:[#allocation13 + $0x10] sm:$0xff]
        %v1255 = vld [vmem:[#allocation13 + $0x18] sm:$0xff]
        %v1256 = vld [vmem:[#allocation13 + $0x20] sm:$0xff]
        %v1257 = vld [vmem:[#allocation13 + $0x28] sm:$0xff]
        %v1258 = vld [vmem:[#allocation13 + $0x30] sm:$0xff]
        %v1259 = vld [vmem:[#allocation13 + $0x38] sm:$0xff]
        %v1260 = vld [vmem:[#allocation13 + $0x40] sm:$0xff]
        %v1261 = vld [vmem:[#allocation13 + $0x48] sm:$0xff]
        %v1262 = vld [vmem:[#allocation13 + $0x50] sm:$0xff]
        %v1263 = vld [vmem:[#allocation13 + $0x58] sm:$0xff]
        %v1264 = vld [vmem:[#allocation13 + $0x60] sm:$0xff]
        %v1265 = vld [vmem:[#allocation13 + $0x68] sm:$0xff]
        %v1266 = vld [vmem:[#allocation13 + $0x70] sm:$0xff]
        %v1267 = vld [vmem:[#allocation13 + $0x78] sm:$0xff]
        %v1284 = vunpack.c.l.b16 %v1252
        %v1285 = vunpack.c.h.b16 %v1252
        %v1286 = vunpack.c.l.b16 %v1253
        %v1287 = vunpack.c.h.b16 %v1253
        %v1288 = vunpack.c.l.b16 %v1254
        %v1289 = vunpack.c.h.b16 %v1254
        %v1290 = vunpack.c.l.b16 %v1255
        %v1291 = vunpack.c.h.b16 %v1255
        %v1292 = vunpack.c.l.b16 %v1256
        %v1293 = vunpack.c.h.b16 %v1256
        %v1294 = vunpack.c.l.b16 %v1257
        %v1295 = vunpack.c.h.b16 %v1257
        %v1296 = vunpack.c.l.b16 %v1258
        %v1297 = vunpack.c.h.b16 %v1258
        %v1298 = vunpack.c.l.b16 %v1259
        %v1299 = vunpack.c.h.b16 %v1259
        %v1300 = vunpack.c.l.b16 %v1260
        %v1301 = vunpack.c.h.b16 %v1260
        %v1302 = vunpack.c.l.b16 %v1261
        %v1303 = vunpack.c.h.b16 %v1261
        %v1304 = vunpack.c.l.b16 %v1262
        %v1305 = vunpack.c.h.b16 %v1262
        %v1306 = vunpack.c.l.b16 %v1263
        %v1307 = vunpack.c.h.b16 %v1263
        %v1308 = vunpack.c.l.b16 %v1264
        %v1309 = vunpack.c.h.b16 %v1264
        %v1310 = vunpack.c.l.b16 %v1265
        %v1311 = vunpack.c.h.b16 %v1265
        %v1312 = vunpack.c.l.b16 %v1266
        %v1313 = vunpack.c.h.b16 %v1266
        %v1314 = vunpack.c.l.b16 %v1267
        %v1315 = vunpack.c.h.b16 %v1267
        %v1316 = vpack.c.b16 %v1286, %v1284
        %v1317 = vpack.c.b16 %v1287, %v1285
        %v1318 = vpack.c.b16 %v1290, %v1288
        %v1319 = vpack.c.b16 %v1291, %v1289
        %v1320 = vpack.c.b16 %v1294, %v1292
        %v1321 = vpack.c.b16 %v1295, %v1293
        %v1322 = vpack.c.b16 %v1298, %v1296
        %v1323 = vpack.c.b16 %v1299, %v1297
        %v1324 = vpack.c.b16 %v1302, %v1300
        %v1325 = vpack.c.b16 %v1303, %v1301
        %v1326 = vpack.c.b16 %v1306, %v1304
        %v1327 = vpack.c.b16 %v1307, %v1305
        %v1328 = vpack.c.b16 %v1310, %v1308
        %v1329 = vpack.c.b16 %v1311, %v1309
        %v1330 = vpack.c.b16 %v1314, %v1312
        %v1331 = vpack.c.b16 %v1315, %v1313
        %1348 = vmatprep.subr.bf16.mxu0 %v1317
        %1349 = vmatpush1.bf16.msra.mxu0 %v1316
        %1350 = vmatprep.subr.bf16.mxu0 %v1319
        %1351 = vmatpush1.bf16.msra.mxu0 %v1318
        %1352 = vmatprep.subr.bf16.mxu0 %v1321
        %1353 = vmatpush1.bf16.msra.mxu0 %v1320
        %1354 = vmatprep.subr.bf16.mxu0 %v1323
        %1355 = vmatpush1.bf16.msra.mxu0 %v1322
        %1356 = vmatprep.subr.bf16.mxu0 %v1325
        %1357 = vmatpush1.bf16.msra.mxu0 %v1324
        %1358 = vmatprep.subr.bf16.mxu0 %v1327
        %1359 = vmatpush1.bf16.msra.mxu0 %v1326
        %1360 = vmatprep.subr.bf16.mxu0 %v1329
        %1361 = vmatpush1.bf16.msra.mxu0 %v1328
        %1362 = vmatprep.subr.bf16.mxu0 %v1331
        %1363 = vmatpush1.bf16.msra.mxu0 %v1330
        %1364 = vmatprep.subr.bf16.mxu0 0
        %1365 = vmatpush1.bf16.msra.mxu0 0
        %1366 = vmatprep.subr.bf16.mxu0 0
        %1367 = vmatpush1.bf16.msra.mxu0 0
        %1368 = vmatprep.subr.bf16.mxu0 0
        %1369 = vmatpush1.bf16.msra.mxu0 0
        %1370 = vmatprep.subr.bf16.mxu0 0
        %1371 = vmatpush1.bf16.msra.mxu0 0
        %1372 = vmatprep.subr.bf16.mxu0 0
        %1373 = vmatpush1.bf16.msra.mxu0 0
        %1374 = vmatprep.subr.bf16.mxu0 0
        %1375 = vmatpush1.bf16.msra.mxu0 0
        %1376 = vmatprep.subr.bf16.mxu0 0
        %1377 = vmatpush1.bf16.msra.mxu0 0
        %1378 = vmatprep.subr.bf16.mxu0 0
        %1379 = vmatpush1.bf16.msra.mxu0 0
        %1380 = vmatprep.mubr.bf16.mxu0 0
        %1381 = vmatmul.mubr.bf16.gmra.mrb[0].mxu0 %v1251
        %v1382 = vpop.f32.mrb[0].mxu0
        %v1383 = vadd.f32 0.0, %v1382
        %v1384 = vpop.f32.mrb[0].mxu0
        %v1385 = vadd.f32 0.0, %v1384
        %v1386 = vpop.f32.mrb[0].mxu0
        %v1387 = vadd.f32 0.0, %v1386
        %v1388 = vpop.f32.mrb[0].mxu0
        %v1389 = vadd.f32 0.0, %v1388
        %1390 = vdwg.mxu0
        %v1391 = vld [vmem:[#allocation15] sm:$0xff]
        %v1392 = vld [vmem:[#allocation15 + $0x8] sm:$0xff]
        %v1393 = vld [vmem:[#allocation15 + $0x10] sm:$0xff]
        %v1394 = vld [vmem:[#allocation15 + $0x18] sm:$0xff]
        %v1395 = vld [vmem:[#allocation15 + $0x20] sm:$0xff]
        %v1396 = vld [vmem:[#allocation15 + $0x28] sm:$0xff]
        %v1397 = vld [vmem:[#allocation15 + $0x30] sm:$0xff]
        %v1398 = vld [vmem:[#allocation15 + $0x38] sm:$0xff]
        %v1399 = vld [vmem:[#allocation15 + $0x40] sm:$0xff]
        %v1400 = vld [vmem:[#allocation15 + $0x48] sm:$0xff]
        %v1401 = vld [vmem:[#allocation15 + $0x50] sm:$0xff]
        %v1402 = vld [vmem:[#allocation15 + $0x58] sm:$0xff]
        %v1403 = vld [vmem:[#allocation15 + $0x60] sm:$0xff]
        %v1404 = vld [vmem:[#allocation15 + $0x68] sm:$0xff]
        %v1405 = vld [vmem:[#allocation15 + $0x70] sm:$0xff]
        %v1406 = vld [vmem:[#allocation15 + $0x78] sm:$0xff]
        %v1423 = vunpack.c.l.b16 %v1391
        %v1424 = vunpack.c.h.b16 %v1391
        %v1425 = vunpack.c.l.b16 %v1392
        %v1426 = vunpack.c.h.b16 %v1392
        %v1427 = vunpack.c.l.b16 %v1393
        %v1428 = vunpack.c.h.b16 %v1393
        %v1429 = vunpack.c.l.b16 %v1394
        %v1430 = vunpack.c.h.b16 %v1394
        %v1431 = vunpack.c.l.b16 %v1395
        %v1432 = vunpack.c.h.b16 %v1395
        %v1433 = vunpack.c.l.b16 %v1396
        %v1434 = vunpack.c.h.b16 %v1396
        %v1435 = vunpack.c.l.b16 %v1397
        %v1436 = vunpack.c.h.b16 %v1397
        %v1437 = vunpack.c.l.b16 %v1398
        %v1438 = vunpack.c.h.b16 %v1398
        %v1439 = vunpack.c.l.b16 %v1399
        %v1440 = vunpack.c.h.b16 %v1399
        %v1441 = vunpack.c.l.b16 %v1400
        %v1442 = vunpack.c.h.b16 %v1400
        %v1443 = vunpack.c.l.b16 %v1401
        %v1444 = vunpack.c.h.b16 %v1401
        %v1445 = vunpack.c.l.b16 %v1402
        %v1446 = vunpack.c.h.b16 %v1402
        %v1447 = vunpack.c.l.b16 %v1403
        %v1448 = vunpack.c.h.b16 %v1403
        %v1449 = vunpack.c.l.b16 %v1404
        %v1450 = vunpack.c.h.b16 %v1404
        %v1451 = vunpack.c.l.b16 %v1405
        %v1452 = vunpack.c.h.b16 %v1405
        %v1453 = vunpack.c.l.b16 %v1406
        %v1454 = vunpack.c.h.b16 %v1406
        %v1455 = vpack.c.b16 %v1425, %v1423
        %v1456 = vpack.c.b16 %v1426, %v1424
        %v1457 = vpack.c.b16 %v1429, %v1427
        %v1458 = vpack.c.b16 %v1430, %v1428
        %v1459 = vpack.c.b16 %v1433, %v1431
        %v1460 = vpack.c.b16 %v1434, %v1432
        %v1461 = vpack.c.b16 %v1437, %v1435
        %v1462 = vpack.c.b16 %v1438, %v1436
        %v1463 = vpack.c.b16 %v1441, %v1439
        %v1464 = vpack.c.b16 %v1442, %v1440
        %v1465 = vpack.c.b16 %v1445, %v1443
        %v1466 = vpack.c.b16 %v1446, %v1444
        %v1467 = vpack.c.b16 %v1449, %v1447
        %v1468 = vpack.c.b16 %v1450, %v1448
        %v1469 = vpack.c.b16 %v1453, %v1451
        %v1470 = vpack.c.b16 %v1454, %v1452
        %1487 = vmatprep.subr.bf16.mxu0 %v1456
        %1488 = vmatpush1.bf16.msra.mxu0 %v1455
        %1489 = vmatprep.subr.bf16.mxu0 %v1458
        %1490 = vmatpush1.bf16.msra.mxu0 %v1457
        %1491 = vmatprep.subr.bf16.mxu0 %v1460
        %1492 = vmatpush1.bf16.msra.mxu0 %v1459
        %1493 = vmatprep.subr.bf16.mxu0 %v1462
        %1494 = vmatpush1.bf16.msra.mxu0 %v1461
        %1495 = vmatprep.subr.bf16.mxu0 %v1464
        %1496 = vmatpush1.bf16.msra.mxu0 %v1463
        %1497 = vmatprep.subr.bf16.mxu0 %v1466
        %1498 = vmatpush1.bf16.msra.mxu0 %v1465
        %1499 = vmatprep.subr.bf16.mxu0 %v1468
        %1500 = vmatpush1.bf16.msra.mxu0 %v1467
        %1501 = vmatprep.subr.bf16.mxu0 %v1470
        %1502 = vmatpush1.bf16.msra.mxu0 %v1469
        %1503 = vmatprep.subr.bf16.mxu0 0
        %1504 = vmatpush1.bf16.msra.mxu0 0
        %1505 = vmatprep.subr.bf16.mxu0 0
        %1506 = vmatpush1.bf16.msra.mxu0 0
        %1507 = vmatprep.subr.bf16.mxu0 0
        %1508 = vmatpush1.bf16.msra.mxu0 0
        %1509 = vmatprep.subr.bf16.mxu0 0
        %1510 = vmatpush1.bf16.msra.mxu0 0
        %1511 = vmatprep.subr.bf16.mxu0 0
        %1512 = vmatpush1.bf16.msra.mxu0 0
        %1513 = vmatprep.subr.bf16.mxu0 0
        %1514 = vmatpush1.bf16.msra.mxu0 0
        %1515 = vmatprep.subr.bf16.mxu0 0
        %1516 = vmatpush1.bf16.msra.mxu0 0
        %1517 = vmatprep.subr.bf16.mxu0 0
        %1518 = vmatpush1.bf16.msra.mxu0 0
        %1519 = vmatprep.mubr.bf16.mxu0 0
        %1520 = vmatmul.mubr.bf16.gmra.mrb[0].mxu0 %v1251
        %v1521 = vpop.f32.mrb[0].mxu0
        %v1522 = vadd.f32 0.0, %v1521
        %v1523 = vpop.f32.mrb[0].mxu0
        %v1524 = vadd.f32 0.0, %v1523
        %v1525 = vpop.f32.mrb[0].mxu0
        %v1526 = vadd.f32 0.0, %v1525
        %v1527 = vpop.f32.mrb[0].mxu0
        %v1528 = vadd.f32 0.0, %v1527
        %1529 = vdwg.mxu0
        %v1530 = vxor.u32 %v1383, 2147483648
        %v1531 = vxor.u32 %v1385, 2147483648
        %v1532 = vxor.u32 %v1387, 2147483648
        %v1533 = vxor.u32 %v1389, 2147483648
        %v1534 = vmul.f32 %v1530, 1.442695
        %v1535 = vpow.pop %v1534
        %v1536 = vmul.f32 %v1531, 1.442695
        %v1537 = vpow.pop %v1536
        %v1538 = vmul.f32 %v1532, 1.442695
        %v1539 = vpow.pop %v1538
        %v1540 = vmul.f32 %v1533, 1.442695
        %v1541 = vpow.pop %v1540
        %v1542 = vadd.f32 %v1535, 1.0
        %v1543 = vadd.f32 %v1537, 1.0
        %v1544 = vadd.f32 %v1539, 1.0
        %v1545 = vadd.f32 %v1541, 1.0
        %v1546 = vrcp.pop %v1542
        %v1547 = vmul.f32 1.0, %v1546
        %v1548 = vrcp.pop %v1543
        %v1549 = vmul.f32 1.0, %v1548
        %v1550 = vrcp.pop %v1544
        %v1551 = vmul.f32 1.0, %v1550
        %v1552 = vrcp.pop %v1545
        %v1553 = vmul.f32 1.0, %v1552
        %v1554 = vmul.f32 %v1383, %v1547
        %v1555 = vmul.f32 %v1385, %v1549
        %v1556 = vmul.f32 %v1387, %v1551
        %v1557 = vmul.f32 %v1389, %v1553
        %v1558 = vmul.f32 %v1554, %v1522
        %v1559 = vmul.f32 %v1555, %v1524
        %v1560 = vmul.f32 %v1556, %v1526
        %v1561 = vmul.f32 %v1557, %v1528
        %v1562 = vpack.c.bf16 %v1560, %v1558
        %v1563 = vpack.c.bf16 %v1561, %v1559
        %v1564 = vld [vmem:[#allocation16] sm:$0xf]
        %v1565 = vld [vmem:[#allocation16 + $0x4] sm:$0xf]
        %v1566 = vld [vmem:[#allocation16 + $0x8] sm:$0xf]
        %v1567 = vld [vmem:[#allocation16 + $0xc] sm:$0xf]
        %v1568 = vld [vmem:[#allocation16 + $0x10] sm:$0xf]
        %v1569 = vld [vmem:[#allocation16 + $0x14] sm:$0xf]
        %v1570 = vld [vmem:[#allocation16 + $0x18] sm:$0xf]
        %v1571 = vld [vmem:[#allocation16 + $0x1c] sm:$0xf]
        %v1572 = vld [vmem:[#allocation16 + $0x20] sm:$0xf]
        %v1573 = vld [vmem:[#allocation16 + $0x24] sm:$0xf]
        %v1574 = vld [vmem:[#allocation16 + $0x28] sm:$0xf]
        %v1575 = vld [vmem:[#allocation16 + $0x2c] sm:$0xf]
        %v1576 = vld [vmem:[#allocation16 + $0x30] sm:$0xf]
        %v1577 = vld [vmem:[#allocation16 + $0x34] sm:$0xf]
        %v1578 = vld [vmem:[#allocation16 + $0x38] sm:$0xf]
        %v1579 = vld [vmem:[#allocation16 + $0x3c] sm:$0xf]
        %v1580 = vld [vmem:[#allocation16 + $0x40] sm:$0xf]
        %v1581 = vld [vmem:[#allocation16 + $0x44] sm:$0xf]
        %v1582 = vld [vmem:[#allocation16 + $0x48] sm:$0xf]
        %v1583 = vld [vmem:[#allocation16 + $0x4c] sm:$0xf]
        %v1584 = vld [vmem:[#allocation16 + $0x50] sm:$0xf]
        %v1585 = vld [vmem:[#allocation16 + $0x54] sm:$0xf]
        %v1586 = vld [vmem:[#allocation16 + $0x58] sm:$0xf]
        %v1587 = vld [vmem:[#allocation16 + $0x5c] sm:$0xf]
        %v1588 = vld [vmem:[#allocation16 + $0x60] sm:$0xf]
        %v1589 = vld [vmem:[#allocation16 + $0x64] sm:$0xf]
        %v1590 = vld [vmem:[#allocation16 + $0x68] sm:$0xf]
        %v1591 = vld [vmem:[#allocation16 + $0x6c] sm:$0xf]
        %v1592 = vld [vmem:[#allocation16 + $0x70] sm:$0xf]
        %v1593 = vld [vmem:[#allocation16 + $0x74] sm:$0xf]
        %v1594 = vld [vmem:[#allocation16 + $0x78] sm:$0xf]
        %v1595 = vld [vmem:[#allocation16 + $0x7c] sm:$0xf]
        %v1628 = vunpack.c.l.b16 %v1564
        %v1629 = vunpack.c.l.b16 %v1565
        %v1630 = vunpack.c.l.b16 %v1566
        %v1631 = vunpack.c.l.b16 %v1567
        %v1632 = vunpack.c.l.b16 %v1568
        %v1633 = vunpack.c.l.b16 %v1569
        %v1634 = vunpack.c.l.b16 %v1570
        %v1635 = vunpack.c.l.b16 %v1571
        %v1636 = vunpack.c.l.b16 %v1572
        %v1637 = vunpack.c.l.b16 %v1573
        %v1638 = vunpack.c.l.b16 %v1574
        %v1639 = vunpack.c.l.b16 %v1575
        %v1640 = vunpack.c.l.b16 %v1576
        %v1641 = vunpack.c.l.b16 %v1577
        %v1642 = vunpack.c.l.b16 %v1578
        %v1643 = vunpack.c.l.b16 %v1579
        %v1644 = vunpack.c.l.b16 %v1580
        %v1645 = vunpack.c.l.b16 %v1581
        %v1646 = vunpack.c.l.b16 %v1582
        %v1647 = vunpack.c.l.b16 %v1583
        %v1648 = vunpack.c.l.b16 %v1584
        %v1649 = vunpack.c.l.b16 %v1585
        %v1650 = vunpack.c.l.b16 %v1586
        %v1651 = vunpack.c.l.b16 %v1587
        %v1652 = vunpack.c.l.b16 %v1588
        %v1653 = vunpack.c.l.b16 %v1589
        %v1654 = vunpack.c.l.b16 %v1590
        %v1655 = vunpack.c.l.b16 %v1591
        %v1656 = vunpack.c.l.b16 %v1592
        %v1657 = vunpack.c.l.b16 %v1593
        %v1658 = vunpack.c.l.b16 %v1594
        %v1659 = vunpack.c.l.b16 %v1595
        %v1660 = vpack.c.b16 %v1629, %v1628
        %v1661 = vpack.c.b16 %v1631, %v1630
        %v1662 = vpack.c.b16 %v1633, %v1632
        %v1663 = vpack.c.b16 %v1635, %v1634
        %v1664 = vpack.c.b16 %v1637, %v1636
        %v1665 = vpack.c.b16 %v1639, %v1638
        %v1666 = vpack.c.b16 %v1641, %v1640
        %v1667 = vpack.c.b16 %v1643, %v1642
        %v1668 = vpack.c.b16 %v1645, %v1644
        %v1669 = vpack.c.b16 %v1647, %v1646
        %v1670 = vpack.c.b16 %v1649, %v1648
        %v1671 = vpack.c.b16 %v1651, %v1650
        %v1672 = vpack.c.b16 %v1653, %v1652
        %v1673 = vpack.c.b16 %v1655, %v1654
        %v1674 = vpack.c.b16 %v1657, %v1656
        %v1675 = vpack.c.b16 %v1659, %v1658
        %1692 = vmatprep.subr.bf16.mxu0 0
        %1693 = vmatpush1.bf16.msra.mxu0 %v1660
        %1694 = vmatprep.subr.bf16.mxu0 0
        %1695 = vmatpush1.bf16.msra.mxu0 %v1661
        %1696 = vmatprep.subr.bf16.mxu0 0
        %1697 = vmatpush1.bf16.msra.mxu0 %v1662
        %1698 = vmatprep.subr.bf16.mxu0 0
        %1699 = vmatpush1.bf16.msra.mxu0 %v1663
        %1700 = vmatprep.subr.bf16.mxu0 0
        %1701 = vmatpush1.bf16.msra.mxu0 %v1664
        %1702 = vmatprep.subr.bf16.mxu0 0
        %1703 = vmatpush1.bf16.msra.mxu0 %v1665
        %1704 = vmatprep.subr.bf16.mxu0 0
        %1705 = vmatpush1.bf16.msra.mxu0 %v1666
        %1706 = vmatprep.subr.bf16.mxu0 0
        %1707 = vmatpush1.bf16.msra.mxu0 %v1667
        %1708 = vmatprep.subr.bf16.mxu0 0
        %1709 = vmatpush1.bf16.msra.mxu0 %v1668
        %1710 = vmatprep.subr.bf16.mxu0 0
        %1711 = vmatpush1.bf16.msra.mxu0 %v1669
        %1712 = vmatprep.subr.bf16.mxu0 0
        %1713 = vmatpush1.bf16.msra.mxu0 %v1670
        %1714 = vmatprep.subr.bf16.mxu0 0
        %1715 = vmatpush1.bf16.msra.mxu0 %v1671
        %1716 = vmatprep.subr.bf16.mxu0 0
        %1717 = vmatpush1.bf16.msra.mxu0 %v1672
        %1718 = vmatprep.subr.bf16.mxu0 0
        %1719 = vmatpush1.bf16.msra.mxu0 %v1673
        %1720 = vmatprep.subr.bf16.mxu0 0
        %1721 = vmatpush1.bf16.msra.mxu0 %v1674
        %1722 = vmatprep.subr.bf16.mxu0 0
        %1723 = vmatpush1.bf16.msra.mxu0 %v1675
        %1724 = vmatprep.mubr.bf16.mxu0 %v1563
        %1725 = vmatmul.mubr.bf16.gmra.mrb[0].mxu0 %v1562
        %v1726 = vpop.f32.mrb[0].mxu0
        %v1727 = vadd.f32 0.0, %v1726
        %v1728 = vpop.f32.mrb[0].mxu0
        %v1729 = vpop.f32.mrb[0].mxu0
        %v1730 = vadd.f32 0.0, %v1729
        %v1731 = vpop.f32.mrb[0].mxu0
        %1732 = vdwg.mxu0
        %v1733 = vadd.f32 %v1226, %v1727
        %v1734 = vadd.f32 %v1227, %v1730
        %s1735 = scalar_lea.vmem %s4, 1
        %v1736 = vld [vmem:[%s1735] sm:$0x1]
        %v1737 = vmul.f32 %v1733, %v1733
        %v1738 = vmul.f32 %v1734, %v1734
        %1739 = vadd.xlane.f32.xlu0 %v1737
        %v1740 = vpop.xlane.xlu0 %1739
        %1741 = vadd.xlane.f32.xlu0 %v1738
        %v1742 = vpop.xlane.xlu0 %1741
        %v1743 = vmul.f32 %v1740, %v513
        %v1744 = vmul.f32 %v1742, %v513
        %v1745 = vadd.f32 %v1743, 1e-05
        %v1746 = vadd.f32 %v1744, 1e-05
        %v1747 = vrsqrt.pop %v1745
        %v1748 = vrsqrt.pop %v1746
        %v1749 = vmul.f32 %v1733, %v1747
        %v1750 = vmul.f32 %v1734, %v1748
        %v1752 = vlaneseq
        %v1753 = vshrl.u32 %v1752, 7
        %v1754 = vsub.s32 0, %v1753
        %v1755 = vrot.slane %v1736, %v1754
        %v1757 = vmul.f32 %v1749, %v1755
        %v1758 = vmul.f32 %v1750, %v1755
        %v1759 = vpack.c.bf16 %v1758, %v1757
        %s1760 = scalar_lea.vmem [#allocation10], 192
        %v1761 = vld [vmem:[%s1760] sm:$0xff]
        %v1762 = vld [vmem:[%s1760 + $0x8] sm:$0xf]
        %v1763 = vld [vmem:[%s1760 + $0xc] sm:$0xff]
        %v1764 = vld [vmem:[%s1760 + $0x14] sm:$0xf]
        %v1765 = vld [vmem:[%s1760 + $0x18] sm:$0xff]
        %v1766 = vld [vmem:[%s1760 + $0x20] sm:$0xf]
        %v1767 = vld [vmem:[%s1760 + $0x24] sm:$0xff]
        %v1768 = vld [vmem:[%s1760 + $0x2c] sm:$0xf]
        %v1769 = vld [vmem:[%s1760 + $0x30] sm:$0xff]
        %v1770 = vld [vmem:[%s1760 + $0x38] sm:$0xf]
        %v1771 = vld [vmem:[%s1760 + $0x3c] sm:$0xff]
        %v1772 = vld [vmem:[%s1760 + $0x44] sm:$0xf]
        %v1773 = vld [vmem:[%s1760 + $0x48] sm:$0xff]
        %v1774 = vld [vmem:[%s1760 + $0x50] sm:$0xf]
        %v1775 = vld [vmem:[%s1760 + $0x54] sm:$0xff]
        %v1776 = vld [vmem:[%s1760 + $0x5c] sm:$0xf]
        %v1777 = vld [vmem:[%s1760 + $0x60] sm:$0xff]
        %v1778 = vld [vmem:[%s1760 + $0x68] sm:$0xf]
        %v1779 = vld [vmem:[%s1760 + $0x6c] sm:$0xff]
        %v1780 = vld [vmem:[%s1760 + $0x74] sm:$0xf]
        %v1781 = vld [vmem:[%s1760 + $0x78] sm:$0xff]
        %v1782 = vld [vmem:[%s1760 + $0x80] sm:$0xf]
        %v1783 = vld [vmem:[%s1760 + $0x84] sm:$0xff]
        %v1784 = vld [vmem:[%s1760 + $0x8c] sm:$0xf]
        %v1785 = vld [vmem:[%s1760 + $0x90] sm:$0xff]
        %v1786 = vld [vmem:[%s1760 + $0x98] sm:$0xf]
        %v1787 = vld [vmem:[%s1760 + $0x9c] sm:$0xff]
        %v1788 = vld [vmem:[%s1760 + $0xa4] sm:$0xf]
        %v1789 = vld [vmem:[%s1760 + $0xa8] sm:$0xff]
        %v1790 = vld [vmem:[%s1760 + $0xb0] sm:$0xf]
        %v1791 = vld [vmem:[%s1760 + $0xb4] sm:$0xff]
        %v1792 = vld [vmem:[%s1760 + $0xbc] sm:$0xf]
        %v1825 = vunpack.c.l.b16 %v1761
        %v1826 = vunpack.c.h.b16 %v1761
        %v1827 = vunpack.c.l.b16 %v1762
        %v1828 = vunpack.c.l.b16 %v1763
        %v1829 = vunpack.c.h.b16 %v1763
        %v1830 = vunpack.c.l.b16 %v1764
        %v1831 = vunpack.c.l.b16 %v1765
        %v1832 = vunpack.c.h.b16 %v1765
        %v1833 = vunpack.c.l.b16 %v1766
        %v1834 = vunpack.c.l.b16 %v1767
        %v1835 = vunpack.c.h.b16 %v1767
        %v1836 = vunpack.c.l.b16 %v1768
        %v1837 = vunpack.c.l.b16 %v1769
        %v1838 = vunpack.c.h.b16 %v1769
        %v1839 = vunpack.c.l.b16 %v1770
        %v1840 = vunpack.c.l.b16 %v1771
        %v1841 = vunpack.c.h.b16 %v1771
        %v1842 = vunpack.c.l.b16 %v1772
        %v1843 = vunpack.c.l.b16 %v1773
        %v1844 = vunpack.c.h.b16 %v1773
        %v1845 = vunpack.c.l.b16 %v1774
        %v1846 = vunpack.c.l.b16 %v1775
        %v1847 = vunpack.c.h.b16 %v1775
        %v1848 = vunpack.c.l.b16 %v1776
        %v1849 = vunpack.c.l.b16 %v1777
        %v1850 = vunpack.c.h.b16 %v1777
        %v1851 = vunpack.c.l.b16 %v1778
        %v1852 = vunpack.c.l.b16 %v1779
        %v1853 = vunpack.c.h.b16 %v1779
        %v1854 = vunpack.c.l.b16 %v1780
        %v1855 = vunpack.c.l.b16 %v1781
        %v1856 = vunpack.c.h.b16 %v1781
        %v1857 = vunpack.c.l.b16 %v1782
        %v1858 = vunpack.c.l.b16 %v1783
        %v1859 = vunpack.c.h.b16 %v1783
        %v1860 = vunpack.c.l.b16 %v1784
        %v1861 = vunpack.c.l.b16 %v1785
        %v1862 = vunpack.c.h.b16 %v1785
        %v1863 = vunpack.c.l.b16 %v1786
        %v1864 = vunpack.c.l.b16 %v1787
        %v1865 = vunpack.c.h.b16 %v1787
        %v1866 = vunpack.c.l.b16 %v1788
        %v1867 = vunpack.c.l.b16 %v1789
        %v1868 = vunpack.c.h.b16 %v1789
        %v1869 = vunpack.c.l.b16 %v1790
        %v1870 = vunpack.c.l.b16 %v1791
        %v1871 = vunpack.c.h.b16 %v1791
        %v1872 = vunpack.c.l.b16 %v1792
        %v1873 = vpack.c.b16 %v1828, %v1825
        %v1874 = vpack.c.b16 %v1829, %v1826
        %v1875 = vpack.c.b16 %v1830, %v1827
        %v1876 = vpack.c.b16 %v1834, %v1831
        %v1877 = vpack.c.b16 %v1835, %v1832
        %v1878 = vpack.c.b16 %v1836, %v1833
        %v1879 = vpack.c.b16 %v1840, %v1837
        %v1880 = vpack.c.b16 %v1841, %v1838
        %v1881 = vpack.c.b16 %v1842, %v1839
        %v1882 = vpack.c.b16 %v1846, %v1843
        %v1883 = vpack.c.b16 %v1847, %v1844
        %v1884 = vpack.c.b16 %v1848, %v1845
        %v1885 = vpack.c.b16 %v1852, %v1849
        %v1886 = vpack.c.b16 %v1853, %v1850
        %v1887 = vpack.c.b16 %v1854, %v1851
        %v1888 = vpack.c.b16 %v1858, %v1855
        %v1889 = vpack.c.b16 %v1859, %v1856
        %v1890 = vpack.c.b16 %v1860, %v1857
        %v1891 = vpack.c.b16 %v1864, %v1861
        %v1892 = vpack.c.b16 %v1865, %v1862
        %v1893 = vpack.c.b16 %v1866, %v1863
        %v1894 = vpack.c.b16 %v1870, %v1867
        %v1895 = vpack.c.b16 %v1871, %v1868
        %v1896 = vpack.c.b16 %v1872, %v1869
        %1921 = vmatprep.subr.bf16.mxu0 %v1874
        %1922 = vmatpush1.bf16.msra.mxu0 %v1873
        %1923 = vmatprep.subr.bf16.mxu0 %v1877
        %1924 = vmatpush1.bf16.msra.mxu0 %v1876
        %1925 = vmatprep.subr.bf16.mxu0 %v1880
        %1926 = vmatpush1.bf16.msra.mxu0 %v1879
        %1927 = vmatprep.subr.bf16.mxu0 %v1883
        %1928 = vmatpush1.bf16.msra.mxu0 %v1882
        %1929 = vmatprep.subr.bf16.mxu0 %v1886
        %1930 = vmatpush1.bf16.msra.mxu0 %v1885
        %1931 = vmatprep.subr.bf16.mxu0 %v1889
        %1932 = vmatpush1.bf16.msra.mxu0 %v1888
        %1933 = vmatprep.subr.bf16.mxu0 %v1892
        %1934 = vmatpush1.bf16.msra.mxu0 %v1891
        %1935 = vmatprep.subr.bf16.mxu0 %v1895
        %1936 = vmatpush1.bf16.msra.mxu0 %v1894
        %1937 = vmatprep.subr.bf16.mxu0 0
        %1938 = vmatpush1.bf16.msra.mxu0 0
        %1939 = vmatprep.subr.bf16.mxu0 0
        %1940 = vmatpush1.bf16.msra.mxu0 0
        %1941 = vmatprep.subr.bf16.mxu0 0
        %1942 = vmatpush1.bf16.msra.mxu0 0
        %1943 = vmatprep.subr.bf16.mxu0 0
        %1944 = vmatpush1.bf16.msra.mxu0 0
        %1945 = vmatprep.subr.bf16.mxu0 0
        %1946 = vmatpush1.bf16.msra.mxu0 0
        %1947 = vmatprep.subr.bf16.mxu0 0
        %1948 = vmatpush1.bf16.msra.mxu0 0
        %1949 = vmatprep.subr.bf16.mxu0 0
        %1950 = vmatpush1.bf16.msra.mxu0 0
        %1951 = vmatprep.subr.bf16.mxu0 0
        %1952 = vmatpush1.bf16.msra.mxu0 0
        %1953 = vmatprep.mubr.bf16.mxu0 0
        %1954 = vmatmul.mubr.bf16.gmra.mrb[0].mxu0 %v1759
        %v1955 = vpop.f32.mrb[0].mxu0
        %v1956 = vadd.f32 0.0, %v1955
        %v1957 = vpop.f32.mrb[0].mxu0
        %v1958 = vadd.f32 0.0, %v1957
        %v1959 = vpop.f32.mrb[0].mxu0
        %v1960 = vadd.f32 0.0, %v1959
        %v1961 = vpop.f32.mrb[0].mxu0
        %v1962 = vadd.f32 0.0, %v1961
        %1963 = vdwg.mxu0
        %1964 = vmatprep.subr.bf16.mxu0 0
        %1965 = vmatpush1.bf16.msra.mxu0 %v1875
        %1966 = vmatprep.subr.bf16.mxu0 0
        %1967 = vmatpush1.bf16.msra.mxu0 %v1878
        %1968 = vmatprep.subr.bf16.mxu0 0
        %1969 = vmatpush1.bf16.msra.mxu0 %v1881
        %1970 = vmatprep.subr.bf16.mxu0 0
        %1971 = vmatpush1.bf16.msra.mxu0 %v1884
        %1972 = vmatprep.subr.bf16.mxu0 0
        %1973 = vmatpush1.bf16.msra.mxu0 %v1887
        %1974 = vmatprep.subr.bf16.mxu0 0
        %1975 = vmatpush1.bf16.msra.mxu0 %v1890
        %1976 = vmatprep.subr.bf16.mxu0 0
        %1977 = vmatpush1.bf16.msra.mxu0 %v1893
        %1978 = vmatprep.subr.bf16.mxu0 0
        %1979 = vmatpush1.bf16.msra.mxu0 %v1896
        %1980 = vmatprep.subr.bf16.mxu0 0
        %1981 = vmatpush1.bf16.msra.mxu0 0
        %1982 = vmatprep.subr.bf16.mxu0 0
        %1983 = vmatpush1.bf16.msra.mxu0 0
        %1984 = vmatprep.subr.bf16.mxu0 0
        %1985 = vmatpush1.bf16.msra.mxu0 0
        %1986 = vmatprep.subr.bf16.mxu0 0
        %1987 = vmatpush1.bf16.msra.mxu0 0
        %1988 = vmatprep.subr.bf16.mxu0 0
        %1989 = vmatpush1.bf16.msra.mxu0 0
        %1990 = vmatprep.subr.bf16.mxu0 0
        %1991 = vmatpush1.bf16.msra.mxu0 0
        %1992 = vmatprep.subr.bf16.mxu0 0
        %1993 = vmatpush1.bf16.msra.mxu0 0
        %1994 = vmatprep.subr.bf16.mxu0 0
        %1995 = vmatpush1.bf16.msra.mxu0 0
        %1996 = vmatprep.mubr.bf16.mxu0 0
        %1997 = vmatmul.mubr.bf16.gmra.mrb[0].mxu0 %v1759
        %v1998 = vpop.f32.mrb[0].mxu0
        %v1999 = vadd.f32 0.0, %v1998
        %v2000 = vpop.f32.mrb[0].mxu0
        %v2001 = vpop.f32.mrb[0].mxu0
        %v2002 = vadd.f32 0.0, %v2001
        %v2003 = vpop.f32.mrb[0].mxu0
        %2004 = vdwg.mxu0
        %v2005 = vmul.f32 %v1956, %v489
        %v2006 = vmul.f32 %v1960, %v490
        %2009 = vrot.lane.b32.xlu0 %v1956, 96
        %v2010 = vpop.permute.xlu0 %2009
        %2011 = vrot.lane.b32.xlu0 %v1960, 96
        %v2012 = vpop.permute.xlu0 %2011
        %2015 = vrot.lane.b32.xlu0 %v1956, 32
        %v2016 = vpop.permute.xlu0 %2015
        %2017 = vrot.lane.b32.xlu0 %v1960, 32
        %v2018 = vpop.permute.xlu0 %2017
        %v2021 = vsel %vm791, %v2010, %v2016
        %v2022 = vsel %vm791, %v2012, %v2018
        %v2023 = vsel %vm794, %v2021, %v2010
        %v2024 = vsel %vm794, %v2022, %v2012
        %v2025 = vsel %vm797, %v2023, %v2016
        %v2026 = vsel %vm797, %v2024, %v2018
        %v2027 = vmul.f32 %v2025, %v491
        %v2028 = vmul.f32 %v2026, %v492
        %v2029 = vadd.f32 %v2005, %v2027
        %v2030 = vadd.f32 %v2006, %v2028
        %v2031 = vpack.c.bf16 %v2030, %v2029
        %v2032 = vmul.f32 %v1958, %v489
        %v2033 = vmul.f32 %v1962, %v490
        %2036 = vrot.lane.b32.xlu0 %v1958, 96
        %v2037 = vpop.permute.xlu0 %2036
        %2038 = vrot.lane.b32.xlu0 %v1962, 96
        %v2039 = vpop.permute.xlu0 %2038
        %2042 = vrot.lane.b32.xlu0 %v1958, 32
        %v2043 = vpop.permute.xlu0 %2042
        %2044 = vrot.lane.b32.xlu0 %v1962, 32
        %v2045 = vpop.permute.xlu0 %2044
        %v2048 = vsel %vm791, %v2037, %v2043
        %v2049 = vsel %vm791, %v2039, %v2045
        %v2050 = vsel %vm794, %v2048, %v2037
        %v2051 = vsel %vm794, %v2049, %v2039
        %v2052 = vsel %vm797, %v2050, %v2043
        %v2053 = vsel %vm797, %v2051, %v2045
        %v2054 = vmul.f32 %v2052, %v491
        %v2055 = vmul.f32 %v2053, %v492
        %v2056 = vadd.f32 %v2032, %v2054
        %v2057 = vadd.f32 %v2033, %v2055
        %v2058 = vpack.c.bf16 %v2057, %v2056
        %v2059 = vpack.c.bf16 %v2002, %v1999
        %s2060 = scalar_lea.vmem [#allocation12], 64
        %v2061 = vld [vmem:[%s2060] sm:$0xf]
        %v2062 = vld [vmem:[%s2060 + $0x4] sm:$0xf]
        %v2063 = vld [vmem:[%s2060 + $0x8] sm:$0xf]
        %v2064 = vld [vmem:[%s2060 + $0xc] sm:$0xf]
        %v2065 = vld [vmem:[%s2060 + $0x10] sm:$0xf]
        %v2066 = vld [vmem:[%s2060 + $0x14] sm:$0xf]
        %v2067 = vld [vmem:[%s2060 + $0x18] sm:$0xf]
        %v2068 = vld [vmem:[%s2060 + $0x1c] sm:$0xf]
        %v2069 = vld [vmem:[%s2060 + $0x20] sm:$0xf]
        %v2070 = vld [vmem:[%s2060 + $0x24] sm:$0xf]
        %v2071 = vld [vmem:[%s2060 + $0x28] sm:$0xf]
        %v2072 = vld [vmem:[%s2060 + $0x2c] sm:$0xf]
        %v2073 = vld [vmem:[%s2060 + $0x30] sm:$0xf]
        %v2074 = vld [vmem:[%s2060 + $0x34] sm:$0xf]
        %v2075 = vld [vmem:[%s2060 + $0x38] sm:$0xf]
        %v2076 = vld [vmem:[%s2060 + $0x3c] sm:$0xf]
        %v2078 = vsel %vm794, %v2031, 0
        %v2081 = vsel %vm794, %v2058, 0
        %2083 = vmatprep.subr.bf16.mxu0 0
        %2084 = vmatpush1.bf16.xpose.msra.mxu0 %v2081
        %2085 = vmatprep.subr.bf16.mxu0 0
        %2086 = vmatpush1.bf16.xpose.msra.mxu0 0
        %2087 = vmatprep.subr.bf16.mxu0 0
        %2088 = vmatpush1.bf16.xpose.msra.mxu0 0
        %2089 = vmatprep.subr.bf16.mxu0 0
        %2090 = vmatpush1.bf16.xpose.msra.mxu0 0
        %2091 = vmatprep.subr.bf16.mxu0 0
        %2092 = vmatpush1.bf16.xpose.msra.mxu0 0
        %2093 = vmatprep.subr.bf16.mxu0 0
        %2094 = vmatpush1.bf16.xpose.msra.mxu0 0
        %2095 = vmatprep.subr.bf16.mxu0 0
        %2096 = vmatpush1.bf16.xpose.msra.mxu0 0
        %2097 = vmatprep.subr.bf16.mxu0 0
        %2098 = vmatpush1.bf16.xpose.msra.mxu0 0
        %2099 = vmatprep.subr.bf16.mxu0 0
        %2100 = vmatpush1.bf16.xpose.msra.mxu0 0
        %2101 = vmatprep.subr.bf16.mxu0 0
        %2102 = vmatpush1.bf16.xpose.msra.mxu0 0
        %2103 = vmatprep.subr.bf16.mxu0 0
        %2104 = vmatpush1.bf16.xpose.msra.mxu0 0
        %2105 = vmatprep.subr.bf16.mxu0 0
        %2106 = vmatpush1.bf16.xpose.msra.mxu0 0
        %2107 = vmatprep.subr.bf16.mxu0 0
        %2108 = vmatpush1.bf16.xpose.msra.mxu0 0
        %2109 = vmatprep.subr.bf16.mxu0 0
        %2110 = vmatpush1.bf16.xpose.msra.mxu0 0
        %2111 = vmatprep.subr.bf16.mxu0 0
        %2112 = vmatpush1.bf16.xpose.msra.mxu0 0
        %2113 = vmatprep.subr.bf16.mxu0 0
        %2114 = vmatpush1.bf16.xpose.msra.mxu0 0
        %2115 = vmatprep.mubr.bf16.mxu0 0
        %2116 = vmatmul.mubr.bf16.gmra.mrb[0].mxu0 %v2078
        %v2117 = vpop.f32.mrb[0].mxu0
        %v2118 = vadd.f32 %v504, %v2117
        %v2119 = vpop.f32.mrb[0].mxu0
        %v2120 = vpop.f32.mrb[0].mxu0
        %v2121 = vadd.f32 %v505, %v2120
        %v2122 = vpop.f32.mrb[0].mxu0
        %2123 = vdwg.mxu0
        %v2124 = vsel %vm896, %v2118, -inf
        %2125 = vmax.xlane.f32.xlu0 %v2124
        %v2126 = vpop.xlane.xlu0 %2125
        %v2127 = vsel %vm896, %v2121, -inf
        %2128 = vmax.xlane.f32.xlu0 %v2127
        %v2129 = vpop.xlane.xlu0 %2128
        %v2130 = vsub.f32 %v2118, %v2126
        %v2131 = vsub.f32 %v2121, %v2129
        %v2132 = vmul.f32 %v2130, 1.442695
        %v2133 = vpow.pop %v2132
        %v2134 = vmul.f32 %v2131, 1.442695
        %v2135 = vpow.pop %v2134
        %v2136 = vsel %vm896, %v2133, 0.0
        %2137 = vadd.xlane.f32.xlu0 %v2136
        %v2138 = vpop.xlane.xlu0 %2137
        %v2139 = vsel %vm896, %v2135, 0.0
        %2140 = vadd.xlane.f32.xlu0 %v2139
        %v2141 = vpop.xlane.xlu0 %2140
        %v2142 = vpack.c.bf16 %v2135, %v2133
        %v2144 = vsel %vm896, %v2142, 0
        %2146 = vmatprep.subr.bf16.mxu0 0
        %2147 = vmatpush1.bf16.msra.mxu0 %v2059
        %2148 = vmatprep.subr.bf16.mxu0 0
        %2149 = vmatpush1.bf16.msra.mxu0 0
        %2150 = vmatprep.subr.bf16.mxu0 0
        %2151 = vmatpush1.bf16.msra.mxu0 0
        %2152 = vmatprep.subr.bf16.mxu0 0
        %2153 = vmatpush1.bf16.msra.mxu0 0
        %2154 = vmatprep.subr.bf16.mxu0 0
        %2155 = vmatpush1.bf16.msra.mxu0 0
        %2156 = vmatprep.subr.bf16.mxu0 0
        %2157 = vmatpush1.bf16.msra.mxu0 0
        %2158 = vmatprep.subr.bf16.mxu0 0
        %2159 = vmatpush1.bf16.msra.mxu0 0
        %2160 = vmatprep.subr.bf16.mxu0 0
        %2161 = vmatpush1.bf16.msra.mxu0 0
        %2162 = vmatprep.subr.bf16.mxu0 0
        %2163 = vmatpush1.bf16.msra.mxu0 0
        %2164 = vmatprep.subr.bf16.mxu0 0
        %2165 = vmatpush1.bf16.msra.mxu0 0
        %2166 = vmatprep.subr.bf16.mxu0 0
        %2167 = vmatpush1.bf16.msra.mxu0 0
        %2168 = vmatprep.subr.bf16.mxu0 0
        %2169 = vmatpush1.bf16.msra.mxu0 0
        %2170 = vmatprep.subr.bf16.mxu0 0
        %2171 = vmatpush1.bf16.msra.mxu0 0
        %2172 = vmatprep.subr.bf16.mxu0 0
        %2173 = vmatpush1.bf16.msra.mxu0 0
        %2174 = vmatprep.subr.bf16.mxu0 0
        %2175 = vmatpush1.bf16.msra.mxu0 0
        %2176 = vmatprep.subr.bf16.mxu0 0
        %2177 = vmatpush1.bf16.msra.mxu0 0
        %2178 = vmatprep.mubr.bf16.mxu0 0
        %2179 = vmatmul.mubr.bf16.gmra.mrb[0].mxu0 %v2144
        %v2180 = vpop.f32.mrb[0].mxu0
        %v2181 = vadd.f32 0.0, %v2180
        %v2182 = vpop.f32.mrb[0].mxu0
        %v2183 = vpop.f32.mrb[0].mxu0
        %v2184 = vadd.f32 0.0, %v2183
        %v2185 = vpop.f32.mrb[0].mxu0
        %2186 = vdwg.mxu0
        %v2187 = vrcp.pop %v2138
        %v2188 = vrcp.pop %v2141
        %v2189 = vmul.f32 %v2181, %v2187
        %v2190 = vmul.f32 %v2184, %v2188
        %v2191 = vpack.c.bf16 %v2190, %v2189
        %2193 = vrot.lane.b32.xlu0 %v2031, 64
        %v2194 = vpop.permute.xlu0 %2193
        %2196 = vrot.lane.b32.xlu0 %v2058, 64
        %v2197 = vpop.permute.xlu0 %2196
        %v2199 = vsel %vm794, %v2194, 0
        %v2202 = vsel %vm794, %v2197, 0
        %2204 = vmatprep.subr.bf16.mxu0 0
        %2205 = vmatpush1.bf16.xpose.msra.mxu0 %v2202
        %2206 = vmatprep.subr.bf16.mxu0 0
        %2207 = vmatpush1.bf16.xpose.msra.mxu0 0
        %2208 = vmatprep.subr.bf16.mxu0 0
        %2209 = vmatpush1.bf16.xpose.msra.mxu0 0
        %2210 = vmatprep.subr.bf16.mxu0 0
        %2211 = vmatpush1.bf16.xpose.msra.mxu0 0
        %2212 = vmatprep.subr.bf16.mxu0 0
        %2213 = vmatpush1.bf16.xpose.msra.mxu0 0
        %2214 = vmatprep.subr.bf16.mxu0 0
        %2215 = vmatpush1.bf16.xpose.msra.mxu0 0
        %2216 = vmatprep.subr.bf16.mxu0 0
        %2217 = vmatpush1.bf16.xpose.msra.mxu0 0
        %2218 = vmatprep.subr.bf16.mxu0 0
        %2219 = vmatpush1.bf16.xpose.msra.mxu0 0
        %2220 = vmatprep.subr.bf16.mxu0 0
        %2221 = vmatpush1.bf16.xpose.msra.mxu0 0
        %2222 = vmatprep.subr.bf16.mxu0 0
        %2223 = vmatpush1.bf16.xpose.msra.mxu0 0
        %2224 = vmatprep.subr.bf16.mxu0 0
        %2225 = vmatpush1.bf16.xpose.msra.mxu0 0
        %2226 = vmatprep.subr.bf16.mxu0 0
        %2227 = vmatpush1.bf16.xpose.msra.mxu0 0
        %2228 = vmatprep.subr.bf16.mxu0 0
        %2229 = vmatpush1.bf16.xpose.msra.mxu0 0
        %2230 = vmatprep.subr.bf16.mxu0 0
        %2231 = vmatpush1.bf16.xpose.msra.mxu0 0
        %2232 = vmatprep.subr.bf16.mxu0 0
        %2233 = vmatpush1.bf16.xpose.msra.mxu0 0
        %2234 = vmatprep.subr.bf16.mxu0 0
        %2235 = vmatpush1.bf16.xpose.msra.mxu0 0
        %2236 = vmatprep.mubr.bf16.mxu0 0
        %2237 = vmatmul.mubr.bf16.gmra.mrb[0].mxu0 %v2199
        %v2238 = vpop.f32.mrb[0].mxu0
        %v2239 = vadd.f32 %v504, %v2238
        %v2240 = vpop.f32.mrb[0].mxu0
        %v2241 = vpop.f32.mrb[0].mxu0
        %v2242 = vadd.f32 %v505, %v2241
        %v2243 = vpop.f32.mrb[0].mxu0
        %2244 = vdwg.mxu0
        %v2245 = vsel %vm896, %v2239, -inf
        %2246 = vmax.xlane.f32.xlu0 %v2245
        %v2247 = vpop.xlane.xlu0 %2246
        %v2248 = vsel %vm896, %v2242, -inf
        %2249 = vmax.xlane.f32.xlu0 %v2248
        %v2250 = vpop.xlane.xlu0 %2249
        %v2251 = vsub.f32 %v2239, %v2247
        %v2252 = vsub.f32 %v2242, %v2250
        %v2253 = vmul.f32 %v2251, 1.442695
        %v2254 = vpow.pop %v2253
        %v2255 = vmul.f32 %v2252, 1.442695
        %v2256 = vpow.pop %v2255
        %v2257 = vsel %vm896, %v2254, 0.0
        %2258 = vadd.xlane.f32.xlu0 %v2257
        %v2259 = vpop.xlane.xlu0 %2258
        %v2260 = vsel %vm896, %v2256, 0.0
        %2261 = vadd.xlane.f32.xlu0 %v2260
        %v2262 = vpop.xlane.xlu0 %2261
        %v2263 = vpack.c.bf16 %v2256, %v2254
        %2265 = vrot.lane.b32.xlu0 %v2059, 64
        %v2266 = vpop.permute.xlu0 %2265
        %v2269 = vsel %vm896, %v2263, 0
        %2271 = vmatprep.subr.bf16.mxu0 0
        %2272 = vmatpush1.bf16.msra.mxu0 %v2266
        %2273 = vmatprep.subr.bf16.mxu0 0
        %2274 = vmatpush1.bf16.msra.mxu0 0
        %2275 = vmatprep.subr.bf16.mxu0 0
        %2276 = vmatpush1.bf16.msra.mxu0 0
        %2277 = vmatprep.subr.bf16.mxu0 0
        %2278 = vmatpush1.bf16.msra.mxu0 0
        %2279 = vmatprep.subr.bf16.mxu0 0
        %2280 = vmatpush1.bf16.msra.mxu0 0
        %2281 = vmatprep.subr.bf16.mxu0 0
        %2282 = vmatpush1.bf16.msra.mxu0 0
        %2283 = vmatprep.subr.bf16.mxu0 0
        %2284 = vmatpush1.bf16.msra.mxu0 0
        %2285 = vmatprep.subr.bf16.mxu0 0
        %2286 = vmatpush1.bf16.msra.mxu0 0
        %2287 = vmatprep.subr.bf16.mxu0 0
        %2288 = vmatpush1.bf16.msra.mxu0 0
        %2289 = vmatprep.subr.bf16.mxu0 0
        %2290 = vmatpush1.bf16.msra.mxu0 0
        %2291 = vmatprep.subr.bf16.mxu0 0
        %2292 = vmatpush1.bf16.msra.mxu0 0
        %2293 = vmatprep.subr.bf16.mxu0 0
        %2294 = vmatpush1.bf16.msra.mxu0 0
        %2295 = vmatprep.subr.bf16.mxu0 0
        %2296 = vmatpush1.bf16.msra.mxu0 0
        %2297 = vmatprep.subr.bf16.mxu0 0
        %2298 = vmatpush1.bf16.msra.mxu0 0
        %2299 = vmatprep.subr.bf16.mxu0 0
        %2300 = vmatpush1.bf16.msra.mxu0 0
        %2301 = vmatprep.subr.bf16.mxu0 0
        %2302 = vmatpush1.bf16.msra.mxu0 0
        %2303 = vmatprep.mubr.bf16.mxu0 0
        %2304 = vmatmul.mubr.bf16.gmra.mrb[0].mxu0 %v2269
        %v2305 = vpop.f32.mrb[0].mxu0
        %v2306 = vadd.f32 0.0, %v2305
        %v2307 = vpop.f32.mrb[0].mxu0
        %v2308 = vpop.f32.mrb[0].mxu0
        %v2309 = vadd.f32 0.0, %v2308
        %v2310 = vpop.f32.mrb[0].mxu0
        %2311 = vdwg.mxu0
        %v2312 = vrcp.pop %v2259
        %v2313 = vrcp.pop %v2262
        %v2314 = vmul.f32 %v2306, %v2312
        %v2315 = vmul.f32 %v2309, %v2313
        %v2316 = vpack.c.bf16 %v2315, %v2314
        %v2325 = vunpack.c.l.b16 %v2069
        %v2326 = vunpack.c.l.b16 %v2070
        %v2327 = vunpack.c.l.b16 %v2071
        %v2328 = vunpack.c.l.b16 %v2072
        %v2329 = vunpack.c.l.b16 %v2073
        %v2330 = vunpack.c.l.b16 %v2074
        %v2331 = vunpack.c.l.b16 %v2075
        %v2332 = vunpack.c.l.b16 %v2076
        %v2333 = vpack.c.b16 %v2326, %v2325
        %v2334 = vpack.c.b16 %v2328, %v2327
        %v2335 = vpack.c.b16 %v2330, %v2329
        %v2336 = vpack.c.b16 %v2332, %v2331
        %v2342 = vsel %vm794, %v2316, 0
        %2344 = vmatprep.subr.bf16.mxu0 0
        %2345 = vmatpush1.bf16.msra.mxu0 %v2333
        %2346 = vmatprep.subr.bf16.mxu0 0
        %2347 = vmatpush1.bf16.msra.mxu0 %v2334
        %2348 = vmatprep.subr.bf16.mxu0 0
        %2349 = vmatpush1.bf16.msra.mxu0 %v2335
        %2350 = vmatprep.subr.bf16.mxu0 0
        %2351 = vmatpush1.bf16.msra.mxu0 %v2336
        %2352 = vmatprep.subr.bf16.mxu0 0
        %2353 = vmatpush1.bf16.msra.mxu0 0
        %2354 = vmatprep.subr.bf16.mxu0 0
        %2355 = vmatpush1.bf16.msra.mxu0 0
        %2356 = vmatprep.subr.bf16.mxu0 0
        %2357 = vmatpush1.bf16.msra.mxu0 0
        %2358 = vmatprep.subr.bf16.mxu0 0
        %2359 = vmatpush1.bf16.msra.mxu0 0
        %2360 = vmatprep.subr.bf16.mxu0 0
        %2361 = vmatpush1.bf16.msra.mxu0 0
        %2362 = vmatprep.subr.bf16.mxu0 0
        %2363 = vmatpush1.bf16.msra.mxu0 0
        %2364 = vmatprep.subr.bf16.mxu0 0
        %2365 = vmatpush1.bf16.msra.mxu0 0
        %2366 = vmatprep.subr.bf16.mxu0 0
        %2367 = vmatpush1.bf16.msra.mxu0 0
        %2368 = vmatprep.subr.bf16.mxu0 0
        %2369 = vmatpush1.bf16.msra.mxu0 0
        %2370 = vmatprep.subr.bf16.mxu0 0
        %2371 = vmatpush1.bf16.msra.mxu0 0
        %2372 = vmatprep.subr.bf16.mxu0 0
        %2373 = vmatpush1.bf16.msra.mxu0 0
        %2374 = vmatprep.subr.bf16.mxu0 0
        %2375 = vmatpush1.bf16.msra.mxu0 0
        %2376 = vmatprep.mubr.bf16.mxu0 0
        %2377 = vmatmul.mubr.bf16.gmra.mrb[0].mxu0 %v2342
        %v2378 = vpop.f32.mrb[0].mxu0
        %v2379 = vadd.f32 0.0, %v2378
        %v2380 = vpop.f32.mrb[0].mxu0
        %v2381 = vpop.f32.mrb[0].mxu0
        %v2382 = vadd.f32 0.0, %v2381
        %v2383 = vpop.f32.mrb[0].mxu0
        %2384 = vdwg.mxu0
        %v2393 = vunpack.c.l.b16 %v2061
        %v2394 = vunpack.c.l.b16 %v2062
        %v2395 = vunpack.c.l.b16 %v2063
        %v2396 = vunpack.c.l.b16 %v2064
        %v2397 = vunpack.c.l.b16 %v2065
        %v2398 = vunpack.c.l.b16 %v2066
        %v2399 = vunpack.c.l.b16 %v2067
        %v2400 = vunpack.c.l.b16 %v2068
        %v2401 = vpack.c.b16 %v2394, %v2393
        %v2402 = vpack.c.b16 %v2396, %v2395
        %v2403 = vpack.c.b16 %v2398, %v2397
        %v2404 = vpack.c.b16 %v2400, %v2399
        %v2410 = vsel %vm794, %v2191, 0
        %2412 = vmatprep.subr.bf16.mxu0 0
        %2413 = vmatpush1.bf16.msra.mxu0 %v2401
        %2414 = vmatprep.subr.bf16.mxu0 0
        %2415 = vmatpush1.bf16.msra.mxu0 %v2402
        %2416 = vmatprep.subr.bf16.mxu0 0
        %2417 = vmatpush1.bf16.msra.mxu0 %v2403
        %2418 = vmatprep.subr.bf16.mxu0 0
        %2419 = vmatpush1.bf16.msra.mxu0 %v2404
        %2420 = vmatprep.subr.bf16.mxu0 0
        %2421 = vmatpush1.bf16.msra.mxu0 0
        %2422 = vmatprep.subr.bf16.mxu0 0
        %2423 = vmatpush1.bf16.msra.mxu0 0
        %2424 = vmatprep.subr.bf16.mxu0 0
        %2425 = vmatpush1.bf16.msra.mxu0 0
        %2426 = vmatprep.subr.bf16.mxu0 0
        %2427 = vmatpush1.bf16.msra.mxu0 0
        %2428 = vmatprep.subr.bf16.mxu0 0
        %2429 = vmatpush1.bf16.msra.mxu0 0
        %2430 = vmatprep.subr.bf16.mxu0 0
        %2431 = vmatpush1.bf16.msra.mxu0 0
        %2432 = vmatprep.subr.bf16.mxu0 0
        %2433 = vmatpush1.bf16.msra.mxu0 0
        %2434 = vmatprep.subr.bf16.mxu0 0
        %2435 = vmatpush1.bf16.msra.mxu0 0
        %2436 = vmatprep.subr.bf16.mxu0 0
        %2437 = vmatpush1.bf16.msra.mxu0 0
        %2438 = vmatprep.subr.bf16.mxu0 0
        %2439 = vmatpush1.bf16.msra.mxu0 0
        %2440 = vmatprep.subr.bf16.mxu0 0
        %2441 = vmatpush1.bf16.msra.mxu0 0
        %2442 = vmatprep.subr.bf16.mxu0 0
        %2443 = vmatpush1.bf16.msra.mxu0 0
        %2444 = vmatprep.mubr.bf16.mxu0 0
        %2445 = vmatmul.mubr.bf16.gmra.mrb[0].mxu0 %v2410
        %v2446 = vpop.f32.mrb[0].mxu0
        %v2447 = vadd.f32 %v2379, %v2446
        %v2448 = vpop.f32.mrb[0].mxu0
        %v2449 = vpop.f32.mrb[0].mxu0
        %v2450 = vadd.f32 %v2382, %v2449
        %v2451 = vpop.f32.mrb[0].mxu0
        %2452 = vdwg.mxu0
        %v2453 = vadd.f32 %v1733, %v2447
        %v2454 = vadd.f32 %v1734, %v2450
        %s2455 = scalar_lea.vmem %s7, 1
        %v2456 = vld [vmem:[%s2455] sm:$0x1]
        %v2457 = vmul.f32 %v2453, %v2453
        %v2458 = vmul.f32 %v2454, %v2454
        %2459 = vadd.xlane.f32.xlu0 %v2457
        %v2460 = vpop.xlane.xlu0 %2459
        %2461 = vadd.xlane.f32.xlu0 %v2458
        %v2462 = vpop.xlane.xlu0 %2461
        %v2463 = vmul.f32 %v2460, %v513
        %v2464 = vmul.f32 %v2462, %v513
        %v2465 = vadd.f32 %v2463, 1e-05
        %v2466 = vadd.f32 %v2464, 1e-05
        %v2467 = vrsqrt.pop %v2465
        %v2468 = vrsqrt.pop %v2466
        %v2469 = vmul.f32 %v2453, %v2467
        %v2470 = vmul.f32 %v2454, %v2468
        %v2472 = vlaneseq
        %v2473 = vshrl.u32 %v2472, 7
        %v2474 = vsub.s32 0, %v2473
        %v2475 = vrot.slane %v2456, %v2474
        %v2477 = vmul.f32 %v2469, %v2475
        %v2478 = vmul.f32 %v2470, %v2475
        %v2479 = vpack.c.bf16 %v2478, %v2477
        %s2480 = scalar_lea.vmem [#allocation13], 128
        %v2481 = vld [vmem:[%s2480] sm:$0xff]
        %v2482 = vld [vmem:[%s2480 + $0x8] sm:$0xff]
        %v2483 = vld [vmem:[%s2480 + $0x10] sm:$0xff]
        %v2484 = vld [vmem:[%s2480 + $0x18] sm:$0xff]
        %v2485 = vld [vmem:[%s2480 + $0x20] sm:$0xff]
        %v2486 = vld [vmem:[%s2480 + $0x28] sm:$0xff]
        %v2487 = vld [vmem:[%s2480 + $0x30] sm:$0xff]
        %v2488 = vld [vmem:[%s2480 + $0x38] sm:$0xff]
        %v2489 = vld [vmem:[%s2480 + $0x40] sm:$0xff]
        %v2490 = vld [vmem:[%s2480 + $0x48] sm:$0xff]
        %v2491 = vld [vmem:[%s2480 + $0x50] sm:$0xff]
        %v2492 = vld [vmem:[%s2480 + $0x58] sm:$0xff]
        %v2493 = vld [vmem:[%s2480 + $0x60] sm:$0xff]
        %v2494 = vld [vmem:[%s2480 + $0x68] sm:$0xff]
        %v2495 = vld [vmem:[%s2480 + $0x70] sm:$0xff]
        %v2496 = vld [vmem:[%s2480 + $0x78] sm:$0xff]
        %v2513 = vunpack.c.l.b16 %v2481
        %v2514 = vunpack.c.h.b16 %v2481
        %v2515 = vunpack.c.l.b16 %v2482
        %v2516 = vunpack.c.h.b16 %v2482
        %v2517 = vunpack.c.l.b16 %v2483
        %v2518 = vunpack.c.h.b16 %v2483
        %v2519 = vunpack.c.l.b16 %v2484
        %v2520 = vunpack.c.h.b16 %v2484
        %v2521 = vunpack.c.l.b16 %v2485
        %v2522 = vunpack.c.h.b16 %v2485
        %v2523 = vunpack.c.l.b16 %v2486
        %v2524 = vunpack.c.h.b16 %v2486
        %v2525 = vunpack.c.l.b16 %v2487
        %v2526 = vunpack.c.h.b16 %v2487
        %v2527 = vunpack.c.l.b16 %v2488
        %v2528 = vunpack.c.h.b16 %v2488
        %v2529 = vunpack.c.l.b16 %v2489
        %v2530 = vunpack.c.h.b16 %v2489
        %v2531 = vunpack.c.l.b16 %v2490
        %v2532 = vunpack.c.h.b16 %v2490
        %v2533 = vunpack.c.l.b16 %v2491
        %v2534 = vunpack.c.h.b16 %v2491
        %v2535 = vunpack.c.l.b16 %v2492
        %v2536 = vunpack.c.h.b16 %v2492
        %v2537 = vunpack.c.l.b16 %v2493
        %v2538 = vunpack.c.h.b16 %v2493
        %v2539 = vunpack.c.l.b16 %v2494
        %v2540 = vunpack.c.h.b16 %v2494
        %v2541 = vunpack.c.l.b16 %v2495
        %v2542 = vunpack.c.h.b16 %v2495
        %v2543 = vunpack.c.l.b16 %v2496
        %v2544 = vunpack.c.h.b16 %v2496
        %v2545 = vpack.c.b16 %v2515, %v2513
        %v2546 = vpack.c.b16 %v2516, %v2514
        %v2547 = vpack.c.b16 %v2519, %v2517
        %v2548 = vpack.c.b16 %v2520, %v2518
        %v2549 = vpack.c.b16 %v2523, %v2521
        %v2550 = vpack.c.b16 %v2524, %v2522
        %v2551 = vpack.c.b16 %v2527, %v2525
        %v2552 = vpack.c.b16 %v2528, %v2526
        %v2553 = vpack.c.b16 %v2531, %v2529
        %v2554 = vpack.c.b16 %v2532, %v2530
        %v2555 = vpack.c.b16 %v2535, %v2533
        %v2556 = vpack.c.b16 %v2536, %v2534
        %v2557 = vpack.c.b16 %v2539, %v2537
        %v2558 = vpack.c.b16 %v2540, %v2538
        %v2559 = vpack.c.b16 %v2543, %v2541
        %v2560 = vpack.c.b16 %v2544, %v2542
        %2577 = vmatprep.subr.bf16.mxu0 %v2546
        %2578 = vmatpush1.bf16.msra.mxu0 %v2545
        %2579 = vmatprep.subr.bf16.mxu0 %v2548
        %2580 = vmatpush1.bf16.msra.mxu0 %v2547
        %2581 = vmatprep.subr.bf16.mxu0 %v2550
        %2582 = vmatpush1.bf16.msra.mxu0 %v2549
        %2583 = vmatprep.subr.bf16.mxu0 %v2552
        %2584 = vmatpush1.bf16.msra.mxu0 %v2551
        %2585 = vmatprep.subr.bf16.mxu0 %v2554
        %2586 = vmatpush1.bf16.msra.mxu0 %v2553
        %2587 = vmatprep.subr.bf16.mxu0 %v2556
        %2588 = vmatpush1.bf16.msra.mxu0 %v2555
        %2589 = vmatprep.subr.bf16.mxu0 %v2558
        %2590 = vmatpush1.bf16.msra.mxu0 %v2557
        %2591 = vmatprep.subr.bf16.mxu0 %v2560
        %2592 = vmatpush1.bf16.msra.mxu0 %v2559
        %2593 = vmatprep.subr.bf16.mxu0 0
        %2594 = vmatpush1.bf16.msra.mxu0 0
        %2595 = vmatprep.subr.bf16.mxu0 0
        %2596 = vmatpush1.bf16.msra.mxu0 0
        %2597 = vmatprep.subr.bf16.mxu0 0
        %2598 = vmatpush1.bf16.msra.mxu0 0
        %2599 = vmatprep.subr.bf16.mxu0 0
        %2600 = vmatpush1.bf16.msra.mxu0 0
        %2601 = vmatprep.subr.bf16.mxu0 0
        %2602 = vmatpush1.bf16.msra.mxu0 0
        %2603 = vmatprep.subr.bf16.mxu0 0
        %2604 = vmatpush1.bf16.msra.mxu0 0
        %2605 = vmatprep.subr.bf16.mxu0 0
        %2606 = vmatpush1.bf16.msra.mxu0 0
        %2607 = vmatprep.subr.bf16.mxu0 0
        %2608 = vmatpush1.bf16.msra.mxu0 0
        %2609 = vmatprep.mubr.bf16.mxu0 0
        %2610 = vmatmul.mubr.bf16.gmra.mrb[0].mxu0 %v2479
        %v2611 = vpop.f32.mrb[0].mxu0
        %v2612 = vadd.f32 0.0, %v2611
        %v2613 = vpop.f32.mrb[0].mxu0
        %v2614 = vadd.f32 0.0, %v2613
        %v2615 = vpop.f32.mrb[0].mxu0
        %v2616 = vadd.f32 0.0, %v2615
        %v2617 = vpop.f32.mrb[0].mxu0
        %v2618 = vadd.f32 0.0, %v2617
        %2619 = vdwg.mxu0
        %s2620 = scalar_lea.vmem [#allocation15], 128
        %v2621 = vld [vmem:[%s2620] sm:$0xff]
        %v2622 = vld [vmem:[%s2620 + $0x8] sm:$0xff]
        %v2623 = vld [vmem:[%s2620 + $0x10] sm:$0xff]
        %v2624 = vld [vmem:[%s2620 + $0x18] sm:$0xff]
        %v2625 = vld [vmem:[%s2620 + $0x20] sm:$0xff]
        %v2626 = vld [vmem:[%s2620 + $0x28] sm:$0xff]
        %v2627 = vld [vmem:[%s2620 + $0x30] sm:$0xff]
        %v2628 = vld [vmem:[%s2620 + $0x38] sm:$0xff]
        %v2629 = vld [vmem:[%s2620 + $0x40] sm:$0xff]
        %v2630 = vld [vmem:[%s2620 + $0x48] sm:$0xff]
        %v2631 = vld [vmem:[%s2620 + $0x50] sm:$0xff]
        %v2632 = vld [vmem:[%s2620 + $0x58] sm:$0xff]
        %v2633 = vld [vmem:[%s2620 + $0x60] sm:$0xff]
        %v2634 = vld [vmem:[%s2620 + $0x68] sm:$0xff]
        %v2635 = vld [vmem:[%s2620 + $0x70] sm:$0xff]
        %v2636 = vld [vmem:[%s2620 + $0x78] sm:$0xff]
        %v2653 = vunpack.c.l.b16 %v2621
        %v2654 = vunpack.c.h.b16 %v2621
        %v2655 = vunpack.c.l.b16 %v2622
        %v2656 = vunpack.c.h.b16 %v2622
        %v2657 = vunpack.c.l.b16 %v2623
        %v2658 = vunpack.c.h.b16 %v2623
        %v2659 = vunpack.c.l.b16 %v2624
        %v2660 = vunpack.c.h.b16 %v2624
        %v2661 = vunpack.c.l.b16 %v2625
        %v2662 = vunpack.c.h.b16 %v2625
        %v2663 = vunpack.c.l.b16 %v2626
        %v2664 = vunpack.c.h.b16 %v2626
        %v2665 = vunpack.c.l.b16 %v2627
        %v2666 = vunpack.c.h.b16 %v2627
        %v2667 = vunpack.c.l.b16 %v2628
        %v2668 = vunpack.c.h.b16 %v2628
        %v2669 = vunpack.c.l.b16 %v2629
        %v2670 = vunpack.c.h.b16 %v2629
        %v2671 = vunpack.c.l.b16 %v2630
        %v2672 = vunpack.c.h.b16 %v2630
        %v2673 = vunpack.c.l.b16 %v2631
        %v2674 = vunpack.c.h.b16 %v2631
        %v2675 = vunpack.c.l.b16 %v2632
        %v2676 = vunpack.c.h.b16 %v2632
        %v2677 = vunpack.c.l.b16 %v2633
        %v2678 = vunpack.c.h.b16 %v2633
        %v2679 = vunpack.c.l.b16 %v2634
        %v2680 = vunpack.c.h.b16 %v2634
        %v2681 = vunpack.c.l.b16 %v2635
        %v2682 = vunpack.c.h.b16 %v2635
        %v2683 = vunpack.c.l.b16 %v2636
        %v2684 = vunpack.c.h.b16 %v2636
        %v2685 = vpack.c.b16 %v2655, %v2653
        %v2686 = vpack.c.b16 %v2656, %v2654
        %v2687 = vpack.c.b16 %v2659, %v2657
        %v2688 = vpack.c.b16 %v2660, %v2658
        %v2689 = vpack.c.b16 %v2663, %v2661
        %v2690 = vpack.c.b16 %v2664, %v2662
        %v2691 = vpack.c.b16 %v2667, %v2665
        %v2692 = vpack.c.b16 %v2668, %v2666
        %v2693 = vpack.c.b16 %v2671, %v2669
        %v2694 = vpack.c.b16 %v2672, %v2670
        %v2695 = vpack.c.b16 %v2675, %v2673
        %v2696 = vpack.c.b16 %v2676, %v2674
        %v2697 = vpack.c.b16 %v2679, %v2677
        %v2698 = vpack.c.b16 %v2680, %v2678
        %v2699 = vpack.c.b16 %v2683, %v2681
        %v2700 = vpack.c.b16 %v2684, %v2682
        %2717 = vmatprep.subr.bf16.mxu0 %v2686
        %2718 = vmatpush1.bf16.msra.mxu0 %v2685
        %2719 = vmatprep.subr.bf16.mxu0 %v2688
        %2720 = vmatpush1.bf16.msra.mxu0 %v2687
        %2721 = vmatprep.subr.bf16.mxu0 %v2690
        %2722 = vmatpush1.bf16.msra.mxu0 %v2689
        %2723 = vmatprep.subr.bf16.mxu0 %v2692
        %2724 = vmatpush1.bf16.msra.mxu0 %v2691
        %2725 = vmatprep.subr.bf16.mxu0 %v2694
        %2726 = vmatpush1.bf16.msra.mxu0 %v2693
        %2727 = vmatprep.subr.bf16.mxu0 %v2696
        %2728 = vmatpush1.bf16.msra.mxu0 %v2695
        %2729 = vmatprep.subr.bf16.mxu0 %v2698
        %2730 = vmatpush1.bf16.msra.mxu0 %v2697
        %2731 = vmatprep.subr.bf16.mxu0 %v2700
        %2732 = vmatpush1.bf16.msra.mxu0 %v2699
        %2733 = vmatprep.subr.bf16.mxu0 0
        %2734 = vmatpush1.bf16.msra.mxu0 0
        %2735 = vmatprep.subr.bf16.mxu0 0
        %2736 = vmatpush1.bf16.msra.mxu0 0
        %2737 = vmatprep.subr.bf16.mxu0 0
        %2738 = vmatpush1.bf16.msra.mxu0 0
        %2739 = vmatprep.subr.bf16.mxu0 0
        %2740 = vmatpush1.bf16.msra.mxu0 0
        %2741 = vmatprep.subr.bf16.mxu0 0
        %2742 = vmatpush1.bf16.msra.mxu0 0
        %2743 = vmatprep.subr.bf16.mxu0 0
        %2744 = vmatpush1.bf16.msra.mxu0 0
        %2745 = vmatprep.subr.bf16.mxu0 0
        %2746 = vmatpush1.bf16.msra.mxu0 0
        %2747 = vmatprep.subr.bf16.mxu0 0
        %2748 = vmatpush1.bf16.msra.mxu0 0
        %2749 = vmatprep.mubr.bf16.mxu0 0
        %2750 = vmatmul.mubr.bf16.gmra.mrb[0].mxu0 %v2479
        %v2751 = vpop.f32.mrb[0].mxu0
        %v2752 = vadd.f32 0.0, %v2751
        %v2753 = vpop.f32.mrb[0].mxu0
        %v2754 = vadd.f32 0.0, %v2753
        %v2755 = vpop.f32.mrb[0].mxu0
        %v2756 = vadd.f32 0.0, %v2755
        %v2757 = vpop.f32.mrb[0].mxu0
        %v2758 = vadd.f32 0.0, %v2757
        %2759 = vdwg.mxu0
        %v2760 = vxor.u32 %v2612, 2147483648
        %v2761 = vxor.u32 %v2614, 2147483648
        %v2762 = vxor.u32 %v2616, 2147483648
        %v2763 = vxor.u32 %v2618, 2147483648
        %v2764 = vmul.f32 %v2760, 1.442695
        %v2765 = vpow.pop %v2764
        %v2766 = vmul.f32 %v2761, 1.442695
        %v2767 = vpow.pop %v2766
        %v2768 = vmul.f32 %v2762, 1.442695
        %v2769 = vpow.pop %v2768
        %v2770 = vmul.f32 %v2763, 1.442695
        %v2771 = vpow.pop %v2770
        %v2772 = vadd.f32 %v2765, 1.0
        %v2773 = vadd.f32 %v2767, 1.0
        %v2774 = vadd.f32 %v2769, 1.0
        %v2775 = vadd.f32 %v2771, 1.0
        %v2776 = vrcp.pop %v2772
        %v2777 = vmul.f32 1.0, %v2776
        %v2778 = vrcp.pop %v2773
        %v2779 = vmul.f32 1.0, %v2778
        %v2780 = vrcp.pop %v2774
        %v2781 = vmul.f32 1.0, %v2780
        %v2782 = vrcp.pop %v2775
        %v2783 = vmul.f32 1.0, %v2782
        %v2784 = vmul.f32 %v2612, %v2777
        %v2785 = vmul.f32 %v2614, %v2779
        %v2786 = vmul.f32 %v2616, %v2781
        %v2787 = vmul.f32 %v2618, %v2783
        %v2788 = vmul.f32 %v2784, %v2752
        %v2789 = vmul.f32 %v2785, %v2754
        %v2790 = vmul.f32 %v2786, %v2756
        %v2791 = vmul.f32 %v2787, %v2758
        %v2792 = vpack.c.bf16 %v2790, %v2788
        %v2793 = vpack.c.bf16 %v2791, %v2789
        %s2794 = scalar_lea.vmem [#allocation16], 128
        %v2795 = vld [vmem:[%s2794] sm:$0xf]
        %v2796 = vld [vmem:[%s2794 + $0x4] sm:$0xf]
        %v2797 = vld [vmem:[%s2794 + $0x8] sm:$0xf]
        %v2798 = vld [vmem:[%s2794 + $0xc] sm:$0xf]
        %v2799 = vld [vmem:[%s2794 + $0x10] sm:$0xf]
        %v2800 = vld [vmem:[%s2794 + $0x14] sm:$0xf]
        %v2801 = vld [vmem:[%s2794 + $0x18] sm:$0xf]
        %v2802 = vld [vmem:[%s2794 + $0x1c] sm:$0xf]
        %v2803 = vld [vmem:[%s2794 + $0x20] sm:$0xf]
        %v2804 = vld [vmem:[%s2794 + $0x24] sm:$0xf]
        %v2805 = vld [vmem:[%s2794 + $0x28] sm:$0xf]
        %v2806 = vld [vmem:[%s2794 + $0x2c] sm:$0xf]
        %v2807 = vld [vmem:[%s2794 + $0x30] sm:$0xf]
        %v2808 = vld [vmem:[%s2794 + $0x34] sm:$0xf]
        %v2809 = vld [vmem:[%s2794 + $0x38] sm:$0xf]
        %v2810 = vld [vmem:[%s2794 + $0x3c] sm:$0xf]
        %v2811 = vld [vmem:[%s2794 + $0x40] sm:$0xf]
        %v2812 = vld [vmem:[%s2794 + $0x44] sm:$0xf]
        %v2813 = vld [vmem:[%s2794 + $0x48] sm:$0xf]
        %v2814 = vld [vmem:[%s2794 + $0x4c] sm:$0xf]
        %v2815 = vld [vmem:[%s2794 + $0x50] sm:$0xf]
        %v2816 = vld [vmem:[%s2794 + $0x54] sm:$0xf]
        %v2817 = vld [vmem:[%s2794 + $0x58] sm:$0xf]
        %v2818 = vld [vmem:[%s2794 + $0x5c] sm:$0xf]
        %v2819 = vld [vmem:[%s2794 + $0x60] sm:$0xf]
        %v2820 = vld [vmem:[%s2794 + $0x64] sm:$0xf]
        %v2821 = vld [vmem:[%s2794 + $0x68] sm:$0xf]
        %v2822 = vld [vmem:[%s2794 + $0x6c] sm:$0xf]
        %v2823 = vld [vmem:[%s2794 + $0x70] sm:$0xf]
        %v2824 = vld [vmem:[%s2794 + $0x74] sm:$0xf]
        %v2825 = vld [vmem:[%s2794 + $0x78] sm:$0xf]
        %v2826 = vld [vmem:[%s2794 + $0x7c] sm:$0xf]
        %v2859 = vunpack.c.l.b16 %v2795
        %v2860 = vunpack.c.l.b16 %v2796
        %v2861 = vunpack.c.l.b16 %v2797
        %v2862 = vunpack.c.l.b16 %v2798
        %v2863 = vunpack.c.l.b16 %v2799
        %v2864 = vunpack.c.l.b16 %v2800
        %v2865 = vunpack.c.l.b16 %v2801
        %v2866 = vunpack.c.l.b16 %v2802
        %v2867 = vunpack.c.l.b16 %v2803
        %v2868 = vunpack.c.l.b16 %v2804
        %v2869 = vunpack.c.l.b16 %v2805
        %v2870 = vunpack.c.l.b16 %v2806
        %v2871 = vunpack.c.l.b16 %v2807
        %v2872 = vunpack.c.l.b16 %v2808
        %v2873 = vunpack.c.l.b16 %v2809
        %v2874 = vunpack.c.l.b16 %v2810
        %v2875 = vunpack.c.l.b16 %v2811
        %v2876 = vunpack.c.l.b16 %v2812
        %v2877 = vunpack.c.l.b16 %v2813
        %v2878 = vunpack.c.l.b16 %v2814
        %v2879 = vunpack.c.l.b16 %v2815
        %v2880 = vunpack.c.l.b16 %v2816
        %v2881 = vunpack.c.l.b16 %v2817
        %v2882 = vunpack.c.l.b16 %v2818
        %v2883 = vunpack.c.l.b16 %v2819
        %v2884 = vunpack.c.l.b16 %v2820
        %v2885 = vunpack.c.l.b16 %v2821
        %v2886 = vunpack.c.l.b16 %v2822
        %v2887 = vunpack.c.l.b16 %v2823
        %v2888 = vunpack.c.l.b16 %v2824
        %v2889 = vunpack.c.l.b16 %v2825
        %v2890 = vunpack.c.l.b16 %v2826
        %v2891 = vpack.c.b16 %v2860, %v2859
        %v2892 = vpack.c.b16 %v2862, %v2861
        %v2893 = vpack.c.b16 %v2864, %v2863
        %v2894 = vpack.c.b16 %v2866, %v2865
        %v2895 = vpack.c.b16 %v2868, %v2867
        %v2896 = vpack.c.b16 %v2870, %v2869
        %v2897 = vpack.c.b16 %v2872, %v2871
        %v2898 = vpack.c.b16 %v2874, %v2873
        %v2899 = vpack.c.b16 %v2876, %v2875
        %v2900 = vpack.c.b16 %v2878, %v2877
        %v2901 = vpack.c.b16 %v2880, %v2879
        %v2902 = vpack.c.b16 %v2882, %v2881
        %v2903 = vpack.c.b16 %v2884, %v2883
        %v2904 = vpack.c.b16 %v2886, %v2885
        %v2905 = vpack.c.b16 %v2888, %v2887
        %v2906 = vpack.c.b16 %v2890, %v2889
        %2923 = vmatprep.subr.bf16.mxu0 0
        %2924 = vmatpush1.bf16.msra.mxu0 %v2891
        %2925 = vmatprep.subr.bf16.mxu0 0
        %2926 = vmatpush1.bf16.msra.mxu0 %v2892
        %2927 = vmatprep.subr.bf16.mxu0 0
        %2928 = vmatpush1.bf16.msra.mxu0 %v2893
        %2929 = vmatprep.subr.bf16.mxu0 0
        %2930 = vmatpush1.bf16.msra.mxu0 %v2894
        %2931 = vmatprep.subr.bf16.mxu0 0
        %2932 = vmatpush1.bf16.msra.mxu0 %v2895
        %2933 = vmatprep.subr.bf16.mxu0 0
        %2934 = vmatpush1.bf16.msra.mxu0 %v2896
        %2935 = vmatprep.subr.bf16.mxu0 0
        %2936 = vmatpush1.bf16.msra.mxu0 %v2897
        %2937 = vmatprep.subr.bf16.mxu0 0
        %2938 = vmatpush1.bf16.msra.mxu0 %v2898
        %2939 = vmatprep.subr.bf16.mxu0 0
        %2940 = vmatpush1.bf16.msra.mxu0 %v2899
        %2941 = vmatprep.subr.bf16.mxu0 0
        %2942 = vmatpush1.bf16.msra.mxu0 %v2900
        %2943 = vmatprep.subr.bf16.mxu0 0
        %2944 = vmatpush1.bf16.msra.mxu0 %v2901
        %2945 = vmatprep.subr.bf16.mxu0 0
        %2946 = vmatpush1.bf16.msra.mxu0 %v2902
        %2947 = vmatprep.subr.bf16.mxu0 0
        %2948 = vmatpush1.bf16.msra.mxu0 %v2903
        %2949 = vmatprep.subr.bf16.mxu0 0
        %2950 = vmatpush1.bf16.msra.mxu0 %v2904
        %2951 = vmatprep.subr.bf16.mxu0 0
        %2952 = vmatpush1.bf16.msra.mxu0 %v2905
        %2953 = vmatprep.subr.bf16.mxu0 0
        %2954 = vmatpush1.bf16.msra.mxu0 %v2906
        %2955 = vmatprep.mubr.bf16.mxu0 %v2793
        %2956 = vmatmul.mubr.bf16.gmra.mrb[0].mxu0 %v2792
        %v2957 = vpop.f32.mrb[0].mxu0
        %v2958 = vadd.f32 0.0, %v2957
        %v2959 = vpop.f32.mrb[0].mxu0
        %v2960 = vpop.f32.mrb[0].mxu0
        %v2961 = vadd.f32 0.0, %v2960
        %v2962 = vpop.f32.mrb[0].mxu0
        %2963 = vdwg.mxu0
        %v2964 = vadd.f32 %v2453, %v2958
        %v2965 = vadd.f32 %v2454, %v2961
        %2966 = vst [vmem:[%s484] sm:$0xff] %v2964
        %2967 = vst [vmem:[%s484 + $0x8] sm:$0xff] %v2965
        %s2968 = sand.u32 %s259, 1
        %s2969 = scalar_lea.sflag [#allocation6], %s2968
        %s2970 = sand.u32 %s259, 1
        %s2971 = smul.addr %s2970, 16
        %s2972 = scalar_lea.vmem [#allocation18], %s2971
        // Predicated region
        $region93: #{tpu_custom_call.1} parent=59 // pred_check
          %p2973 = pneg %p269
        $region94: #{tpu_custom_call.1} parent=59 // pred_check_branch
          %2975 = sbr.rel (%p2973) target = $region96
        $region95: #{tpu_custom_call.1} parent=59 // pred_region
          %s2977 = ssub.s32 256, 256
          %2978 = vsyncadd %s2969, %s2977
          %s2979 = smul.addr %s36, 2
          %s2980 = smul.addr %s2979, 128
          %s2981 = scalar_lea.hbm %s11, %s2980
          %s2982 = sshll.u32 %s2972, 4
          %s2983 = int_to_ptr.vmem [resolvable:$true] %s2982
          %2988 = dma.vmem_to_hbm [thread:$0]  %s2983, 256, %s2981, %s2969, 128, 128, 8
        $region96: #{tpu_custom_call.1} parent=59 // pred_fallthru
          _
      $region60: #{tpu_custom_call.1} parent=5 // pred_fallthru
        _
      %p2989 = scmp.le.s32.totalorder 2, %s31
      // Predicated region
      $region97: #{tpu_custom_call.1} parent=5 // pred_check
        %p2990 = pneg %p2989
      $region98: #{tpu_custom_call.1} parent=5 // pred_check_branch
        %2992 = sbr.rel (%p2990) target = $region100
      $region99: #{tpu_custom_call.1} parent=5 // pred_region
        %s2993 = ssub.s32 %s31, 2
        // Predicated region
        $region101: #{tpu_custom_call.1} parent=99 // pred_check
          %p2994 = pneg %p275
        $region102: #{tpu_custom_call.1} parent=99 // pred_check_branch
          %2996 = sbr.rel (%p2994) target = $region104
        $region103: #{tpu_custom_call.1} parent=99 // pred_region
          %s2997 = sand.u32 %s260, 1
          %s2998 = scalar_lea.sflag [#allocation6], %s2997
          %s2999 = sand.u32 %s260, 1
          %s3000 = smul.addr %s2999, 16
          %s3001 = scalar_lea.vmem [#allocation18], %s3000
          %3002 = dma.done %s2998, 256
        $region104: #{tpu_custom_call.1} parent=99 // pred_fallthru
          _
      $region100: #{tpu_custom_call.1} parent=5 // pred_fallthru
        _
    $region6: #{tpu_custom_call.1} parent=1 // loop_footer
      %s35 = sadd.s32 1, %s31
    $region7: #{tpu_custom_call.1} parent=1 // loop_footer_branch
      %30 = sbr.rel target = $region3
    $region8: #{tpu_custom_call.1} parent=1 // loop_exit
      _
    %3003 = vsyncpa [#allocation5], 1
    %s3004 = scalar_lea.sflag [#allocation5], 1
    %3005 = vsyncpa %s3004, 1
    %3006 = vsyncpa [#allocation8], 1
    %3007 = vsyncpa [#allocation11], 1
    %3008 = vsyncpa [#allocation14], 1
    %3009 = vsyncpa [#allocation17], 1
    %3010 = vsyncpa [#allocation6], 1
    %s3011 = scalar_lea.sflag [#allocation6], 1
    %3012 = vsyncpa %s3011, 1

// kernel: tpu_custom_call.1
$region0: #{tpu_custom_call.1}
  #allocation0 [shape = 'u32[]', space=smem, size = 0x4, offset = 0x4, fixed_abs, tag = 'smem constant byte address 0x4 - core index']
  #allocation1 [shape = 'u32[144,128]{1,0:T(1,128)}', space=vmem, size = 0x12000, scoped, tag = 'internal scratch']
  #allocation2 [shape = 's32[1]{0}', space=sflag, size = 0x4, scoped, tag = 'scoped memory for tpu_custom_call.1']
  #allocation3 [shape = 'u8[512]{0}', space=smem, size = 0x200, scoped, tag = 'prefetched SMEM operand 0']
  %s0 = inlined_call_operand.hbm [shape: s32[2], index: 0, kind: input, shape index: {}]
  %s1 = inlined_call_operand.hbm [shape: f32[2,16,128], index: 1, kind: input, shape index: {}]
  %s2 = inlined_call_operand.hbm [shape: f32[16,128], index: 2, kind: input, shape index: {}]
  %s3 = inlined_call_operand.hbm [shape: f32[16,128], index: 3, kind: input, shape index: {}]
  %s4 = inlined_call_operand.vmem [shape: f32[2,1,128], index: 4, kind: input, shape index: {}]
  %s5 = inlined_call_operand.hbm [shape: bf16[2,128,384], index: 5, kind: input, shape index: {}]
  %s6 = inlined_call_operand.hbm [shape: bf16[2,128,128], index: 6, kind: input, shape index: {}]
  %s7 = inlined_call_operand.vmem [shape: f32[2,1,128], index: 7, kind: input, shape index: {}]
  %s8 = inlined_call_operand.hbm [shape: bf16[2,128,256], index: 8, kind: input, shape index: {}]
  %s9 = inlined_call_operand.hbm [shape: bf16[2,128,256], index: 9, kind: input, shape index: {}]
  %s10 = inlined_call_operand.hbm [shape: bf16[2,256,128], index: 10, kind: input, shape index: {}]
  %s11 = inlined_call_operand.hbm [shape: f32[2,16,128], index: 11, kind: output, shape index: {}]
  %s12 = sld [smem:[#allocation0]]
  $region105: #{tpu_custom_call.1} parent=0
    _
  %s14 = ssub.s32 1, %s12
  %s15 = scalar_select 0, %s14, %s12
  %17 = dma.hbm_to_smem %s0, 16, [#allocation3], [#allocation2]
  %18 = dma.done [#allocation2], 16
  %19 = sfence
  $region1: #{tpu_custom_call.1} parent=0
    #allocation4 [shape = 'u8[16384]{0}', space=vmem, size = 0x4000, scoped, tag = 'input window, operand 1']
    #allocation5 [shape = 's32[2]{0}', space=sflag, size = 0x8, scoped, tag = 'scoped memory for tpu_custom_call.1']
    #allocation6 [shape = 's32[2]{0}', space=sflag, size = 0x8, scoped, tag = 'scoped memory for tpu_custom_call.1']
    #allocation7 [shape = 'u8[8192]{0}', space=vmem, size = 0x2000, scoped, tag = 'input window, operand 2, single buffered']
    #allocation8 [shape = 's32[1]{0}', space=sflag, size = 0x4, scoped, tag = 'scoped memory for tpu_custom_call.1']
    #allocation9 [shape = 'u8[8192]{0}', space=vmem, size = 0x2000, scoped, tag = 'input window, operand 3, single buffered']
    #allocation10 [shape = 'u8[196608]{0}', space=vmem, size = 0x30000, scoped, tag = 'input window, operand 5, single buffered']
    #allocation11 [shape = 's32[1]{0}', space=sflag, size = 0x4, scoped, tag = 'scoped memory for tpu_custom_call.1']
    #allocation12 [shape = 'u8[65536]{0}', space=vmem, size = 0x10000, scoped, tag = 'input window, operand 6, single buffered']
    #allocation13 [shape = 'u8[131072]{0}', space=vmem, size = 0x20000, scoped, tag = 'input window, operand 8, single buffered']
    #allocation14 [shape = 's32[1]{0}', space=sflag, size = 0x4, scoped, tag = 'scoped memory for tpu_custom_call.1']
    #allocation15 [shape = 'u8[131072]{0}', space=vmem, size = 0x20000, scoped, tag = 'input window, operand 9, single buffered']
    #allocation16 [shape = 'u8[131072]{0}', space=vmem, size = 0x20000, scoped, tag = 'input window, operand 10, single buffered']
    #allocation17 [shape = 's32[1]{0}', space=sflag, size = 0x4, scoped, tag = 'scoped memory for tpu_custom_call.1']
    #allocation18 [shape = 'u8[16384]{0}', space=vmem, size = 0x4000, scoped, tag = 'output window, operand 0']
    %20 = vsyncpa [#allocation5], 0
    %s21 = scalar_lea.sflag [#allocation5], 1
    %22 = vsyncpa %s21, 0
    %23 = vsyncpa [#allocation8], 0
    %24 = vsyncpa [#allocation11], 0
    %25 = vsyncpa [#allocation14], 0
    %26 = vsyncpa [#allocation17], 0
    %27 = vsyncpa [#allocation6], 0
    %s28 = scalar_lea.sflag [#allocation6], 1
    %29 = vsyncpa %s28, 0
    loop: start=0, step=1, limit=4
    $region2: #{tpu_custom_call.1} parent=1 // loop_pre_header
      _
    $region3: #{tpu_custom_call.1} parent=1 // loop_header
      %s31 = sphi 0, %s35
      %p32 = scmp.ge.s32.totalorder %s31, 4
      %s41 = sphi 0, %s43
      %s44 = sphi 0, %s41
      %s45 = sphi 0, %s44
      %s61 = sphi 0, %s45
      %s65 = sphi 0, %s65
      %s67 = sphi 0, %s65
      %s68 = sphi 0, %s67
      %s82 = sphi 0, %s68
      %s86 = sphi 0, %s86
      %s88 = sphi 0, %s86
      %s89 = sphi 0, %s88
      %s103 = sphi 0, %s89
      %s107 = sphi 0, %s107
      %s109 = sphi 0, %s107
      %s110 = sphi 0, %s109
      %s124 = sphi 0, %s110
      %s128 = sphi 0, %s128
      %s130 = sphi 0, %s128
      %s131 = sphi 0, %s130
      %s145 = sphi 0, %s131
      %s149 = sphi 0, %s149
      %s151 = sphi 0, %s149
      %s152 = sphi 0, %s151
      %s166 = sphi 0, %s152
      %s170 = sphi 0, %s170
      %s172 = sphi 0, %s170
      %s173 = sphi 0, %s172
      %s187 = sphi 0, %s173
      %s191 = sphi 0, %s191
      %s193 = sphi 0, %s191
      %s194 = sphi 0, %s193
      %s208 = sphi 0, %s194
      %s212 = sphi 0, %s212
      %s214 = sphi 0, %s212
      %s215 = sphi 0, %s214
      %s229 = sphi 0, %s215
      %s233 = sphi 0, %s233
      %s235 = sphi 0, %s233
      %s236 = sphi 0, %s235
      %s250 = sphi 0, %s236
      %s256 = sphi 0, %s258
      %s259 = sphi 0, %s256
      %s260 = sphi 0, %s259
      %s276 = sphi 0, %s260
    $region4: #{tpu_custom_call.1} parent=1 // loop_header_branch
      %34 = sbr.rel (%p32) target = $region8
    $region5: #{tpu_custom_call.1} parent=1 // loop_body
      %s36 = ssub.s32 %s31, 1
      %s37 = ssub.s32 %s31, 2
      %s38 = sadd.s32 %s31, 1
      %s39 = ssub.s32 %s31, %s38
      %p40 = scmp.eq.s32.totalorder %s39, 0
      %s42 = sadd.s32 %s41, 1
      %s43 = scalar_select %p40, %s41, %s42
      %p46 = pneg %p40
      %p47 = scmp.eq.s32.totalorder %s31, 1
      %p48 = por %p46, %p47
      %p49 = scmp.ne.s32.totalorder %s41, %s44
      %p50 = scmp.eq.s32.totalorder %s31, 0
      %p51 = por %p49, %p50
      %p52 = scmp.ne.s32.totalorder %s41, %s44
      %p53 = scmp.eq.s32.totalorder %s36, 1
      %p54 = por %p52, %p53
      %p55 = scmp.ne.s32.totalorder %s44, %s45
      %p56 = scmp.eq.s32.totalorder %s36, 0
      %p57 = por %p55, %p56
      %p58 = scmp.ne.s32.totalorder %s44, %s45
      %p59 = scmp.eq.s32.totalorder %s37, 1
      %p60 = por %p58, %p59
      %p62 = scmp.ne.s32.totalorder %s45, %s61
      %p63 = scmp.eq.s32.totalorder %s37, 0
      %p64 = por %p62, %p63
      %s66 = sadd.s32 %s65, 1
      %p69 = scmp.eq.s32.totalorder %s31, 1
      %p70 = scmp.ne.s32.totalorder %s65, %s67
      %p71 = scmp.eq.s32.totalorder %s31, 0
      %p72 = por %p70, %p71
      %p73 = scmp.ne.s32.totalorder %s65, %s67
      %p74 = scmp.eq.s32.totalorder %s36, 1
      %p75 = por %p73, %p74
      %p76 = scmp.ne.s32.totalorder %s67, %s68
      %p77 = scmp.eq.s32.totalorder %s36, 0
      %p78 = por %p76, %p77
      %p79 = scmp.ne.s32.totalorder %s67, %s68
      %p80 = scmp.eq.s32.totalorder %s37, 1
      %p81 = por %p79, %p80
      %p83 = scmp.ne.s32.totalorder %s68, %s82
      %p84 = scmp.eq.s32.totalorder %s37, 0
      %p85 = por %p83, %p84
      %s87 = sadd.s32 %s86, 1
      %p90 = scmp.eq.s32.totalorder %s31, 1
      %p91 = scmp.ne.s32.totalorder %s86, %s88
      %p92 = scmp.eq.s32.totalorder %s31, 0
      %p93 = por %p91, %p92
      %p94 = scmp.ne.s32.totalorder %s86, %s88
      %p95 = scmp.eq.s32.totalorder %s36, 1
      %p96 = por %p94, %p95
      %p97 = scmp.ne.s32.totalorder %s88, %s89
      %p98 = scmp.eq.s32.totalorder %s36, 0
      %p99 = por %p97, %p98
      %p100 = scmp.ne.s32.totalorder %s88, %s89
      %p101 = scmp.eq.s32.totalorder %s37, 1
      %p102 = por %p100, %p101
      %p104 = scmp.ne.s32.totalorder %s89, %s103
      %p105 = scmp.eq.s32.totalorder %s37, 0
      %p106 = por %p104, %p105
      %s108 = sadd.s32 %s107, 1
      %p111 = scmp.eq.s32.totalorder %s31, 1
      %p112 = scmp.ne.s32.totalorder %s107, %s109
      %p113 = scmp.eq.s32.totalorder %s31, 0
      %p114 = por %p112, %p113
      %p115 = scmp.ne.s32.totalorder %s107, %s109
      %p116 = scmp.eq.s32.totalorder %s36, 1
      %p117 = por %p115, %p116
      %p118 = scmp.ne.s32.totalorder %s109, %s110
      %p119 = scmp.eq.s32.totalorder %s36, 0
      %p120 = por %p118, %p119
      %p121 = scmp.ne.s32.totalorder %s109, %s110
      %p122 = scmp.eq.s32.totalorder %s37, 1
      %p123 = por %p121, %p122
      %p125 = scmp.ne.s32.totalorder %s110, %s124
      %p126 = scmp.eq.s32.totalorder %s37, 0
      %p127 = por %p125, %p126
      %s129 = sadd.s32 %s128, 1
      %p132 = scmp.eq.s32.totalorder %s31, 1
      %p133 = scmp.ne.s32.totalorder %s128, %s130
      %p134 = scmp.eq.s32.totalorder %s31, 0
      %p135 = por %p133, %p134
      %p136 = scmp.ne.s32.totalorder %s128, %s130
      %p137 = scmp.eq.s32.totalorder %s36, 1
      %p138 = por %p136, %p137
      %p139 = scmp.ne.s32.totalorder %s130, %s131
      %p140 = scmp.eq.s32.totalorder %s36, 0
      %p141 = por %p139, %p140
      %p142 = scmp.ne.s32.totalorder %s130, %s131
      %p143 = scmp.eq.s32.totalorder %s37, 1
      %p144 = por %p142, %p143
      %p146 = scmp.ne.s32.totalorder %s131, %s145
      %p147 = scmp.eq.s32.totalorder %s37, 0
      %p148 = por %p146, %p147
      %s150 = sadd.s32 %s149, 1
      %p153 = scmp.eq.s32.totalorder %s31, 1
      %p154 = scmp.ne.s32.totalorder %s149, %s151
      %p155 = scmp.eq.s32.totalorder %s31, 0
      %p156 = por %p154, %p155
      %p157 = scmp.ne.s32.totalorder %s149, %s151
      %p158 = scmp.eq.s32.totalorder %s36, 1
      %p159 = por %p157, %p158
      %p160 = scmp.ne.s32.totalorder %s151, %s152
      %p161 = scmp.eq.s32.totalorder %s36, 0
      %p162 = por %p160, %p161
      %p163 = scmp.ne.s32.totalorder %s151, %s152
      %p164 = scmp.eq.s32.totalorder %s37, 1
      %p165 = por %p163, %p164
      %p167 = scmp.ne.s32.totalorder %s152, %s166
      %p168 = scmp.eq.s32.totalorder %s37, 0
      %p169 = por %p167, %p168
      %s171 = sadd.s32 %s170, 1
      %p174 = scmp.eq.s32.totalorder %s31, 1
      %p175 = scmp.ne.s32.totalorder %s170, %s172
      %p176 = scmp.eq.s32.totalorder %s31, 0
      %p177 = por %p175, %p176
      %p178 = scmp.ne.s32.totalorder %s170, %s172
      %p179 = scmp.eq.s32.totalorder %s36, 1
      %p180 = por %p178, %p179
      %p181 = scmp.ne.s32.totalorder %s172, %s173
      %p182 = scmp.eq.s32.totalorder %s36, 0
      %p183 = por %p181, %p182
      %p184 = scmp.ne.s32.totalorder %s172, %s173
      %p185 = scmp.eq.s32.totalorder %s37, 1
      %p186 = por %p184, %p185
      %p188 = scmp.ne.s32.totalorder %s173, %s187
      %p189 = scmp.eq.s32.totalorder %s37, 0
      %p190 = por %p188, %p189
      %s192 = sadd.s32 %s191, 1
      %p195 = scmp.eq.s32.totalorder %s31, 1
      %p196 = scmp.ne.s32.totalorder %s191, %s193
      %p197 = scmp.eq.s32.totalorder %s31, 0
      %p198 = por %p196, %p197
      %p199 = scmp.ne.s32.totalorder %s191, %s193
      %p200 = scmp.eq.s32.totalorder %s36, 1
      %p201 = por %p199, %p200
      %p202 = scmp.ne.s32.totalorder %s193, %s194
      %p203 = scmp.eq.s32.totalorder %s36, 0
      %p204 = por %p202, %p203
      %p205 = scmp.ne.s32.totalorder %s193, %s194
      %p206 = scmp.eq.s32.totalorder %s37, 1
      %p207 = por %p205, %p206
      %p209 = scmp.ne.s32.totalorder %s194, %s208
      %p210 = scmp.eq.s32.totalorder %s37, 0
      %p211 = por %p209, %p210
      %s213 = sadd.s32 %s212, 1
      %p216 = scmp.eq.s32.totalorder %s31, 1
      %p217 = scmp.ne.s32.totalorder %s212, %s214
      %p218 = scmp.eq.s32.totalorder %s31, 0
      %p219 = por %p217, %p218
      %p220 = scmp.ne.s32.totalorder %s212, %s214
      %p221 = scmp.eq.s32.totalorder %s36, 1
      %p222 = por %p220, %p221
      %p223 = scmp.ne.s32.totalorder %s214, %s215
      %p224 = scmp.eq.s32.totalorder %s36, 0
      %p225 = por %p223, %p224
      %p226 = scmp.ne.s32.totalorder %s214, %s215
      %p227 = scmp.eq.s32.totalorder %s37, 1
      %p228 = por %p226, %p227
      %p230 = scmp.ne.s32.totalorder %s215, %s229
      %p231 = scmp.eq.s32.totalorder %s37, 0
      %p232 = por %p230, %p231
      %s234 = sadd.s32 %s233, 1
      %p237 = scmp.eq.s32.totalorder %s31, 1
      %p238 = scmp.ne.s32.totalorder %s233, %s235
      %p239 = scmp.eq.s32.totalorder %s31, 0
      %p240 = por %p238, %p239
      %p241 = scmp.ne.s32.totalorder %s233, %s235
      %p242 = scmp.eq.s32.totalorder %s36, 1
      %p243 = por %p241, %p242
      %p244 = scmp.ne.s32.totalorder %s235, %s236
      %p245 = scmp.eq.s32.totalorder %s36, 0
      %p246 = por %p244, %p245
      %p247 = scmp.ne.s32.totalorder %s235, %s236
      %p248 = scmp.eq.s32.totalorder %s37, 1
      %p249 = por %p247, %p248
      %p251 = scmp.ne.s32.totalorder %s236, %s250
      %p252 = scmp.eq.s32.totalorder %s37, 0
      %p253 = por %p251, %p252
      %s254 = ssub.s32 %s31, %s38
      %p255 = scmp.eq.s32.totalorder %s254, 0
      %s257 = sadd.s32 %s256, 1
      %s258 = scalar_select %p255, %s256, %s257
      %p261 = pneg %p255
      %p262 = scmp.eq.s32.totalorder %s31, 1
      %p263 = por %p261, %p262
      %p264 = scmp.ne.s32.totalorder %s256, %s259
      %p265 = scmp.eq.s32.totalorder %s31, 0
      %p266 = por %p264, %p265
      %p267 = scmp.ne.s32.totalorder %s256, %s259
      %p268 = scmp.eq.s32.totalorder %s36, 1
      %p269 = por %p267, %p268
      %p270 = scmp.ne.s32.totalorder %s259, %s260
      %p271 = scmp.eq.s32.totalorder %s36, 0
      %p272 = por %p270, %p271
      %p273 = scmp.ne.s32.totalorder %s259, %s260
      %p274 = scmp.eq.s32.totalorder %s37, 1
      %p275 = por %p273, %p274
      %p277 = scmp.ne.s32.totalorder %s260, %s276
      %p278 = scmp.eq.s32.totalorder %s37, 0
      %p279 = por %p277, %p278
      %p280 = scmp.le.s32.totalorder 1, %s31
      %p281 = scmp.lt.s32.totalorder %s31, 3
      %p282 = pnand %p280, %p281
      %p283 = pneg %p282
      // Predicated region
      $region9: #{tpu_custom_call.1} parent=5 // pred_check
        _
      $region10: #{tpu_custom_call.1} parent=5 // pred_check_branch
        %285 = sbr.rel (%p282) target = $region12
      $region11: #{tpu_custom_call.1} parent=5 // pred_region
        %s286 = ssub.s32 %s31, 1
        // Predicated region
        $region13: #{tpu_custom_call.1} parent=11 // pred_check
          %p287 = pneg %p78
        $region14: #{tpu_custom_call.1} parent=11 // pred_check_branch
          %289 = sbr.rel (%p287) target = $region16
        $region15: #{tpu_custom_call.1} parent=11 // pred_region
          %s291 = ssub.s32 256, 256
          %292 = vsyncadd [#allocation8], %s291
          %s293 = sshll.u32 [#allocation7], 4
          %s294 = int_to_ptr.vmem [resolvable:$true] %s293
          %299 = dma.hbm_to_vmem [thread:$0]  %s2, 256, %s294, [#allocation8], 128, 128, 8
        $region16: #{tpu_custom_call.1} parent=11 // pred_fallthru
          _
        // Predicated region
        $region17: #{tpu_custom_call.1} parent=11 // pred_check
          %p300 = pneg %p99
        $region18: #{tpu_custom_call.1} parent=11 // pred_check_branch
          %302 = sbr.rel (%p300) target = $region20
        $region19: #{tpu_custom_call.1} parent=11 // pred_region
          %s304 = ssub.s32 256, 256
          %305 = vsyncadd [#allocation8], %s304
          %s306 = sshll.u32 [#allocation9], 4
          %s307 = int_to_ptr.vmem [resolvable:$true] %s306
          %312 = dma.hbm_to_vmem [thread:$0]  %s3, 256, %s307, [#allocation8], 128, 128, 8
        $region20: #{tpu_custom_call.1} parent=11 // pred_fallthru
          _
        // Predicated region
        $region21: #{tpu_custom_call.1} parent=11 // pred_check
          %p313 = pneg %p120
        $region22: #{tpu_custom_call.1} parent=11 // pred_check_branch
          %315 = sbr.rel (%p313) target = $region24
        $region23: #{tpu_custom_call.1} parent=11 // pred_region
          _
        $region24: #{tpu_custom_call.1} parent=11 // pred_fallthru
          _
        // Predicated region
        $region25: #{tpu_custom_call.1} parent=11 // pred_check
          %p316 = pneg %p141
        $region26: #{tpu_custom_call.1} parent=11 // pred_check_branch
          %318 = sbr.rel (%p316) target = $region28
        $region27: #{tpu_custom_call.1} parent=11 // pred_region
          %s320 = ssub.s32 6144, 6144
          %321 = vsyncadd [#allocation11], %s320
          %s322 = sshll.u32 [#allocation10], 4
          %s323 = int_to_ptr.vmem [resolvable:$true] %s322
          %328 = dma.hbm_to_vmem [thread:$0]  %s5, 6144, %s323, [#allocation11], 192, 192, 12
        $region28: #{tpu_custom_call.1} parent=11 // pred_fallthru
          _
        // Predicated region
        $region29: #{tpu_custom_call.1} parent=11 // pred_check
          %p329 = pneg %p162
        $region30: #{tpu_custom_call.1} parent=11 // pred_check_branch
          %331 = sbr.rel (%p329) target = $region32
        $region31: #{tpu_custom_call.1} parent=11 // pred_region
          %s333 = ssub.s32 2048, 2048
          %334 = vsyncadd [#allocation11], %s333
          %s335 = sshll.u32 [#allocation12], 4
          %s336 = int_to_ptr.vmem [resolvable:$true] %s335
          %341 = dma.hbm_to_vmem [thread:$0]  %s6, 2048, %s336, [#allocation11], 64, 64, 4
        $region32: #{tpu_custom_call.1} parent=11 // pred_fallthru
          _
        // Predicated region
        $region33: #{tpu_custom_call.1} parent=11 // pred_check
          %p342 = pneg %p183
        $region34: #{tpu_custom_call.1} parent=11 // pred_check_branch
          %344 = sbr.rel (%p342) target = $region36
        $region35: #{tpu_custom_call.1} parent=11 // pred_region
          _
        $region36: #{tpu_custom_call.1} parent=11 // pred_fallthru
          _
        // Predicated region
        $region37: #{tpu_custom_call.1} parent=11 // pred_check
          %p345 = pneg %p204
        $region38: #{tpu_custom_call.1} parent=11 // pred_check_branch
          %347 = sbr.rel (%p345) target = $region40
        $region39: #{tpu_custom_call.1} parent=11 // pred_region
          %s349 = ssub.s32 4096, 4096
          %350 = vsyncadd [#allocation14], %s349
          %s351 = sshll.u32 [#allocation13], 4
          %s352 = int_to_ptr.vmem [resolvable:$true] %s351
          %357 = dma.hbm_to_vmem [thread:$0]  %s8, 4096, %s352, [#allocation14], 128, 128, 8
        $region40: #{tpu_custom_call.1} parent=11 // pred_fallthru
          _
        // Predicated region
        $region41: #{tpu_custom_call.1} parent=11 // pred_check
          %p358 = pneg %p225
        $region42: #{tpu_custom_call.1} parent=11 // pred_check_branch
          %360 = sbr.rel (%p358) target = $region44
        $region43: #{tpu_custom_call.1} parent=11 // pred_region
          %s362 = ssub.s32 4096, 4096
          %363 = vsyncadd [#allocation14], %s362
          %s364 = sshll.u32 [#allocation15], 4
          %s365 = int_to_ptr.vmem [resolvable:$true] %s364
          %370 = dma.hbm_to_vmem [thread:$0]  %s9, 4096, %s365, [#allocation14], 128, 128, 8
        $region44: #{tpu_custom_call.1} parent=11 // pred_fallthru
          _
        // Predicated region
        $region45: #{tpu_custom_call.1} parent=11 // pred_check
          %p371 = pneg %p246
        $region46: #{tpu_custom_call.1} parent=11 // pred_check_branch
          %373 = sbr.rel (%p371) target = $region48
        $region47: #{tpu_custom_call.1} parent=11 // pred_region
          %s375 = ssub.s32 4096, 4096
          %376 = vsyncadd [#allocation17], %s375
          %s377 = sshll.u32 [#allocation16], 4
          %s378 = int_to_ptr.vmem [resolvable:$true] %s377
          %383 = dma.hbm_to_vmem [thread:$0]  %s10, 4096, %s378, [#allocation17], 64, 64, 4
        $region48: #{tpu_custom_call.1} parent=11 // pred_fallthru
          _
      $region12: #{tpu_custom_call.1} parent=5 // pred_fallthru
        _
      %p384 = scmp.lt.s32.totalorder %s31, 2
      // Predicated region
      $region49: #{tpu_custom_call.1} parent=5 // pred_check
        %p385 = pneg %p384
      $region50: #{tpu_custom_call.1} parent=5 // pred_check_branch
        %387 = sbr.rel (%p385) target = $region52
      $region51: #{tpu_custom_call.1} parent=5 // pred_region
        // Predicated region
        $region53: #{tpu_custom_call.1} parent=51 // pred_check
          %p388 = pneg %p51
        $region54: #{tpu_custom_call.1} parent=51 // pred_check_branch
          %390 = sbr.rel (%p388) target = $region56
        $region55: #{tpu_custom_call.1} parent=51 // pred_region
          %s391 = sand.u32 %s41, 1
          %s392 = scalar_lea.sflag [#allocation5], %s391
          %s393 = sand.u32 %s41, 1
          %s394 = smul.addr %s393, 16
          %s395 = scalar_lea.vmem [#allocation4], %s394
          %s397 = ssub.s32 256, 256
          %398 = vsyncadd %s392, %s397
          %s399 = smul.addr %s31, 2
          %s400 = smul.addr %s399, 128
          %s401 = scalar_lea.hbm %s1, %s400
          %s402 = sshll.u32 %s395, 4
          %s403 = int_to_ptr.vmem [resolvable:$true] %s402
          %408 = dma.hbm_to_vmem [thread:$0]  %s401, 256, %s403, %s392, 128, 128, 8
        $region56: #{tpu_custom_call.1} parent=51 // pred_fallthru
          _
      $region52: #{tpu_custom_call.1} parent=5 // pred_fallthru
        _
      %p409 = scmp.le.s32.totalorder 1, %s31
      %p410 = scmp.lt.s32.totalorder %s31, 3
      %p411 = pnand %p409, %p410
      %p412 = pneg %p411
      // Predicated region
      $region57: #{tpu_custom_call.1} parent=5 // pred_check
        _
      $region58: #{tpu_custom_call.1} parent=5 // pred_check_branch
        %414 = sbr.rel (%p411) target = $region60
      $region59: #{tpu_custom_call.1} parent=5 // pred_region
        %s415 = ssub.s32 %s31, 1
        %s416 = sand.u32 %s44, 1
        %s417 = scalar_lea.sflag [#allocation5], %s416
        %s418 = sand.u32 %s44, 1
        %s419 = smul.addr %s418, 16
        %s420 = scalar_lea.vmem [#allocation4], %s419
        // Predicated region
        $region61: #{tpu_custom_call.1} parent=59 // pred_check
          %p421 = pneg %p57
        $region62: #{tpu_custom_call.1} parent=59 // pred_check_branch
          %423 = sbr.rel (%p421) target = $region64
        $region63: #{tpu_custom_call.1} parent=59 // pred_region
          %424 = dma.done %s417, 256
        $region64: #{tpu_custom_call.1} parent=59 // pred_fallthru
          _
        // Predicated region
        $region65: #{tpu_custom_call.1} parent=59 // pred_check
          %p425 = pneg %p78
        $region66: #{tpu_custom_call.1} parent=59 // pred_check_branch
          %427 = sbr.rel (%p425) target = $region68
        $region67: #{tpu_custom_call.1} parent=59 // pred_region
          %428 = dma.done [#allocation8], 256
        $region68: #{tpu_custom_call.1} parent=59 // pred_fallthru
          _
        // Predicated region
        $region69: #{tpu_custom_call.1} parent=59 // pred_check
          %p429 = pneg %p99
        $region70: #{tpu_custom_call.1} parent=59 // pred_check_branch
          %431 = sbr.rel (%p429) target = $region72
        $region71: #{tpu_custom_call.1} parent=59 // pred_region
          %432 = dma.done [#allocation8], 256
        $region72: #{tpu_custom_call.1} parent=59 // pred_fallthru
          _
        // Predicated region
        $region73: #{tpu_custom_call.1} parent=59 // pred_check
          %p433 = pneg %p141
        $region74: #{tpu_custom_call.1} parent=59 // pred_check_branch
          %435 = sbr.rel (%p433) target = $region76
        $region75: #{tpu_custom_call.1} parent=59 // pred_region
          %436 = dma.done [#allocation11], 6144
        $region76: #{tpu_custom_call.1} parent=59 // pred_fallthru
          _
        // Predicated region
        $region77: #{tpu_custom_call.1} parent=59 // pred_check
          %p437 = pneg %p162
        $region78: #{tpu_custom_call.1} parent=59 // pred_check_branch
          %439 = sbr.rel (%p437) target = $region80
        $region79: #{tpu_custom_call.1} parent=59 // pred_region
          %440 = dma.done [#allocation11], 2048
        $region80: #{tpu_custom_call.1} parent=59 // pred_fallthru
          _
        // Predicated region
        $region81: #{tpu_custom_call.1} parent=59 // pred_check
          %p441 = pneg %p204
        $region82: #{tpu_custom_call.1} parent=59 // pred_check_branch
          %443 = sbr.rel (%p441) target = $region84
        $region83: #{tpu_custom_call.1} parent=59 // pred_region
          %444 = dma.done [#allocation14], 4096
        $region84: #{tpu_custom_call.1} parent=59 // pred_fallthru
          _
        // Predicated region
        $region85: #{tpu_custom_call.1} parent=59 // pred_check
          %p445 = pneg %p225
        $region86: #{tpu_custom_call.1} parent=59 // pred_check_branch
          %447 = sbr.rel (%p445) target = $region88
        $region87: #{tpu_custom_call.1} parent=59 // pred_region
          %448 = dma.done [#allocation14], 4096
        $region88: #{tpu_custom_call.1} parent=59 // pred_fallthru
          _
        // Predicated region
        $region89: #{tpu_custom_call.1} parent=59 // pred_check
          %p449 = pneg %p246
        $region90: #{tpu_custom_call.1} parent=59 // pred_check_branch
          %451 = sbr.rel (%p449) target = $region92
        $region91: #{tpu_custom_call.1} parent=59 // pred_region
          %452 = dma.done [#allocation17], 4096
        $region92: #{tpu_custom_call.1} parent=59 // pred_fallthru
          _
        %s453 = sand.u32 %s44, 1
        %s454 = scalar_lea.sflag [#allocation5], %s453
        %s455 = sand.u32 %s44, 1
        %s456 = smul.addr %s455, 16
        %s457 = scalar_lea.vmem [#allocation4], %s456
        %p458 = pneg %p57
        %p459 = pneg %p54
        %p460 = pneg %p78
        %p461 = pneg %p75
        %p462 = pneg %p99
        %p463 = pneg %p96
        %p464 = pneg %p120
        %p465 = pneg %p117
        %p466 = pneg %p141
        %p467 = pneg %p138
        %p468 = pneg %p162
        %p469 = pneg %p159
        %p470 = pneg %p183
        %p471 = pneg %p180
        %p472 = pneg %p204
        %p473 = pneg %p201
        %p474 = pneg %p225
        %p475 = pneg %p222
        %p476 = pneg %p246
        %p477 = pneg %p243
        %p478 = pneg %p272
        %p479 = pneg %p269
        %s480 = sand.u32 %s259, 1
        %s481 = scalar_lea.sflag [#allocation6], %s480
        %s482 = sand.u32 %s259, 1
        %s483 = smul.addr %s482, 16
        %s484 = scalar_lea.vmem [#allocation18], %s483
        %s486 = sld [smem:[#allocation3 + %s36]]
        %v487 = vld [vmem:[%s420] sm:$0xff]
        %v488 = vld [vmem:[%s420 + $0x8] sm:$0xff]
        %v489 = vld [vmem:[#allocation7] sm:$0xff]
        %v490 = vld [vmem:[#allocation7 + $0x8] sm:$0xff]
        %v491 = vld [vmem:[#allocation9] sm:$0xff]
        %v492 = vld [vmem:[#allocation9 + $0x8] sm:$0xff]
        %v493 = vlaneseq
        %v494 = vshrl.u32 %v493, 7
        %v495 = vadd.s32 %v494, 8
        %v496 = vlaneseq
        %v497 = vand.u32 %v496, 127
        %vm498 = vcmp.le.s32.totalorder %v497, %v494
        %vm499 = vcmp.le.s32.totalorder %v497, %v495
        %v500 = vstv %s486
        %vm501 = vcmp.lt.s32.totalorder %v497, %v500
        %vm502 = vmand %vm498, %vm501
        %vm503 = vmand %vm499, %vm501
        %v504 = vsel %vm502, 0.0, -1e+09
        %v505 = vsel %vm503, 0.0, -1e+09
        %v506 = vld [vmem:[%s4] sm:$0x1]
        %v507 = vmul.f32 %v487, %v487
        %v508 = vmul.f32 %v488, %v488
        %509 = vadd.xlane.f32.xlu0 %v507
        %v510 = vpop.xlane.xlu0 %509
        %511 = vadd.xlane.f32.xlu0 %v508
        %v512 = vpop.xlane.xlu0 %511
        %v513 = vrcp.pop 128.0
        %v514 = vmul.f32 %v510, %v513
        %v515 = vmul.f32 %v512, %v513
        %v516 = vadd.f32 %v514, 1e-05
        %v517 = vadd.f32 %v515, 1e-05
        %v518 = vrsqrt.pop %v516
        %v519 = vrsqrt.pop %v517
        %v520 = vmul.f32 %v487, %v518
        %v521 = vmul.f32 %v488, %v519
        %v523 = vlaneseq
        %v524 = vshrl.u32 %v523, 7
        %v525 = vsub.s32 0, %v524
        %v526 = vrot.slane %v506, %v525
        %v528 = vmul.f32 %v520, %v526
        %v529 = vmul.f32 %v521, %v526
        %v530 = vpack.c.bf16 %v529, %v528
        %v531 = vld [vmem:[#allocation10] sm:$0xff]
        %v532 = vld [vmem:[#allocation10 + $0x8] sm:$0xf]
        %v533 = vld [vmem:[#allocation10 + $0xc] sm:$0xff]
        %v534 = vld [vmem:[#allocation10 + $0x14] sm:$0xf]
        %v535 = vld [vmem:[#allocation10 + $0x18] sm:$0xff]
        %v536 = vld [vmem:[#allocation10 + $0x20] sm:$0xf]
        %v537 = vld [vmem:[#allocation10 + $0x24] sm:$0xff]
        %v538 = vld [vmem:[#allocation10 + $0x2c] sm:$0xf]
        %v539 = vld [vmem:[#allocation10 + $0x30] sm:$0xff]
        %v540 = vld [vmem:[#allocation10 + $0x38] sm:$0xf]
        %v541 = vld [vmem:[#allocation10 + $0x3c] sm:$0xff]
        %v542 = vld [vmem:[#allocation10 + $0x44] sm:$0xf]
        %v543 = vld [vmem:[#allocation10 + $0x48] sm:$0xff]
        %v544 = vld [vmem:[#allocation10 + $0x50] sm:$0xf]
        %v545 = vld [vmem:[#allocation10 + $0x54] sm:$0xff]
        %v546 = vld [vmem:[#allocation10 + $0x5c] sm:$0xf]
        %v547 = vld [vmem:[#allocation10 + $0x60] sm:$0xff]
        %v548 = vld [vmem:[#allocation10 + $0x68] sm:$0xf]
        %v549 = vld [vmem:[#allocation10 + $0x6c] sm:$0xff]
        %v550 = vld [vmem:[#allocation10 + $0x74] sm:$0xf]
        %v551 = vld [vmem:[#allocation10 + $0x78] sm:$0xff]
        %v552 = vld [vmem:[#allocation10 + $0x80] sm:$0xf]
        %v553 = vld [vmem:[#allocation10 + $0x84] sm:$0xff]
        %v554 = vld [vmem:[#allocation10 + $0x8c] sm:$0xf]
        %v555 = vld [vmem:[#allocation10 + $0x90] sm:$0xff]
        %v556 = vld [vmem:[#allocation10 + $0x98] sm:$0xf]
        %v557 = vld [vmem:[#allocation10 + $0x9c] sm:$0xff]
        %v558 = vld [vmem:[#allocation10 + $0xa4] sm:$0xf]
        %v559 = vld [vmem:[#allocation10 + $0xa8] sm:$0xff]
        %v560 = vld [vmem:[#allocation10 + $0xb0] sm:$0xf]
        %v561 = vld [vmem:[#allocation10 + $0xb4] sm:$0xff]
        %v562 = vld [vmem:[#allocation10 + $0xbc] sm:$0xf]
        %v595 = vunpack.c.l.b16 %v531
        %v596 = vunpack.c.h.b16 %v531
        %v597 = vunpack.c.l.b16 %v532
        %v598 = vunpack.c.l.b16 %v533
        %v599 = vunpack.c.h.b16 %v533
        %v600 = vunpack.c.l.b16 %v534
        %v601 = vunpack.c.l.b16 %v535
        %v602 = vunpack.c.h.b16 %v535
        %v603 = vunpack.c.l.b16 %v536
        %v604 = vunpack.c.l.b16 %v537
        %v605 = vunpack.c.h.b16 %v537
        %v606 = vunpack.c.l.b16 %v538
        %v607 = vunpack.c.l.b16 %v539
        %v608 = vunpack.c.h.b16 %v539
        %v609 = vunpack.c.l.b16 %v540
        %v610 = vunpack.c.l.b16 %v541
        %v611 = vunpack.c.h.b16 %v541
        %v612 = vunpack.c.l.b16 %v542
        %v613 = vunpack.c.l.b16 %v543
        %v614 = vunpack.c.h.b16 %v543
        %v615 = vunpack.c.l.b16 %v544
        %v616 = vunpack.c.l.b16 %v545
        %v617 = vunpack.c.h.b16 %v545
        %v618 = vunpack.c.l.b16 %v546
        %v619 = vunpack.c.l.b16 %v547
        %v620 = vunpack.c.h.b16 %v547
        %v621 = vunpack.c.l.b16 %v548
        %v622 = vunpack.c.l.b16 %v549
        %v623 = vunpack.c.h.b16 %v549
        %v624 = vunpack.c.l.b16 %v550
        %v625 = vunpack.c.l.b16 %v551
        %v626 = vunpack.c.h.b16 %v551
        %v627 = vunpack.c.l.b16 %v552
        %v628 = vunpack.c.l.b16 %v553
        %v629 = vunpack.c.h.b16 %v553
        %v630 = vunpack.c.l.b16 %v554
        %v631 = vunpack.c.l.b16 %v555
        %v632 = vunpack.c.h.b16 %v555
        %v633 = vunpack.c.l.b16 %v556
        %v634 = vunpack.c.l.b16 %v557
        %v635 = vunpack.c.h.b16 %v557
        %v636 = vunpack.c.l.b16 %v558
        %v637 = vunpack.c.l.b16 %v559
        %v638 = vunpack.c.h.b16 %v559
        %v639 = vunpack.c.l.b16 %v560
        %v640 = vunpack.c.l.b16 %v561
        %v641 = vunpack.c.h.b16 %v561
        %v642 = vunpack.c.l.b16 %v562
        %v643 = vpack.c.b16 %v598, %v595
        %v644 = vpack.c.b16 %v599, %v596
        %v645 = vpack.c.b16 %v600, %v597
        %v646 = vpack.c.b16 %v604, %v601
        %v647 = vpack.c.b16 %v605, %v602
        %v648 = vpack.c.b16 %v606, %v603
        %v649 = vpack.c.b16 %v610, %v607
        %v650 = vpack.c.b16 %v611, %v608
        %v651 = vpack.c.b16 %v612, %v609
        %v652 = vpack.c.b16 %v616, %v613
        %v653 = vpack.c.b16 %v617, %v614
        %v654 = vpack.c.b16 %v618, %v615
        %v655 = vpack.c.b16 %v622, %v619
        %v656 = vpack.c.b16 %v623, %v620
        %v657 = vpack.c.b16 %v624, %v621
        %v658 = vpack.c.b16 %v628, %v625
        %v659 = vpack.c.b16 %v629, %v626
        %v660 = vpack.c.b16 %v630, %v627
        %v661 = vpack.c.b16 %v634, %v631
        %v662 = vpack.c.b16 %v635, %v632
        %v663 = vpack.c.b16 %v636, %v633
        %v664 = vpack.c.b16 %v640, %v637
        %v665 = vpack.c.b16 %v641, %v638
        %v666 = vpack.c.b16 %v642, %v639
        %691 = vmatprep.subr.bf16.mxu0 %v644
        %692 = vmatpush1.bf16.msra.mxu0 %v643
        %693 = vmatprep.subr.bf16.mxu0 %v647
        %694 = vmatpush1.bf16.msra.mxu0 %v646
        %695 = vmatprep.subr.bf16.mxu0 %v650
        %696 = vmatpush1.bf16.msra.mxu0 %v649
        %697 = vmatprep.subr.bf16.mxu0 %v653
        %698 = vmatpush1.bf16.msra.mxu0 %v652
        %699 = vmatprep.subr.bf16.mxu0 %v656
        %700 = vmatpush1.bf16.msra.mxu0 %v655
        %701 = vmatprep.subr.bf16.mxu0 %v659
        %702 = vmatpush1.bf16.msra.mxu0 %v658
        %703 = vmatprep.subr.bf16.mxu0 %v662
        %704 = vmatpush1.bf16.msra.mxu0 %v661
        %705 = vmatprep.subr.bf16.mxu0 %v665
        %706 = vmatpush1.bf16.msra.mxu0 %v664
        %707 = vmatprep.subr.bf16.mxu0 0
        %708 = vmatpush1.bf16.msra.mxu0 0
        %709 = vmatprep.subr.bf16.mxu0 0
        %710 = vmatpush1.bf16.msra.mxu0 0
        %711 = vmatprep.subr.bf16.mxu0 0
        %712 = vmatpush1.bf16.msra.mxu0 0
        %713 = vmatprep.subr.bf16.mxu0 0
        %714 = vmatpush1.bf16.msra.mxu0 0
        %715 = vmatprep.subr.bf16.mxu0 0
        %716 = vmatpush1.bf16.msra.mxu0 0
        %717 = vmatprep.subr.bf16.mxu0 0
        %718 = vmatpush1.bf16.msra.mxu0 0
        %719 = vmatprep.subr.bf16.mxu0 0
        %720 = vmatpush1.bf16.msra.mxu0 0
        %721 = vmatprep.subr.bf16.mxu0 0
        %722 = vmatpush1.bf16.msra.mxu0 0
        %723 = vmatprep.mubr.bf16.mxu0 0
        %724 = vmatmul.mubr.bf16.gmra.mrb[0].mxu0 %v530
        %v725 = vpop.f32.mrb[0].mxu0
        %v726 = vadd.f32 0.0, %v725
        %v727 = vpop.f32.mrb[0].mxu0
        %v728 = vadd.f32 0.0, %v727
        %v729 = vpop.f32.mrb[0].mxu0
        %v730 = vadd.f32 0.0, %v729
        %v731 = vpop.f32.mrb[0].mxu0
        %v732 = vadd.f32 0.0, %v731
        %733 = vdwg.mxu0
        %734 = vmatprep.subr.bf16.mxu0 0
        %735 = vmatpush1.bf16.msra.mxu0 %v645
        %736 = vmatprep.subr.bf16.mxu0 0
        %737 = vmatpush1.bf16.msra.mxu0 %v648
        %738 = vmatprep.subr.bf16.mxu0 0
        %739 = vmatpush1.bf16.msra.mxu0 %v651
        %740 = vmatprep.subr.bf16.mxu0 0
        %741 = vmatpush1.bf16.msra.mxu0 %v654
        %742 = vmatprep.subr.bf16.mxu0 0
        %743 = vmatpush1.bf16.msra.mxu0 %v657
        %744 = vmatprep.subr.bf16.mxu0 0
        %745 = vmatpush1.bf16.msra.mxu0 %v660
        %746 = vmatprep.subr.bf16.mxu0 0
        %747 = vmatpush1.bf16.msra.mxu0 %v663
        %748 = vmatprep.subr.bf16.mxu0 0
        %749 = vmatpush1.bf16.msra.mxu0 %v666
        %750 = vmatprep.subr.bf16.mxu0 0
        %751 = vmatpush1.bf16.msra.mxu0 0
        %752 = vmatprep.subr.bf16.mxu0 0
        %753 = vmatpush1.bf16.msra.mxu0 0
        %754 = vmatprep.subr.bf16.mxu0 0
        %755 = vmatpush1.bf16.msra.mxu0 0
        %756 = vmatprep.subr.bf16.mxu0 0
        %757 = vmatpush1.bf16.msra.mxu0 0
        %758 = vmatprep.subr.bf16.mxu0 0
        %759 = vmatpush1.bf16.msra.mxu0 0
        %760 = vmatprep.subr.bf16.mxu0 0
        %761 = vmatpush1.bf16.msra.mxu0 0
        %762 = vmatprep.subr.bf16.mxu0 0
        %763 = vmatpush1.bf16.msra.mxu0 0
        %764 = vmatprep.subr.bf16.mxu0 0
        %765 = vmatpush1.bf16.msra.mxu0 0
        %766 = vmatprep.mubr.bf16.mxu0 0
        %767 = vmatmul.mubr.bf16.gmra.mrb[0].mxu0 %v530
        %v768 = vpop.f32.mrb[0].mxu0
        %v769 = vadd.f32 0.0, %v768
        %v770 = vpop.f32.mrb[0].mxu0
        %v771 = vpop.f32.mrb[0].mxu0
        %v772 = vadd.f32 0.0, %v771
        %v773 = vpop.f32.mrb[0].mxu0
        %774 = vdwg.mxu0
        %v775 = vmul.f32 %v726, %v489
        %v776 = vmul.f32 %v730, %v490
        %779 = vrot.lane.b32.xlu0 %v726, 96
        %v780 = vpop.permute.xlu0 %779
        %781 = vrot.lane.b32.xlu0 %v730, 96
        %v782 = vpop.permute.xlu0 %781
        %785 = vrot.lane.b32.xlu0 %v726, 32
        %v786 = vpop.permute.xlu0 %785
        %787 = vrot.lane.b32.xlu0 %v730, 32
        %v788 = vpop.permute.xlu0 %787
        %vm791 = vcmask 261120
        %v792 = vsel %vm791, %v780, %v786
        %v793 = vsel %vm791, %v782, %v788
        %vm794 = vcmask 523264
        %v795 = vsel %vm794, %v792, %v780
        %v796 = vsel %vm794, %v793, %v782
        %vm797 = vcmask 785408
        %v798 = vsel %vm797, %v795, %v786
        %v799 = vsel %vm797, %v796, %v788
        %v800 = vmul.f32 %v798, %v491
        %v801 = vmul.f32 %v799, %v492
        %v802 = vadd.f32 %v775, %v800
        %v803 = vadd.f32 %v776, %v801
        %v804 = vpack.c.bf16 %v803, %v802
        %v805 = vmul.f32 %v728, %v489
        %v806 = vmul.f32 %v732, %v490
        %809 = vrot.lane.b32.xlu0 %v728, 96
        %v810 = vpop.permute.xlu0 %809
        %811 = vrot.lane.b32.xlu0 %v732, 96
        %v812 = vpop.permute.xlu0 %811
        %815 = vrot.lane.b32.xlu0 %v728, 32
        %v816 = vpop.permute.xlu0 %815
        %817 = vrot.lane.b32.xlu0 %v732, 32
        %v818 = vpop.permute.xlu0 %817
        %v821 = vsel %vm791, %v810, %v816
        %v822 = vsel %vm791, %v812, %v818
        %v823 = vsel %vm794, %v821, %v810
        %v824 = vsel %vm794, %v822, %v812
        %v825 = vsel %vm797, %v823, %v816
        %v826 = vsel %vm797, %v824, %v818
        %v827 = vmul.f32 %v825, %v491
        %v828 = vmul.f32 %v826, %v492
        %v829 = vadd.f32 %v805, %v827
        %v830 = vadd.f32 %v806, %v828
        %v831 = vpack.c.bf16 %v830, %v829
        %v832 = vpack.c.bf16 %v772, %v769
        %v833 = vld [vmem:[#allocation12] sm:$0xf]
        %v834 = vld [vmem:[#allocation12 + $0x4] sm:$0xf]
        %v835 = vld [vmem:[#allocation12 + $0x8] sm:$0xf]
        %v836 = vld [vmem:[#allocation12 + $0xc] sm:$0xf]
        %v837 = vld [vmem:[#allocation12 + $0x10] sm:$0xf]
        %v838 = vld [vmem:[#allocation12 + $0x14] sm:$0xf]
        %v839 = vld [vmem:[#allocation12 + $0x18] sm:$0xf]
        %v840 = vld [vmem:[#allocation12 + $0x1c] sm:$0xf]
        %v841 = vld [vmem:[#allocation12 + $0x20] sm:$0xf]
        %v842 = vld [vmem:[#allocation12 + $0x24] sm:$0xf]
        %v843 = vld [vmem:[#allocation12 + $0x28] sm:$0xf]
        %v844 = vld [vmem:[#allocation12 + $0x2c] sm:$0xf]
        %v845 = vld [vmem:[#allocation12 + $0x30] sm:$0xf]
        %v846 = vld [vmem:[#allocation12 + $0x34] sm:$0xf]
        %v847 = vld [vmem:[#allocation12 + $0x38] sm:$0xf]
        %v848 = vld [vmem:[#allocation12 + $0x3c] sm:$0xf]
        %v850 = vsel %vm794, %v804, 0
        %v853 = vsel %vm794, %v831, 0
        %855 = vmatprep.subr.bf16.mxu0 0
        %856 = vmatpush1.bf16.xpose.msra.mxu0 %v853
        %857 = vmatprep.subr.bf16.mxu0 0
        %858 = vmatpush1.bf16.xpose.msra.mxu0 0
        %859 = vmatprep.subr.bf16.mxu0 0
        %860 = vmatpush1.bf16.xpose.msra.mxu0 0
        %861 = vmatprep.subr.bf16.mxu0 0
        %862 = vmatpush1.bf16.xpose.msra.mxu0 0
        %863 = vmatprep.subr.bf16.mxu0 0
        %864 = vmatpush1.bf16.xpose.msra.mxu0 0
        %865 = vmatprep.subr.bf16.mxu0 0
        %866 = vmatpush1.bf16.xpose.msra.mxu0 0
        %867 = vmatprep.subr.bf16.mxu0 0
        %868 = vmatpush1.bf16.xpose.msra.mxu0 0
        %869 = vmatprep.subr.bf16.mxu0 0
        %870 = vmatpush1.bf16.xpose.msra.mxu0 0
        %871 = vmatprep.subr.bf16.mxu0 0
        %872 = vmatpush1.bf16.xpose.msra.mxu0 0
        %873 = vmatprep.subr.bf16.mxu0 0
        %874 = vmatpush1.bf16.xpose.msra.mxu0 0
        %875 = vmatprep.subr.bf16.mxu0 0
        %876 = vmatpush1.bf16.xpose.msra.mxu0 0
        %877 = vmatprep.subr.bf16.mxu0 0
        %878 = vmatpush1.bf16.xpose.msra.mxu0 0
        %879 = vmatprep.subr.bf16.mxu0 0
        %880 = vmatpush1.bf16.xpose.msra.mxu0 0
        %881 = vmatprep.subr.bf16.mxu0 0
        %882 = vmatpush1.bf16.xpose.msra.mxu0 0
        %883 = vmatprep.subr.bf16.mxu0 0
        %884 = vmatpush1.bf16.xpose.msra.mxu0 0
        %885 = vmatprep.subr.bf16.mxu0 0
        %886 = vmatpush1.bf16.xpose.msra.mxu0 0
        %887 = vmatprep.mubr.bf16.mxu0 0
        %888 = vmatmul.mubr.bf16.gmra.mrb[0].mxu0 %v850
        %v889 = vpop.f32.mrb[0].mxu0
        %v890 = vadd.f32 %v504, %v889
        %v891 = vpop.f32.mrb[0].mxu0
        %v892 = vpop.f32.mrb[0].mxu0
        %v893 = vadd.f32 %v505, %v892
        %v894 = vpop.f32.mrb[0].mxu0
        %895 = vdwg.mxu0
        %vm896 = vcmask 130048
        %v897 = vsel %vm896, %v890, -inf
        %898 = vmax.xlane.f32.xlu0 %v897
        %v899 = vpop.xlane.xlu0 %898
        %v900 = vsel %vm896, %v893, -inf
        %901 = vmax.xlane.f32.xlu0 %v900
        %v902 = vpop.xlane.xlu0 %901
        %v903 = vsub.f32 %v890, %v899
        %v904 = vsub.f32 %v893, %v902
        %v905 = vmul.f32 %v903, 1.442695
        %v906 = vpow.pop %v905
        %v907 = vmul.f32 %v904, 1.442695
        %v908 = vpow.pop %v907
        %v909 = vsel %vm896, %v906, 0.0
        %910 = vadd.xlane.f32.xlu0 %v909
        %v911 = vpop.xlane.xlu0 %910
        %v912 = vsel %vm896, %v908, 0.0
        %913 = vadd.xlane.f32.xlu0 %v912
        %v914 = vpop.xlane.xlu0 %913
        %v915 = vpack.c.bf16 %v908, %v906
        %v917 = vsel %vm896, %v915, 0
        %919 = vmatprep.subr.bf16.mxu0 0
        %920 = vmatpush1.bf16.msra.mxu0 %v832
        %921 = vmatprep.subr.bf16.mxu0 0
        %922 = vmatpush1.bf16.msra.mxu0 0
        %923 = vmatprep.subr.bf16.mxu0 0
        %924 = vmatpush1.bf16.msra.mxu0 0
        %925 = vmatprep.subr.bf16.mxu0 0
        %926 = vmatpush1.bf16.msra.mxu0 0
        %927 = vmatprep.subr.bf16.mxu0 0
        %928 = vmatpush1.bf16.msra.mxu0 0
        %929 = vmatprep.subr.bf16.mxu0 0
        %930 = vmatpush1.bf16.msra.mxu0 0
        %931 = vmatprep.subr.bf16.mxu0 0
        %932 = vmatpush1.bf16.msra.mxu0 0
        %933 = vmatprep.subr.bf16.mxu0 0
        %934 = vmatpush1.bf16.msra.mxu0 0
        %935 = vmatprep.subr.bf16.mxu0 0
        %936 = vmatpush1.bf16.msra.mxu0 0
        %937 = vmatprep.subr.bf16.mxu0 0
        %938 = vmatpush1.bf16.msra.mxu0 0
        %939 = vmatprep.subr.bf16.mxu0 0
        %940 = vmatpush1.bf16.msra.mxu0 0
        %941 = vmatprep.subr.bf16.mxu0 0
        %942 = vmatpush1.bf16.msra.mxu0 0
        %943 = vmatprep.subr.bf16.mxu0 0
        %944 = vmatpush1.bf16.msra.mxu0 0
        %945 = vmatprep.subr.bf16.mxu0 0
        %946 = vmatpush1.bf16.msra.mxu0 0
        %947 = vmatprep.subr.bf16.mxu0 0
        %948 = vmatpush1.bf16.msra.mxu0 0
        %949 = vmatprep.subr.bf16.mxu0 0
        %950 = vmatpush1.bf16.msra.mxu0 0
        %951 = vmatprep.mubr.bf16.mxu0 0
        %952 = vmatmul.mubr.bf16.gmra.mrb[0].mxu0 %v917
        %v953 = vpop.f32.mrb[0].mxu0
        %v954 = vadd.f32 0.0, %v953
        %v955 = vpop.f32.mrb[0].mxu0
        %v956 = vpop.f32.mrb[0].mxu0
        %v957 = vadd.f32 0.0, %v956
        %v958 = vpop.f32.mrb[0].mxu0
        %959 = vdwg.mxu0
        %v960 = vrcp.pop %v911
        %v961 = vrcp.pop %v914
        %v962 = vmul.f32 %v954, %v960
        %v963 = vmul.f32 %v957, %v961
        %v964 = vpack.c.bf16 %v963, %v962
        %966 = vrot.lane.b32.xlu0 %v804, 64
        %v967 = vpop.permute.xlu0 %966
        %969 = vrot.lane.b32.xlu0 %v831, 64
        %v970 = vpop.permute.xlu0 %969
        %v972 = vsel %vm794, %v967, 0
        %v975 = vsel %vm794, %v970, 0
        %977 = vmatprep.subr.bf16.mxu0 0
        %978 = vmatpush1.bf16.xpose.msra.mxu0 %v975
        %979 = vmatprep.subr.bf16.mxu0 0
        %980 = vmatpush1.bf16.xpose.msra.mxu0 0
        %981 = vmatprep.subr.bf16.mxu0 0
        %982 = vmatpush1.bf16.xpose.msra.mxu0 0
        %983 = vmatprep.subr.bf16.mxu0 0
        %984 = vmatpush1.bf16.xpose.msra.mxu0 0
        %985 = vmatprep.subr.bf16.mxu0 0
        %986 = vmatpush1.bf16.xpose.msra.mxu0 0
        %987 = vmatprep.subr.bf16.mxu0 0
        %988 = vmatpush1.bf16.xpose.msra.mxu0 0
        %989 = vmatprep.subr.bf16.mxu0 0
        %990 = vmatpush1.bf16.xpose.msra.mxu0 0
        %991 = vmatprep.subr.bf16.mxu0 0
        %992 = vmatpush1.bf16.xpose.msra.mxu0 0
        %993 = vmatprep.subr.bf16.mxu0 0
        %994 = vmatpush1.bf16.xpose.msra.mxu0 0
        %995 = vmatprep.subr.bf16.mxu0 0
        %996 = vmatpush1.bf16.xpose.msra.mxu0 0
        %997 = vmatprep.subr.bf16.mxu0 0
        %998 = vmatpush1.bf16.xpose.msra.mxu0 0
        %999 = vmatprep.subr.bf16.mxu0 0
        %1000 = vmatpush1.bf16.xpose.msra.mxu0 0
        %1001 = vmatprep.subr.bf16.mxu0 0
        %1002 = vmatpush1.bf16.xpose.msra.mxu0 0
        %1003 = vmatprep.subr.bf16.mxu0 0
        %1004 = vmatpush1.bf16.xpose.msra.mxu0 0
        %1005 = vmatprep.subr.bf16.mxu0 0
        %1006 = vmatpush1.bf16.xpose.msra.mxu0 0
        %1007 = vmatprep.subr.bf16.mxu0 0
        %1008 = vmatpush1.bf16.xpose.msra.mxu0 0
        %1009 = vmatprep.mubr.bf16.mxu0 0
        %1010 = vmatmul.mubr.bf16.gmra.mrb[0].mxu0 %v972
        %v1011 = vpop.f32.mrb[0].mxu0
        %v1012 = vadd.f32 %v504, %v1011
        %v1013 = vpop.f32.mrb[0].mxu0
        %v1014 = vpop.f32.mrb[0].mxu0
        %v1015 = vadd.f32 %v505, %v1014
        %v1016 = vpop.f32.mrb[0].mxu0
        %1017 = vdwg.mxu0
        %v1018 = vsel %vm896, %v1012, -inf
        %1019 = vmax.xlane.f32.xlu0 %v1018
        %v1020 = vpop.xlane.xlu0 %1019
        %v1021 = vsel %vm896, %v1015, -inf
        %1022 = vmax.xlane.f32.xlu0 %v1021
        %v1023 = vpop.xlane.xlu0 %1022
        %v1024 = vsub.f32 %v1012, %v1020
        %v1025 = vsub.f32 %v1015, %v1023
        %v1026 = vmul.f32 %v1024, 1.442695
        %v1027 = vpow.pop %v1026
        %v1028 = vmul.f32 %v1025, 1.442695
        %v1029 = vpow.pop %v1028
        %v1030 = vsel %vm896, %v1027, 0.0
        %1031 = vadd.xlane.f32.xlu0 %v1030
        %v1032 = vpop.xlane.xlu0 %1031
        %v1033 = vsel %vm896, %v1029, 0.0
        %1034 = vadd.xlane.f32.xlu0 %v1033
        %v1035 = vpop.xlane.xlu0 %1034
        %v1036 = vpack.c.bf16 %v1029, %v1027
        %1038 = vrot.lane.b32.xlu0 %v832, 64
        %v1039 = vpop.permute.xlu0 %1038
        %v1042 = vsel %vm896, %v1036, 0
        %1044 = vmatprep.subr.bf16.mxu0 0
        %1045 = vmatpush1.bf16.msra.mxu0 %v1039
        %1046 = vmatprep.subr.bf16.mxu0 0
        %1047 = vmatpush1.bf16.msra.mxu0 0
        %1048 = vmatprep.subr.bf16.mxu0 0
        %1049 = vmatpush1.bf16.msra.mxu0 0
        %1050 = vmatprep.subr.bf16.mxu0 0
        %1051 = vmatpush1.bf16.msra.mxu0 0
        %1052 = vmatprep.subr.bf16.mxu0 0
        %1053 = vmatpush1.bf16.msra.mxu0 0
        %1054 = vmatprep.subr.bf16.mxu0 0
        %1055 = vmatpush1.bf16.msra.mxu0 0
        %1056 = vmatprep.subr.bf16.mxu0 0
        %1057 = vmatpush1.bf16.msra.mxu0 0
        %1058 = vmatprep.subr.bf16.mxu0 0
        %1059 = vmatpush1.bf16.msra.mxu0 0
        %1060 = vmatprep.subr.bf16.mxu0 0
        %1061 = vmatpush1.bf16.msra.mxu0 0
        %1062 = vmatprep.subr.bf16.mxu0 0
        %1063 = vmatpush1.bf16.msra.mxu0 0
        %1064 = vmatprep.subr.bf16.mxu0 0
        %1065 = vmatpush1.bf16.msra.mxu0 0
        %1066 = vmatprep.subr.bf16.mxu0 0
        %1067 = vmatpush1.bf16.msra.mxu0 0
        %1068 = vmatprep.subr.bf16.mxu0 0
        %1069 = vmatpush1.bf16.msra.mxu0 0
        %1070 = vmatprep.subr.bf16.mxu0 0
        %1071 = vmatpush1.bf16.msra.mxu0 0
        %1072 = vmatprep.subr.bf16.mxu0 0
        %1073 = vmatpush1.bf16.msra.mxu0 0
        %1074 = vmatprep.subr.bf16.mxu0 0
        %1075 = vmatpush1.bf16.msra.mxu0 0
        %1076 = vmatprep.mubr.bf16.mxu0 0
        %1077 = vmatmul.mubr.bf16.gmra.mrb[0].mxu0 %v1042
        %v1078 = vpop.f32.mrb[0].mxu0
        %v1079 = vadd.f32 0.0, %v1078
        %v1080 = vpop.f32.mrb[0].mxu0
        %v1081 = vpop.f32.mrb[0].mxu0
        %v1082 = vadd.f32 0.0, %v1081
        %v1083 = vpop.f32.mrb[0].mxu0
        %1084 = vdwg.mxu0
        %v1085 = vrcp.pop %v1032
        %v1086 = vrcp.pop %v1035
        %v1087 = vmul.f32 %v1079, %v1085
        %v1088 = vmul.f32 %v1082, %v1086
        %v1089 = vpack.c.bf16 %v1088, %v1087
        %v1098 = vunpack.c.l.b16 %v841
        %v1099 = vunpack.c.l.b16 %v842
        %v1100 = vunpack.c.l.b16 %v843
        %v1101 = vunpack.c.l.b16 %v844
        %v1102 = vunpack.c.l.b16 %v845
        %v1103 = vunpack.c.l.b16 %v846
        %v1104 = vunpack.c.l.b16 %v847
        %v1105 = vunpack.c.l.b16 %v848
        %v1106 = vpack.c.b16 %v1099, %v1098
        %v1107 = vpack.c.b16 %v1101, %v1100
        %v1108 = vpack.c.b16 %v1103, %v1102
        %v1109 = vpack.c.b16 %v1105, %v1104
        %v1115 = vsel %vm794, %v1089, 0
        %1117 = vmatprep.subr.bf16.mxu0 0
        %1118 = vmatpush1.bf16.msra.mxu0 %v1106
        %1119 = vmatprep.subr.bf16.mxu0 0
        %1120 = vmatpush1.bf16.msra.mxu0 %v1107
        %1121 = vmatprep.subr.bf16.mxu0 0
        %1122 = vmatpush1.bf16.msra.mxu0 %v1108
        %1123 = vmatprep.subr.bf16.mxu0 0
        %1124 = vmatpush1.bf16.msra.mxu0 %v1109
        %1125 = vmatprep.subr.bf16.mxu0 0
        %1126 = vmatpush1.bf16.msra.mxu0 0
        %1127 = vmatprep.subr.bf16.mxu0 0
        %1128 = vmatpush1.bf16.msra.mxu0 0
        %1129 = vmatprep.subr.bf16.mxu0 0
        %1130 = vmatpush1.bf16.msra.mxu0 0
        %1131 = vmatprep.subr.bf16.mxu0 0
        %1132 = vmatpush1.bf16.msra.mxu0 0
        %1133 = vmatprep.subr.bf16.mxu0 0
        %1134 = vmatpush1.bf16.msra.mxu0 0
        %1135 = vmatprep.subr.bf16.mxu0 0
        %1136 = vmatpush1.bf16.msra.mxu0 0
        %1137 = vmatprep.subr.bf16.mxu0 0
        %1138 = vmatpush1.bf16.msra.mxu0 0
        %1139 = vmatprep.subr.bf16.mxu0 0
        %1140 = vmatpush1.bf16.msra.mxu0 0
        %1141 = vmatprep.subr.bf16.mxu0 0
        %1142 = vmatpush1.bf16.msra.mxu0 0
        %1143 = vmatprep.subr.bf16.mxu0 0
        %1144 = vmatpush1.bf16.msra.mxu0 0
        %1145 = vmatprep.subr.bf16.mxu0 0
        %1146 = vmatpush1.bf16.msra.mxu0 0
        %1147 = vmatprep.subr.bf16.mxu0 0
        %1148 = vmatpush1.bf16.msra.mxu0 0
        %1149 = vmatprep.mubr.bf16.mxu0 0
        %1150 = vmatmul.mubr.bf16.gmra.mrb[0].mxu0 %v1115
        %v1151 = vpop.f32.mrb[0].mxu0
        %v1152 = vadd.f32 0.0, %v1151
        %v1153 = vpop.f32.mrb[0].mxu0
        %v1154 = vpop.f32.mrb[0].mxu0
        %v1155 = vadd.f32 0.0, %v1154
        %v1156 = vpop.f32.mrb[0].mxu0
        %1157 = vdwg.mxu0
        %v1166 = vunpack.c.l.b16 %v833
        %v1167 = vunpack.c.l.b16 %v834
        %v1168 = vunpack.c.l.b16 %v835
        %v1169 = vunpack.c.l.b16 %v836
        %v1170 = vunpack.c.l.b16 %v837
        %v1171 = vunpack.c.l.b16 %v838
        %v1172 = vunpack.c.l.b16 %v839
        %v1173 = vunpack.c.l.b16 %v840
        %v1174 = vpack.c.b16 %v1167, %v1166
        %v1175 = vpack.c.b16 %v1169, %v1168
        %v1176 = vpack.c.b16 %v1171, %v1170
        %v1177 = vpack.c.b16 %v1173, %v1172
        %v1183 = vsel %vm794, %v964, 0
        %1185 = vmatprep.subr.bf16.mxu0 0
        %1186 = vmatpush1.bf16.msra.mxu0 %v1174
        %1187 = vmatprep.subr.bf16.mxu0 0
        %1188 = vmatpush1.bf16.msra.mxu0 %v1175
        %1189 = vmatprep.subr.bf16.mxu0 0
        %1190 = vmatpush1.bf16.msra.mxu0 %v1176
        %1191 = vmatprep.subr.bf16.mxu0 0
        %1192 = vmatpush1.bf16.msra.mxu0 %v1177
        %1193 = vmatprep.subr.bf16.mxu0 0
        %1194 = vmatpush1.bf16.msra.mxu0 0
        %1195 = vmatprep.subr.bf16.mxu0 0
        %1196 = vmatpush1.bf16.msra.mxu0 0
        %1197 = vmatprep.subr.bf16.mxu0 0
        %1198 = vmatpush1.bf16.msra.mxu0 0
        %1199 = vmatprep.subr.bf16.mxu0 0
        %1200 = vmatpush1.bf16.msra.mxu0 0
        %1201 = vmatprep.subr.bf16.mxu0 0
        %1202 = vmatpush1.bf16.msra.mxu0 0
        %1203 = vmatprep.subr.bf16.mxu0 0
        %1204 = vmatpush1.bf16.msra.mxu0 0
        %1205 = vmatprep.subr.bf16.mxu0 0
        %1206 = vmatpush1.bf16.msra.mxu0 0
        %1207 = vmatprep.subr.bf16.mxu0 0
        %1208 = vmatpush1.bf16.msra.mxu0 0
        %1209 = vmatprep.subr.bf16.mxu0 0
        %1210 = vmatpush1.bf16.msra.mxu0 0
        %1211 = vmatprep.subr.bf16.mxu0 0
        %1212 = vmatpush1.bf16.msra.mxu0 0
        %1213 = vmatprep.subr.bf16.mxu0 0
        %1214 = vmatpush1.bf16.msra.mxu0 0
        %1215 = vmatprep.subr.bf16.mxu0 0
        %1216 = vmatpush1.bf16.msra.mxu0 0
        %1217 = vmatprep.mubr.bf16.mxu0 0
        %1218 = vmatmul.mubr.bf16.gmra.mrb[0].mxu0 %v1183
        %v1219 = vpop.f32.mrb[0].mxu0
        %v1220 = vadd.f32 %v1152, %v1219
        %v1221 = vpop.f32.mrb[0].mxu0
        %v1222 = vpop.f32.mrb[0].mxu0
        %v1223 = vadd.f32 %v1155, %v1222
        %v1224 = vpop.f32.mrb[0].mxu0
        %1225 = vdwg.mxu0
        %v1226 = vadd.f32 %v487, %v1220
        %v1227 = vadd.f32 %v488, %v1223
        %v1228 = vld [vmem:[%s7] sm:$0x1]
        %v1229 = vmul.f32 %v1226, %v1226
        %v1230 = vmul.f32 %v1227, %v1227
        %1231 = vadd.xlane.f32.xlu0 %v1229
        %v1232 = vpop.xlane.xlu0 %1231
        %1233 = vadd.xlane.f32.xlu0 %v1230
        %v1234 = vpop.xlane.xlu0 %1233
        %v1235 = vmul.f32 %v1232, %v513
        %v1236 = vmul.f32 %v1234, %v513
        %v1237 = vadd.f32 %v1235, 1e-05
        %v1238 = vadd.f32 %v1236, 1e-05
        %v1239 = vrsqrt.pop %v1237
        %v1240 = vrsqrt.pop %v1238
        %v1241 = vmul.f32 %v1226, %v1239
        %v1242 = vmul.f32 %v1227, %v1240
        %v1244 = vlaneseq
        %v1245 = vshrl.u32 %v1244, 7
        %v1246 = vsub.s32 0, %v1245
        %v1247 = vrot.slane %v1228, %v1246
        %v1249 = vmul.f32 %v1241, %v1247
        %v1250 = vmul.f32 %v1242, %v1247
        %v1251 = vpack.c.bf16 %v1250, %v1249
        %v1252 = vld [vmem:[#allocation13] sm:$0xff]
        %v1253 = vld [vmem:[#allocation13 + $0x8] sm:$0xff]
        %v1254 = vld [vmem:[#allocation13 + $0x10] sm:$0xff]
        %v1255 = vld [vmem:[#allocation13 + $0x18] sm:$0xff]
        %v1256 = vld [vmem:[#allocation13 + $0x20] sm:$0xff]
        %v1257 = vld [vmem:[#allocation13 + $0x28] sm:$0xff]
        %v1258 = vld [vmem:[#allocation13 + $0x30] sm:$0xff]
        %v1259 = vld [vmem:[#allocation13 + $0x38] sm:$0xff]
        %v1260 = vld [vmem:[#allocation13 + $0x40] sm:$0xff]
        %v1261 = vld [vmem:[#allocation13 + $0x48] sm:$0xff]
        %v1262 = vld [vmem:[#allocation13 + $0x50] sm:$0xff]
        %v1263 = vld [vmem:[#allocation13 + $0x58] sm:$0xff]
        %v1264 = vld [vmem:[#allocation13 + $0x60] sm:$0xff]
        %v1265 = vld [vmem:[#allocation13 + $0x68] sm:$0xff]
        %v1266 = vld [vmem:[#allocation13 + $0x70] sm:$0xff]
        %v1267 = vld [vmem:[#allocation13 + $0x78] sm:$0xff]
        %v1284 = vunpack.c.l.b16 %v1252
        %v1285 = vunpack.c.h.b16 %v1252
        %v1286 = vunpack.c.l.b16 %v1253
        %v1287 = vunpack.c.h.b16 %v1253
        %v1288 = vunpack.c.l.b16 %v1254
        %v1289 = vunpack.c.h.b16 %v1254
        %v1290 = vunpack.c.l.b16 %v1255
        %v1291 = vunpack.c.h.b16 %v1255
        %v1292 = vunpack.c.l.b16 %v1256
        %v1293 = vunpack.c.h.b16 %v1256
        %v1294 = vunpack.c.l.b16 %v1257
        %v1295 = vunpack.c.h.b16 %v1257
        %v1296 = vunpack.c.l.b16 %v1258
        %v1297 = vunpack.c.h.b16 %v1258
        %v1298 = vunpack.c.l.b16 %v1259
        %v1299 = vunpack.c.h.b16 %v1259
        %v1300 = vunpack.c.l.b16 %v1260
        %v1301 = vunpack.c.h.b16 %v1260
        %v1302 = vunpack.c.l.b16 %v1261
        %v1303 = vunpack.c.h.b16 %v1261
        %v1304 = vunpack.c.l.b16 %v1262
        %v1305 = vunpack.c.h.b16 %v1262
        %v1306 = vunpack.c.l.b16 %v1263
        %v1307 = vunpack.c.h.b16 %v1263
        %v1308 = vunpack.c.l.b16 %v1264
        %v1309 = vunpack.c.h.b16 %v1264
        %v1310 = vunpack.c.l.b16 %v1265
        %v1311 = vunpack.c.h.b16 %v1265
        %v1312 = vunpack.c.l.b16 %v1266
        %v1313 = vunpack.c.h.b16 %v1266
        %v1314 = vunpack.c.l.b16 %v1267
        %v1315 = vunpack.c.h.b16 %v1267
        %v1316 = vpack.c.b16 %v1286, %v1284
        %v1317 = vpack.c.b16 %v1287, %v1285
        %v1318 = vpack.c.b16 %v1290, %v1288
        %v1319 = vpack.c.b16 %v1291, %v1289
        %v1320 = vpack.c.b16 %v1294, %v1292
        %v1321 = vpack.c.b16 %v1295, %v1293
        %v1322 = vpack.c.b16 %v1298, %v1296
        %v1323 = vpack.c.b16 %v1299, %v1297
        %v1324 = vpack.c.b16 %v1302, %v1300
        %v1325 = vpack.c.b16 %v1303, %v1301
        %v1326 = vpack.c.b16 %v1306, %v1304
        %v1327 = vpack.c.b16 %v1307, %v1305
        %v1328 = vpack.c.b16 %v1310, %v1308
        %v1329 = vpack.c.b16 %v1311, %v1309
        %v1330 = vpack.c.b16 %v1314, %v1312
        %v1331 = vpack.c.b16 %v1315, %v1313
        %1348 = vmatprep.subr.bf16.mxu0 %v1317
        %1349 = vmatpush1.bf16.msra.mxu0 %v1316
        %1350 = vmatprep.subr.bf16.mxu0 %v1319
        %1351 = vmatpush1.bf16.msra.mxu0 %v1318
        %1352 = vmatprep.subr.bf16.mxu0 %v1321
        %1353 = vmatpush1.bf16.msra.mxu0 %v1320
        %1354 = vmatprep.subr.bf16.mxu0 %v1323
        %1355 = vmatpush1.bf16.msra.mxu0 %v1322
        %1356 = vmatprep.subr.bf16.mxu0 %v1325
        %1357 = vmatpush1.bf16.msra.mxu0 %v1324
        %1358 = vmatprep.subr.bf16.mxu0 %v1327
        %1359 = vmatpush1.bf16.msra.mxu0 %v1326
        %1360 = vmatprep.subr.bf16.mxu0 %v1329
        %1361 = vmatpush1.bf16.msra.mxu0 %v1328
        %1362 = vmatprep.subr.bf16.mxu0 %v1331
        %1363 = vmatpush1.bf16.msra.mxu0 %v1330
        %1364 = vmatprep.subr.bf16.mxu0 0
        %1365 = vmatpush1.bf16.msra.mxu0 0
        %1366 = vmatprep.subr.bf16.mxu0 0
        %1367 = vmatpush1.bf16.msra.mxu0 0
        %1368 = vmatprep.subr.bf16.mxu0 0
        %1369 = vmatpush1.bf16.msra.mxu0 0
        %1370 = vmatprep.subr.bf16.mxu0 0
        %1371 = vmatpush1.bf16.msra.mxu0 0
        %1372 = vmatprep.subr.bf16.mxu0 0
        %1373 = vmatpush1.bf16.msra.mxu0 0
        %1374 = vmatprep.subr.bf16.mxu0 0
        %1375 = vmatpush1.bf16.msra.mxu0 0
        %1376 = vmatprep.subr.bf16.mxu0 0
        %1377 = vmatpush1.bf16.msra.mxu0 0
        %1378 = vmatprep.subr.bf16.mxu0 0
        %1379 = vmatpush1.bf16.msra.mxu0 0
        %1380 = vmatprep.mubr.bf16.mxu0 0
        %1381 = vmatmul.mubr.bf16.gmra.mrb[0].mxu0 %v1251
        %v1382 = vpop.f32.mrb[0].mxu0
        %v1383 = vadd.f32 0.0, %v1382
        %v1384 = vpop.f32.mrb[0].mxu0
        %v1385 = vadd.f32 0.0, %v1384
        %v1386 = vpop.f32.mrb[0].mxu0
        %v1387 = vadd.f32 0.0, %v1386
        %v1388 = vpop.f32.mrb[0].mxu0
        %v1389 = vadd.f32 0.0, %v1388
        %1390 = vdwg.mxu0
        %v1391 = vld [vmem:[#allocation15] sm:$0xff]
        %v1392 = vld [vmem:[#allocation15 + $0x8] sm:$0xff]
        %v1393 = vld [vmem:[#allocation15 + $0x10] sm:$0xff]
        %v1394 = vld [vmem:[#allocation15 + $0x18] sm:$0xff]
        %v1395 = vld [vmem:[#allocation15 + $0x20] sm:$0xff]
        %v1396 = vld [vmem:[#allocation15 + $0x28] sm:$0xff]
        %v1397 = vld [vmem:[#allocation15 + $0x30] sm:$0xff]
        %v1398 = vld [vmem:[#allocation15 + $0x38] sm:$0xff]
        %v1399 = vld [vmem:[#allocation15 + $0x40] sm:$0xff]
        %v1400 = vld [vmem:[#allocation15 + $0x48] sm:$0xff]
        %v1401 = vld [vmem:[#allocation15 + $0x50] sm:$0xff]
        %v1402 = vld [vmem:[#allocation15 + $0x58] sm:$0xff]
        %v1403 = vld [vmem:[#allocation15 + $0x60] sm:$0xff]
        %v1404 = vld [vmem:[#allocation15 + $0x68] sm:$0xff]
        %v1405 = vld [vmem:[#allocation15 + $0x70] sm:$0xff]
        %v1406 = vld [vmem:[#allocation15 + $0x78] sm:$0xff]
        %v1423 = vunpack.c.l.b16 %v1391
        %v1424 = vunpack.c.h.b16 %v1391
        %v1425 = vunpack.c.l.b16 %v1392
        %v1426 = vunpack.c.h.b16 %v1392
        %v1427 = vunpack.c.l.b16 %v1393
        %v1428 = vunpack.c.h.b16 %v1393
        %v1429 = vunpack.c.l.b16 %v1394
        %v1430 = vunpack.c.h.b16 %v1394
        %v1431 = vunpack.c.l.b16 %v1395
        %v1432 = vunpack.c.h.b16 %v1395
        %v1433 = vunpack.c.l.b16 %v1396
        %v1434 = vunpack.c.h.b16 %v1396
        %v1435 = vunpack.c.l.b16 %v1397
        %v1436 = vunpack.c.h.b16 %v1397
        %v1437 = vunpack.c.l.b16 %v1398
        %v1438 = vunpack.c.h.b16 %v1398
        %v1439 = vunpack.c.l.b16 %v1399
        %v1440 = vunpack.c.h.b16 %v1399
        %v1441 = vunpack.c.l.b16 %v1400
        %v1442 = vunpack.c.h.b16 %v1400
        %v1443 = vunpack.c.l.b16 %v1401
        %v1444 = vunpack.c.h.b16 %v1401
        %v1445 = vunpack.c.l.b16 %v1402
        %v1446 = vunpack.c.h.b16 %v1402
        %v1447 = vunpack.c.l.b16 %v1403
        %v1448 = vunpack.c.h.b16 %v1403
        %v1449 = vunpack.c.l.b16 %v1404
        %v1450 = vunpack.c.h.b16 %v1404
        %v1451 = vunpack.c.l.b16 %v1405
        %v1452 = vunpack.c.h.b16 %v1405
        %v1453 = vunpack.c.l.b16 %v1406
        %v1454 = vunpack.c.h.b16 %v1406
        %v1455 = vpack.c.b16 %v1425, %v1423
        %v1456 = vpack.c.b16 %v1426, %v1424
        %v1457 = vpack.c.b16 %v1429, %v1427
        %v1458 = vpack.c.b16 %v1430, %v1428
        %v1459 = vpack.c.b16 %v1433, %v1431
        %v1460 = vpack.c.b16 %v1434, %v1432
        %v1461 = vpack.c.b16 %v1437, %v1435
        %v1462 = vpack.c.b16 %v1438, %v1436
        %v1463 = vpack.c.b16 %v1441, %v1439
        %v1464 = vpack.c.b16 %v1442, %v1440
        %v1465 = vpack.c.b16 %v1445, %v1443
        %v1466 = vpack.c.b16 %v1446, %v1444
        %v1467 = vpack.c.b16 %v1449, %v1447
        %v1468 = vpack.c.b16 %v1450, %v1448
        %v1469 = vpack.c.b16 %v1453, %v1451
        %v1470 = vpack.c.b16 %v1454, %v1452
        %1487 = vmatprep.subr.bf16.mxu0 %v1456
        %1488 = vmatpush1.bf16.msra.mxu0 %v1455
        %1489 = vmatprep.subr.bf16.mxu0 %v1458
        %1490 = vmatpush1.bf16.msra.mxu0 %v1457
        %1491 = vmatprep.subr.bf16.mxu0 %v1460
        %1492 = vmatpush1.bf16.msra.mxu0 %v1459
        %1493 = vmatprep.subr.bf16.mxu0 %v1462
        %1494 = vmatpush1.bf16.msra.mxu0 %v1461
        %1495 = vmatprep.subr.bf16.mxu0 %v1464
        %1496 = vmatpush1.bf16.msra.mxu0 %v1463
        %1497 = vmatprep.subr.bf16.mxu0 %v1466
        %1498 = vmatpush1.bf16.msra.mxu0 %v1465
        %1499 = vmatprep.subr.bf16.mxu0 %v1468
        %1500 = vmatpush1.bf16.msra.mxu0 %v1467
        %1501 = vmatprep.subr.bf16.mxu0 %v1470
        %1502 = vmatpush1.bf16.msra.mxu0 %v1469
        %1503 = vmatprep.subr.bf16.mxu0 0
        %1504 = vmatpush1.bf16.msra.mxu0 0
        %1505 = vmatprep.subr.bf16.mxu0 0
        %1506 = vmatpush1.bf16.msra.mxu0 0
        %1507 = vmatprep.subr.bf16.mxu0 0
        %1508 = vmatpush1.bf16.msra.mxu0 0
        %1509 = vmatprep.subr.bf16.mxu0 0
        %1510 = vmatpush1.bf16.msra.mxu0 0
        %1511 = vmatprep.subr.bf16.mxu0 0
        %1512 = vmatpush1.bf16.msra.mxu0 0
        %1513 = vmatprep.subr.bf16.mxu0 0
        %1514 = vmatpush1.bf16.msra.mxu0 0
        %1515 = vmatprep.subr.bf16.mxu0 0
        %1516 = vmatpush1.bf16.msra.mxu0 0
        %1517 = vmatprep.subr.bf16.mxu0 0
        %1518 = vmatpush1.bf16.msra.mxu0 0
        %1519 = vmatprep.mubr.bf16.mxu0 0
        %1520 = vmatmul.mubr.bf16.gmra.mrb[0].mxu0 %v1251
        %v1521 = vpop.f32.mrb[0].mxu0
        %v1522 = vadd.f32 0.0, %v1521
        %v1523 = vpop.f32.mrb[0].mxu0
        %v1524 = vadd.f32 0.0, %v1523
        %v1525 = vpop.f32.mrb[0].mxu0
        %v1526 = vadd.f32 0.0, %v1525
        %v1527 = vpop.f32.mrb[0].mxu0
        %v1528 = vadd.f32 0.0, %v1527
        %1529 = vdwg.mxu0
        %v1530 = vxor.u32 %v1383, 2147483648
        %v1531 = vxor.u32 %v1385, 2147483648
        %v1532 = vxor.u32 %v1387, 2147483648
        %v1533 = vxor.u32 %v1389, 2147483648
        %v1534 = vmul.f32 %v1530, 1.442695
        %v1535 = vpow.pop %v1534
        %v1536 = vmul.f32 %v1531, 1.442695
        %v1537 = vpow.pop %v1536
        %v1538 = vmul.f32 %v1532, 1.442695
        %v1539 = vpow.pop %v1538
        %v1540 = vmul.f32 %v1533, 1.442695
        %v1541 = vpow.pop %v1540
        %v1542 = vadd.f32 %v1535, 1.0
        %v1543 = vadd.f32 %v1537, 1.0
        %v1544 = vadd.f32 %v1539, 1.0
        %v1545 = vadd.f32 %v1541, 1.0
        %v1546 = vrcp.pop %v1542
        %v1547 = vmul.f32 1.0, %v1546
        %v1548 = vrcp.pop %v1543
        %v1549 = vmul.f32 1.0, %v1548
        %v1550 = vrcp.pop %v1544
        %v1551 = vmul.f32 1.0, %v1550
        %v1552 = vrcp.pop %v1545
        %v1553 = vmul.f32 1.0, %v1552
        %v1554 = vmul.f32 %v1383, %v1547
        %v1555 = vmul.f32 %v1385, %v1549
        %v1556 = vmul.f32 %v1387, %v1551
        %v1557 = vmul.f32 %v1389, %v1553
        %v1558 = vmul.f32 %v1554, %v1522
        %v1559 = vmul.f32 %v1555, %v1524
        %v1560 = vmul.f32 %v1556, %v1526
        %v1561 = vmul.f32 %v1557, %v1528
        %v1562 = vpack.c.bf16 %v1560, %v1558
        %v1563 = vpack.c.bf16 %v1561, %v1559
        %v1564 = vld [vmem:[#allocation16] sm:$0xf]
        %v1565 = vld [vmem:[#allocation16 + $0x4] sm:$0xf]
        %v1566 = vld [vmem:[#allocation16 + $0x8] sm:$0xf]
        %v1567 = vld [vmem:[#allocation16 + $0xc] sm:$0xf]
        %v1568 = vld [vmem:[#allocation16 + $0x10] sm:$0xf]
        %v1569 = vld [vmem:[#allocation16 + $0x14] sm:$0xf]
        %v1570 = vld [vmem:[#allocation16 + $0x18] sm:$0xf]
        %v1571 = vld [vmem:[#allocation16 + $0x1c] sm:$0xf]
        %v1572 = vld [vmem:[#allocation16 + $0x20] sm:$0xf]
        %v1573 = vld [vmem:[#allocation16 + $0x24] sm:$0xf]
        %v1574 = vld [vmem:[#allocation16 + $0x28] sm:$0xf]
        %v1575 = vld [vmem:[#allocation16 + $0x2c] sm:$0xf]
        %v1576 = vld [vmem:[#allocation16 + $0x30] sm:$0xf]
        %v1577 = vld [vmem:[#allocation16 + $0x34] sm:$0xf]
        %v1578 = vld [vmem:[#allocation16 + $0x38] sm:$0xf]
        %v1579 = vld [vmem:[#allocation16 + $0x3c] sm:$0xf]
        %v1580 = vld [vmem:[#allocation16 + $0x40] sm:$0xf]
        %v1581 = vld [vmem:[#allocation16 + $0x44] sm:$0xf]
        %v1582 = vld [vmem:[#allocation16 + $0x48] sm:$0xf]
        %v1583 = vld [vmem:[#allocation16 + $0x4c] sm:$0xf]
        %v1584 = vld [vmem:[#allocation16 + $0x50] sm:$0xf]
        %v1585 = vld [vmem:[#allocation16 + $0x54] sm:$0xf]
        %v1586 = vld [vmem:[#allocation16 + $0x58] sm:$0xf]
        %v1587 = vld [vmem:[#allocation16 + $0x5c] sm:$0xf]
        %v1588 = vld [vmem:[#allocation16 + $0x60] sm:$0xf]
        %v1589 = vld [vmem:[#allocation16 + $0x64] sm:$0xf]
        %v1590 = vld [vmem:[#allocation16 + $0x68] sm:$0xf]
        %v1591 = vld [vmem:[#allocation16 + $0x6c] sm:$0xf]
        %v1592 = vld [vmem:[#allocation16 + $0x70] sm:$0xf]
        %v1593 = vld [vmem:[#allocation16 + $0x74] sm:$0xf]
        %v1594 = vld [vmem:[#allocation16 + $0x78] sm:$0xf]
        %v1595 = vld [vmem:[#allocation16 + $0x7c] sm:$0xf]
        %v1628 = vunpack.c.l.b16 %v1564
        %v1629 = vunpack.c.l.b16 %v1565
        %v1630 = vunpack.c.l.b16 %v1566
        %v1631 = vunpack.c.l.b16 %v1567
        %v1632 = vunpack.c.l.b16 %v1568
        %v1633 = vunpack.c.l.b16 %v1569
        %v1634 = vunpack.c.l.b16 %v1570
        %v1635 = vunpack.c.l.b16 %v1571
        %v1636 = vunpack.c.l.b16 %v1572
        %v1637 = vunpack.c.l.b16 %v1573
        %v1638 = vunpack.c.l.b16 %v1574
        %v1639 = vunpack.c.l.b16 %v1575
        %v1640 = vunpack.c.l.b16 %v1576
        %v1641 = vunpack.c.l.b16 %v1577
        %v1642 = vunpack.c.l.b16 %v1578
        %v1643 = vunpack.c.l.b16 %v1579
        %v1644 = vunpack.c.l.b16 %v1580
        %v1645 = vunpack.c.l.b16 %v1581
        %v1646 = vunpack.c.l.b16 %v1582
        %v1647 = vunpack.c.l.b16 %v1583
        %v1648 = vunpack.c.l.b16 %v1584
        %v1649 = vunpack.c.l.b16 %v1585
        %v1650 = vunpack.c.l.b16 %v1586
        %v1651 = vunpack.c.l.b16 %v1587
        %v1652 = vunpack.c.l.b16 %v1588
        %v1653 = vunpack.c.l.b16 %v1589
        %v1654 = vunpack.c.l.b16 %v1590
        %v1655 = vunpack.c.l.b16 %v1591
        %v1656 = vunpack.c.l.b16 %v1592
        %v1657 = vunpack.c.l.b16 %v1593
        %v1658 = vunpack.c.l.b16 %v1594
        %v1659 = vunpack.c.l.b16 %v1595
        %v1660 = vpack.c.b16 %v1629, %v1628
        %v1661 = vpack.c.b16 %v1631, %v1630
        %v1662 = vpack.c.b16 %v1633, %v1632
        %v1663 = vpack.c.b16 %v1635, %v1634
        %v1664 = vpack.c.b16 %v1637, %v1636
        %v1665 = vpack.c.b16 %v1639, %v1638
        %v1666 = vpack.c.b16 %v1641, %v1640
        %v1667 = vpack.c.b16 %v1643, %v1642
        %v1668 = vpack.c.b16 %v1645, %v1644
        %v1669 = vpack.c.b16 %v1647, %v1646
        %v1670 = vpack.c.b16 %v1649, %v1648
        %v1671 = vpack.c.b16 %v1651, %v1650
        %v1672 = vpack.c.b16 %v1653, %v1652
        %v1673 = vpack.c.b16 %v1655, %v1654
        %v1674 = vpack.c.b16 %v1657, %v1656
        %v1675 = vpack.c.b16 %v1659, %v1658
        %1692 = vmatprep.subr.bf16.mxu0 0
        %1693 = vmatpush1.bf16.msra.mxu0 %v1660
        %1694 = vmatprep.subr.bf16.mxu0 0
        %1695 = vmatpush1.bf16.msra.mxu0 %v1661
        %1696 = vmatprep.subr.bf16.mxu0 0
        %1697 = vmatpush1.bf16.msra.mxu0 %v1662
        %1698 = vmatprep.subr.bf16.mxu0 0
        %1699 = vmatpush1.bf16.msra.mxu0 %v1663
        %1700 = vmatprep.subr.bf16.mxu0 0
        %1701 = vmatpush1.bf16.msra.mxu0 %v1664
        %1702 = vmatprep.subr.bf16.mxu0 0
        %1703 = vmatpush1.bf16.msra.mxu0 %v1665
        %1704 = vmatprep.subr.bf16.mxu0 0
        %1705 = vmatpush1.bf16.msra.mxu0 %v1666
        %1706 = vmatprep.subr.bf16.mxu0 0
        %1707 = vmatpush1.bf16.msra.mxu0 %v1667
        %1708 = vmatprep.subr.bf16.mxu0 0
        %1709 = vmatpush1.bf16.msra.mxu0 %v1668
        %1710 = vmatprep.subr.bf16.mxu0 0
        %1711 = vmatpush1.bf16.msra.mxu0 %v1669
        %1712 = vmatprep.subr.bf16.mxu0 0
        %1713 = vmatpush1.bf16.msra.mxu0 %v1670
        %1714 = vmatprep.subr.bf16.mxu0 0
        %1715 = vmatpush1.bf16.msra.mxu0 %v1671
        %1716 = vmatprep.subr.bf16.mxu0 0
        %1717 = vmatpush1.bf16.msra.mxu0 %v1672
        %1718 = vmatprep.subr.bf16.mxu0 0
        %1719 = vmatpush1.bf16.msra.mxu0 %v1673
        %1720 = vmatprep.subr.bf16.mxu0 0
        %1721 = vmatpush1.bf16.msra.mxu0 %v1674
        %1722 = vmatprep.subr.bf16.mxu0 0
        %1723 = vmatpush1.bf16.msra.mxu0 %v1675
        %1724 = vmatprep.mubr.bf16.mxu0 %v1563
        %1725 = vmatmul.mubr.bf16.gmra.mrb[0].mxu0 %v1562
        %v1726 = vpop.f32.mrb[0].mxu0
        %v1727 = vadd.f32 0.0, %v1726
        %v1728 = vpop.f32.mrb[0].mxu0
        %v1729 = vpop.f32.mrb[0].mxu0
        %v1730 = vadd.f32 0.0, %v1729
        %v1731 = vpop.f32.mrb[0].mxu0
        %1732 = vdwg.mxu0
        %v1733 = vadd.f32 %v1226, %v1727
        %v1734 = vadd.f32 %v1227, %v1730
        %s1735 = scalar_lea.vmem %s4, 1
        %v1736 = vld [vmem:[%s1735] sm:$0x1]
        %v1737 = vmul.f32 %v1733, %v1733
        %v1738 = vmul.f32 %v1734, %v1734
        %1739 = vadd.xlane.f32.xlu0 %v1737
        %v1740 = vpop.xlane.xlu0 %1739
        %1741 = vadd.xlane.f32.xlu0 %v1738
        %v1742 = vpop.xlane.xlu0 %1741
        %v1743 = vmul.f32 %v1740, %v513
        %v1744 = vmul.f32 %v1742, %v513
        %v1745 = vadd.f32 %v1743, 1e-05
        %v1746 = vadd.f32 %v1744, 1e-05
        %v1747 = vrsqrt.pop %v1745
        %v1748 = vrsqrt.pop %v1746
        %v1749 = vmul.f32 %v1733, %v1747
        %v1750 = vmul.f32 %v1734, %v1748
        %v1752 = vlaneseq
        %v1753 = vshrl.u32 %v1752, 7
        %v1754 = vsub.s32 0, %v1753
        %v1755 = vrot.slane %v1736, %v1754
        %v1757 = vmul.f32 %v1749, %v1755
        %v1758 = vmul.f32 %v1750, %v1755
        %v1759 = vpack.c.bf16 %v1758, %v1757
        %s1760 = scalar_lea.vmem [#allocation10], 192
        %v1761 = vld [vmem:[%s1760] sm:$0xff]
        %v1762 = vld [vmem:[%s1760 + $0x8] sm:$0xf]
        %v1763 = vld [vmem:[%s1760 + $0xc] sm:$0xff]
        %v1764 = vld [vmem:[%s1760 + $0x14] sm:$0xf]
        %v1765 = vld [vmem:[%s1760 + $0x18] sm:$0xff]
        %v1766 = vld [vmem:[%s1760 + $0x20] sm:$0xf]
        %v1767 = vld [vmem:[%s1760 + $0x24] sm:$0xff]
        %v1768 = vld [vmem:[%s1760 + $0x2c] sm:$0xf]
        %v1769 = vld [vmem:[%s1760 + $0x30] sm:$0xff]
        %v1770 = vld [vmem:[%s1760 + $0x38] sm:$0xf]
        %v1771 = vld [vmem:[%s1760 + $0x3c] sm:$0xff]
        %v1772 = vld [vmem:[%s1760 + $0x44] sm:$0xf]
        %v1773 = vld [vmem:[%s1760 + $0x48] sm:$0xff]
        %v1774 = vld [vmem:[%s1760 + $0x50] sm:$0xf]
        %v1775 = vld [vmem:[%s1760 + $0x54] sm:$0xff]
        %v1776 = vld [vmem:[%s1760 + $0x5c] sm:$0xf]
        %v1777 = vld [vmem:[%s1760 + $0x60] sm:$0xff]
        %v1778 = vld [vmem:[%s1760 + $0x68] sm:$0xf]
        %v1779 = vld [vmem:[%s1760 + $0x6c] sm:$0xff]
        %v1780 = vld [vmem:[%s1760 + $0x74] sm:$0xf]
        %v1781 = vld [vmem:[%s1760 + $0x78] sm:$0xff]
        %v1782 = vld [vmem:[%s1760 + $0x80] sm:$0xf]
        %v1783 = vld [vmem:[%s1760 + $0x84] sm:$0xff]
        %v1784 = vld [vmem:[%s1760 + $0x8c] sm:$0xf]
        %v1785 = vld [vmem:[%s1760 + $0x90] sm:$0xff]
        %v1786 = vld [vmem:[%s1760 + $0x98] sm:$0xf]
        %v1787 = vld [vmem:[%s1760 + $0x9c] sm:$0xff]
        %v1788 = vld [vmem:[%s1760 + $0xa4] sm:$0xf]
        %v1789 = vld [vmem:[%s1760 + $0xa8] sm:$0xff]
        %v1790 = vld [vmem:[%s1760 + $0xb0] sm:$0xf]
        %v1791 = vld [vmem:[%s1760 + $0xb4] sm:$0xff]
        %v1792 = vld [vmem:[%s1760 + $0xbc] sm:$0xf]
        %v1825 = vunpack.c.l.b16 %v1761
        %v1826 = vunpack.c.h.b16 %v1761
        %v1827 = vunpack.c.l.b16 %v1762
        %v1828 = vunpack.c.l.b16 %v1763
        %v1829 = vunpack.c.h.b16 %v1763
        %v1830 = vunpack.c.l.b16 %v1764
        %v1831 = vunpack.c.l.b16 %v1765
        %v1832 = vunpack.c.h.b16 %v1765
        %v1833 = vunpack.c.l.b16 %v1766
        %v1834 = vunpack.c.l.b16 %v1767
        %v1835 = vunpack.c.h.b16 %v1767
        %v1836 = vunpack.c.l.b16 %v1768
        %v1837 = vunpack.c.l.b16 %v1769
        %v1838 = vunpack.c.h.b16 %v1769
        %v1839 = vunpack.c.l.b16 %v1770
        %v1840 = vunpack.c.l.b16 %v1771
        %v1841 = vunpack.c.h.b16 %v1771
        %v1842 = vunpack.c.l.b16 %v1772
        %v1843 = vunpack.c.l.b16 %v1773
        %v1844 = vunpack.c.h.b16 %v1773
        %v1845 = vunpack.c.l.b16 %v1774
        %v1846 = vunpack.c.l.b16 %v1775
        %v1847 = vunpack.c.h.b16 %v1775
        %v1848 = vunpack.c.l.b16 %v1776
        %v1849 = vunpack.c.l.b16 %v1777
        %v1850 = vunpack.c.h.b16 %v1777
        %v1851 = vunpack.c.l.b16 %v1778
        %v1852 = vunpack.c.l.b16 %v1779
        %v1853 = vunpack.c.h.b16 %v1779
        %v1854 = vunpack.c.l.b16 %v1780
        %v1855 = vunpack.c.l.b16 %v1781
        %v1856 = vunpack.c.h.b16 %v1781
        %v1857 = vunpack.c.l.b16 %v1782
        %v1858 = vunpack.c.l.b16 %v1783
        %v1859 = vunpack.c.h.b16 %v1783
        %v1860 = vunpack.c.l.b16 %v1784
        %v1861 = vunpack.c.l.b16 %v1785
        %v1862 = vunpack.c.h.b16 %v1785
        %v1863 = vunpack.c.l.b16 %v1786
        %v1864 = vunpack.c.l.b16 %v1787
        %v1865 = vunpack.c.h.b16 %v1787
        %v1866 = vunpack.c.l.b16 %v1788
        %v1867 = vunpack.c.l.b16 %v1789
        %v1868 = vunpack.c.h.b16 %v1789
        %v1869 = vunpack.c.l.b16 %v1790
        %v1870 = vunpack.c.l.b16 %v1791
        %v1871 = vunpack.c.h.b16 %v1791
        %v1872 = vunpack.c.l.b16 %v1792
        %v1873 = vpack.c.b16 %v1828, %v1825
        %v1874 = vpack.c.b16 %v1829, %v1826
        %v1875 = vpack.c.b16 %v1830, %v1827
        %v1876 = vpack.c.b16 %v1834, %v1831
        %v1877 = vpack.c.b16 %v1835, %v1832
        %v1878 = vpack.c.b16 %v1836, %v1833
        %v1879 = vpack.c.b16 %v1840, %v1837
        %v1880 = vpack.c.b16 %v1841, %v1838
        %v1881 = vpack.c.b16 %v1842, %v1839
        %v1882 = vpack.c.b16 %v1846, %v1843
        %v1883 = vpack.c.b16 %v1847, %v1844
        %v1884 = vpack.c.b16 %v1848, %v1845
        %v1885 = vpack.c.b16 %v1852, %v1849
        %v1886 = vpack.c.b16 %v1853, %v1850
        %v1887 = vpack.c.b16 %v1854, %v1851
        %v1888 = vpack.c.b16 %v1858, %v1855
        %v1889 = vpack.c.b16 %v1859, %v1856
        %v1890 = vpack.c.b16 %v1860, %v1857
        %v1891 = vpack.c.b16 %v1864, %v1861
        %v1892 = vpack.c.b16 %v1865, %v1862
        %v1893 = vpack.c.b16 %v1866, %v1863
        %v1894 = vpack.c.b16 %v1870, %v1867
        %v1895 = vpack.c.b16 %v1871, %v1868
        %v1896 = vpack.c.b16 %v1872, %v1869
        %1921 = vmatprep.subr.bf16.mxu0 %v1874
        %1922 = vmatpush1.bf16.msra.mxu0 %v1873
        %1923 = vmatprep.subr.bf16.mxu0 %v1877
        %1924 = vmatpush1.bf16.msra.mxu0 %v1876
        %1925 = vmatprep.subr.bf16.mxu0 %v1880
        %1926 = vmatpush1.bf16.msra.mxu0 %v1879
        %1927 = vmatprep.subr.bf16.mxu0 %v1883
        %1928 = vmatpush1.bf16.msra.mxu0 %v1882
        %1929 = vmatprep.subr.bf16.mxu0 %v1886
        %1930 = vmatpush1.bf16.msra.mxu0 %v1885
        %1931 = vmatprep.subr.bf16.mxu0 %v1889
        %1932 = vmatpush1.bf16.msra.mxu0 %v1888
        %1933 = vmatprep.subr.bf16.mxu0 %v1892
        %1934 = vmatpush1.bf16.msra.mxu0 %v1891
        %1935 = vmatprep.subr.bf16.mxu0 %v1895
        %1936 = vmatpush1.bf16.msra.mxu0 %v1894
        %1937 = vmatprep.subr.bf16.mxu0 0
        %1938 = vmatpush1.bf16.msra.mxu0 0
        %1939 = vmatprep.subr.bf16.mxu0 0
        %1940 = vmatpush1.bf16.msra.mxu0 0
        %1941 = vmatprep.subr.bf16.mxu0 0
        %1942 = vmatpush1.bf16.msra.mxu0 0
        %1943 = vmatprep.subr.bf16.mxu0 0
        %1944 = vmatpush1.bf16.msra.mxu0 0
        %1945 = vmatprep.subr.bf16.mxu0 0
        %1946 = vmatpush1.bf16.msra.mxu0 0
        %1947 = vmatprep.subr.bf16.mxu0 0
        %1948 = vmatpush1.bf16.msra.mxu0 0
        %1949 = vmatprep.subr.bf16.mxu0 0
        %1950 = vmatpush1.bf16.msra.mxu0 0
        %1951 = vmatprep.subr.bf16.mxu0 0
        %1952 = vmatpush1.bf16.msra.mxu0 0
        %1953 = vmatprep.mubr.bf16.mxu0 0
        %1954 = vmatmul.mubr.bf16.gmra.mrb[0].mxu0 %v1759
        %v1955 = vpop.f32.mrb[0].mxu0
        %v1956 = vadd.f32 0.0, %v1955
        %v1957 = vpop.f32.mrb[0].mxu0
        %v1958 = vadd.f32 0.0, %v1957
        %v1959 = vpop.f32.mrb[0].mxu0
        %v1960 = vadd.f32 0.0, %v1959
        %v1961 = vpop.f32.mrb[0].mxu0
        %v1962 = vadd.f32 0.0, %v1961
        %1963 = vdwg.mxu0
        %1964 = vmatprep.subr.bf16.mxu0 0
        %1965 = vmatpush1.bf16.msra.mxu0 %v1875
        %1966 = vmatprep.subr.bf16.mxu0 0
        %1967 = vmatpush1.bf16.msra.mxu0 %v1878
        %1968 = vmatprep.subr.bf16.mxu0 0
        %1969 = vmatpush1.bf16.msra.mxu0 %v1881
        %1970 = vmatprep.subr.bf16.mxu0 0
        %1971 = vmatpush1.bf16.msra.mxu0 %v1884
        %1972 = vmatprep.subr.bf16.mxu0 0
        %1973 = vmatpush1.bf16.msra.mxu0 %v1887
        %1974 = vmatprep.subr.bf16.mxu0 0
        %1975 = vmatpush1.bf16.msra.mxu0 %v1890
        %1976 = vmatprep.subr.bf16.mxu0 0
        %1977 = vmatpush1.bf16.msra.mxu0 %v1893
        %1978 = vmatprep.subr.bf16.mxu0 0
        %1979 = vmatpush1.bf16.msra.mxu0 %v1896
        %1980 = vmatprep.subr.bf16.mxu0 0
        %1981 = vmatpush1.bf16.msra.mxu0 0
        %1982 = vmatprep.subr.bf16.mxu0 0
        %1983 = vmatpush1.bf16.msra.mxu0 0
        %1984 = vmatprep.subr.bf16.mxu0 0
        %1985 = vmatpush1.bf16.msra.mxu0 0
        %1986 = vmatprep.subr.bf16.mxu0 0
        %1987 = vmatpush1.bf16.msra.mxu0 0
        %1988 = vmatprep.subr.bf16.mxu0 0
        %1989 = vmatpush1.bf16.msra.mxu0 0
        %1990 = vmatprep.subr.bf16.mxu0 0
        %1991 = vmatpush1.bf16.msra.mxu0 0
        %1992 = vmatprep.subr.bf16.mxu0 0
        %1993 = vmatpush1.bf16.msra.mxu0 0
        %1994 = vmatprep.subr.bf16.mxu0 0
        %1995 = vmatpush1.bf16.msra.mxu0 0
        %1996 = vmatprep.mubr.bf16.mxu0 0
        %1997 = vmatmul.mubr.bf16.gmra.mrb[0].mxu0 %v1759
        %v1998 = vpop.f32.mrb[0].mxu0
        %v1999 = vadd.f32 0.0, %v1998
        %v2000 = vpop.f32.mrb[0].mxu0
        %v2001 = vpop.f32.mrb[0].mxu0
        %v2002 = vadd.f32 0.0, %v2001
        %v2003 = vpop.f32.mrb[0].mxu0
        %2004 = vdwg.mxu0
        %v2005 = vmul.f32 %v1956, %v489
        %v2006 = vmul.f32 %v1960, %v490
        %2009 = vrot.lane.b32.xlu0 %v1956, 96
        %v2010 = vpop.permute.xlu0 %2009
        %2011 = vrot.lane.b32.xlu0 %v1960, 96
        %v2012 = vpop.permute.xlu0 %2011
        %2015 = vrot.lane.b32.xlu0 %v1956, 32
        %v2016 = vpop.permute.xlu0 %2015
        %2017 = vrot.lane.b32.xlu0 %v1960, 32
        %v2018 = vpop.permute.xlu0 %2017
        %v2021 = vsel %vm791, %v2010, %v2016
        %v2022 = vsel %vm791, %v2012, %v2018
        %v2023 = vsel %vm794, %v2021, %v2010
        %v2024 = vsel %vm794, %v2022, %v2012
        %v2025 = vsel %vm797, %v2023, %v2016
        %v2026 = vsel %vm797, %v2024, %v2018
        %v2027 = vmul.f32 %v2025, %v491
        %v2028 = vmul.f32 %v2026, %v492
        %v2029 = vadd.f32 %v2005, %v2027
        %v2030 = vadd.f32 %v2006, %v2028
        %v2031 = vpack.c.bf16 %v2030, %v2029
        %v2032 = vmul.f32 %v1958, %v489
        %v2033 = vmul.f32 %v1962, %v490
        %2036 = vrot.lane.b32.xlu0 %v1958, 96
        %v2037 = vpop.permute.xlu0 %2036
        %2038 = vrot.lane.b32.xlu0 %v1962, 96
        %v2039 = vpop.permute.xlu0 %2038
        %2042 = vrot.lane.b32.xlu0 %v1958, 32
        %v2043 = vpop.permute.xlu0 %2042
        %2044 = vrot.lane.b32.xlu0 %v1962, 32
        %v2045 = vpop.permute.xlu0 %2044
        %v2048 = vsel %vm791, %v2037, %v2043
        %v2049 = vsel %vm791, %v2039, %v2045
        %v2050 = vsel %vm794, %v2048, %v2037
        %v2051 = vsel %vm794, %v2049, %v2039
        %v2052 = vsel %vm797, %v2050, %v2043
        %v2053 = vsel %vm797, %v2051, %v2045
        %v2054 = vmul.f32 %v2052, %v491
        %v2055 = vmul.f32 %v2053, %v492
        %v2056 = vadd.f32 %v2032, %v2054
        %v2057 = vadd.f32 %v2033, %v2055
        %v2058 = vpack.c.bf16 %v2057, %v2056
        %v2059 = vpack.c.bf16 %v2002, %v1999
        %s2060 = scalar_lea.vmem [#allocation12], 64
        %v2061 = vld [vmem:[%s2060] sm:$0xf]
        %v2062 = vld [vmem:[%s2060 + $0x4] sm:$0xf]
        %v2063 = vld [vmem:[%s2060 + $0x8] sm:$0xf]
        %v2064 = vld [vmem:[%s2060 + $0xc] sm:$0xf]
        %v2065 = vld [vmem:[%s2060 + $0x10] sm:$0xf]
        %v2066 = vld [vmem:[%s2060 + $0x14] sm:$0xf]
        %v2067 = vld [vmem:[%s2060 + $0x18] sm:$0xf]
        %v2068 = vld [vmem:[%s2060 + $0x1c] sm:$0xf]
        %v2069 = vld [vmem:[%s2060 + $0x20] sm:$0xf]
        %v2070 = vld [vmem:[%s2060 + $0x24] sm:$0xf]
        %v2071 = vld [vmem:[%s2060 + $0x28] sm:$0xf]
        %v2072 = vld [vmem:[%s2060 + $0x2c] sm:$0xf]
        %v2073 = vld [vmem:[%s2060 + $0x30] sm:$0xf]
        %v2074 = vld [vmem:[%s2060 + $0x34] sm:$0xf]
        %v2075 = vld [vmem:[%s2060 + $0x38] sm:$0xf]
        %v2076 = vld [vmem:[%s2060 + $0x3c] sm:$0xf]
        %v2078 = vsel %vm794, %v2031, 0
        %v2081 = vsel %vm794, %v2058, 0
        %2083 = vmatprep.subr.bf16.mxu0 0
        %2084 = vmatpush1.bf16.xpose.msra.mxu0 %v2081
        %2085 = vmatprep.subr.bf16.mxu0 0
        %2086 = vmatpush1.bf16.xpose.msra.mxu0 0
        %2087 = vmatprep.subr.bf16.mxu0 0
        %2088 = vmatpush1.bf16.xpose.msra.mxu0 0
        %2089 = vmatprep.subr.bf16.mxu0 0
        %2090 = vmatpush1.bf16.xpose.msra.mxu0 0
        %2091 = vmatprep.subr.bf16.mxu0 0
        %2092 = vmatpush1.bf16.xpose.msra.mxu0 0
        %2093 = vmatprep.subr.bf16.mxu0 0
        %2094 = vmatpush1.bf16.xpose.msra.mxu0 0
        %2095 = vmatprep.subr.bf16.mxu0 0
        %2096 = vmatpush1.bf16.xpose.msra.mxu0 0
        %2097 = vmatprep.subr.bf16.mxu0 0
        %2098 = vmatpush1.bf16.xpose.msra.mxu0 0
        %2099 = vmatprep.subr.bf16.mxu0 0
        %2100 = vmatpush1.bf16.xpose.msra.mxu0 0
        %2101 = vmatprep.subr.bf16.mxu0 0
        %2102 = vmatpush1.bf16.xpose.msra.mxu0 0
        %2103 = vmatprep.subr.bf16.mxu0 0
        %2104 = vmatpush1.bf16.xpose.msra.mxu0 0
        %2105 = vmatprep.subr.bf16.mxu0 0
        %2106 = vmatpush1.bf16.xpose.msra.mxu0 0
        %2107 = vmatprep.subr.bf16.mxu0 0
        %2108 = vmatpush1.bf16.xpose.msra.mxu0 0
        %2109 = vmatprep.subr.bf16.mxu0 0
        %2110 = vmatpush1.bf16.xpose.msra.mxu0 0
        %2111 = vmatprep.subr.bf16.mxu0 0
        %2112 = vmatpush1.bf16.xpose.msra.mxu0 0
        %2113 = vmatprep.subr.bf16.mxu0 0
        %2114 = vmatpush1.bf16.xpose.msra.mxu0 0
        %2115 = vmatprep.mubr.bf16.mxu0 0
        %2116 = vmatmul.mubr.bf16.gmra.mrb[0].mxu0 %v2078
        %v2117 = vpop.f32.mrb[0].mxu0
        %v2118 = vadd.f32 %v504, %v2117
        %v2119 = vpop.f32.mrb[0].mxu0
        %v2120 = vpop.f32.mrb[0].mxu0
        %v2121 = vadd.f32 %v505, %v2120
        %v2122 = vpop.f32.mrb[0].mxu0
        %2123 = vdwg.mxu0
        %v2124 = vsel %vm896, %v2118, -inf
        %2125 = vmax.xlane.f32.xlu0 %v2124
        %v2126 = vpop.xlane.xlu0 %2125
        %v2127 = vsel %vm896, %v2121, -inf
        %2128 = vmax.xlane.f32.xlu0 %v2127
        %v2129 = vpop.xlane.xlu0 %2128
        %v2130 = vsub.f32 %v2118, %v2126
        %v2131 = vsub.f32 %v2121, %v2129
        %v2132 = vmul.f32 %v2130, 1.442695
        %v2133 = vpow.pop %v2132
        %v2134 = vmul.f32 %v2131, 1.442695
        %v2135 = vpow.pop %v2134
        %v2136 = vsel %vm896, %v2133, 0.0
        %2137 = vadd.xlane.f32.xlu0 %v2136
        %v2138 = vpop.xlane.xlu0 %2137
        %v2139 = vsel %vm896, %v2135, 0.0
        %2140 = vadd.xlane.f32.xlu0 %v2139
        %v2141 = vpop.xlane.xlu0 %2140
        %v2142 = vpack.c.bf16 %v2135, %v2133
        %v2144 = vsel %vm896, %v2142, 0
        %2146 = vmatprep.subr.bf16.mxu0 0
        %2147 = vmatpush1.bf16.msra.mxu0 %v2059
        %2148 = vmatprep.subr.bf16.mxu0 0
        %2149 = vmatpush1.bf16.msra.mxu0 0
        %2150 = vmatprep.subr.bf16.mxu0 0
        %2151 = vmatpush1.bf16.msra.mxu0 0
        %2152 = vmatprep.subr.bf16.mxu0 0
        %2153 = vmatpush1.bf16.msra.mxu0 0
        %2154 = vmatprep.subr.bf16.mxu0 0
        %2155 = vmatpush1.bf16.msra.mxu0 0
        %2156 = vmatprep.subr.bf16.mxu0 0
        %2157 = vmatpush1.bf16.msra.mxu0 0
        %2158 = vmatprep.subr.bf16.mxu0 0
        %2159 = vmatpush1.bf16.msra.mxu0 0
        %2160 = vmatprep.subr.bf16.mxu0 0
        %2161 = vmatpush1.bf16.msra.mxu0 0
        %2162 = vmatprep.subr.bf16.mxu0 0
        %2163 = vmatpush1.bf16.msra.mxu0 0
        %2164 = vmatprep.subr.bf16.mxu0 0
        %2165 = vmatpush1.bf16.msra.mxu0 0
        %2166 = vmatprep.subr.bf16.mxu0 0
        %2167 = vmatpush1.bf16.msra.mxu0 0
        %2168 = vmatprep.subr.bf16.mxu0 0
        %2169 = vmatpush1.bf16.msra.mxu0 0
        %2170 = vmatprep.subr.bf16.mxu0 0
        %2171 = vmatpush1.bf16.msra.mxu0 0
        %2172 = vmatprep.subr.bf16.mxu0 0
        %2173 = vmatpush1.bf16.msra.mxu0 0
        %2174 = vmatprep.subr.bf16.mxu0 0
        %2175 = vmatpush1.bf16.msra.mxu0 0
        %2176 = vmatprep.subr.bf16.mxu0 0
        %2177 = vmatpush1.bf16.msra.mxu0 0
        %2178 = vmatprep.mubr.bf16.mxu0 0
        %2179 = vmatmul.mubr.bf16.gmra.mrb[0].mxu0 %v2144
        %v2180 = vpop.f32.mrb[0].mxu0
        %v2181 = vadd.f32 0.0, %v2180
        %v2182 = vpop.f32.mrb[0].mxu0
        %v2183 = vpop.f32.mrb[0].mxu0
        %v2184 = vadd.f32 0.0, %v2183
        %v2185 = vpop.f32.mrb[0].mxu0
        %2186 = vdwg.mxu0
        %v2187 = vrcp.pop %v2138
        %v2188 = vrcp.pop %v2141
        %v2189 = vmul.f32 %v2181, %v2187
        %v2190 = vmul.f32 %v2184, %v2188
        %v2191 = vpack.c.bf16 %v2190, %v2189
        %2193 = vrot.lane.b32.xlu0 %v2031, 64
        %v2194 = vpop.permute.xlu0 %2193
        %2196 = vrot.lane.b32.xlu0 %v2058, 64
        %v2197 = vpop.permute.xlu0 %2196
        %v2199 = vsel %vm794, %v2194, 0
        %v2202 = vsel %vm794, %v2197, 0
        %2204 = vmatprep.subr.bf16.mxu0 0
        %2205 = vmatpush1.bf16.xpose.msra.mxu0 %v2202
        %2206 = vmatprep.subr.bf16.mxu0 0
        %2207 = vmatpush1.bf16.xpose.msra.mxu0 0
        %2208 = vmatprep.subr.bf16.mxu0 0
        %2209 = vmatpush1.bf16.xpose.msra.mxu0 0
        %2210 = vmatprep.subr.bf16.mxu0 0
        %2211 = vmatpush1.bf16.xpose.msra.mxu0 0
        %2212 = vmatprep.subr.bf16.mxu0 0
        %2213 = vmatpush1.bf16.xpose.msra.mxu0 0
        %2214 = vmatprep.subr.bf16.mxu0 0
        %2215 = vmatpush1.bf16.xpose.msra.mxu0 0
        %2216 = vmatprep.subr.bf16.mxu0 0
        %2217 = vmatpush1.bf16.xpose.msra.mxu0 0
        %2218 = vmatprep.subr.bf16.mxu0 0
        %2219 = vmatpush1.bf16.xpose.msra.mxu0 0
        %2220 = vmatprep.subr.bf16.mxu0 0
        %2221 = vmatpush1.bf16.xpose.msra.mxu0 0
        %2222 = vmatprep.subr.bf16.mxu0 0
        %2223 = vmatpush1.bf16.xpose.msra.mxu0 0
        %2224 = vmatprep.subr.bf16.mxu0 0
        %2225 = vmatpush1.bf16.xpose.msra.mxu0 0
        %2226 = vmatprep.subr.bf16.mxu0 0
        %2227 = vmatpush1.bf16.xpose.msra.mxu0 0
        %2228 = vmatprep.subr.bf16.mxu0 0
        %2229 = vmatpush1.bf16.xpose.msra.mxu0 0
        %2230 = vmatprep.subr.bf16.mxu0 0
        %2231 = vmatpush1.bf16.xpose.msra.mxu0 0
        %2232 = vmatprep.subr.bf16.mxu0 0
        %2233 = vmatpush1.bf16.xpose.msra.mxu0 0
        %2234 = vmatprep.subr.bf16.mxu0 0
        %2235 = vmatpush1.bf16.xpose.msra.mxu0 0
        %2236 = vmatprep.mubr.bf16.mxu0 0
        %2237 = vmatmul.mubr.bf16.gmra.mrb[0].mxu0 %v2199
        %v2238 = vpop.f32.mrb[0].mxu0
        %v2239 = vadd.f32 %v504, %v2238
        %v2240 = vpop.f32.mrb[0].mxu0
        %v2241 = vpop.f32.mrb[0].mxu0
        %v2242 = vadd.f32 %v505, %v2241
        %v2243 = vpop.f32.mrb[0].mxu0
        %2244 = vdwg.mxu0
        %v2245 = vsel %vm896, %v2239, -inf
        %2246 = vmax.xlane.f32.xlu0 %v2245
        %v2247 = vpop.xlane.xlu0 %2246
        %v2248 = vsel %vm896, %v2242, -inf
        %2249 = vmax.xlane.f32.xlu0 %v2248
        %v2250 = vpop.xlane.xlu0 %2249
        %v2251 = vsub.f32 %v2239, %v2247
        %v2252 = vsub.f32 %v2242, %v2250
        %v2253 = vmul.f32 %v2251, 1.442695
        %v2254 = vpow.pop %v2253
        %v2255 = vmul.f32 %v2252, 1.442695
        %v2256 = vpow.pop %v2255
        %v2257 = vsel %vm896, %v2254, 0.0
        %2258 = vadd.xlane.f32.xlu0 %v2257
        %v2259 = vpop.xlane.xlu0 %2258
        %v2260 = vsel %vm896, %v2256, 0.0
        %2261 = vadd.xlane.f32.xlu0 %v2260
        %v2262 = vpop.xlane.xlu0 %2261
        %v2263 = vpack.c.bf16 %v2256, %v2254
        %2265 = vrot.lane.b32.xlu0 %v2059, 64
        %v2266 = vpop.permute.xlu0 %2265
        %v2269 = vsel %vm896, %v2263, 0
        %2271 = vmatprep.subr.bf16.mxu0 0
        %2272 = vmatpush1.bf16.msra.mxu0 %v2266
        %2273 = vmatprep.subr.bf16.mxu0 0
        %2274 = vmatpush1.bf16.msra.mxu0 0
        %2275 = vmatprep.subr.bf16.mxu0 0
        %2276 = vmatpush1.bf16.msra.mxu0 0
        %2277 = vmatprep.subr.bf16.mxu0 0
        %2278 = vmatpush1.bf16.msra.mxu0 0
        %2279 = vmatprep.subr.bf16.mxu0 0
        %2280 = vmatpush1.bf16.msra.mxu0 0
        %2281 = vmatprep.subr.bf16.mxu0 0
        %2282 = vmatpush1.bf16.msra.mxu0 0
        %2283 = vmatprep.subr.bf16.mxu0 0
        %2284 = vmatpush1.bf16.msra.mxu0 0
        %2285 = vmatprep.subr.bf16.mxu0 0
        %2286 = vmatpush1.bf16.msra.mxu0 0
        %2287 = vmatprep.subr.bf16.mxu0 0
        %2288 = vmatpush1.bf16.msra.mxu0 0
        %2289 = vmatprep.subr.bf16.mxu0 0
        %2290 = vmatpush1.bf16.msra.mxu0 0
        %2291 = vmatprep.subr.bf16.mxu0 0
        %2292 = vmatpush1.bf16.msra.mxu0 0
        %2293 = vmatprep.subr.bf16.mxu0 0
        %2294 = vmatpush1.bf16.msra.mxu0 0
        %2295 = vmatprep.subr.bf16.mxu0 0
        %2296 = vmatpush1.bf16.msra.mxu0 0
        %2297 = vmatprep.subr.bf16.mxu0 0
        %2298 = vmatpush1.bf16.msra.mxu0 0
        %2299 = vmatprep.subr.bf16.mxu0 0
        %2300 = vmatpush1.bf16.msra.mxu0 0
        %2301 = vmatprep.subr.bf16.mxu0 0
        %2302 = vmatpush1.bf16.msra.mxu0 0
        %2303 = vmatprep.mubr.bf16.mxu0 0
        %2304 = vmatmul.mubr.bf16.gmra.mrb[0].mxu0 %v2269
        %v2305 = vpop.f32.mrb[0].mxu0
        %v2306 = vadd.f32 0.0, %v2305
        %v2307 = vpop.f32.mrb[0].mxu0
        %v2308 = vpop.f32.mrb[0].mxu0
        %v2309 = vadd.f32 0.0, %v2308
        %v2310 = vpop.f32.mrb[0].mxu0
        %2311 = vdwg.mxu0
        %v2312 = vrcp.pop %v2259
        %v2313 = vrcp.pop %v2262
        %v2314 = vmul.f32 %v2306, %v2312
        %v2315 = vmul.f32 %v2309, %v2313
        %v2316 = vpack.c.bf16 %v2315, %v2314
        %v2325 = vunpack.c.l.b16 %v2069
        %v2326 = vunpack.c.l.b16 %v2070
        %v2327 = vunpack.c.l.b16 %v2071
        %v2328 = vunpack.c.l.b16 %v2072
        %v2329 = vunpack.c.l.b16 %v2073
        %v2330 = vunpack.c.l.b16 %v2074
        %v2331 = vunpack.c.l.b16 %v2075
        %v2332 = vunpack.c.l.b16 %v2076
        %v2333 = vpack.c.b16 %v2326, %v2325
        %v2334 = vpack.c.b16 %v2328, %v2327
        %v2335 = vpack.c.b16 %v2330, %v2329
        %v2336 = vpack.c.b16 %v2332, %v2331
        %v2342 = vsel %vm794, %v2316, 0
        %2344 = vmatprep.subr.bf16.mxu0 0
        %2345 = vmatpush1.bf16.msra.mxu0 %v2333
        %2346 = vmatprep.subr.bf16.mxu0 0
        %2347 = vmatpush1.bf16.msra.mxu0 %v2334
        %2348 = vmatprep.subr.bf16.mxu0 0
        %2349 = vmatpush1.bf16.msra.mxu0 %v2335
        %2350 = vmatprep.subr.bf16.mxu0 0
        %2351 = vmatpush1.bf16.msra.mxu0 %v2336
        %2352 = vmatprep.subr.bf16.mxu0 0
        %2353 = vmatpush1.bf16.msra.mxu0 0
        %2354 = vmatprep.subr.bf16.mxu0 0
        %2355 = vmatpush1.bf16.msra.mxu0 0
        %2356 = vmatprep.subr.bf16.mxu0 0
        %2357 = vmatpush1.bf16.msra.mxu0 0
        %2358 = vmatprep.subr.bf16.mxu0 0
        %2359 = vmatpush1.bf16.msra.mxu0 0
        %2360 = vmatprep.subr.bf16.mxu0 0
        %2361 = vmatpush1.bf16.msra.mxu0 0
        %2362 = vmatprep.subr.bf16.mxu0 0
        %2363 = vmatpush1.bf16.msra.mxu0 0
        %2364 = vmatprep.subr.bf16.mxu0 0
        %2365 = vmatpush1.bf16.msra.mxu0 0
        %2366 = vmatprep.subr.bf16.mxu0 0
        %2367 = vmatpush1.bf16.msra.mxu0 0
        %2368 = vmatprep.subr.bf16.mxu0 0
        %2369 = vmatpush1.bf16.msra.mxu0 0
        %2370 = vmatprep.subr.bf16.mxu0 0
        %2371 = vmatpush1.bf16.msra.mxu0 0
        %2372 = vmatprep.subr.bf16.mxu0 0
        %2373 = vmatpush1.bf16.msra.mxu0 0
        %2374 = vmatprep.subr.bf16.mxu0 0
        %2375 = vmatpush1.bf16.msra.mxu0 0
        %2376 = vmatprep.mubr.bf16.mxu0 0
        %2377 = vmatmul.mubr.bf16.gmra.mrb[0].mxu0 %v2342
        %v2378 = vpop.f32.mrb[0].mxu0
        %v2379 = vadd.f32 0.0, %v2378
        %v2380 = vpop.f32.mrb[0].mxu0
        %v2381 = vpop.f32.mrb[0].mxu0
        %v2382 = vadd.f32 0.0, %v2381
        %v2383 = vpop.f32.mrb[0].mxu0
        %2384 = vdwg.mxu0
        %v2393 = vunpack.c.l.b16 %v2061
        %v2394 = vunpack.c.l.b16 %v2062
        %v2395 = vunpack.c.l.b16 %v2063
        %v2396 = vunpack.c.l.b16 %v2064
        %v2397 = vunpack.c.l.b16 %v2065
        %v2398 = vunpack.c.l.b16 %v2066
        %v2399 = vunpack.c.l.b16 %v2067
        %v2400 = vunpack.c.l.b16 %v2068
        %v2401 = vpack.c.b16 %v2394, %v2393
        %v2402 = vpack.c.b16 %v2396, %v2395
        %v2403 = vpack.c.b16 %v2398, %v2397
        %v2404 = vpack.c.b16 %v2400, %v2399
        %v2410 = vsel %vm794, %v2191, 0
        %2412 = vmatprep.subr.bf16.mxu0 0
        %2413 = vmatpush1.bf16.msra.mxu0 %v2401
        %2414 = vmatprep.subr.bf16.mxu0 0
        %2415 = vmatpush1.bf16.msra.mxu0 %v2402
        %2416 = vmatprep.subr.bf16.mxu0 0
        %2417 = vmatpush1.bf16.msra.mxu0 %v2403
        %2418 = vmatprep.subr.bf16.mxu0 0
        %2419 = vmatpush1.bf16.msra.mxu0 %v2404
        %2420 = vmatprep.subr.bf16.mxu0 0
        %2421 = vmatpush1.bf16.msra.mxu0 0
        %2422 = vmatprep.subr.bf16.mxu0 0
        %2423 = vmatpush1.bf16.msra.mxu0 0
        %2424 = vmatprep.subr.bf16.mxu0 0
        %2425 = vmatpush1.bf16.msra.mxu0 0
        %2426 = vmatprep.subr.bf16.mxu0 0
        %2427 = vmatpush1.bf16.msra.mxu0 0
        %2428 = vmatprep.subr.bf16.mxu0 0
        %2429 = vmatpush1.bf16.msra.mxu0 0
        %2430 = vmatprep.subr.bf16.mxu0 0
        %2431 = vmatpush1.bf16.msra.mxu0 0
        %2432 = vmatprep.subr.bf16.mxu0 0
        %2433 = vmatpush1.bf16.msra.mxu0 0
        %2434 = vmatprep.subr.bf16.mxu0 0
        %2435 = vmatpush1.bf16.msra.mxu0 0
        %2436 = vmatprep.subr.bf16.mxu0 0
        %2437 = vmatpush1.bf16.msra.mxu0 0
        %2438 = vmatprep.subr.bf16.mxu0 0
        %2439 = vmatpush1.bf16.msra.mxu0 0
        %2440 = vmatprep.subr.bf16.mxu0 0
        %2441 = vmatpush1.bf16.msra.mxu0 0
        %2442 = vmatprep.subr.bf16.mxu0 0
        %2443 = vmatpush1.bf16.msra.mxu0 0
        %2444 = vmatprep.mubr.bf16.mxu0 0
        %2445 = vmatmul.mubr.bf16.gmra.mrb[0].mxu0 %v2410
        %v2446 = vpop.f32.mrb[0].mxu0
        %v2447 = vadd.f32 %v2379, %v2446
        %v2448 = vpop.f32.mrb[0].mxu0
        %v2449 = vpop.f32.mrb[0].mxu0
        %v2450 = vadd.f32 %v2382, %v2449
        %v2451 = vpop.f32.mrb[0].mxu0
        %2452 = vdwg.mxu0
        %v2453 = vadd.f32 %v1733, %v2447
        %v2454 = vadd.f32 %v1734, %v2450
        %s2455 = scalar_lea.vmem %s7, 1
        %v2456 = vld [vmem:[%s2455] sm:$0x1]
        %v2457 = vmul.f32 %v2453, %v2453
        %v2458 = vmul.f32 %v2454, %v2454
        %2459 = vadd.xlane.f32.xlu0 %v2457
        %v2460 = vpop.xlane.xlu0 %2459
        %2461 = vadd.xlane.f32.xlu0 %v2458
        %v2462 = vpop.xlane.xlu0 %2461
        %v2463 = vmul.f32 %v2460, %v513
        %v2464 = vmul.f32 %v2462, %v513
        %v2465 = vadd.f32 %v2463, 1e-05
        %v2466 = vadd.f32 %v2464, 1e-05
        %v2467 = vrsqrt.pop %v2465
        %v2468 = vrsqrt.pop %v2466
        %v2469 = vmul.f32 %v2453, %v2467
        %v2470 = vmul.f32 %v2454, %v2468
        %v2472 = vlaneseq
        %v2473 = vshrl.u32 %v2472, 7
        %v2474 = vsub.s32 0, %v2473
        %v2475 = vrot.slane %v2456, %v2474
        %v2477 = vmul.f32 %v2469, %v2475
        %v2478 = vmul.f32 %v2470, %v2475
        %v2479 = vpack.c.bf16 %v2478, %v2477
        %s2480 = scalar_lea.vmem [#allocation13], 128
        %v2481 = vld [vmem:[%s2480] sm:$0xff]
        %v2482 = vld [vmem:[%s2480 + $0x8] sm:$0xff]
        %v2483 = vld [vmem:[%s2480 + $0x10] sm:$0xff]
        %v2484 = vld [vmem:[%s2480 + $0x18] sm:$0xff]
        %v2485 = vld [vmem:[%s2480 + $0x20] sm:$0xff]
        %v2486 = vld [vmem:[%s2480 + $0x28] sm:$0xff]
        %v2487 = vld [vmem:[%s2480 + $0x30] sm:$0xff]
        %v2488 = vld [vmem:[%s2480 + $0x38] sm:$0xff]
        %v2489 = vld [vmem:[%s2480 + $0x40] sm:$0xff]
        %v2490 = vld [vmem:[%s2480 + $0x48] sm:$0xff]
        %v2491 = vld [vmem:[%s2480 + $0x50] sm:$0xff]
        %v2492 = vld [vmem:[%s2480 + $0x58] sm:$0xff]
        %v2493 = vld [vmem:[%s2480 + $0x60] sm:$0xff]
        %v2494 = vld [vmem:[%s2480 + $0x68] sm:$0xff]
        %v2495 = vld [vmem:[%s2480 + $0x70] sm:$0xff]
        %v2496 = vld [vmem:[%s2480 + $0x78] sm:$0xff]
        %v2513 = vunpack.c.l.b16 %v2481
        %v2514 = vunpack.c.h.b16 %v2481
        %v2515 = vunpack.c.l.b16 %v2482
        %v2516 = vunpack.c.h.b16 %v2482
        %v2517 = vunpack.c.l.b16 %v2483
        %v2518 = vunpack.c.h.b16 %v2483
        %v2519 = vunpack.c.l.b16 %v2484
        %v2520 = vunpack.c.h.b16 %v2484
        %v2521 = vunpack.c.l.b16 %v2485
        %v2522 = vunpack.c.h.b16 %v2485
        %v2523 = vunpack.c.l.b16 %v2486
        %v2524 = vunpack.c.h.b16 %v2486
        %v2525 = vunpack.c.l.b16 %v2487
        %v2526 = vunpack.c.h.b16 %v2487
        %v2527 = vunpack.c.l.b16 %v2488
        %v2528 = vunpack.c.h.b16 %v2488
        %v2529 = vunpack.c.l.b16 %v2489
        %v2530 = vunpack.c.h.b16 %v2489
        %v2531 = vunpack.c.l.b16 %v2490
        %v2532 = vunpack.c.h.b16 %v2490
        %v2533 = vunpack.c.l.b16 %v2491
        %v2534 = vunpack.c.h.b16 %v2491
        %v2535 = vunpack.c.l.b16 %v2492
        %v2536 = vunpack.c.h.b16 %v2492
        %v2537 = vunpack.c.l.b16 %v2493
        %v2538 = vunpack.c.h.b16 %v2493
        %v2539 = vunpack.c.l.b16 %v2494
        %v2540 = vunpack.c.h.b16 %v2494
        %v2541 = vunpack.c.l.b16 %v2495
        %v2542 = vunpack.c.h.b16 %v2495
        %v2543 = vunpack.c.l.b16 %v2496
        %v2544 = vunpack.c.h.b16 %v2496
        %v2545 = vpack.c.b16 %v2515, %v2513
        %v2546 = vpack.c.b16 %v2516, %v2514
        %v2547 = vpack.c.b16 %v2519, %v2517
        %v2548 = vpack.c.b16 %v2520, %v2518
        %v2549 = vpack.c.b16 %v2523, %v2521
        %v2550 = vpack.c.b16 %v2524, %v2522
        %v2551 = vpack.c.b16 %v2527, %v2525
        %v2552 = vpack.c.b16 %v2528, %v2526
        %v2553 = vpack.c.b16 %v2531, %v2529
        %v2554 = vpack.c.b16 %v2532, %v2530
        %v2555 = vpack.c.b16 %v2535, %v2533
        %v2556 = vpack.c.b16 %v2536, %v2534
        %v2557 = vpack.c.b16 %v2539, %v2537
        %v2558 = vpack.c.b16 %v2540, %v2538
        %v2559 = vpack.c.b16 %v2543, %v2541
        %v2560 = vpack.c.b16 %v2544, %v2542
        %2577 = vmatprep.subr.bf16.mxu0 %v2546
        %2578 = vmatpush1.bf16.msra.mxu0 %v2545
        %2579 = vmatprep.subr.bf16.mxu0 %v2548
        %2580 = vmatpush1.bf16.msra.mxu0 %v2547
        %2581 = vmatprep.subr.bf16.mxu0 %v2550
        %2582 = vmatpush1.bf16.msra.mxu0 %v2549
        %2583 = vmatprep.subr.bf16.mxu0 %v2552
        %2584 = vmatpush1.bf16.msra.mxu0 %v2551
        %2585 = vmatprep.subr.bf16.mxu0 %v2554
        %2586 = vmatpush1.bf16.msra.mxu0 %v2553
        %2587 = vmatprep.subr.bf16.mxu0 %v2556
        %2588 = vmatpush1.bf16.msra.mxu0 %v2555
        %2589 = vmatprep.subr.bf16.mxu0 %v2558
        %2590 = vmatpush1.bf16.msra.mxu0 %v2557
        %2591 = vmatprep.subr.bf16.mxu0 %v2560
        %2592 = vmatpush1.bf16.msra.mxu0 %v2559
        %2593 = vmatprep.subr.bf16.mxu0 0
        %2594 = vmatpush1.bf16.msra.mxu0 0
        %2595 = vmatprep.subr.bf16.mxu0 0
        %2596 = vmatpush1.bf16.msra.mxu0 0
        %2597 = vmatprep.subr.bf16.mxu0 0
        %2598 = vmatpush1.bf16.msra.mxu0 0
        %2599 = vmatprep.subr.bf16.mxu0 0
        %2600 = vmatpush1.bf16.msra.mxu0 0
        %2601 = vmatprep.subr.bf16.mxu0 0
        %2602 = vmatpush1.bf16.msra.mxu0 0
        %2603 = vmatprep.subr.bf16.mxu0 0
        %2604 = vmatpush1.bf16.msra.mxu0 0
        %2605 = vmatprep.subr.bf16.mxu0 0
        %2606 = vmatpush1.bf16.msra.mxu0 0
        %2607 = vmatprep.subr.bf16.mxu0 0
        %2608 = vmatpush1.bf16.msra.mxu0 0
        %2609 = vmatprep.mubr.bf16.mxu0 0
        %2610 = vmatmul.mubr.bf16.gmra.mrb[0].mxu0 %v2479
        %v2611 = vpop.f32.mrb[0].mxu0
        %v2612 = vadd.f32 0.0, %v2611
        %v2613 = vpop.f32.mrb[0].mxu0
        %v2614 = vadd.f32 0.0, %v2613
        %v2615 = vpop.f32.mrb[0].mxu0
        %v2616 = vadd.f32 0.0, %v2615
        %v2617 = vpop.f32.mrb[0].mxu0
        %v2618 = vadd.f32 0.0, %v2617
        %2619 = vdwg.mxu0
        %s2620 = scalar_lea.vmem [#allocation15], 128
        %v2621 = vld [vmem:[%s2620] sm:$0xff]
        %v2622 = vld [vmem:[%s2620 + $0x8] sm:$0xff]
        %v2623 = vld [vmem:[%s2620 + $0x10] sm:$0xff]
        %v2624 = vld [vmem:[%s2620 + $0x18] sm:$0xff]
        %v2625 = vld [vmem:[%s2620 + $0x20] sm:$0xff]
        %v2626 = vld [vmem:[%s2620 + $0x28] sm:$0xff]
        %v2627 = vld [vmem:[%s2620 + $0x30] sm:$0xff]
        %v2628 = vld [vmem:[%s2620 + $0x38] sm:$0xff]
        %v2629 = vld [vmem:[%s2620 + $0x40] sm:$0xff]
        %v2630 = vld [vmem:[%s2620 + $0x48] sm:$0xff]
        %v2631 = vld [vmem:[%s2620 + $0x50] sm:$0xff]
        %v2632 = vld [vmem:[%s2620 + $0x58] sm:$0xff]
        %v2633 = vld [vmem:[%s2620 + $0x60] sm:$0xff]
        %v2634 = vld [vmem:[%s2620 + $0x68] sm:$0xff]
        %v2635 = vld [vmem:[%s2620 + $0x70] sm:$0xff]
        %v2636 = vld [vmem:[%s2620 + $0x78] sm:$0xff]
        %v2653 = vunpack.c.l.b16 %v2621
        %v2654 = vunpack.c.h.b16 %v2621
        %v2655 = vunpack.c.l.b16 %v2622
        %v2656 = vunpack.c.h.b16 %v2622
        %v2657 = vunpack.c.l.b16 %v2623
        %v2658 = vunpack.c.h.b16 %v2623
        %v2659 = vunpack.c.l.b16 %v2624
        %v2660 = vunpack.c.h.b16 %v2624
        %v2661 = vunpack.c.l.b16 %v2625
        %v2662 = vunpack.c.h.b16 %v2625
        %v2663 = vunpack.c.l.b16 %v2626
        %v2664 = vunpack.c.h.b16 %v2626
        %v2665 = vunpack.c.l.b16 %v2627
        %v2666 = vunpack.c.h.b16 %v2627
        %v2667 = vunpack.c.l.b16 %v2628
        %v2668 = vunpack.c.h.b16 %v2628
        %v2669 = vunpack.c.l.b16 %v2629
        %v2670 = vunpack.c.h.b16 %v2629
        %v2671 = vunpack.c.l.b16 %v2630
        %v2672 = vunpack.c.h.b16 %v2630
        %v2673 = vunpack.c.l.b16 %v2631
        %v2674 = vunpack.c.h.b16 %v2631
        %v2675 = vunpack.c.l.b16 %v2632
        %v2676 = vunpack.c.h.b16 %v2632
        %v2677 = vunpack.c.l.b16 %v2633
        %v2678 = vunpack.c.h.b16 %v2633
        %v2679 = vunpack.c.l.b16 %v2634
        %v2680 = vunpack.c.h.b16 %v2634
        %v2681 = vunpack.c.l.b16 %v2635
        %v2682 = vunpack.c.h.b16 %v2635
        %v2683 = vunpack.c.l.b16 %v2636
        %v2684 = vunpack.c.h.b16 %v2636
        %v2685 = vpack.c.b16 %v2655, %v2653
        %v2686 = vpack.c.b16 %v2656, %v2654
        %v2687 = vpack.c.b16 %v2659, %v2657
        %v2688 = vpack.c.b16 %v2660, %v2658
        %v2689 = vpack.c.b16 %v2663, %v2661
        %v2690 = vpack.c.b16 %v2664, %v2662
        %v2691 = vpack.c.b16 %v2667, %v2665
        %v2692 = vpack.c.b16 %v2668, %v2666
        %v2693 = vpack.c.b16 %v2671, %v2669
        %v2694 = vpack.c.b16 %v2672, %v2670
        %v2695 = vpack.c.b16 %v2675, %v2673
        %v2696 = vpack.c.b16 %v2676, %v2674
        %v2697 = vpack.c.b16 %v2679, %v2677
        %v2698 = vpack.c.b16 %v2680, %v2678
        %v2699 = vpack.c.b16 %v2683, %v2681
        %v2700 = vpack.c.b16 %v2684, %v2682
        %2717 = vmatprep.subr.bf16.mxu0 %v2686
        %2718 = vmatpush1.bf16.msra.mxu0 %v2685
        %2719 = vmatprep.subr.bf16.mxu0 %v2688
        %2720 = vmatpush1.bf16.msra.mxu0 %v2687
        %2721 = vmatprep.subr.bf16.mxu0 %v2690
        %2722 = vmatpush1.bf16.msra.mxu0 %v2689
        %2723 = vmatprep.subr.bf16.mxu0 %v2692
        %2724 = vmatpush1.bf16.msra.mxu0 %v2691
        %2725 = vmatprep.subr.bf16.mxu0 %v2694
        %2726 = vmatpush1.bf16.msra.mxu0 %v2693
        %2727 = vmatprep.subr.bf16.mxu0 %v2696
        %2728 = vmatpush1.bf16.msra.mxu0 %v2695
        %2729 = vmatprep.subr.bf16.mxu0 %v2698
        %2730 = vmatpush1.bf16.msra.mxu0 %v2697
        %2731 = vmatprep.subr.bf16.mxu0 %v2700
        %2732 = vmatpush1.bf16.msra.mxu0 %v2699
        %2733 = vmatprep.subr.bf16.mxu0 0
        %2734 = vmatpush1.bf16.msra.mxu0 0
        %2735 = vmatprep.subr.bf16.mxu0 0
        %2736 = vmatpush1.bf16.msra.mxu0 0
        %2737 = vmatprep.subr.bf16.mxu0 0
        %2738 = vmatpush1.bf16.msra.mxu0 0
        %2739 = vmatprep.subr.bf16.mxu0 0
        %2740 = vmatpush1.bf16.msra.mxu0 0
        %2741 = vmatprep.subr.bf16.mxu0 0
        %2742 = vmatpush1.bf16.msra.mxu0 0
        %2743 = vmatprep.subr.bf16.mxu0 0
        %2744 = vmatpush1.bf16.msra.mxu0 0
        %2745 = vmatprep.subr.bf16.mxu0 0
        %2746 = vmatpush1.bf16.msra.mxu0 0
        %2747 = vmatprep.subr.bf16.mxu0 0
        %2748 = vmatpush1.bf16.msra.mxu0 0
        %2749 = vmatprep.mubr.bf16.mxu0 0
        %2750 = vmatmul.mubr.bf16.gmra.mrb[0].mxu0 %v2479
        %v2751 = vpop.f32.mrb[0].mxu0
        %v2752 = vadd.f32 0.0, %v2751
        %v2753 = vpop.f32.mrb[0].mxu0
        %v2754 = vadd.f32 0.0, %v2753
        %v2755 = vpop.f32.mrb[0].mxu0
        %v2756 = vadd.f32 0.0, %v2755
        %v2757 = vpop.f32.mrb[0].mxu0
        %v2758 = vadd.f32 0.0, %v2757
        %2759 = vdwg.mxu0
        %v2760 = vxor.u32 %v2612, 2147483648
        %v2761 = vxor.u32 %v2614, 2147483648
        %v2762 = vxor.u32 %v2616, 2147483648
        %v2763 = vxor.u32 %v2618, 2147483648
        %v2764 = vmul.f32 %v2760, 1.442695
        %v2765 = vpow.pop %v2764
        %v2766 = vmul.f32 %v2761, 1.442695
        %v2767 = vpow.pop %v2766
        %v2768 = vmul.f32 %v2762, 1.442695
        %v2769 = vpow.pop %v2768
        %v2770 = vmul.f32 %v2763, 1.442695
        %v2771 = vpow.pop %v2770
        %v2772 = vadd.f32 %v2765, 1.0
        %v2773 = vadd.f32 %v2767, 1.0
        %v2774 = vadd.f32 %v2769, 1.0
        %v2775 = vadd.f32 %v2771, 1.0
        %v2776 = vrcp.pop %v2772
        %v2777 = vmul.f32 1.0, %v2776
        %v2778 = vrcp.pop %v2773
        %v2779 = vmul.f32 1.0, %v2778
        %v2780 = vrcp.pop %v2774
        %v2781 = vmul.f32 1.0, %v2780
        %v2782 = vrcp.pop %v2775
        %v2783 = vmul.f32 1.0, %v2782
        %v2784 = vmul.f32 %v2612, %v2777
        %v2785 = vmul.f32 %v2614, %v2779
        %v2786 = vmul.f32 %v2616, %v2781
        %v2787 = vmul.f32 %v2618, %v2783
        %v2788 = vmul.f32 %v2784, %v2752
        %v2789 = vmul.f32 %v2785, %v2754
        %v2790 = vmul.f32 %v2786, %v2756
        %v2791 = vmul.f32 %v2787, %v2758
        %v2792 = vpack.c.bf16 %v2790, %v2788
        %v2793 = vpack.c.bf16 %v2791, %v2789
        %s2794 = scalar_lea.vmem [#allocation16], 128
        %v2795 = vld [vmem:[%s2794] sm:$0xf]
        %v2796 = vld [vmem:[%s2794 + $0x4] sm:$0xf]
        %v2797 = vld [vmem:[%s2794 + $0x8] sm:$0xf]
        %v2798 = vld [vmem:[%s2794 + $0xc] sm:$0xf]
        %v2799 = vld [vmem:[%s2794 + $0x10] sm:$0xf]
        %v2800 = vld [vmem:[%s2794 + $0x14] sm:$0xf]
        %v2801 = vld [vmem:[%s2794 + $0x18] sm:$0xf]
        %v2802 = vld [vmem:[%s2794 + $0x1c] sm:$0xf]
        %v2803 = vld [vmem:[%s2794 + $0x20] sm:$0xf]
        %v2804 = vld [vmem:[%s2794 + $0x24] sm:$0xf]
        %v2805 = vld [vmem:[%s2794 + $0x28] sm:$0xf]
        %v2806 = vld [vmem:[%s2794 + $0x2c] sm:$0xf]
        %v2807 = vld [vmem:[%s2794 + $0x30] sm:$0xf]
        %v2808 = vld [vmem:[%s2794 + $0x34] sm:$0xf]
        %v2809 = vld [vmem:[%s2794 + $0x38] sm:$0xf]
        %v2810 = vld [vmem:[%s2794 + $0x3c] sm:$0xf]
        %v2811 = vld [vmem:[%s2794 + $0x40] sm:$0xf]
        %v2812 = vld [vmem:[%s2794 + $0x44] sm:$0xf]
        %v2813 = vld [vmem:[%s2794 + $0x48] sm:$0xf]
        %v2814 = vld [vmem:[%s2794 + $0x4c] sm:$0xf]
        %v2815 = vld [vmem:[%s2794 + $0x50] sm:$0xf]
        %v2816 = vld [vmem:[%s2794 + $0x54] sm:$0xf]
        %v2817 = vld [vmem:[%s2794 + $0x58] sm:$0xf]
        %v2818 = vld [vmem:[%s2794 + $0x5c] sm:$0xf]
        %v2819 = vld [vmem:[%s2794 + $0x60] sm:$0xf]
        %v2820 = vld [vmem:[%s2794 + $0x64] sm:$0xf]
        %v2821 = vld [vmem:[%s2794 + $0x68] sm:$0xf]
        %v2822 = vld [vmem:[%s2794 + $0x6c] sm:$0xf]
        %v2823 = vld [vmem:[%s2794 + $0x70] sm:$0xf]
        %v2824 = vld [vmem:[%s2794 + $0x74] sm:$0xf]
        %v2825 = vld [vmem:[%s2794 + $0x78] sm:$0xf]
        %v2826 = vld [vmem:[%s2794 + $0x7c] sm:$0xf]
        %v2859 = vunpack.c.l.b16 %v2795
        %v2860 = vunpack.c.l.b16 %v2796
        %v2861 = vunpack.c.l.b16 %v2797
        %v2862 = vunpack.c.l.b16 %v2798
        %v2863 = vunpack.c.l.b16 %v2799
        %v2864 = vunpack.c.l.b16 %v2800
        %v2865 = vunpack.c.l.b16 %v2801
        %v2866 = vunpack.c.l.b16 %v2802
        %v2867 = vunpack.c.l.b16 %v2803
        %v2868 = vunpack.c.l.b16 %v2804
        %v2869 = vunpack.c.l.b16 %v2805
        %v2870 = vunpack.c.l.b16 %v2806
        %v2871 = vunpack.c.l.b16 %v2807
        %v2872 = vunpack.c.l.b16 %v2808
        %v2873 = vunpack.c.l.b16 %v2809
        %v2874 = vunpack.c.l.b16 %v2810
        %v2875 = vunpack.c.l.b16 %v2811
        %v2876 = vunpack.c.l.b16 %v2812
        %v2877 = vunpack.c.l.b16 %v2813
        %v2878 = vunpack.c.l.b16 %v2814
        %v2879 = vunpack.c.l.b16 %v2815
        %v2880 = vunpack.c.l.b16 %v2816
        %v2881 = vunpack.c.l.b16 %v2817
        %v2882 = vunpack.c.l.b16 %v2818
        %v2883 = vunpack.c.l.b16 %v2819
        %v2884 = vunpack.c.l.b16 %v2820
        %v2885 = vunpack.c.l.b16 %v2821
        %v2886 = vunpack.c.l.b16 %v2822
        %v2887 = vunpack.c.l.b16 %v2823
        %v2888 = vunpack.c.l.b16 %v2824
        %v2889 = vunpack.c.l.b16 %v2825
        %v2890 = vunpack.c.l.b16 %v2826
        %v2891 = vpack.c.b16 %v2860, %v2859
        %v2892 = vpack.c.b16 %v2862, %v2861
        %v2893 = vpack.c.b16 %v2864, %v2863
        %v2894 = vpack.c.b16 %v2866, %v2865
        %v2895 = vpack.c.b16 %v2868, %v2867
        %v2896 = vpack.c.b16 %v2870, %v2869
        %v2897 = vpack.c.b16 %v2872, %v2871
        %v2898 = vpack.c.b16 %v2874, %v2873
        %v2899 = vpack.c.b16 %v2876, %v2875
        %v2900 = vpack.c.b16 %v2878, %v2877
        %v2901 = vpack.c.b16 %v2880, %v2879
        %v2902 = vpack.c.b16 %v2882, %v2881
        %v2903 = vpack.c.b16 %v2884, %v2883
        %v2904 = vpack.c.b16 %v2886, %v2885
        %v2905 = vpack.c.b16 %v2888, %v2887
        %v2906 = vpack.c.b16 %v2890, %v2889
        %2923 = vmatprep.subr.bf16.mxu0 0
        %2924 = vmatpush1.bf16.msra.mxu0 %v2891
        %2925 = vmatprep.subr.bf16.mxu0 0
        %2926 = vmatpush1.bf16.msra.mxu0 %v2892
        %2927 = vmatprep.subr.bf16.mxu0 0
        %2928 = vmatpush1.bf16.msra.mxu0 %v2893
        %2929 = vmatprep.subr.bf16.mxu0 0
        %2930 = vmatpush1.bf16.msra.mxu0 %v2894
        %2931 = vmatprep.subr.bf16.mxu0 0
        %2932 = vmatpush1.bf16.msra.mxu0 %v2895
        %2933 = vmatprep.subr.bf16.mxu0 0
        %2934 = vmatpush1.bf16.msra.mxu0 %v2896
        %2935 = vmatprep.subr.bf16.mxu0 0
        %2936 = vmatpush1.bf16.msra.mxu0 %v2897
        %2937 = vmatprep.subr.bf16.mxu0 0
        %2938 = vmatpush1.bf16.msra.mxu0 %v2898
        %2939 = vmatprep.subr.bf16.mxu0 0
        %2940 = vmatpush1.bf16.msra.mxu0 %v2899
        %2941 = vmatprep.subr.bf16.mxu0 0
        %2942 = vmatpush1.bf16.msra.mxu0 %v2900
        %2943 = vmatprep.subr.bf16.mxu0 0
        %2944 = vmatpush1.bf16.msra.mxu0 %v2901
        %2945 = vmatprep.subr.bf16.mxu0 0
        %2946 = vmatpush1.bf16.msra.mxu0 %v2902
        %2947 = vmatprep.subr.bf16.mxu0 0
        %2948 = vmatpush1.bf16.msra.mxu0 %v2903
        %2949 = vmatprep.subr.bf16.mxu0 0
        %2950 = vmatpush1.bf16.msra.mxu0 %v2904
        %2951 = vmatprep.subr.bf16.mxu0 0
        %2952 = vmatpush1.bf16.msra.mxu0 %v2905
        %2953 = vmatprep.subr.bf16.mxu0 0
        %2954 = vmatpush1.bf16.msra.mxu0 %v2906
        %2955 = vmatprep.mubr.bf16.mxu0 %v2793
        %2956 = vmatmul.mubr.bf16.gmra.mrb[0].mxu0 %v2792
        %v2957 = vpop.f32.mrb[0].mxu0
        %v2958 = vadd.f32 0.0, %v2957
        %v2959 = vpop.f32.mrb[0].mxu0
        %v2960 = vpop.f32.mrb[0].mxu0
        %v2961 = vadd.f32 0.0, %v2960
        %v2962 = vpop.f32.mrb[0].mxu0
        %2963 = vdwg.mxu0
        %v2964 = vadd.f32 %v2453, %v2958
        %v2965 = vadd.f32 %v2454, %v2961
        %2966 = vst [vmem:[%s484] sm:$0xff] %v2964
        %2967 = vst [vmem:[%s484 + $0x8] sm:$0xff] %v2965
        %s2968 = sand.u32 %s259, 1
        %s2969 = scalar_lea.sflag [#allocation6], %s2968
        %s2970 = sand.u32 %s259, 1
        %s2971 = smul.addr %s2970, 16
        %s2972 = scalar_lea.vmem [#allocation18], %s2971
        // Predicated region
        $region93: #{tpu_custom_call.1} parent=59 // pred_check
          %p2973 = pneg %p269
        $region94: #{tpu_custom_call.1} parent=59 // pred_check_branch
          %2975 = sbr.rel (%p2973) target = $region96
        $region95: #{tpu_custom_call.1} parent=59 // pred_region
          %s2977 = ssub.s32 256, 256
          %2978 = vsyncadd %s2969, %s2977
          %s2979 = smul.addr %s36, 2
          %s2980 = smul.addr %s2979, 128
          %s2981 = scalar_lea.hbm %s11, %s2980
          %s2982 = sshll.u32 %s2972, 4
          %s2983 = int_to_ptr.vmem [resolvable:$true] %s2982
          %2988 = dma.vmem_to_hbm [thread:$0]  %s2983, 256, %s2981, %s2969, 128, 128, 8
        $region96: #{tpu_custom_call.1} parent=59 // pred_fallthru
          _
      $region60: #{tpu_custom_call.1} parent=5 // pred_fallthru
        _
      %p2989 = scmp.le.s32.totalorder 2, %s31
      // Predicated region
      $region97: #{tpu_custom_call.1} parent=5 // pred_check
        %p2990 = pneg %p2989
      $region98: #{tpu_custom_call.1} parent=5 // pred_check_branch
        %2992 = sbr.rel (%p2990) target = $region100
      $region99: #{tpu_custom_call.1} parent=5 // pred_region
        %s2993 = ssub.s32 %s31, 2
        // Predicated region
        $region101: #{tpu_custom_call.1} parent=99 // pred_check
          %p2994 = pneg %p275
        $region102: #{tpu_custom_call.1} parent=99 // pred_check_branch
          %2996 = sbr.rel (%p2994) target = $region104
        $region103: #{tpu_custom_call.1} parent=99 // pred_region
          %s2997 = sand.u32 %s260, 1
          %s2998 = scalar_lea.sflag [#allocation6], %s2997
          %s2999 = sand.u32 %s260, 1
          %s3000 = smul.addr %s2999, 16
          %s3001 = scalar_lea.vmem [#allocation18], %s3000
          %3002 = dma.done %s2998, 256
        $region104: #{tpu_custom_call.1} parent=99 // pred_fallthru
          _
      $region100: #{tpu_custom_call.1} parent=5 // pred_fallthru
        _
    $region6: #{tpu_custom_call.1} parent=1 // loop_footer
      %s35 = sadd.s32 1, %s31
    $region7: #{tpu_custom_call.1} parent=1 // loop_footer_branch
      %30 = sbr.rel target = $region3
    $region8: #{tpu_custom_call.1} parent=1 // loop_exit
      _
    %3003 = vsyncpa [#allocation5], 1
    %s3004 = scalar_lea.sflag [#allocation5], 1
    %3005 = vsyncpa %s3004, 1
    %3006 = vsyncpa [#allocation8], 1
    %3007 = vsyncpa [#allocation11], 1
    %3008 = vsyncpa [#allocation14], 1
    %3009 = vsyncpa [#allocation17], 1
    %3010 = vsyncpa [#allocation6], 1
    %s3011 = scalar_lea.sflag [#allocation6], 1
    %3012 = vsyncpa %s3011, 1

</llo_original>
